<compile_context>
chip_gen: v5e
topology: v5e:2x2
jax: 0.10.0
libtpu: 0.0.40
codegen_flags: <defaults>
</compile_context>

<pallas_src>
import math

import jax
import jax.numpy as jnp
import numpy as np
from jax import lax
from jax.experimental import pallas as pl
from jax.experimental.pallas import tpu as pltpu


# ---------------- static model configuration ----------------
EMOTION_DIM = 25          # cfg.emotion_dim
HIDDEN_DIM = 128          # cfg.hidden_dim (VectorQuantizer(200, 128) is hard-coded)
EMB_DIMS = (128, 128)     # cfg.emb_dims (tanh MLP)
COEFF_3DMM_DIM = 58       # cfg.coeff_3dmm_dim
WINDOW = 8                # cfg.window_size (small & static -> loops fully unrolled)
N_E = 200                 # VectorQuantizer n_e
BETA = 0.25               # VectorQuantizer beta
BP_TILE_CAP = 256         # max rows of the window-batch axis per grid step


def _sigmoid(x):
    # 0.5*(tanh(0.5x)+1) == sigmoid(x): one EUP op instead of exp + reciprocal.
    return 0.5 * (jnp.tanh(0.5 * x) + 1.0)


def _lstm_cell(x_gates, h, c, wh):
    """One LSTMCell step given the already-projected input contribution (gate order i,f,g,o)."""
    H = HIDDEN_DIM
    gates = x_gates + jnp.dot(h, wh, preferred_element_type=jnp.float32)
    i = _sigmoid(gates[:, 0 * H:1 * H])
    f = _sigmoid(gates[:, 1 * H:2 * H])
    g = jnp.tanh(gates[:, 2 * H:3 * H])
    o = _sigmoid(gates[:, 3 * H:4 * H])
    c_new = f * c + i * g
    h_new = o * jnp.tanh(c_new)
    return h_new, c_new


# ---------------- the fused kernel (one grid step = one tile of B' rows) ----------------
def fused_kernel(x_ref,
                 enc_wx_ref, enc_wh_ref, enc_b_ref,
                 embt_ref, e_sq_ref,
                 wz_ref, bz_ref,
                 wdx_h_ref, wdx_y_ref, wdh_ref, bd_ref,
                 w1_ref, b1_ref, w2_ref, b2_ref,
                 wo_ref, bo_ref,
                 wc1_ref, bc1_ref, wc2_ref, bc2_ref,
                 y_ref, c3d_ref, hx_ref, enc_ref, idx_ref):
    W_, B, E = x_ref.shape
    H = HIDDEN_DIM

    # -------- encoder LSTM over the window --------
    # Batched input projection: one (W*B, E) @ (E, 4H) matmul instead of W tiny K=25
    # matmuls sitting on the serial recurrence chain (bias folded in once).
    xg_all = (jnp.dot(x_ref[...].reshape(W_ * B, E), enc_wx_ref[...],
                      preferred_element_type=jnp.float32) + enc_b_ref[...])
    h = jnp.zeros((B, H), jnp.float32)
    c = jnp.zeros((B, H), jnp.float32)
    for t in range(W_):                                       # static window -> unrolled
        h, c = _lstm_cell(xg_all[t * B:(t + 1) * B], h, c, enc_wh_ref[...])
    hx_ref[...] = h                                           # last hidden state (B, H)

    # -------- vector quantizer: nearest code -> one-hot --------
    # (batch-global loss / perplexity are finished in the wrapper so tiles stay independent)
    z_sq = jnp.sum(h * h, axis=1, keepdims=True)                         # (B, 1)
    d = z_sq + e_sq_ref[...] - 2.0 * jnp.dot(h, embt_ref[...],
                                             preferred_element_type=jnp.float32)
    d_min = jnp.min(d, axis=1, keepdims=True)
    col_f = lax.broadcasted_iota(jnp.int32, d.shape, 1).astype(jnp.float32)
    # first arg-min along codes (same tie-breaking as torch.argmin)
    idx_f = jnp.min(jnp.where(d <= d_min, col_f, float(N_E)), axis=1, keepdims=True)
    enc_ref[...] = (col_f == idx_f).astype(jnp.float32)                  # one-hot (B, N_E)
    idx_ref[...] = idx_f.astype(jnp.int32)

    # -------- decoder: fc_z_dec + W autoregressive LSTMCell steps --------
    # Faithful to the module: fc_z_dec is applied to the UN-quantized encoder state h_x.
    # TODO(synk): nn.Dropout is only active in training mode; identity at inference.
    h_y = jnp.dot(h, wz_ref[...], preferred_element_type=jnp.float32) + bz_ref[...]
    # cat([h_y, y_prev]) @ W_ih split into two matmuls; the h_y half is loop-invariant.
    gx_const = jnp.dot(h_y, wdx_h_ref[...], preferred_element_type=jnp.float32) + bd_ref[...]

    hd = jnp.zeros((B, H), jnp.float32)
    cd = jnp.zeros((B, H), jnp.float32)
    y_prev = jnp.zeros((B, EMOTION_DIM), jnp.float32)
    for t in range(W_):                                       # autoregressive, unrolled
        # Weight matrices are re-read from their VMEM refs each step so their live
        # ranges stay bounded (no forced vreg spills across the 8-way unroll).
        xg = gx_const + jnp.dot(y_prev, wdx_y_ref[...], preferred_element_type=jnp.float32)
        hd, cd = _lstm_cell(xg, hd, cd, wdh_ref[...])
        m = jnp.tanh(jnp.dot(hd, w1_ref[...], preferred_element_type=jnp.float32) + b1_ref[...])
        m = jnp.tanh(jnp.dot(m, w2_ref[...], preferred_element_type=jnp.float32) + b2_ref[...])
        y_i = jnp.dot(m, wo_ref[...], preferred_element_type=jnp.float32) + bo_ref[...]
        y_ref[t] = y_i                                        # (B, E)
        y_prev = y_i

    # -------- coeff_reg head, hoisted out of the recurrence and batched over W*B --------
    y_all = y_ref[...].reshape(W_ * B, EMOTION_DIM)
    cr = jnp.maximum(jnp.dot(y_all, wc1_ref[...], preferred_element_type=jnp.float32)
                     + bc1_ref[...], 0.0)
    c3d = jnp.dot(cr, wc2_ref[...], preferred_element_type=jnp.float32) + bc2_ref[...]
    c3d_ref[...] = c3d.reshape(W_, B, COEFF_3DMM_DIM)


# ---------------- spec helpers ----------------
def _resident_spec(shape):
    """Full-array block with a constant index map -> stays resident across grid steps."""
    zero = (0,) * len(shape)
    return pl.BlockSpec(shape, lambda *_: zero)


def _pick_tile(n, cap=BP_TILE_CAP):
    """Largest multiple-of-8 divisor of n that is <= cap (n itself if n <= cap)."""
    if n <= cap:
        return n
    t = cap - (cap % 8)
    while t >= 8:
        if n % t == 0:
            return t
        t -= 8
    return n


# ---------------- wrapper ----------------
@jax.jit
def autoencoder_forward(listener_emotion, listener_3dmm, params):
    """Inference forward of AutoencoderRNN_VQVAE_v2.
       listener_emotion: (B, T, EMOTION_DIM) f32 with T % WINDOW == 0."""
    p = params
    B, T, E = listener_emotion.shape
    assert T % WINDOW == 0, "seq_len must be divisible by window_size"
    Bp = B * (T // WINDOW)

    # (B, T, E) -> (B', W, E) -> (W, B', E)   (tiny glue tensors)
    x = jnp.transpose(listener_emotion.reshape(Bp, WINDOW, E), (1, 0, 2)).astype(jnp.float32)

    # Pad the window-batch axis to a multiple of 8 so every kernel tile is sublane-aligned;
    # padded rows are sliced off (VQ stats are computed in the wrapper from sliced arrays).
    pad = (-Bp) % 8
    if pad:
        x = jnp.pad(x, ((0, 0), (0, pad), (0, 0)))
    bp_pad = Bp + pad
    bt = _pick_tile(bp_pad)
    n_tiles = bp_pad // bt

    weights = (p['enc_wx'], p['enc_wh'], p['enc_b'],
               p['codebook_t'], p['codebook_sq'],
               p['wz'], p['bz'],
               p['dec_wx_h'], p['dec_wx_y'], p['dec_wh'], p['dec_b'],
               p['mlp_w1'], p['mlp_b1'], p['mlp_w2'], p['mlp_b2'],
               p['wo'], p['bo'],
               p['wc1'], p['bc1'], p['wc2'], p['bc2'])

    y_seq, c3d_seq, h_x, min_enc, min_idx = pl.pallas_call(
        fused_kernel,
        out_shape=(
            jax.ShapeDtypeStruct((WINDOW, bp_pad, EMOTION_DIM), jnp.float32),
            jax.ShapeDtypeStruct((WINDOW, bp_pad, COEFF_3DMM_DIM), jnp.float32),
            jax.ShapeDtypeStruct((bp_pad, HIDDEN_DIM), jnp.float32),
            jax.ShapeDtypeStruct((bp_pad, N_E), jnp.float32),
            jax.ShapeDtypeStruct((bp_pad, 1), jnp.int32),
        ),
        grid=(n_tiles,),
        in_specs=[pl.BlockSpec((WINDOW, bt, EMOTION_DIM), lambda i: (0, i, 0))]
                 + [_resident_spec(w.shape) for w in weights],
        out_specs=(
            pl.BlockSpec((WINDOW, bt, EMOTION_DIM), lambda i: (0, i, 0)),
            pl.BlockSpec((WINDOW, bt, COEFF_3DMM_DIM), lambda i: (0, i, 0)),
            pl.BlockSpec((bt, HIDDEN_DIM), lambda i: (i, 0)),
            pl.BlockSpec((bt, N_E), lambda i: (i, 0)),
            pl.BlockSpec((bt, 1), lambda i: (i, 0)),
        ),
        compiler_params=pltpu.CompilerParams(
            dimension_semantics=("parallel",),
            vmem_limit_bytes=32 * 1024 * 1024),
    )(x, *weights)

    if pad:
        y_seq = y_seq[:, :Bp]
        c3d_seq = c3d_seq[:, :Bp]
        h_x = h_x[:Bp]
        min_enc = min_enc[:Bp]
        min_idx = min_idx[:Bp]

    # Batch-global VQ statistics finished here (tiny XLA ops) so they stay exact
    # regardless of how the B' axis was tiled inside the kernel.
    z_q = jnp.dot(min_enc, p['codebook'])                    # exact row gather via one-hot
    mse = jnp.mean((z_q - h_x) ** 2)
    emb_loss = BETA * mse + mse   # forward value of beta*||sg[zq]-z||^2 + ||zq-sg[z]||^2
    e_mean = jnp.mean(min_enc, axis=0)
    perplexity = jnp.exp(-jnp.sum(e_mean * jnp.log(e_mean + 1e-10)))

    # (W, B', E) -> (B', W, E) -> (B, T, E)
    prediction = jnp.transpose(y_seq, (1, 0, 2)).reshape(B, T, E)
    coefficients = jnp.transpose(c3d_seq, (1, 0, 2)).reshape(B, T, COEFF_3DMM_DIM)

    return {
        'prediction': prediction,
        'target': listener_emotion,
        'coefficients_3dmm': coefficients,
        'target_coefficients': listener_3dmm,
        'emb_loss': emb_loss,
        'info': (perplexity, min_enc, min_idx),
    }


# ---------------- parameter construction (PyTorch-style uniform init) ----------------
def init_params(key):
    H, E, C = HIDDEN_DIM, EMOTION_DIM, COEFF_3DMM_DIM
    ks = iter(jax.random.split(key, 32))
    u = lambda shape, s: jax.random.uniform(next(ks), shape, jnp.float32, -s, s)
    sH = 1.0 / math.sqrt(H)
    sE = 1.0 / math.sqrt(E)
    p = {
        # encoder LSTMCell (weights stored pre-transposed: x @ W; gate order i,f,g,o)
        'enc_wx': u((E, 4 * H), sH), 'enc_wh': u((H, 4 * H), sH), 'enc_b': u((1, 4 * H), sH),
        # VectorQuantizer codebook (torch default is uniform(+-1/n_e); a slightly larger
        # scale is used for the demo so the nearest-code decision is well conditioned)
        'codebook': u((N_E, H), 0.1),
        # fc_z_dec
        'wz': u((H, H), sH), 'bz': u((1, H), sH),
        # decoder LSTMCell on cat([h_y, y_prev]) -> split input weights
        'dec_wx_h': u((H, 4 * H), sH), 'dec_wx_y': u((E, 4 * H), sH),
        'dec_wh': u((H, 4 * H), sH), 'dec_b': u((1, 4 * H), sH),
        # d_mlp (tanh) + d_out
        'mlp_w1': u((H, EMB_DIMS[0]), sH), 'mlp_b1': u((1, EMB_DIMS[0]), sH),
        'mlp_w2': u((EMB_DIMS[0], EMB_DIMS[1]), sH), 'mlp_b2': u((1, EMB_DIMS[1]), sH),
        'wo': u((EMB_DIMS[1], E), sH), 'bo': u((1, E), sH),
        # coeff_reg: Linear(E,H) -> ReLU -> Linear(H,C)
        'wc1': u((E, H), sE), 'bc1': u((1, H), sE),
        'wc2': u((H, C), sH), 'bc2': u((1, C), sH),
    }
    # derived constants of the weights (built once, not per forward call)
    p['codebook_t'] = jnp.transpose(p['codebook'])                      # (H, N_E)
    p['codebook_sq'] = jnp.sum(p['codebook'] ** 2, axis=1)[None, :]     # (1, N_E)
    return p


# ---------------- pure-JAX reference for verification ----------------
def _hdot(a, b):
    return jnp.dot(a, b, precision=jax.lax.Precision.HIGHEST)


def reference_forward(listener_emotion, listener_3dmm, p):
    H, E, C = HIDDEN_DIM, EMOTION_DIM, COEFF_3DMM_DIM
    B, T, _ = listener_emotion.shape
    Bp = B * (T // WINDOW)
    x = jnp.transpose(listener_emotion.reshape(Bp, WINDOW, E), (1, 0, 2))

    def cell(xg, h, c, wh):
        g = xg + _hdot(h, wh)
        i, f = jax.nn.sigmoid(g[:, :H]), jax.nn.sigmoid(g[:, H:2 * H])
        gg, o = jnp.tanh(g[:, 2 * H:3 * H]), jax.nn.sigmoid(g[:, 3 * H:])
        c = f * c + i * gg
        return o * jnp.tanh(c), c

    h = jnp.zeros((Bp, H)); c = jnp.zeros((Bp, H))
    for t in range(WINDOW):
        h, c = cell(_hdot(x[t], p['enc_wx']) + p['enc_b'], h, c, p['enc_wh'])
    h_x = h

    emb = p['codebook']
    d = (jnp.sum(h_x ** 2, axis=1, keepdims=True) + jnp.sum(emb ** 2, axis=1)[None, :]
         - 2.0 * _hdot(h_x, emb.T))
    idx = jnp.argmin(d, axis=1)
    onehot = jax.nn.one_hot(idx, N_E, dtype=jnp.float32)
    z_q = _hdot(onehot, emb)
    mse = jnp.mean((z_q - h_x) ** 2)
    emb_loss = BETA * mse + mse
    e_mean = jnp.mean(onehot, axis=0)
    perplexity = jnp.exp(-jnp.sum(e_mean * jnp.log(e_mean + 1e-10)))

    h_y = _hdot(h_x, p['wz']) + p['bz']
    hd = jnp.zeros((Bp, H)); cd = jnp.zeros((Bp, H))
    y_prev = jnp.zeros((Bp, E))
    ys, cs = [], []
    for _ in range(WINDOW):
        xg = _hdot(h_y, p['dec_wx_h']) + _hdot(y_prev, p['dec_wx_y']) + p['dec_b']
        hd, cd = cell(xg, hd, cd, p['dec_wh'])
        m = jnp.tanh(_hdot(hd, p['mlp_w1']) + p['mlp_b1'])
        m = jnp.tanh(_hdot(m, p['mlp_w2']) + p['mlp_b2'])
        y_i = _hdot(m, p['wo']) + p['bo']
        c3 = _hdot(jnp.maximum(_hdot(y_i, p['wc1']) + p['bc1'], 0.0), p['wc2']) + p['bc2']
        ys.append(y_i); cs.append(c3)
        y_prev = y_i
    pred = jnp.transpose(jnp.stack(ys), (1, 0, 2)).reshape(B, T, E)
    coeff = jnp.transpose(jnp.stack(cs), (1, 0, 2)).reshape(B, T, C)
    return {
        'prediction': pred,
        'coefficients_3dmm': coeff,
        'emb_loss': emb_loss,
        'perplexity': perplexity,
        'indices': idx.astype(jnp.int32).reshape(Bp, 1),
    }


if __name__ == "__main__":
    key = jax.random.PRNGKey(0)
    k_data, k_3dmm, k_params = jax.random.split(key, 3)

    B, T = 4, 2 * WINDOW          # batch=4, seq_len=16 (two windows per sequence) -> B'=8
    listener_emotion = jax.random.normal(k_data, (B, T, EMOTION_DIM), dtype=jnp.float32)
    listener_3dmm = jax.random.normal(k_3dmm, (B, T, COEFF_3DMM_DIM), dtype=jnp.float32)
    params = init_params(k_params)

    out = autoencoder_forward(listener_emotion, listener_3dmm, params)
    jax.block_until_ready(out)

    # shape / dtype checks
    Bp = B * (T // WINDOW)
    assert out['prediction'].shape == (B, T, EMOTION_DIM)
    assert out['coefficients_3dmm'].shape == (B, T, COEFF_3DMM_DIM)
    perplexity, min_enc, min_idx = out['info']
    assert min_enc.shape == (Bp, N_E)
    assert min_idx.shape == (Bp, 1) and min_idx.dtype == jnp.int32

    # numeric check against a pure-JAX reference of the same forward pass
    ref = reference_forward(listener_emotion, listener_3dmm, params)
    np.testing.assert_allclose(np.asarray(out['prediction']), np.asarray(ref['prediction']),
                               rtol=5e-3, atol=5e-3)
    np.testing.assert_allclose(np.asarray(out['coefficients_3dmm']),
                               np.asarray(ref['coefficients_3dmm']), rtol=5e-3, atol=5e-3)
    np.testing.assert_allclose(float(out['emb_loss']), float(ref['emb_loss']), rtol=5e-3, atol=5e-3)
    np.testing.assert_allclose(float(perplexity), float(ref['perplexity']), rtol=5e-3, atol=5e-3)
    np.testing.assert_array_equal(np.asarray(min_idx), np.asarray(ref['indices']))

    print("KERNEL_OK")
</pallas_src>

<mosaic_0001>
module attributes {stable_mosaic.version = 11 : i64} {
  func.func @fused_kernel(%arg0: i32, %arg1: memref<8x8x25xf32, #tpu.memory_space<vmem>>, %arg2: memref<25x512xf32, #tpu.memory_space<vmem>>, %arg3: memref<128x512xf32, #tpu.memory_space<vmem>>, %arg4: memref<1x512xf32, #tpu.memory_space<vmem>>, %arg5: memref<128x200xf32, #tpu.memory_space<vmem>>, %arg6: memref<1x200xf32, #tpu.memory_space<vmem>>, %arg7: memref<128x128xf32, #tpu.memory_space<vmem>>, %arg8: memref<1x128xf32, #tpu.memory_space<vmem>>, %arg9: memref<128x512xf32, #tpu.memory_space<vmem>>, %arg10: memref<25x512xf32, #tpu.memory_space<vmem>>, %arg11: memref<128x512xf32, #tpu.memory_space<vmem>>, %arg12: memref<1x512xf32, #tpu.memory_space<vmem>>, %arg13: memref<128x128xf32, #tpu.memory_space<vmem>>, %arg14: memref<1x128xf32, #tpu.memory_space<vmem>>, %arg15: memref<128x128xf32, #tpu.memory_space<vmem>>, %arg16: memref<1x128xf32, #tpu.memory_space<vmem>>, %arg17: memref<128x25xf32, #tpu.memory_space<vmem>>, %arg18: memref<1x25xf32, #tpu.memory_space<vmem>>, %arg19: memref<25x128xf32, #tpu.memory_space<vmem>>, %arg20: memref<1x128xf32, #tpu.memory_space<vmem>>, %arg21: memref<128x58xf32, #tpu.memory_space<vmem>>, %arg22: memref<1x58xf32, #tpu.memory_space<vmem>>, %arg23: memref<8x8x25xf32, #tpu.memory_space<vmem>>, %arg24: memref<8x8x58xf32, #tpu.memory_space<vmem>>, %arg25: memref<8x128xf32, #tpu.memory_space<vmem>>, %arg26: memref<8x200xf32, #tpu.memory_space<vmem>>, %arg27: memref<8x1xi32, #tpu.memory_space<vmem>>) attributes {dimension_semantics = [#tpu.dimension_semantics<parallel>], iteration_bounds = array<i64: 1>, scalar_prefetch = 0 : i64, scratch_operands = 0 : i64, tpu.core_type = #tpu.core_type<tc>, window_params = [{transform_indices = @transform_0, window_bounds = array<i64: 8, 8, 25>}, {pipeline_mode = #tpu.pipeline_mode<synchronous>, transform_indices = @transform_1, window_bounds = array<i64: 25, 512>}, {pipeline_mode = #tpu.pipeline_mode<synchronous>, transform_indices = @transform_2, window_bounds = array<i64: 128, 512>}, {pipeline_mode = #tpu.pipeline_mode<synchronous>, transform_indices = @transform_3, window_bounds = array<i64: 1, 512>}, {pipeline_mode = #tpu.pipeline_mode<synchronous>, transform_indices = @transform_4, window_bounds = array<i64: 128, 200>}, {pipeline_mode = #tpu.pipeline_mode<synchronous>, transform_indices = @transform_5, window_bounds = array<i64: 1, 200>}, {pipeline_mode = #tpu.pipeline_mode<synchronous>, transform_indices = @transform_6, window_bounds = array<i64: 128, 128>}, {pipeline_mode = #tpu.pipeline_mode<synchronous>, transform_indices = @transform_7, window_bounds = array<i64: 1, 128>}, {pipeline_mode = #tpu.pipeline_mode<synchronous>, transform_indices = @transform_8, window_bounds = array<i64: 128, 512>}, {pipeline_mode = #tpu.pipeline_mode<synchronous>, transform_indices = @transform_9, window_bounds = array<i64: 25, 512>}, {pipeline_mode = #tpu.pipeline_mode<synchronous>, transform_indices = @transform_10, window_bounds = array<i64: 128, 512>}, {pipeline_mode = #tpu.pipeline_mode<synchronous>, transform_indices = @transform_11, window_bounds = array<i64: 1, 512>}, {pipeline_mode = #tpu.pipeline_mode<synchronous>, transform_indices = @transform_12, window_bounds = array<i64: 128, 128>}, {pipeline_mode = #tpu.pipeline_mode<synchronous>, transform_indices = @transform_13, window_bounds = array<i64: 1, 128>}, {pipeline_mode = #tpu.pipeline_mode<synchronous>, transform_indices = @transform_14, window_bounds = array<i64: 128, 128>}, {pipeline_mode = #tpu.pipeline_mode<synchronous>, transform_indices = @transform_15, window_bounds = array<i64: 1, 128>}, {pipeline_mode = #tpu.pipeline_mode<synchronous>, transform_indices = @transform_16, window_bounds = array<i64: 128, 25>}, {pipeline_mode = #tpu.pipeline_mode<synchronous>, transform_indices = @transform_17, window_bounds = array<i64: 1, 25>}, {pipeline_mode = #tpu.pipeline_mode<synchronous>, transform_indices = @transform_18, window_bounds = array<i64: 25, 128>}, {pipeline_mode = #tpu.pipeline_mode<synchronous>, transform_indices = @transform_19, window_bounds = array<i64: 1, 128>}, {pipeline_mode = #tpu.pipeline_mode<synchronous>, transform_indices = @transform_20, window_bounds = array<i64: 128, 58>}, {pipeline_mode = #tpu.pipeline_mode<synchronous>, transform_indices = @transform_21, window_bounds = array<i64: 1, 58>}, {transform_indices = @transform_22, window_bounds = array<i64: 8, 8, 25>}, {transform_indices = @transform_23, window_bounds = array<i64: 8, 8, 58>}, {transform_indices = @transform_24, window_bounds = array<i64: 8, 128>}, {transform_indices = @transform_25, window_bounds = array<i64: 8, 200>}, {transform_indices = @transform_26, window_bounds = array<i64: 8, 1>}]} {
    %c0 = arith.constant 0 : index
    %c0_0 = arith.constant 0 : index
    %c0_1 = arith.constant 0 : index
    %0 = vector.load %arg1[%c0, %c0_0, %c0_1] : memref<8x8x25xf32, #tpu.memory_space<vmem>>, vector<8x8x25xf32>
    %1 = vector.shape_cast %0 : vector<8x8x25xf32> to vector<64x25xf32>
    %c0_2 = arith.constant 0 : index
    %c0_3 = arith.constant 0 : index
    %2 = vector.load %arg2[%c0_2, %c0_3] : memref<25x512xf32, #tpu.memory_space<vmem>>, vector<25x512xf32>
    %cst = arith.constant dense<0.000000e+00> : vector<64x512xf32>
    %3 = tpu.matmul %1, %2, %cst {dimension_numbers = #tpu.dot_dimension_numbers<[1], [0], [0], [1], [0, 0, 1, 1], [], []>} : vector<64x25xf32>, vector<25x512xf32>, vector<64x512xf32> -> vector<64x512xf32>
    %c0_4 = arith.constant 0 : index
    %c0_5 = arith.constant 0 : index
    %4 = vector.load %arg4[%c0_4, %c0_5] : memref<1x512xf32, #tpu.memory_space<vmem>>, vector<1x512xf32>
    %5 = vector.broadcast %4 : vector<1x512xf32> to vector<64x512xf32>
    %6 = arith.addf %3, %5 : vector<64x512xf32>
    %cst_6 = arith.constant 0.000000e+00 : f32
    %7 = vector.broadcast %cst_6 : f32 to vector<8x128xf32>
    %cst_7 = arith.constant 0.000000e+00 : f32
    %8 = vector.broadcast %cst_7 : f32 to vector<8x128xf32>
    %9 = vector.extract_strided_slice %6 {offsets = [0, 0], sizes = [8, 512], strides = [1, 1]} : vector<64x512xf32> to vector<8x512xf32>
    %c0_8 = arith.constant 0 : index
    %c0_9 = arith.constant 0 : index
    %10 = vector.load %arg3[%c0_8, %c0_9] : memref<128x512xf32, #tpu.memory_space<vmem>>, vector<128x512xf32>
    %cst_10 = arith.constant dense<0.000000e+00> : vector<8x512xf32>
    %11 = tpu.matmul %7, %10, %cst_10 {dimension_numbers = #tpu.dot_dimension_numbers<[1], [0], [0], [1], [0, 0, 1, 1], [], []>} : vector<8x128xf32>, vector<128x512xf32>, vector<8x512xf32> -> vector<8x512xf32>
    %12 = arith.addf %9, %11 : vector<8x512xf32>
    %13 = vector.extract_strided_slice %12 {offsets = [0, 0], sizes = [8, 128], strides = [1, 1]} : vector<8x512xf32> to vector<8x128xf32>
    %cst_11 = arith.constant 5.000000e-01 : f32
    %14 = vector.broadcast %cst_11 : f32 to vector<8x128xf32>
    %15 = arith.mulf %14, %13 : vector<8x128xf32>
    %16 = math.tanh %15 : vector<8x128xf32>
    %cst_12 = arith.constant 1.000000e+00 : f32
    %17 = vector.broadcast %cst_12 : f32 to vector<8x128xf32>
    %18 = arith.addf %16, %17 : vector<8x128xf32>
    %cst_13 = arith.constant 5.000000e-01 : f32
    %19 = vector.broadcast %cst_13 : f32 to vector<8x128xf32>
    %20 = arith.mulf %19, %18 : vector<8x128xf32>
    %21 = vector.extract_strided_slice %12 {offsets = [0, 128], sizes = [8, 128], strides = [1, 1]} : vector<8x512xf32> to vector<8x128xf32>
    %cst_14 = arith.constant 5.000000e-01 : f32
    %22 = vector.broadcast %cst_14 : f32 to vector<8x128xf32>
    %23 = arith.mulf %22, %21 : vector<8x128xf32>
    %24 = math.tanh %23 : vector<8x128xf32>
    %cst_15 = arith.constant 1.000000e+00 : f32
    %25 = vector.broadcast %cst_15 : f32 to vector<8x128xf32>
    %26 = arith.addf %24, %25 : vector<8x128xf32>
    %cst_16 = arith.constant 5.000000e-01 : f32
    %27 = vector.broadcast %cst_16 : f32 to vector<8x128xf32>
    %28 = arith.mulf %27, %26 : vector<8x128xf32>
    %29 = vector.extract_strided_slice %12 {offsets = [0, 256], sizes = [8, 128], strides = [1, 1]} : vector<8x512xf32> to vector<8x128xf32>
    %30 = math.tanh %29 : vector<8x128xf32>
    %31 = vector.extract_strided_slice %12 {offsets = [0, 384], sizes = [8, 128], strides = [1, 1]} : vector<8x512xf32> to vector<8x128xf32>
    %cst_17 = arith.constant 5.000000e-01 : f32
    %32 = vector.broadcast %cst_17 : f32 to vector<8x128xf32>
    %33 = arith.mulf %32, %31 : vector<8x128xf32>
    %34 = math.tanh %33 : vector<8x128xf32>
    %cst_18 = arith.constant 1.000000e+00 : f32
    %35 = vector.broadcast %cst_18 : f32 to vector<8x128xf32>
    %36 = arith.addf %34, %35 : vector<8x128xf32>
    %cst_19 = arith.constant 5.000000e-01 : f32
    %37 = vector.broadcast %cst_19 : f32 to vector<8x128xf32>
    %38 = arith.mulf %37, %36 : vector<8x128xf32>
    %39 = arith.mulf %28, %8 : vector<8x128xf32>
    %40 = arith.mulf %20, %30 : vector<8x128xf32>
    %41 = arith.addf %39, %40 : vector<8x128xf32>
    %42 = math.tanh %41 : vector<8x128xf32>
    %43 = arith.mulf %38, %42 : vector<8x128xf32>
    %44 = vector.extract_strided_slice %6 {offsets = [8, 0], sizes = [8, 512], strides = [1, 1]} : vector<64x512xf32> to vector<8x512xf32>
    %c0_20 = arith.constant 0 : index
    %c0_21 = arith.constant 0 : index
    %45 = vector.load %arg3[%c0_20, %c0_21] : memref<128x512xf32, #tpu.memory_space<vmem>>, vector<128x512xf32>
    %cst_22 = arith.constant dense<0.000000e+00> : vector<8x512xf32>
    %46 = tpu.matmul %43, %45, %cst_22 {dimension_numbers = #tpu.dot_dimension_numbers<[1], [0], [0], [1], [0, 0, 1, 1], [], []>} : vector<8x128xf32>, vector<128x512xf32>, vector<8x512xf32> -> vector<8x512xf32>
    %47 = arith.addf %44, %46 : vector<8x512xf32>
    %48 = vector.extract_strided_slice %47 {offsets = [0, 0], sizes = [8, 128], strides = [1, 1]} : vector<8x512xf32> to vector<8x128xf32>
    %cst_23 = arith.constant 5.000000e-01 : f32
    %49 = vector.broadcast %cst_23 : f32 to vector<8x128xf32>
    %50 = arith.mulf %49, %48 : vector<8x128xf32>
    %51 = math.tanh %50 : vector<8x128xf32>
    %cst_24 = arith.constant 1.000000e+00 : f32
    %52 = vector.broadcast %cst_24 : f32 to vector<8x128xf32>
    %53 = arith.addf %51, %52 : vector<8x128xf32>
    %cst_25 = arith.constant 5.000000e-01 : f32
    %54 = vector.broadcast %cst_25 : f32 to vector<8x128xf32>
    %55 = arith.mulf %54, %53 : vector<8x128xf32>
    %56 = vector.extract_strided_slice %47 {offsets = [0, 128], sizes = [8, 128], strides = [1, 1]} : vector<8x512xf32> to vector<8x128xf32>
    %cst_26 = arith.constant 5.000000e-01 : f32
    %57 = vector.broadcast %cst_26 : f32 to vector<8x128xf32>
    %58 = arith.mulf %57, %56 : vector<8x128xf32>
    %59 = math.tanh %58 : vector<8x128xf32>
    %cst_27 = arith.constant 1.000000e+00 : f32
    %60 = vector.broadcast %cst_27 : f32 to vector<8x128xf32>
    %61 = arith.addf %59, %60 : vector<8x128xf32>
    %cst_28 = arith.constant 5.000000e-01 : f32
    %62 = vector.broadcast %cst_28 : f32 to vector<8x128xf32>
    %63 = arith.mulf %62, %61 : vector<8x128xf32>
    %64 = vector.extract_strided_slice %47 {offsets = [0, 256], sizes = [8, 128], strides = [1, 1]} : vector<8x512xf32> to vector<8x128xf32>
    %65 = math.tanh %64 : vector<8x128xf32>
    %66 = vector.extract_strided_slice %47 {offsets = [0, 384], sizes = [8, 128], strides = [1, 1]} : vector<8x512xf32> to vector<8x128xf32>
    %cst_29 = arith.constant 5.000000e-01 : f32
    %67 = vector.broadcast %cst_29 : f32 to vector<8x128xf32>
    %68 = arith.mulf %67, %66 : vector<8x128xf32>
    %69 = math.tanh %68 : vector<8x128xf32>
    %cst_30 = arith.constant 1.000000e+00 : f32
    %70 = vector.broadcast %cst_30 : f32 to vector<8x128xf32>
    %71 = arith.addf %69, %70 : vector<8x128xf32>
    %cst_31 = arith.constant 5.000000e-01 : f32
    %72 = vector.broadcast %cst_31 : f32 to vector<8x128xf32>
    %73 = arith.mulf %72, %71 : vector<8x128xf32>
    %74 = arith.mulf %63, %41 : vector<8x128xf32>
    %75 = arith.mulf %55, %65 : vector<8x128xf32>
    %76 = arith.addf %74, %75 : vector<8x128xf32>
    %77 = math.tanh %76 : vector<8x128xf32>
    %78 = arith.mulf %73, %77 : vector<8x128xf32>
    %79 = vector.extract_strided_slice %6 {offsets = [16, 0], sizes = [8, 512], strides = [1, 1]} : vector<64x512xf32> to vector<8x512xf32>
    %c0_32 = arith.constant 0 : index
    %c0_33 = arith.constant 0 : index
    %80 = vector.load %arg3[%c0_32, %c0_33] : memref<128x512xf32, #tpu.memory_space<vmem>>, vector<128x512xf32>
    %cst_34 = arith.constant dense<0.000000e+00> : vector<8x512xf32>
    %81 = tpu.matmul %78, %80, %cst_34 {dimension_numbers = #tpu.dot_dimension_numbers<[1], [0], [0], [1], [0, 0, 1, 1], [], []>} : vector<8x128xf32>, vector<128x512xf32>, vector<8x512xf32> -> vector<8x512xf32>
    %82 = arith.addf %79, %81 : vector<8x512xf32>
    %83 = vector.extract_strided_slice %82 {offsets = [0, 0], sizes = [8, 128], strides = [1, 1]} : vector<8x512xf32> to vector<8x128xf32>
    %cst_35 = arith.constant 5.000000e-01 : f32
    %84 = vector.broadcast %cst_35 : f32 to vector<8x128xf32>
    %85 = arith.mulf %84, %83 : vector<8x128xf32>
    %86 = math.tanh %85 : vector<8x128xf32>
    %cst_36 = arith.constant 1.000000e+00 : f32
    %87 = vector.broadcast %cst_36 : f32 to vector<8x128xf32>
    %88 = arith.addf %86, %87 : vector<8x128xf32>
    %cst_37 = arith.constant 5.000000e-01 : f32
    %89 = vector.broadcast %cst_37 : f32 to vector<8x128xf32>
    %90 = arith.mulf %89, %88 : vector<8x128xf32>
    %91 = vector.extract_strided_slice %82 {offsets = [0, 128], sizes = [8, 128], strides = [1, 1]} : vector<8x512xf32> to vector<8x128xf32>
    %cst_38 = arith.constant 5.000000e-01 : f32
    %92 = vector.broadcast %cst_38 : f32 to vector<8x128xf32>
    %93 = arith.mulf %92, %91 : vector<8x128xf32>
    %94 = math.tanh %93 : vector<8x128xf32>
    %cst_39 = arith.constant 1.000000e+00 : f32
    %95 = vector.broadcast %cst_39 : f32 to vector<8x128xf32>
    %96 = arith.addf %94, %95 : vector<8x128xf32>
    %cst_40 = arith.constant 5.000000e-01 : f32
    %97 = vector.broadcast %cst_40 : f32 to vector<8x128xf32>
    %98 = arith.mulf %97, %96 : vector<8x128xf32>
    %99 = vector.extract_strided_slice %82 {offsets = [0, 256], sizes = [8, 128], strides = [1, 1]} : vector<8x512xf32> to vector<8x128xf32>
    %100 = math.tanh %99 : vector<8x128xf32>
    %101 = vector.extract_strided_slice %82 {offsets = [0, 384], sizes = [8, 128], strides = [1, 1]} : vector<8x512xf32> to vector<8x128xf32>
    %cst_41 = arith.constant 5.000000e-01 : f32
    %102 = vector.broadcast %cst_41 : f32 to vector<8x128xf32>
    %103 = arith.mulf %102, %101 : vector<8x128xf32>
    %104 = math.tanh %103 : vector<8x128xf32>
    %cst_42 = arith.constant 1.000000e+00 : f32
    %105 = vector.broadcast %cst_42 : f32 to vector<8x128xf32>
    %106 = arith.addf %104, %105 : vector<8x128xf32>
    %cst_43 = arith.constant 5.000000e-01 : f32
    %107 = vector.broadcast %cst_43 : f32 to vector<8x128xf32>
    %108 = arith.mulf %107, %106 : vector<8x128xf32>
    %109 = arith.mulf %98, %76 : vector<8x128xf32>
    %110 = arith.mulf %90, %100 : vector<8x128xf32>
    %111 = arith.addf %109, %110 : vector<8x128xf32>
    %112 = math.tanh %111 : vector<8x128xf32>
    %113 = arith.mulf %108, %112 : vector<8x128xf32>
    %114 = vector.extract_strided_slice %6 {offsets = [24, 0], sizes = [8, 512], strides = [1, 1]} : vector<64x512xf32> to vector<8x512xf32>
    %c0_44 = arith.constant 0 : index
    %c0_45 = arith.constant 0 : index
    %115 = vector.load %arg3[%c0_44, %c0_45] : memref<128x512xf32, #tpu.memory_space<vmem>>, vector<128x512xf32>
    %cst_46 = arith.constant dense<0.000000e+00> : vector<8x512xf32>
    %116 = tpu.matmul %113, %115, %cst_46 {dimension_numbers = #tpu.dot_dimension_numbers<[1], [0], [0], [1], [0, 0, 1, 1], [], []>} : vector<8x128xf32>, vector<128x512xf32>, vector<8x512xf32> -> vector<8x512xf32>
    %117 = arith.addf %114, %116 : vector<8x512xf32>
    %118 = vector.extract_strided_slice %117 {offsets = [0, 0], sizes = [8, 128], strides = [1, 1]} : vector<8x512xf32> to vector<8x128xf32>
    %cst_47 = arith.constant 5.000000e-01 : f32
    %119 = vector.broadcast %cst_47 : f32 to vector<8x128xf32>
    %120 = arith.mulf %119, %118 : vector<8x128xf32>
    %121 = math.tanh %120 : vector<8x128xf32>
    %cst_48 = arith.constant 1.000000e+00 : f32
    %122 = vector.broadcast %cst_48 : f32 to vector<8x128xf32>
    %123 = arith.addf %121, %122 : vector<8x128xf32>
    %cst_49 = arith.constant 5.000000e-01 : f32
    %124 = vector.broadcast %cst_49 : f32 to vector<8x128xf32>
    %125 = arith.mulf %124, %123 : vector<8x128xf32>
    %126 = vector.extract_strided_slice %117 {offsets = [0, 128], sizes = [8, 128], strides = [1, 1]} : vector<8x512xf32> to vector<8x128xf32>
    %cst_50 = arith.constant 5.000000e-01 : f32
    %127 = vector.broadcast %cst_50 : f32 to vector<8x128xf32>
    %128 = arith.mulf %127, %126 : vector<8x128xf32>
    %129 = math.tanh %128 : vector<8x128xf32>
    %cst_51 = arith.constant 1.000000e+00 : f32
    %130 = vector.broadcast %cst_51 : f32 to vector<8x128xf32>
    %131 = arith.addf %129, %130 : vector<8x128xf32>
    %cst_52 = arith.constant 5.000000e-01 : f32
    %132 = vector.broadcast %cst_52 : f32 to vector<8x128xf32>
    %133 = arith.mulf %132, %131 : vector<8x128xf32>
    %134 = vector.extract_strided_slice %117 {offsets = [0, 256], sizes = [8, 128], strides = [1, 1]} : vector<8x512xf32> to vector<8x128xf32>
    %135 = math.tanh %134 : vector<8x128xf32>
    %136 = vector.extract_strided_slice %117 {offsets = [0, 384], sizes = [8, 128], strides = [1, 1]} : vector<8x512xf32> to vector<8x128xf32>
    %cst_53 = arith.constant 5.000000e-01 : f32
    %137 = vector.broadcast %cst_53 : f32 to vector<8x128xf32>
    %138 = arith.mulf %137, %136 : vector<8x128xf32>
    %139 = math.tanh %138 : vector<8x128xf32>
    %cst_54 = arith.constant 1.000000e+00 : f32
    %140 = vector.broadcast %cst_54 : f32 to vector<8x128xf32>
    %141 = arith.addf %139, %140 : vector<8x128xf32>
    %cst_55 = arith.constant 5.000000e-01 : f32
    %142 = vector.broadcast %cst_55 : f32 to vector<8x128xf32>
    %143 = arith.mulf %142, %141 : vector<8x128xf32>
    %144 = arith.mulf %133, %111 : vector<8x128xf32>
    %145 = arith.mulf %125, %135 : vector<8x128xf32>
    %146 = arith.addf %144, %145 : vector<8x128xf32>
    %147 = math.tanh %146 : vector<8x128xf32>
    %148 = arith.mulf %143, %147 : vector<8x128xf32>
    %149 = vector.extract_strided_slice %6 {offsets = [32, 0], sizes = [8, 512], strides = [1, 1]} : vector<64x512xf32> to vector<8x512xf32>
    %c0_56 = arith.constant 0 : index
    %c0_57 = arith.constant 0 : index
    %150 = vector.load %arg3[%c0_56, %c0_57] : memref<128x512xf32, #tpu.memory_space<vmem>>, vector<128x512xf32>
    %cst_58 = arith.constant dense<0.000000e+00> : vector<8x512xf32>
    %151 = tpu.matmul %148, %150, %cst_58 {dimension_numbers = #tpu.dot_dimension_numbers<[1], [0], [0], [1], [0, 0, 1, 1], [], []>} : vector<8x128xf32>, vector<128x512xf32>, vector<8x512xf32> -> vector<8x512xf32>
    %152 = arith.addf %149, %151 : vector<8x512xf32>
    %153 = vector.extract_strided_slice %152 {offsets = [0, 0], sizes = [8, 128], strides = [1, 1]} : vector<8x512xf32> to vector<8x128xf32>
    %cst_59 = arith.constant 5.000000e-01 : f32
    %154 = vector.broadcast %cst_59 : f32 to vector<8x128xf32>
    %155 = arith.mulf %154, %153 : vector<8x128xf32>
    %156 = math.tanh %155 : vector<8x128xf32>
    %cst_60 = arith.constant 1.000000e+00 : f32
    %157 = vector.broadcast %cst_60 : f32 to vector<8x128xf32>
    %158 = arith.addf %156, %157 : vector<8x128xf32>
    %cst_61 = arith.constant 5.000000e-01 : f32
    %159 = vector.broadcast %cst_61 : f32 to vector<8x128xf32>
    %160 = arith.mulf %159, %158 : vector<8x128xf32>
    %161 = vector.extract_strided_slice %152 {offsets = [0, 128], sizes = [8, 128], strides = [1, 1]} : vector<8x512xf32> to vector<8x128xf32>
    %cst_62 = arith.constant 5.000000e-01 : f32
    %162 = vector.broadcast %cst_62 : f32 to vector<8x128xf32>
    %163 = arith.mulf %162, %161 : vector<8x128xf32>
    %164 = math.tanh %163 : vector<8x128xf32>
    %cst_63 = arith.constant 1.000000e+00 : f32
    %165 = vector.broadcast %cst_63 : f32 to vector<8x128xf32>
    %166 = arith.addf %164, %165 : vector<8x128xf32>
    %cst_64 = arith.constant 5.000000e-01 : f32
    %167 = vector.broadcast %cst_64 : f32 to vector<8x128xf32>
    %168 = arith.mulf %167, %166 : vector<8x128xf32>
    %169 = vector.extract_strided_slice %152 {offsets = [0, 256], sizes = [8, 128], strides = [1, 1]} : vector<8x512xf32> to vector<8x128xf32>
    %170 = math.tanh %169 : vector<8x128xf32>
    %171 = vector.extract_strided_slice %152 {offsets = [0, 384], sizes = [8, 128], strides = [1, 1]} : vector<8x512xf32> to vector<8x128xf32>
    %cst_65 = arith.constant 5.000000e-01 : f32
    %172 = vector.broadcast %cst_65 : f32 to vector<8x128xf32>
    %173 = arith.mulf %172, %171 : vector<8x128xf32>
    %174 = math.tanh %173 : vector<8x128xf32>
    %cst_66 = arith.constant 1.000000e+00 : f32
    %175 = vector.broadcast %cst_66 : f32 to vector<8x128xf32>
    %176 = arith.addf %174, %175 : vector<8x128xf32>
    %cst_67 = arith.constant 5.000000e-01 : f32
    %177 = vector.broadcast %cst_67 : f32 to vector<8x128xf32>
    %178 = arith.mulf %177, %176 : vector<8x128xf32>
    %179 = arith.mulf %168, %146 : vector<8x128xf32>
    %180 = arith.mulf %160, %170 : vector<8x128xf32>
    %181 = arith.addf %179, %180 : vector<8x128xf32>
    %182 = math.tanh %181 : vector<8x128xf32>
    %183 = arith.mulf %178, %182 : vector<8x128xf32>
    %184 = vector.extract_strided_slice %6 {offsets = [40, 0], sizes = [8, 512], strides = [1, 1]} : vector<64x512xf32> to vector<8x512xf32>
    %c0_68 = arith.constant 0 : index
    %c0_69 = arith.constant 0 : index
    %185 = vector.load %arg3[%c0_68, %c0_69] : memref<128x512xf32, #tpu.memory_space<vmem>>, vector<128x512xf32>
    %cst_70 = arith.constant dense<0.000000e+00> : vector<8x512xf32>
    %186 = tpu.matmul %183, %185, %cst_70 {dimension_numbers = #tpu.dot_dimension_numbers<[1], [0], [0], [1], [0, 0, 1, 1], [], []>} : vector<8x128xf32>, vector<128x512xf32>, vector<8x512xf32> -> vector<8x512xf32>
    %187 = arith.addf %184, %186 : vector<8x512xf32>
    %188 = vector.extract_strided_slice %187 {offsets = [0, 0], sizes = [8, 128], strides = [1, 1]} : vector<8x512xf32> to vector<8x128xf32>
    %cst_71 = arith.constant 5.000000e-01 : f32
    %189 = vector.broadcast %cst_71 : f32 to vector<8x128xf32>
    %190 = arith.mulf %189, %188 : vector<8x128xf32>
    %191 = math.tanh %190 : vector<8x128xf32>
    %cst_72 = arith.constant 1.000000e+00 : f32
    %192 = vector.broadcast %cst_72 : f32 to vector<8x128xf32>
    %193 = arith.addf %191, %192 : vector<8x128xf32>
    %cst_73 = arith.constant 5.000000e-01 : f32
    %194 = vector.broadcast %cst_73 : f32 to vector<8x128xf32>
    %195 = arith.mulf %194, %193 : vector<8x128xf32>
    %196 = vector.extract_strided_slice %187 {offsets = [0, 128], sizes = [8, 128], strides = [1, 1]} : vector<8x512xf32> to vector<8x128xf32>
    %cst_74 = arith.constant 5.000000e-01 : f32
    %197 = vector.broadcast %cst_74 : f32 to vector<8x128xf32>
    %198 = arith.mulf %197, %196 : vector<8x128xf32>
    %199 = math.tanh %198 : vector<8x128xf32>
    %cst_75 = arith.constant 1.000000e+00 : f32
    %200 = vector.broadcast %cst_75 : f32 to vector<8x128xf32>
    %201 = arith.addf %199, %200 : vector<8x128xf32>
    %cst_76 = arith.constant 5.000000e-01 : f32
    %202 = vector.broadcast %cst_76 : f32 to vector<8x128xf32>
    %203 = arith.mulf %202, %201 : vector<8x128xf32>
    %204 = vector.extract_strided_slice %187 {offsets = [0, 256], sizes = [8, 128], strides = [1, 1]} : vector<8x512xf32> to vector<8x128xf32>
    %205 = math.tanh %204 : vector<8x128xf32>
    %206 = vector.extract_strided_slice %187 {offsets = [0, 384], sizes = [8, 128], strides = [1, 1]} : vector<8x512xf32> to vector<8x128xf32>
    %cst_77 = arith.constant 5.000000e-01 : f32
    %207 = vector.broadcast %cst_77 : f32 to vector<8x128xf32>
    %208 = arith.mulf %207, %206 : vector<8x128xf32>
    %209 = math.tanh %208 : vector<8x128xf32>
    %cst_78 = arith.constant 1.000000e+00 : f32
    %210 = vector.broadcast %cst_78 : f32 to vector<8x128xf32>
    %211 = arith.addf %209, %210 : vector<8x128xf32>
    %cst_79 = arith.constant 5.000000e-01 : f32
    %212 = vector.broadcast %cst_79 : f32 to vector<8x128xf32>
    %213 = arith.mulf %212, %211 : vector<8x128xf32>
    %214 = arith.mulf %203, %181 : vector<8x128xf32>
    %215 = arith.mulf %195, %205 : vector<8x128xf32>
    %216 = arith.addf %214, %215 : vector<8x128xf32>
    %217 = math.tanh %216 : vector<8x128xf32>
    %218 = arith.mulf %213, %217 : vector<8x128xf32>
    %219 = vector.extract_strided_slice %6 {offsets = [48, 0], sizes = [8, 512], strides = [1, 1]} : vector<64x512xf32> to vector<8x512xf32>
    %c0_80 = arith.constant 0 : index
    %c0_81 = arith.constant 0 : index
    %220 = vector.load %arg3[%c0_80, %c0_81] : memref<128x512xf32, #tpu.memory_space<vmem>>, vector<128x512xf32>
    %cst_82 = arith.constant dense<0.000000e+00> : vector<8x512xf32>
    %221 = tpu.matmul %218, %220, %cst_82 {dimension_numbers = #tpu.dot_dimension_numbers<[1], [0], [0], [1], [0, 0, 1, 1], [], []>} : vector<8x128xf32>, vector<128x512xf32>, vector<8x512xf32> -> vector<8x512xf32>
    %222 = arith.addf %219, %221 : vector<8x512xf32>
    %223 = vector.extract_strided_slice %222 {offsets = [0, 0], sizes = [8, 128], strides = [1, 1]} : vector<8x512xf32> to vector<8x128xf32>
    %cst_83 = arith.constant 5.000000e-01 : f32
    %224 = vector.broadcast %cst_83 : f32 to vector<8x128xf32>
    %225 = arith.mulf %224, %223 : vector<8x128xf32>
    %226 = math.tanh %225 : vector<8x128xf32>
    %cst_84 = arith.constant 1.000000e+00 : f32
    %227 = vector.broadcast %cst_84 : f32 to vector<8x128xf32>
    %228 = arith.addf %226, %227 : vector<8x128xf32>
    %cst_85 = arith.constant 5.000000e-01 : f32
    %229 = vector.broadcast %cst_85 : f32 to vector<8x128xf32>
    %230 = arith.mulf %229, %228 : vector<8x128xf32>
    %231 = vector.extract_strided_slice %222 {offsets = [0, 128], sizes = [8, 128], strides = [1, 1]} : vector<8x512xf32> to vector<8x128xf32>
    %cst_86 = arith.constant 5.000000e-01 : f32
    %232 = vector.broadcast %cst_86 : f32 to vector<8x128xf32>
    %233 = arith.mulf %232, %231 : vector<8x128xf32>
    %234 = math.tanh %233 : vector<8x128xf32>
    %cst_87 = arith.constant 1.000000e+00 : f32
    %235 = vector.broadcast %cst_87 : f32 to vector<8x128xf32>
    %236 = arith.addf %234, %235 : vector<8x128xf32>
    %cst_88 = arith.constant 5.000000e-01 : f32
    %237 = vector.broadcast %cst_88 : f32 to vector<8x128xf32>
    %238 = arith.mulf %237, %236 : vector<8x128xf32>
    %239 = vector.extract_strided_slice %222 {offsets = [0, 256], sizes = [8, 128], strides = [1, 1]} : vector<8x512xf32> to vector<8x128xf32>
    %240 = math.tanh %239 : vector<8x128xf32>
    %241 = vector.extract_strided_slice %222 {offsets = [0, 384], sizes = [8, 128], strides = [1, 1]} : vector<8x512xf32> to vector<8x128xf32>
    %cst_89 = arith.constant 5.000000e-01 : f32
    %242 = vector.broadcast %cst_89 : f32 to vector<8x128xf32>
    %243 = arith.mulf %242, %241 : vector<8x128xf32>
    %244 = math.tanh %243 : vector<8x128xf32>
    %cst_90 = arith.constant 1.000000e+00 : f32
    %245 = vector.broadcast %cst_90 : f32 to vector<8x128xf32>
    %246 = arith.addf %244, %245 : vector<8x128xf32>
    %cst_91 = arith.constant 5.000000e-01 : f32
    %247 = vector.broadcast %cst_91 : f32 to vector<8x128xf32>
    %248 = arith.mulf %247, %246 : vector<8x128xf32>
    %249 = arith.mulf %238, %216 : vector<8x128xf32>
    %250 = arith.mulf %230, %240 : vector<8x128xf32>
    %251 = arith.addf %249, %250 : vector<8x128xf32>
    %252 = math.tanh %251 : vector<8x128xf32>
    %253 = arith.mulf %248, %252 : vector<8x128xf32>
    %254 = vector.extract_strided_slice %6 {offsets = [56, 0], sizes = [8, 512], strides = [1, 1]} : vector<64x512xf32> to vector<8x512xf32>
    %c0_92 = arith.constant 0 : index
    %c0_93 = arith.constant 0 : index
    %255 = vector.load %arg3[%c0_92, %c0_93] : memref<128x512xf32, #tpu.memory_space<vmem>>, vector<128x512xf32>
    %cst_94 = arith.constant dense<0.000000e+00> : vector<8x512xf32>
    %256 = tpu.matmul %253, %255, %cst_94 {dimension_numbers = #tpu.dot_dimension_numbers<[1], [0], [0], [1], [0, 0, 1, 1], [], []>} : vector<8x128xf32>, vector<128x512xf32>, vector<8x512xf32> -> vector<8x512xf32>
    %257 = arith.addf %254, %256 : vector<8x512xf32>
    %258 = vector.extract_strided_slice %257 {offsets = [0, 0], sizes = [8, 128], strides = [1, 1]} : vector<8x512xf32> to vector<8x128xf32>
    %cst_95 = arith.constant 5.000000e-01 : f32
    %259 = vector.broadcast %cst_95 : f32 to vector<8x128xf32>
    %260 = arith.mulf %259, %258 : vector<8x128xf32>
    %261 = math.tanh %260 : vector<8x128xf32>
    %cst_96 = arith.constant 1.000000e+00 : f32
    %262 = vector.broadcast %cst_96 : f32 to vector<8x128xf32>
    %263 = arith.addf %261, %262 : vector<8x128xf32>
    %cst_97 = arith.constant 5.000000e-01 : f32
    %264 = vector.broadcast %cst_97 : f32 to vector<8x128xf32>
    %265 = arith.mulf %264, %263 : vector<8x128xf32>
    %266 = vector.extract_strided_slice %257 {offsets = [0, 128], sizes = [8, 128], strides = [1, 1]} : vector<8x512xf32> to vector<8x128xf32>
    %cst_98 = arith.constant 5.000000e-01 : f32
    %267 = vector.broadcast %cst_98 : f32 to vector<8x128xf32>
    %268 = arith.mulf %267, %266 : vector<8x128xf32>
    %269 = math.tanh %268 : vector<8x128xf32>
    %cst_99 = arith.constant 1.000000e+00 : f32
    %270 = vector.broadcast %cst_99 : f32 to vector<8x128xf32>
    %271 = arith.addf %269, %270 : vector<8x128xf32>
    %cst_100 = arith.constant 5.000000e-01 : f32
    %272 = vector.broadcast %cst_100 : f32 to vector<8x128xf32>
    %273 = arith.mulf %272, %271 : vector<8x128xf32>
    %274 = vector.extract_strided_slice %257 {offsets = [0, 256], sizes = [8, 128], strides = [1, 1]} : vector<8x512xf32> to vector<8x128xf32>
    %275 = math.tanh %274 : vector<8x128xf32>
    %276 = vector.extract_strided_slice %257 {offsets = [0, 384], sizes = [8, 128], strides = [1, 1]} : vector<8x512xf32> to vector<8x128xf32>
    %cst_101 = arith.constant 5.000000e-01 : f32
    %277 = vector.broadcast %cst_101 : f32 to vector<8x128xf32>
    %278 = arith.mulf %277, %276 : vector<8x128xf32>
    %279 = math.tanh %278 : vector<8x128xf32>
    %cst_102 = arith.constant 1.000000e+00 : f32
    %280 = vector.broadcast %cst_102 : f32 to vector<8x128xf32>
    %281 = arith.addf %279, %280 : vector<8x128xf32>
    %cst_103 = arith.constant 5.000000e-01 : f32
    %282 = vector.broadcast %cst_103 : f32 to vector<8x128xf32>
    %283 = arith.mulf %282, %281 : vector<8x128xf32>
    %284 = arith.mulf %273, %251 : vector<8x128xf32>
    %285 = arith.mulf %265, %275 : vector<8x128xf32>
    %286 = arith.addf %284, %285 : vector<8x128xf32>
    %287 = math.tanh %286 : vector<8x128xf32>
    %288 = arith.mulf %283, %287 : vector<8x128xf32>
    %c0_104 = arith.constant 0 : index
    %c0_105 = arith.constant 0 : index
    %289 = vector.load %arg25[%c0_104, %c0_105] : memref<8x128xf32, #tpu.memory_space<vmem>>, vector<8x128xf32>
    tpu.vector_store %arg25[%c0_104, %c0_105], %288 {strides = array<i32>} : memref<8x128xf32, #tpu.memory_space<vmem>>, vector<8x128xf32>,
    %290 = arith.mulf %288, %288 : vector<8x128xf32>
    %cst_106 = arith.constant dense<0.000000e+00> : vector<8xf32>
    %291 = vector.multi_reduction <add>, %290, %cst_106 [1] : vector<8x128xf32> to vector<8xf32>
    %292 = vector.shape_cast %291 : vector<8xf32> to vector<8x1xf32>
    %c0_107 = arith.constant 0 : index
    %c0_108 = arith.constant 0 : index
    %293 = vector.load %arg6[%c0_107, %c0_108] : memref<1x200xf32, #tpu.memory_space<vmem>>, vector<1x200xf32>
    %294 = vector.broadcast %292 : vector<8x1xf32> to vector<8x200xf32>
    %295 = vector.broadcast %293 : vector<1x200xf32> to vector<8x200xf32>
    %296 = arith.addf %294, %295 : vector<8x200xf32>
    %c0_109 = arith.constant 0 : index
    %c0_110 = arith.constant 0 : index
    %297 = vector.load %arg5[%c0_109, %c0_110] : memref<128x200xf32, #tpu.memory_space<vmem>>, vector<128x200xf32>
    %cst_111 = arith.constant dense<0.000000e+00> : vector<8x200xf32>
    %298 = tpu.matmul %288, %297, %cst_111 {dimension_numbers = #tpu.dot_dimension_numbers<[1], [0], [0], [1], [0, 0, 1, 1], [], []>} : vector<8x128xf32>, vector<128x200xf32>, vector<8x200xf32> -> vector<8x200xf32>
    %cst_112 = arith.constant 2.000000e+00 : f32
    %299 = vector.broadcast %cst_112 : f32 to vector<8x200xf32>
    %300 = arith.mulf %299, %298 : vector<8x200xf32>
    %301 = arith.subf %296, %300 : vector<8x200xf32>
    %cst_113 = arith.constant dense<0x7F800000> : vector<8xf32>
    %302 = vector.multi_reduction <minimumf>, %301, %cst_113 [1] : vector<8x200xf32> to vector<8xf32>
    %303 = vector.shape_cast %302 : vector<8xf32> to vector<8x1xf32>
    %304 = tpu.iota {dimensions = array<i32: 1>} : vector<8x200xi32>
    %305 = arith.sitofp %304 : vector<8x200xi32> to vector<8x200xf32>
    %306 = vector.broadcast %303 : vector<8x1xf32> to vector<8x200xf32>
    %307 = arith.cmpf ole, %301, %306 : vector<8x200xf32>
    %cst_114 = arith.constant 2.000000e+02 : f32
    %308 = vector.broadcast %cst_114 : f32 to vector<8x200xf32>
    %309 = arith.select %307, %305, %308 : vector<8x200xi1>, vector<8x200xf32>
    %cst_115 = arith.constant dense<0x7F800000> : vector<8xf32>
    %310 = vector.multi_reduction <minimumf>, %309, %cst_115 [1] : vector<8x200xf32> to vector<8xf32>
    %311 = vector.shape_cast %310 : vector<8xf32> to vector<8x1xf32>
    %312 = vector.broadcast %311 : vector<8x1xf32> to vector<8x200xf32>
    %313 = arith.cmpf oeq, %305, %312 : vector<8x200xf32>
    %314 = arith.extui %313 : vector<8x200xi1> to vector<8x200xi32>
    %315 = arith.sitofp %314 : vector<8x200xi32> to vector<8x200xf32>
    %c0_116 = arith.constant 0 : index
    %c0_117 = arith.constant 0 : index
    %316 = vector.load %arg26[%c0_116, %c0_117] : memref<8x200xf32, #tpu.memory_space<vmem>>, vector<8x200xf32>
    tpu.vector_store %arg26[%c0_116, %c0_117], %315 {strides = array<i32>} : memref<8x200xf32, #tpu.memory_space<vmem>>, vector<8x200xf32>,
    %317 = arith.fptosi %311 : vector<8x1xf32> to vector<8x1xi32>
    %c0_118 = arith.constant 0 : index
    %c0_119 = arith.constant 0 : index
    %318 = vector.load %arg27[%c0_118, %c0_119] : memref<8x1xi32, #tpu.memory_space<vmem>>, vector<8x1xi32>
    tpu.vector_store %arg27[%c0_118, %c0_119], %317 {strides = array<i32>} : memref<8x1xi32, #tpu.memory_space<vmem>>, vector<8x1xi32>,
    %c0_120 = arith.constant 0 : index
    %c0_121 = arith.constant 0 : index
    %319 = vector.load %arg7[%c0_120, %c0_121] : memref<128x128xf32, #tpu.memory_space<vmem>>, vector<128x128xf32>
    %cst_122 = arith.constant dense<0.000000e+00> : vector<8x128xf32>
    %320 = tpu.matmul %288, %319, %cst_122 {dimension_numbers = #tpu.dot_dimension_numbers<[1], [0], [0], [1], [0, 0, 1, 1], [], []>} : vector<8x128xf32>, vector<128x128xf32>, vector<8x128xf32> -> vector<8x128xf32>
    %c0_123 = arith.constant 0 : index
    %c0_124 = arith.constant 0 : index
    %321 = vector.load %arg8[%c0_123, %c0_124] : memref<1x128xf32, #tpu.memory_space<vmem>>, vector<1x128xf32>
    %322 = vector.broadcast %321 : vector<1x128xf32> to vector<8x128xf32>
    %323 = arith.addf %320, %322 : vector<8x128xf32>
    %c0_125 = arith.constant 0 : index
    %c0_126 = arith.constant 0 : index
    %324 = vector.load %arg9[%c0_125, %c0_126] : memref<128x512xf32, #tpu.memory_space<vmem>>, vector<128x512xf32>
    %cst_127 = arith.constant dense<0.000000e+00> : vector<8x512xf32>
    %325 = tpu.matmul %323, %324, %cst_127 {dimension_numbers = #tpu.dot_dimension_numbers<[1], [0], [0], [1], [0, 0, 1, 1], [], []>} : vector<8x128xf32>, vector<128x512xf32>, vector<8x512xf32> -> vector<8x512xf32>
    %c0_128 = arith.constant 0 : index
    %c0_129 = arith.constant 0 : index
    %326 = vector.load %arg12[%c0_128, %c0_129] : memref<1x512xf32, #tpu.memory_space<vmem>>, vector<1x512xf32>
    %327 = vector.broadcast %326 : vector<1x512xf32> to vector<8x512xf32>
    %328 = arith.addf %325, %327 : vector<8x512xf32>
    %cst_130 = arith.constant 0.000000e+00 : f32
    %329 = vector.broadcast %cst_130 : f32 to vector<8x128xf32>
    %cst_131 = arith.constant 0.000000e+00 : f32
    %330 = vector.broadcast %cst_131 : f32 to vector<8x128xf32>
    %cst_132 = arith.constant 0.000000e+00 : f32
    %331 = vector.broadcast %cst_132 : f32 to vector<8x25xf32>
    %c0_133 = arith.constant 0 : index
    %c0_134 = arith.constant 0 : index
    %332 = vector.load %arg10[%c0_133, %c0_134] : memref<25x512xf32, #tpu.memory_space<vmem>>, vector<25x512xf32>
    %cst_135 = arith.constant dense<0.000000e+00> : vector<8x512xf32>
    %333 = tpu.matmul %331, %332, %cst_135 {dimension_numbers = #tpu.dot_dimension_numbers<[1], [0], [0], [1], [0, 0, 1, 1], [], []>} : vector<8x25xf32>, vector<25x512xf32>, vector<8x512xf32> -> vector<8x512xf32>
    %334 = arith.addf %328, %333 : vector<8x512xf32>
    %c0_136 = arith.constant 0 : index
    %c0_137 = arith.constant 0 : index
    %335 = vector.load %arg11[%c0_136, %c0_137] : memref<128x512xf32, #tpu.memory_space<vmem>>, vector<128x512xf32>
    %cst_138 = arith.constant dense<0.000000e+00> : vector<8x512xf32>
    %336 = tpu.matmul %329, %335, %cst_138 {dimension_numbers = #tpu.dot_dimension_numbers<[1], [0], [0], [1], [0, 0, 1, 1], [], []>} : vector<8x128xf32>, vector<128x512xf32>, vector<8x512xf32> -> vector<8x512xf32>
    %337 = arith.addf %334, %336 : vector<8x512xf32>
    %338 = vector.extract_strided_slice %337 {offsets = [0, 0], sizes = [8, 128], strides = [1, 1]} : vector<8x512xf32> to vector<8x128xf32>
    %cst_139 = arith.constant 5.000000e-01 : f32
    %339 = vector.broadcast %cst_139 : f32 to vector<8x128xf32>
    %340 = arith.mulf %339, %338 : vector<8x128xf32>
    %341 = math.tanh %340 : vector<8x128xf32>
    %cst_140 = arith.constant 1.000000e+00 : f32
    %342 = vector.broadcast %cst_140 : f32 to vector<8x128xf32>
    %343 = arith.addf %341, %342 : vector<8x128xf32>
    %cst_141 = arith.constant 5.000000e-01 : f32
    %344 = vector.broadcast %cst_141 : f32 to vector<8x128xf32>
    %345 = arith.mulf %344, %343 : vector<8x128xf32>
    %346 = vector.extract_strided_slice %337 {offsets = [0, 128], sizes = [8, 128], strides = [1, 1]} : vector<8x512xf32> to vector<8x128xf32>
    %cst_142 = arith.constant 5.000000e-01 : f32
    %347 = vector.broadcast %cst_142 : f32 to vector<8x128xf32>
    %348 = arith.mulf %347, %346 : vector<8x128xf32>
    %349 = math.tanh %348 : vector<8x128xf32>
    %cst_143 = arith.constant 1.000000e+00 : f32
    %350 = vector.broadcast %cst_143 : f32 to vector<8x128xf32>
    %351 = arith.addf %349, %350 : vector<8x128xf32>
    %cst_144 = arith.constant 5.000000e-01 : f32
    %352 = vector.broadcast %cst_144 : f32 to vector<8x128xf32>
    %353 = arith.mulf %352, %351 : vector<8x128xf32>
    %354 = vector.extract_strided_slice %337 {offsets = [0, 256], sizes = [8, 128], strides = [1, 1]} : vector<8x512xf32> to vector<8x128xf32>
    %355 = math.tanh %354 : vector<8x128xf32>
    %356 = vector.extract_strided_slice %337 {offsets = [0, 384], sizes = [8, 128], strides = [1, 1]} : vector<8x512xf32> to vector<8x128xf32>
    %cst_145 = arith.constant 5.000000e-01 : f32
    %357 = vector.broadcast %cst_145 : f32 to vector<8x128xf32>
    %358 = arith.mulf %357, %356 : vector<8x128xf32>
    %359 = math.tanh %358 : vector<8x128xf32>
    %cst_146 = arith.constant 1.000000e+00 : f32
    %360 = vector.broadcast %cst_146 : f32 to vector<8x128xf32>
    %361 = arith.addf %359, %360 : vector<8x128xf32>
    %cst_147 = arith.constant 5.000000e-01 : f32
    %362 = vector.broadcast %cst_147 : f32 to vector<8x128xf32>
    %363 = arith.mulf %362, %361 : vector<8x128xf32>
    %364 = arith.mulf %353, %330 : vector<8x128xf32>
    %365 = arith.mulf %345, %355 : vector<8x128xf32>
    %366 = arith.addf %364, %365 : vector<8x128xf32>
    %367 = math.tanh %366 : vector<8x128xf32>
    %368 = arith.mulf %363, %367 : vector<8x128xf32>
    %c0_148 = arith.constant 0 : index
    %c0_149 = arith.constant 0 : index
    %369 = vector.load %arg13[%c0_148, %c0_149] : memref<128x128xf32, #tpu.memory_space<vmem>>, vector<128x128xf32>
    %cst_150 = arith.constant dense<0.000000e+00> : vector<8x128xf32>
    %370 = tpu.matmul %368, %369, %cst_150 {dimension_numbers = #tpu.dot_dimension_numbers<[1], [0], [0], [1], [0, 0, 1, 1], [], []>} : vector<8x128xf32>, vector<128x128xf32>, vector<8x128xf32> -> vector<8x128xf32>
    %c0_151 = arith.constant 0 : index
    %c0_152 = arith.constant 0 : index
    %371 = vector.load %arg14[%c0_151, %c0_152] : memref<1x128xf32, #tpu.memory_space<vmem>>, vector<1x128xf32>
    %372 = vector.broadcast %371 : vector<1x128xf32> to vector<8x128xf32>
    %373 = arith.addf %370, %372 : vector<8x128xf32>
    %374 = math.tanh %373 : vector<8x128xf32>
    %c0_153 = arith.constant 0 : index
    %c0_154 = arith.constant 0 : index
    %375 = vector.load %arg15[%c0_153, %c0_154] : memref<128x128xf32, #tpu.memory_space<vmem>>, vector<128x128xf32>
    %cst_155 = arith.constant dense<0.000000e+00> : vector<8x128xf32>
    %376 = tpu.matmul %374, %375, %cst_155 {dimension_numbers = #tpu.dot_dimension_numbers<[1], [0], [0], [1], [0, 0, 1, 1], [], []>} : vector<8x128xf32>, vector<128x128xf32>, vector<8x128xf32> -> vector<8x128xf32>
    %c0_156 = arith.constant 0 : index
    %c0_157 = arith.constant 0 : index
    %377 = vector.load %arg16[%c0_156, %c0_157] : memref<1x128xf32, #tpu.memory_space<vmem>>, vector<1x128xf32>
    %378 = vector.broadcast %377 : vector<1x128xf32> to vector<8x128xf32>
    %379 = arith.addf %376, %378 : vector<8x128xf32>
    %380 = math.tanh %379 : vector<8x128xf32>
    %c0_158 = arith.constant 0 : index
    %c0_159 = arith.constant 0 : index
    %381 = vector.load %arg17[%c0_158, %c0_159] : memref<128x25xf32, #tpu.memory_space<vmem>>, vector<128x25xf32>
    %cst_160 = arith.constant dense<0.000000e+00> : vector<8x25xf32>
    %382 = tpu.matmul %380, %381, %cst_160 {dimension_numbers = #tpu.dot_dimension_numbers<[1], [0], [0], [1], [0, 0, 1, 1], [], []>} : vector<8x128xf32>, vector<128x25xf32>, vector<8x25xf32> -> vector<8x25xf32>
    %c0_161 = arith.constant 0 : index
    %c0_162 = arith.constant 0 : index
    %383 = vector.load %arg18[%c0_161, %c0_162] : memref<1x25xf32, #tpu.memory_space<vmem>>, vector<1x25xf32>
    %384 = vector.broadcast %383 : vector<1x25xf32> to vector<8x25xf32>
    %385 = arith.addf %382, %384 : vector<8x25xf32>
    %c0_163 = arith.constant 0 : index
    %c0_164 = arith.constant 0 : index
    %c0_165 = arith.constant 0 : index
    %386 = vector.load %arg23[%c0_163, %c0_164, %c0_165] : memref<8x8x25xf32, #tpu.memory_space<vmem>>, vector<1x8x25xf32>
    %387 = vector.shape_cast %386 : vector<1x8x25xf32> to vector<8x25xf32>
    %388 = vector.shape_cast %385 : vector<8x25xf32> to vector<1x8x25xf32>
    tpu.vector_store %arg23[%c0_163, %c0_164, %c0_165], %388 {strides = array<i32>} : memref<8x8x25xf32, #tpu.memory_space<vmem>>, vector<1x8x25xf32>,
    %c0_166 = arith.constant 0 : index
    %c0_167 = arith.constant 0 : index
    %389 = vector.load %arg10[%c0_166, %c0_167] : memref<25x512xf32, #tpu.memory_space<vmem>>, vector<25x512xf32>
    %cst_168 = arith.constant dense<0.000000e+00> : vector<8x512xf32>
    %390 = tpu.matmul %385, %389, %cst_168 {dimension_numbers = #tpu.dot_dimension_numbers<[1], [0], [0], [1], [0, 0, 1, 1], [], []>} : vector<8x25xf32>, vector<25x512xf32>, vector<8x512xf32> -> vector<8x512xf32>
    %391 = arith.addf %328, %390 : vector<8x512xf32>
    %c0_169 = arith.constant 0 : index
    %c0_170 = arith.constant 0 : index
    %392 = vector.load %arg11[%c0_169, %c0_170] : memref<128x512xf32, #tpu.memory_space<vmem>>, vector<128x512xf32>
    %cst_171 = arith.constant dense<0.000000e+00> : vector<8x512xf32>
    %393 = tpu.matmul %368, %392, %cst_171 {dimension_numbers = #tpu.dot_dimension_numbers<[1], [0], [0], [1], [0, 0, 1, 1], [], []>} : vector<8x128xf32>, vector<128x512xf32>, vector<8x512xf32> -> vector<8x512xf32>
    %394 = arith.addf %391, %393 : vector<8x512xf32>
    %395 = vector.extract_strided_slice %394 {offsets = [0, 0], sizes = [8, 128], strides = [1, 1]} : vector<8x512xf32> to vector<8x128xf32>
    %cst_172 = arith.constant 5.000000e-01 : f32
    %396 = vector.broadcast %cst_172 : f32 to vector<8x128xf32>
    %397 = arith.mulf %396, %395 : vector<8x128xf32>
    %398 = math.tanh %397 : vector<8x128xf32>
    %cst_173 = arith.constant 1.000000e+00 : f32
    %399 = vector.broadcast %cst_173 : f32 to vector<8x128xf32>
    %400 = arith.addf %398, %399 : vector<8x128xf32>
    %cst_174 = arith.constant 5.000000e-01 : f32
    %401 = vector.broadcast %cst_174 : f32 to vector<8x128xf32>
    %402 = arith.mulf %401, %400 : vector<8x128xf32>
    %403 = vector.extract_strided_slice %394 {offsets = [0, 128], sizes = [8, 128], strides = [1, 1]} : vector<8x512xf32> to vector<8x128xf32>
    %cst_175 = arith.constant 5.000000e-01 : f32
    %404 = vector.broadcast %cst_175 : f32 to vector<8x128xf32>
    %405 = arith.mulf %404, %403 : vector<8x128xf32>
    %406 = math.tanh %405 : vector<8x128xf32>
    %cst_176 = arith.constant 1.000000e+00 : f32
    %407 = vector.broadcast %cst_176 : f32 to vector<8x128xf32>
    %408 = arith.addf %406, %407 : vector<8x128xf32>
    %cst_177 = arith.constant 5.000000e-01 : f32
    %409 = vector.broadcast %cst_177 : f32 to vector<8x128xf32>
    %410 = arith.mulf %409, %408 : vector<8x128xf32>
    %411 = vector.extract_strided_slice %394 {offsets = [0, 256], sizes = [8, 128], strides = [1, 1]} : vector<8x512xf32> to vector<8x128xf32>
    %412 = math.tanh %411 : vector<8x128xf32>
    %413 = vector.extract_strided_slice %394 {offsets = [0, 384], sizes = [8, 128], strides = [1, 1]} : vector<8x512xf32> to vector<8x128xf32>
    %cst_178 = arith.constant 5.000000e-01 : f32
    %414 = vector.broadcast %cst_178 : f32 to vector<8x128xf32>
    %415 = arith.mulf %414, %413 : vector<8x128xf32>
    %416 = math.tanh %415 : vector<8x128xf32>
    %cst_179 = arith.constant 1.000000e+00 : f32
    %417 = vector.broadcast %cst_179 : f32 to vector<8x128xf32>
    %418 = arith.addf %416, %417 : vector<8x128xf32>
    %cst_180 = arith.constant 5.000000e-01 : f32
    %419 = vector.broadcast %cst_180 : f32 to vector<8x128xf32>
    %420 = arith.mulf %419, %418 : vector<8x128xf32>
    %421 = arith.mulf %410, %366 : vector<8x128xf32>
    %422 = arith.mulf %402, %412 : vector<8x128xf32>
    %423 = arith.addf %421, %422 : vector<8x128xf32>
    %424 = math.tanh %423 : vector<8x128xf32>
    %425 = arith.mulf %420, %424 : vector<8x128xf32>
    %c0_181 = arith.constant 0 : index
    %c0_182 = arith.constant 0 : index
    %426 = vector.load %arg13[%c0_181, %c0_182] : memref<128x128xf32, #tpu.memory_space<vmem>>, vector<128x128xf32>
    %cst_183 = arith.constant dense<0.000000e+00> : vector<8x128xf32>
    %427 = tpu.matmul %425, %426, %cst_183 {dimension_numbers = #tpu.dot_dimension_numbers<[1], [0], [0], [1], [0, 0, 1, 1], [], []>} : vector<8x128xf32>, vector<128x128xf32>, vector<8x128xf32> -> vector<8x128xf32>
    %c0_184 = arith.constant 0 : index
    %c0_185 = arith.constant 0 : index
    %428 = vector.load %arg14[%c0_184, %c0_185] : memref<1x128xf32, #tpu.memory_space<vmem>>, vector<1x128xf32>
    %429 = vector.broadcast %428 : vector<1x128xf32> to vector<8x128xf32>
    %430 = arith.addf %427, %429 : vector<8x128xf32>
    %431 = math.tanh %430 : vector<8x128xf32>
    %c0_186 = arith.constant 0 : index
    %c0_187 = arith.constant 0 : index
    %432 = vector.load %arg15[%c0_186, %c0_187] : memref<128x128xf32, #tpu.memory_space<vmem>>, vector<128x128xf32>
    %cst_188 = arith.constant dense<0.000000e+00> : vector<8x128xf32>
    %433 = tpu.matmul %431, %432, %cst_188 {dimension_numbers = #tpu.dot_dimension_numbers<[1], [0], [0], [1], [0, 0, 1, 1], [], []>} : vector<8x128xf32>, vector<128x128xf32>, vector<8x128xf32> -> vector<8x128xf32>
    %c0_189 = arith.constant 0 : index
    %c0_190 = arith.constant 0 : index
    %434 = vector.load %arg16[%c0_189, %c0_190] : memref<1x128xf32, #tpu.memory_space<vmem>>, vector<1x128xf32>
    %435 = vector.broadcast %434 : vector<1x128xf32> to vector<8x128xf32>
    %436 = arith.addf %433, %435 : vector<8x128xf32>
    %437 = math.tanh %436 : vector<8x128xf32>
    %c0_191 = arith.constant 0 : index
    %c0_192 = arith.constant 0 : index
    %438 = vector.load %arg17[%c0_191, %c0_192] : memref<128x25xf32, #tpu.memory_space<vmem>>, vector<128x25xf32>
    %cst_193 = arith.constant dense<0.000000e+00> : vector<8x25xf32>
    %439 = tpu.matmul %437, %438, %cst_193 {dimension_numbers = #tpu.dot_dimension_numbers<[1], [0], [0], [1], [0, 0, 1, 1], [], []>} : vector<8x128xf32>, vector<128x25xf32>, vector<8x25xf32> -> vector<8x25xf32>
    %c0_194 = arith.constant 0 : index
    %c0_195 = arith.constant 0 : index
    %440 = vector.load %arg18[%c0_194, %c0_195] : memref<1x25xf32, #tpu.memory_space<vmem>>, vector<1x25xf32>
    %441 = vector.broadcast %440 : vector<1x25xf32> to vector<8x25xf32>
    %442 = arith.addf %439, %441 : vector<8x25xf32>
    %c1 = arith.constant 1 : index
    %c0_196 = arith.constant 0 : index
    %c0_197 = arith.constant 0 : index
    %443 = vector.load %arg23[%c1, %c0_196, %c0_197] : memref<8x8x25xf32, #tpu.memory_space<vmem>>, vector<1x8x25xf32>
    %444 = vector.shape_cast %443 : vector<1x8x25xf32> to vector<8x25xf32>
    %445 = vector.shape_cast %442 : vector<8x25xf32> to vector<1x8x25xf32>
    tpu.vector_store %arg23[%c1, %c0_196, %c0_197], %445 {strides = array<i32>} : memref<8x8x25xf32, #tpu.memory_space<vmem>>, vector<1x8x25xf32>,
    %c0_198 = arith.constant 0 : index
    %c0_199 = arith.constant 0 : index
    %446 = vector.load %arg10[%c0_198, %c0_199] : memref<25x512xf32, #tpu.memory_space<vmem>>, vector<25x512xf32>
    %cst_200 = arith.constant dense<0.000000e+00> : vector<8x512xf32>
    %447 = tpu.matmul %442, %446, %cst_200 {dimension_numbers = #tpu.dot_dimension_numbers<[1], [0], [0], [1], [0, 0, 1, 1], [], []>} : vector<8x25xf32>, vector<25x512xf32>, vector<8x512xf32> -> vector<8x512xf32>
    %448 = arith.addf %328, %447 : vector<8x512xf32>
    %c0_201 = arith.constant 0 : index
    %c0_202 = arith.constant 0 : index
    %449 = vector.load %arg11[%c0_201, %c0_202] : memref<128x512xf32, #tpu.memory_space<vmem>>, vector<128x512xf32>
    %cst_203 = arith.constant dense<0.000000e+00> : vector<8x512xf32>
    %450 = tpu.matmul %425, %449, %cst_203 {dimension_numbers = #tpu.dot_dimension_numbers<[1], [0], [0], [1], [0, 0, 1, 1], [], []>} : vector<8x128xf32>, vector<128x512xf32>, vector<8x512xf32> -> vector<8x512xf32>
    %451 = arith.addf %448, %450 : vector<8x512xf32>
    %452 = vector.extract_strided_slice %451 {offsets = [0, 0], sizes = [8, 128], strides = [1, 1]} : vector<8x512xf32> to vector<8x128xf32>
    %cst_204 = arith.constant 5.000000e-01 : f32
    %453 = vector.broadcast %cst_204 : f32 to vector<8x128xf32>
    %454 = arith.mulf %453, %452 : vector<8x128xf32>
    %455 = math.tanh %454 : vector<8x128xf32>
    %cst_205 = arith.constant 1.000000e+00 : f32
    %456 = vector.broadcast %cst_205 : f32 to vector<8x128xf32>
    %457 = arith.addf %455, %456 : vector<8x128xf32>
    %cst_206 = arith.constant 5.000000e-01 : f32
    %458 = vector.broadcast %cst_206 : f32 to vector<8x128xf32>
    %459 = arith.mulf %458, %457 : vector<8x128xf32>
    %460 = vector.extract_strided_slice %451 {offsets = [0, 128], sizes = [8, 128], strides = [1, 1]} : vector<8x512xf32> to vector<8x128xf32>
    %cst_207 = arith.constant 5.000000e-01 : f32
    %461 = vector.broadcast %cst_207 : f32 to vector<8x128xf32>
    %462 = arith.mulf %461, %460 : vector<8x128xf32>
    %463 = math.tanh %462 : vector<8x128xf32>
    %cst_208 = arith.constant 1.000000e+00 : f32
    %464 = vector.broadcast %cst_208 : f32 to vector<8x128xf32>
    %465 = arith.addf %463, %464 : vector<8x128xf32>
    %cst_209 = arith.constant 5.000000e-01 : f32
    %466 = vector.broadcast %cst_209 : f32 to vector<8x128xf32>
    %467 = arith.mulf %466, %465 : vector<8x128xf32>
    %468 = vector.extract_strided_slice %451 {offsets = [0, 256], sizes = [8, 128], strides = [1, 1]} : vector<8x512xf32> to vector<8x128xf32>
    %469 = math.tanh %468 : vector<8x128xf32>
    %470 = vector.extract_strided_slice %451 {offsets = [0, 384], sizes = [8, 128], strides = [1, 1]} : vector<8x512xf32> to vector<8x128xf32>
    %cst_210 = arith.constant 5.000000e-01 : f32
    %471 = vector.broadcast %cst_210 : f32 to vector<8x128xf32>
    %472 = arith.mulf %471, %470 : vector<8x128xf32>
    %473 = math.tanh %472 : vector<8x128xf32>
    %cst_211 = arith.constant 1.000000e+00 : f32
    %474 = vector.broadcast %cst_211 : f32 to vector<8x128xf32>
    %475 = arith.addf %473, %474 : vector<8x128xf32>
    %cst_212 = arith.constant 5.000000e-01 : f32
    %476 = vector.broadcast %cst_212 : f32 to vector<8x128xf32>
    %477 = arith.mulf %476, %475 : vector<8x128xf32>
    %478 = arith.mulf %467, %423 : vector<8x128xf32>
    %479 = arith.mulf %459, %469 : vector<8x128xf32>
    %480 = arith.addf %478, %479 : vector<8x128xf32>
    %481 = math.tanh %480 : vector<8x128xf32>
    %482 = arith.mulf %477, %481 : vector<8x128xf32>
    %c0_213 = arith.constant 0 : index
    %c0_214 = arith.constant 0 : index
    %483 = vector.load %arg13[%c0_213, %c0_214] : memref<128x128xf32, #tpu.memory_space<vmem>>, vector<128x128xf32>
    %cst_215 = arith.constant dense<0.000000e+00> : vector<8x128xf32>
    %484 = tpu.matmul %482, %483, %cst_215 {dimension_numbers = #tpu.dot_dimension_numbers<[1], [0], [0], [1], [0, 0, 1, 1], [], []>} : vector<8x128xf32>, vector<128x128xf32>, vector<8x128xf32> -> vector<8x128xf32>
    %c0_216 = arith.constant 0 : index
    %c0_217 = arith.constant 0 : index
    %485 = vector.load %arg14[%c0_216, %c0_217] : memref<1x128xf32, #tpu.memory_space<vmem>>, vector<1x128xf32>
    %486 = vector.broadcast %485 : vector<1x128xf32> to vector<8x128xf32>
    %487 = arith.addf %484, %486 : vector<8x128xf32>
    %488 = math.tanh %487 : vector<8x128xf32>
    %c0_218 = arith.constant 0 : index
    %c0_219 = arith.constant 0 : index
    %489 = vector.load %arg15[%c0_218, %c0_219] : memref<128x128xf32, #tpu.memory_space<vmem>>, vector<128x128xf32>
    %cst_220 = arith.constant dense<0.000000e+00> : vector<8x128xf32>
    %490 = tpu.matmul %488, %489, %cst_220 {dimension_numbers = #tpu.dot_dimension_numbers<[1], [0], [0], [1], [0, 0, 1, 1], [], []>} : vector<8x128xf32>, vector<128x128xf32>, vector<8x128xf32> -> vector<8x128xf32>
    %c0_221 = arith.constant 0 : index
    %c0_222 = arith.constant 0 : index
    %491 = vector.load %arg16[%c0_221, %c0_222] : memref<1x128xf32, #tpu.memory_space<vmem>>, vector<1x128xf32>
    %492 = vector.broadcast %491 : vector<1x128xf32> to vector<8x128xf32>
    %493 = arith.addf %490, %492 : vector<8x128xf32>
    %494 = math.tanh %493 : vector<8x128xf32>
    %c0_223 = arith.constant 0 : index
    %c0_224 = arith.constant 0 : index
    %495 = vector.load %arg17[%c0_223, %c0_224] : memref<128x25xf32, #tpu.memory_space<vmem>>, vector<128x25xf32>
    %cst_225 = arith.constant dense<0.000000e+00> : vector<8x25xf32>
    %496 = tpu.matmul %494, %495, %cst_225 {dimension_numbers = #tpu.dot_dimension_numbers<[1], [0], [0], [1], [0, 0, 1, 1], [], []>} : vector<8x128xf32>, vector<128x25xf32>, vector<8x25xf32> -> vector<8x25xf32>
    %c0_226 = arith.constant 0 : index
    %c0_227 = arith.constant 0 : index
    %497 = vector.load %arg18[%c0_226, %c0_227] : memref<1x25xf32, #tpu.memory_space<vmem>>, vector<1x25xf32>
    %498 = vector.broadcast %497 : vector<1x25xf32> to vector<8x25xf32>
    %499 = arith.addf %496, %498 : vector<8x25xf32>
    %c2 = arith.constant 2 : index
    %c0_228 = arith.constant 0 : index
    %c0_229 = arith.constant 0 : index
    %500 = vector.load %arg23[%c2, %c0_228, %c0_229] : memref<8x8x25xf32, #tpu.memory_space<vmem>>, vector<1x8x25xf32>
    %501 = vector.shape_cast %500 : vector<1x8x25xf32> to vector<8x25xf32>
    %502 = vector.shape_cast %499 : vector<8x25xf32> to vector<1x8x25xf32>
    tpu.vector_store %arg23[%c2, %c0_228, %c0_229], %502 {strides = array<i32>} : memref<8x8x25xf32, #tpu.memory_space<vmem>>, vector<1x8x25xf32>,
    %c0_230 = arith.constant 0 : index
    %c0_231 = arith.constant 0 : index
    %503 = vector.load %arg10[%c0_230, %c0_231] : memref<25x512xf32, #tpu.memory_space<vmem>>, vector<25x512xf32>
    %cst_232 = arith.constant dense<0.000000e+00> : vector<8x512xf32>
    %504 = tpu.matmul %499, %503, %cst_232 {dimension_numbers = #tpu.dot_dimension_numbers<[1], [0], [0], [1], [0, 0, 1, 1], [], []>} : vector<8x25xf32>, vector<25x512xf32>, vector<8x512xf32> -> vector<8x512xf32>
    %505 = arith.addf %328, %504 : vector<8x512xf32>
    %c0_233 = arith.constant 0 : index
    %c0_234 = arith.constant 0 : index
    %506 = vector.load %arg11[%c0_233, %c0_234] : memref<128x512xf32, #tpu.memory_space<vmem>>, vector<128x512xf32>
    %cst_235 = arith.constant dense<0.000000e+00> : vector<8x512xf32>
    %507 = tpu.matmul %482, %506, %cst_235 {dimension_numbers = #tpu.dot_dimension_numbers<[1], [0], [0], [1], [0, 0, 1, 1], [], []>} : vector<8x128xf32>, vector<128x512xf32>, vector<8x512xf32> -> vector<8x512xf32>
    %508 = arith.addf %505, %507 : vector<8x512xf32>
    %509 = vector.extract_strided_slice %508 {offsets = [0, 0], sizes = [8, 128], strides = [1, 1]} : vector<8x512xf32> to vector<8x128xf32>
    %cst_236 = arith.constant 5.000000e-01 : f32
    %510 = vector.broadcast %cst_236 : f32 to vector<8x128xf32>
    %511 = arith.mulf %510, %509 : vector<8x128xf32>
    %512 = math.tanh %511 : vector<8x128xf32>
    %cst_237 = arith.constant 1.000000e+00 : f32
    %513 = vector.broadcast %cst_237 : f32 to vector<8x128xf32>
    %514 = arith.addf %512, %513 : vector<8x128xf32>
    %cst_238 = arith.constant 5.000000e-01 : f32
    %515 = vector.broadcast %cst_238 : f32 to vector<8x128xf32>
    %516 = arith.mulf %515, %514 : vector<8x128xf32>
    %517 = vector.extract_strided_slice %508 {offsets = [0, 128], sizes = [8, 128], strides = [1, 1]} : vector<8x512xf32> to vector<8x128xf32>
    %cst_239 = arith.constant 5.000000e-01 : f32
    %518 = vector.broadcast %cst_239 : f32 to vector<8x128xf32>
    %519 = arith.mulf %518, %517 : vector<8x128xf32>
    %520 = math.tanh %519 : vector<8x128xf32>
    %cst_240 = arith.constant 1.000000e+00 : f32
    %521 = vector.broadcast %cst_240 : f32 to vector<8x128xf32>
    %522 = arith.addf %520, %521 : vector<8x128xf32>
    %cst_241 = arith.constant 5.000000e-01 : f32
    %523 = vector.broadcast %cst_241 : f32 to vector<8x128xf32>
    %524 = arith.mulf %523, %522 : vector<8x128xf32>
    %525 = vector.extract_strided_slice %508 {offsets = [0, 256], sizes = [8, 128], strides = [1, 1]} : vector<8x512xf32> to vector<8x128xf32>
    %526 = math.tanh %525 : vector<8x128xf32>
    %527 = vector.extract_strided_slice %508 {offsets = [0, 384], sizes = [8, 128], strides = [1, 1]} : vector<8x512xf32> to vector<8x128xf32>
    %cst_242 = arith.constant 5.000000e-01 : f32
    %528 = vector.broadcast %cst_242 : f32 to vector<8x128xf32>
    %529 = arith.mulf %528, %527 : vector<8x128xf32>
    %530 = math.tanh %529 : vector<8x128xf32>
    %cst_243 = arith.constant 1.000000e+00 : f32
    %531 = vector.broadcast %cst_243 : f32 to vector<8x128xf32>
    %532 = arith.addf %530, %531 : vector<8x128xf32>
    %cst_244 = arith.constant 5.000000e-01 : f32
    %533 = vector.broadcast %cst_244 : f32 to vector<8x128xf32>
    %534 = arith.mulf %533, %532 : vector<8x128xf32>
    %535 = arith.mulf %524, %480 : vector<8x128xf32>
    %536 = arith.mulf %516, %526 : vector<8x128xf32>
    %537 = arith.addf %535, %536 : vector<8x128xf32>
    %538 = math.tanh %537 : vector<8x128xf32>
    %539 = arith.mulf %534, %538 : vector<8x128xf32>
    %c0_245 = arith.constant 0 : index
    %c0_246 = arith.constant 0 : index
    %540 = vector.load %arg13[%c0_245, %c0_246] : memref<128x128xf32, #tpu.memory_space<vmem>>, vector<128x128xf32>
    %cst_247 = arith.constant dense<0.000000e+00> : vector<8x128xf32>
    %541 = tpu.matmul %539, %540, %cst_247 {dimension_numbers = #tpu.dot_dimension_numbers<[1], [0], [0], [1], [0, 0, 1, 1], [], []>} : vector<8x128xf32>, vector<128x128xf32>, vector<8x128xf32> -> vector<8x128xf32>
    %c0_248 = arith.constant 0 : index
    %c0_249 = arith.constant 0 : index
    %542 = vector.load %arg14[%c0_248, %c0_249] : memref<1x128xf32, #tpu.memory_space<vmem>>, vector<1x128xf32>
    %543 = vector.broadcast %542 : vector<1x128xf32> to vector<8x128xf32>
    %544 = arith.addf %541, %543 : vector<8x128xf32>
    %545 = math.tanh %544 : vector<8x128xf32>
    %c0_250 = arith.constant 0 : index
    %c0_251 = arith.constant 0 : index
    %546 = vector.load %arg15[%c0_250, %c0_251] : memref<128x128xf32, #tpu.memory_space<vmem>>, vector<128x128xf32>
    %cst_252 = arith.constant dense<0.000000e+00> : vector<8x128xf32>
    %547 = tpu.matmul %545, %546, %cst_252 {dimension_numbers = #tpu.dot_dimension_numbers<[1], [0], [0], [1], [0, 0, 1, 1], [], []>} : vector<8x128xf32>, vector<128x128xf32>, vector<8x128xf32> -> vector<8x128xf32>
    %c0_253 = arith.constant 0 : index
    %c0_254 = arith.constant 0 : index
    %548 = vector.load %arg16[%c0_253, %c0_254] : memref<1x128xf32, #tpu.memory_space<vmem>>, vector<1x128xf32>
    %549 = vector.broadcast %548 : vector<1x128xf32> to vector<8x128xf32>
    %550 = arith.addf %547, %549 : vector<8x128xf32>
    %551 = math.tanh %550 : vector<8x128xf32>
    %c0_255 = arith.constant 0 : index
    %c0_256 = arith.constant 0 : index
    %552 = vector.load %arg17[%c0_255, %c0_256] : memref<128x25xf32, #tpu.memory_space<vmem>>, vector<128x25xf32>
    %cst_257 = arith.constant dense<0.000000e+00> : vector<8x25xf32>
    %553 = tpu.matmul %551, %552, %cst_257 {dimension_numbers = #tpu.dot_dimension_numbers<[1], [0], [0], [1], [0, 0, 1, 1], [], []>} : vector<8x128xf32>, vector<128x25xf32>, vector<8x25xf32> -> vector<8x25xf32>
    %c0_258 = arith.constant 0 : index
    %c0_259 = arith.constant 0 : index
    %554 = vector.load %arg18[%c0_258, %c0_259] : memref<1x25xf32, #tpu.memory_space<vmem>>, vector<1x25xf32>
    %555 = vector.broadcast %554 : vector<1x25xf32> to vector<8x25xf32>
    %556 = arith.addf %553, %555 : vector<8x25xf32>
    %c3 = arith.constant 3 : index
    %c0_260 = arith.constant 0 : index
    %c0_261 = arith.constant 0 : index
    %557 = vector.load %arg23[%c3, %c0_260, %c0_261] : memref<8x8x25xf32, #tpu.memory_space<vmem>>, vector<1x8x25xf32>
    %558 = vector.shape_cast %557 : vector<1x8x25xf32> to vector<8x25xf32>
    %559 = vector.shape_cast %556 : vector<8x25xf32> to vector<1x8x25xf32>
    tpu.vector_store %arg23[%c3, %c0_260, %c0_261], %559 {strides = array<i32>} : memref<8x8x25xf32, #tpu.memory_space<vmem>>, vector<1x8x25xf32>,
    %c0_262 = arith.constant 0 : index
    %c0_263 = arith.constant 0 : index
    %560 = vector.load %arg10[%c0_262, %c0_263] : memref<25x512xf32, #tpu.memory_space<vmem>>, vector<25x512xf32>
    %cst_264 = arith.constant dense<0.000000e+00> : vector<8x512xf32>
    %561 = tpu.matmul %556, %560, %cst_264 {dimension_numbers = #tpu.dot_dimension_numbers<[1], [0], [0], [1], [0, 0, 1, 1], [], []>} : vector<8x25xf32>, vector<25x512xf32>, vector<8x512xf32> -> vector<8x512xf32>
    %562 = arith.addf %328, %561 : vector<8x512xf32>
    %c0_265 = arith.constant 0 : index
    %c0_266 = arith.constant 0 : index
    %563 = vector.load %arg11[%c0_265, %c0_266] : memref<128x512xf32, #tpu.memory_space<vmem>>, vector<128x512xf32>
    %cst_267 = arith.constant dense<0.000000e+00> : vector<8x512xf32>
    %564 = tpu.matmul %539, %563, %cst_267 {dimension_numbers = #tpu.dot_dimension_numbers<[1], [0], [0], [1], [0, 0, 1, 1], [], []>} : vector<8x128xf32>, vector<128x512xf32>, vector<8x512xf32> -> vector<8x512xf32>
    %565 = arith.addf %562, %564 : vector<8x512xf32>
    %566 = vector.extract_strided_slice %565 {offsets = [0, 0], sizes = [8, 128], strides = [1, 1]} : vector<8x512xf32> to vector<8x128xf32>
    %cst_268 = arith.constant 5.000000e-01 : f32
    %567 = vector.broadcast %cst_268 : f32 to vector<8x128xf32>
    %568 = arith.mulf %567, %566 : vector<8x128xf32>
    %569 = math.tanh %568 : vector<8x128xf32>
    %cst_269 = arith.constant 1.000000e+00 : f32
    %570 = vector.broadcast %cst_269 : f32 to vector<8x128xf32>
    %571 = arith.addf %569, %570 : vector<8x128xf32>
    %cst_270 = arith.constant 5.000000e-01 : f32
    %572 = vector.broadcast %cst_270 : f32 to vector<8x128xf32>
    %573 = arith.mulf %572, %571 : vector<8x128xf32>
    %574 = vector.extract_strided_slice %565 {offsets = [0, 128], sizes = [8, 128], strides = [1, 1]} : vector<8x512xf32> to vector<8x128xf32>
    %cst_271 = arith.constant 5.000000e-01 : f32
    %575 = vector.broadcast %cst_271 : f32 to vector<8x128xf32>
    %576 = arith.mulf %575, %574 : vector<8x128xf32>
    %577 = math.tanh %576 : vector<8x128xf32>
    %cst_272 = arith.constant 1.000000e+00 : f32
    %578 = vector.broadcast %cst_272 : f32 to vector<8x128xf32>
    %579 = arith.addf %577, %578 : vector<8x128xf32>
    %cst_273 = arith.constant 5.000000e-01 : f32
    %580 = vector.broadcast %cst_273 : f32 to vector<8x128xf32>
    %581 = arith.mulf %580, %579 : vector<8x128xf32>
    %582 = vector.extract_strided_slice %565 {offsets = [0, 256], sizes = [8, 128], strides = [1, 1]} : vector<8x512xf32> to vector<8x128xf32>
    %583 = math.tanh %582 : vector<8x128xf32>
    %584 = vector.extract_strided_slice %565 {offsets = [0, 384], sizes = [8, 128], strides = [1, 1]} : vector<8x512xf32> to vector<8x128xf32>
    %cst_274 = arith.constant 5.000000e-01 : f32
    %585 = vector.broadcast %cst_274 : f32 to vector<8x128xf32>
    %586 = arith.mulf %585, %584 : vector<8x128xf32>
    %587 = math.tanh %586 : vector<8x128xf32>
    %cst_275 = arith.constant 1.000000e+00 : f32
    %588 = vector.broadcast %cst_275 : f32 to vector<8x128xf32>
    %589 = arith.addf %587, %588 : vector<8x128xf32>
    %cst_276 = arith.constant 5.000000e-01 : f32
    %590 = vector.broadcast %cst_276 : f32 to vector<8x128xf32>
    %591 = arith.mulf %590, %589 : vector<8x128xf32>
    %592 = arith.mulf %581, %537 : vector<8x128xf32>
    %593 = arith.mulf %573, %583 : vector<8x128xf32>
    %594 = arith.addf %592, %593 : vector<8x128xf32>
    %595 = math.tanh %594 : vector<8x128xf32>
    %596 = arith.mulf %591, %595 : vector<8x128xf32>
    %c0_277 = arith.constant 0 : index
    %c0_278 = arith.constant 0 : index
    %597 = vector.load %arg13[%c0_277, %c0_278] : memref<128x128xf32, #tpu.memory_space<vmem>>, vector<128x128xf32>
    %cst_279 = arith.constant dense<0.000000e+00> : vector<8x128xf32>
    %598 = tpu.matmul %596, %597, %cst_279 {dimension_numbers = #tpu.dot_dimension_numbers<[1], [0], [0], [1], [0, 0, 1, 1], [], []>} : vector<8x128xf32>, vector<128x128xf32>, vector<8x128xf32> -> vector<8x128xf32>
    %c0_280 = arith.constant 0 : index
    %c0_281 = arith.constant 0 : index
    %599 = vector.load %arg14[%c0_280, %c0_281] : memref<1x128xf32, #tpu.memory_space<vmem>>, vector<1x128xf32>
    %600 = vector.broadcast %599 : vector<1x128xf32> to vector<8x128xf32>
    %601 = arith.addf %598, %600 : vector<8x128xf32>
    %602 = math.tanh %601 : vector<8x128xf32>
    %c0_282 = arith.constant 0 : index
    %c0_283 = arith.constant 0 : index
    %603 = vector.load %arg15[%c0_282, %c0_283] : memref<128x128xf32, #tpu.memory_space<vmem>>, vector<128x128xf32>
    %cst_284 = arith.constant dense<0.000000e+00> : vector<8x128xf32>
    %604 = tpu.matmul %602, %603, %cst_284 {dimension_numbers = #tpu.dot_dimension_numbers<[1], [0], [0], [1], [0, 0, 1, 1], [], []>} : vector<8x128xf32>, vector<128x128xf32>, vector<8x128xf32> -> vector<8x128xf32>
    %c0_285 = arith.constant 0 : index
    %c0_286 = arith.constant 0 : index
    %605 = vector.load %arg16[%c0_285, %c0_286] : memref<1x128xf32, #tpu.memory_space<vmem>>, vector<1x128xf32>
    %606 = vector.broadcast %605 : vector<1x128xf32> to vector<8x128xf32>
    %607 = arith.addf %604, %606 : vector<8x128xf32>
    %608 = math.tanh %607 : vector<8x128xf32>
    %c0_287 = arith.constant 0 : index
    %c0_288 = arith.constant 0 : index
    %609 = vector.load %arg17[%c0_287, %c0_288] : memref<128x25xf32, #tpu.memory_space<vmem>>, vector<128x25xf32>
    %cst_289 = arith.constant dense<0.000000e+00> : vector<8x25xf32>
    %610 = tpu.matmul %608, %609, %cst_289 {dimension_numbers = #tpu.dot_dimension_numbers<[1], [0], [0], [1], [0, 0, 1, 1], [], []>} : vector<8x128xf32>, vector<128x25xf32>, vector<8x25xf32> -> vector<8x25xf32>
    %c0_290 = arith.constant 0 : index
    %c0_291 = arith.constant 0 : index
    %611 = vector.load %arg18[%c0_290, %c0_291] : memref<1x25xf32, #tpu.memory_space<vmem>>, vector<1x25xf32>
    %612 = vector.broadcast %611 : vector<1x25xf32> to vector<8x25xf32>
    %613 = arith.addf %610, %612 : vector<8x25xf32>
    %c4 = arith.constant 4 : index
    %c0_292 = arith.constant 0 : index
    %c0_293 = arith.constant 0 : index
    %614 = vector.load %arg23[%c4, %c0_292, %c0_293] : memref<8x8x25xf32, #tpu.memory_space<vmem>>, vector<1x8x25xf32>
    %615 = vector.shape_cast %614 : vector<1x8x25xf32> to vector<8x25xf32>
    %616 = vector.shape_cast %613 : vector<8x25xf32> to vector<1x8x25xf32>
    tpu.vector_store %arg23[%c4, %c0_292, %c0_293], %616 {strides = array<i32>} : memref<8x8x25xf32, #tpu.memory_space<vmem>>, vector<1x8x25xf32>,
    %c0_294 = arith.constant 0 : index
    %c0_295 = arith.constant 0 : index
    %617 = vector.load %arg10[%c0_294, %c0_295] : memref<25x512xf32, #tpu.memory_space<vmem>>, vector<25x512xf32>
    %cst_296 = arith.constant dense<0.000000e+00> : vector<8x512xf32>
    %618 = tpu.matmul %613, %617, %cst_296 {dimension_numbers = #tpu.dot_dimension_numbers<[1], [0], [0], [1], [0, 0, 1, 1], [], []>} : vector<8x25xf32>, vector<25x512xf32>, vector<8x512xf32> -> vector<8x512xf32>
    %619 = arith.addf %328, %618 : vector<8x512xf32>
    %c0_297 = arith.constant 0 : index
    %c0_298 = arith.constant 0 : index
    %620 = vector.load %arg11[%c0_297, %c0_298] : memref<128x512xf32, #tpu.memory_space<vmem>>, vector<128x512xf32>
    %cst_299 = arith.constant dense<0.000000e+00> : vector<8x512xf32>
    %621 = tpu.matmul %596, %620, %cst_299 {dimension_numbers = #tpu.dot_dimension_numbers<[1], [0], [0], [1], [0, 0, 1, 1], [], []>} : vector<8x128xf32>, vector<128x512xf32>, vector<8x512xf32> -> vector<8x512xf32>
    %622 = arith.addf %619, %621 : vector<8x512xf32>
    %623 = vector.extract_strided_slice %622 {offsets = [0, 0], sizes = [8, 128], strides = [1, 1]} : vector<8x512xf32> to vector<8x128xf32>
    %cst_300 = arith.constant 5.000000e-01 : f32
    %624 = vector.broadcast %cst_300 : f32 to vector<8x128xf32>
    %625 = arith.mulf %624, %623 : vector<8x128xf32>
    %626 = math.tanh %625 : vector<8x128xf32>
    %cst_301 = arith.constant 1.000000e+00 : f32
    %627 = vector.broadcast %cst_301 : f32 to vector<8x128xf32>
    %628 = arith.addf %626, %627 : vector<8x128xf32>
    %cst_302 = arith.constant 5.000000e-01 : f32
    %629 = vector.broadcast %cst_302 : f32 to vector<8x128xf32>
    %630 = arith.mulf %629, %628 : vector<8x128xf32>
    %631 = vector.extract_strided_slice %622 {offsets = [0, 128], sizes = [8, 128], strides = [1, 1]} : vector<8x512xf32> to vector<8x128xf32>
    %cst_303 = arith.constant 5.000000e-01 : f32
    %632 = vector.broadcast %cst_303 : f32 to vector<8x128xf32>
    %633 = arith.mulf %632, %631 : vector<8x128xf32>
    %634 = math.tanh %633 : vector<8x128xf32>
    %cst_304 = arith.constant 1.000000e+00 : f32
    %635 = vector.broadcast %cst_304 : f32 to vector<8x128xf32>
    %636 = arith.addf %634, %635 : vector<8x128xf32>
    %cst_305 = arith.constant 5.000000e-01 : f32
    %637 = vector.broadcast %cst_305 : f32 to vector<8x128xf32>
    %638 = arith.mulf %637, %636 : vector<8x128xf32>
    %639 = vector.extract_strided_slice %622 {offsets = [0, 256], sizes = [8, 128], strides = [1, 1]} : vector<8x512xf32> to vector<8x128xf32>
    %640 = math.tanh %639 : vector<8x128xf32>
    %641 = vector.extract_strided_slice %622 {offsets = [0, 384], sizes = [8, 128], strides = [1, 1]} : vector<8x512xf32> to vector<8x128xf32>
    %cst_306 = arith.constant 5.000000e-01 : f32
    %642 = vector.broadcast %cst_306 : f32 to vector<8x128xf32>
    %643 = arith.mulf %642, %641 : vector<8x128xf32>
    %644 = math.tanh %643 : vector<8x128xf32>
    %cst_307 = arith.constant 1.000000e+00 : f32
    %645 = vector.broadcast %cst_307 : f32 to vector<8x128xf32>
    %646 = arith.addf %644, %645 : vector<8x128xf32>
    %cst_308 = arith.constant 5.000000e-01 : f32
    %647 = vector.broadcast %cst_308 : f32 to vector<8x128xf32>
    %648 = arith.mulf %647, %646 : vector<8x128xf32>
    %649 = arith.mulf %638, %594 : vector<8x128xf32>
    %650 = arith.mulf %630, %640 : vector<8x128xf32>
    %651 = arith.addf %649, %650 : vector<8x128xf32>
    %652 = math.tanh %651 : vector<8x128xf32>
    %653 = arith.mulf %648, %652 : vector<8x128xf32>
    %c0_309 = arith.constant 0 : index
    %c0_310 = arith.constant 0 : index
    %654 = vector.load %arg13[%c0_309, %c0_310] : memref<128x128xf32, #tpu.memory_space<vmem>>, vector<128x128xf32>
    %cst_311 = arith.constant dense<0.000000e+00> : vector<8x128xf32>
    %655 = tpu.matmul %653, %654, %cst_311 {dimension_numbers = #tpu.dot_dimension_numbers<[1], [0], [0], [1], [0, 0, 1, 1], [], []>} : vector<8x128xf32>, vector<128x128xf32>, vector<8x128xf32> -> vector<8x128xf32>
    %c0_312 = arith.constant 0 : index
    %c0_313 = arith.constant 0 : index
    %656 = vector.load %arg14[%c0_312, %c0_313] : memref<1x128xf32, #tpu.memory_space<vmem>>, vector<1x128xf32>
    %657 = vector.broadcast %656 : vector<1x128xf32> to vector<8x128xf32>
    %658 = arith.addf %655, %657 : vector<8x128xf32>
    %659 = math.tanh %658 : vector<8x128xf32>
    %c0_314 = arith.constant 0 : index
    %c0_315 = arith.constant 0 : index
    %660 = vector.load %arg15[%c0_314, %c0_315] : memref<128x128xf32, #tpu.memory_space<vmem>>, vector<128x128xf32>
    %cst_316 = arith.constant dense<0.000000e+00> : vector<8x128xf32>
    %661 = tpu.matmul %659, %660, %cst_316 {dimension_numbers = #tpu.dot_dimension_numbers<[1], [0], [0], [1], [0, 0, 1, 1], [], []>} : vector<8x128xf32>, vector<128x128xf32>, vector<8x128xf32> -> vector<8x128xf32>
    %c0_317 = arith.constant 0 : index
    %c0_318 = arith.constant 0 : index
    %662 = vector.load %arg16[%c0_317, %c0_318] : memref<1x128xf32, #tpu.memory_space<vmem>>, vector<1x128xf32>
    %663 = vector.broadcast %662 : vector<1x128xf32> to vector<8x128xf32>
    %664 = arith.addf %661, %663 : vector<8x128xf32>
    %665 = math.tanh %664 : vector<8x128xf32>
    %c0_319 = arith.constant 0 : index
    %c0_320 = arith.constant 0 : index
    %666 = vector.load %arg17[%c0_319, %c0_320] : memref<128x25xf32, #tpu.memory_space<vmem>>, vector<128x25xf32>
    %cst_321 = arith.constant dense<0.000000e+00> : vector<8x25xf32>
    %667 = tpu.matmul %665, %666, %cst_321 {dimension_numbers = #tpu.dot_dimension_numbers<[1], [0], [0], [1], [0, 0, 1, 1], [], []>} : vector<8x128xf32>, vector<128x25xf32>, vector<8x25xf32> -> vector<8x25xf32>
    %c0_322 = arith.constant 0 : index
    %c0_323 = arith.constant 0 : index
    %668 = vector.load %arg18[%c0_322, %c0_323] : memref<1x25xf32, #tpu.memory_space<vmem>>, vector<1x25xf32>
    %669 = vector.broadcast %668 : vector<1x25xf32> to vector<8x25xf32>
    %670 = arith.addf %667, %669 : vector<8x25xf32>
    %c5 = arith.constant 5 : index
    %c0_324 = arith.constant 0 : index
    %c0_325 = arith.constant 0 : index
    %671 = vector.load %arg23[%c5, %c0_324, %c0_325] : memref<8x8x25xf32, #tpu.memory_space<vmem>>, vector<1x8x25xf32>
    %672 = vector.shape_cast %671 : vector<1x8x25xf32> to vector<8x25xf32>
    %673 = vector.shape_cast %670 : vector<8x25xf32> to vector<1x8x25xf32>
    tpu.vector_store %arg23[%c5, %c0_324, %c0_325], %673 {strides = array<i32>} : memref<8x8x25xf32, #tpu.memory_space<vmem>>, vector<1x8x25xf32>,
    %c0_326 = arith.constant 0 : index
    %c0_327 = arith.constant 0 : index
    %674 = vector.load %arg10[%c0_326, %c0_327] : memref<25x512xf32, #tpu.memory_space<vmem>>, vector<25x512xf32>
    %cst_328 = arith.constant dense<0.000000e+00> : vector<8x512xf32>
    %675 = tpu.matmul %670, %674, %cst_328 {dimension_numbers = #tpu.dot_dimension_numbers<[1], [0], [0], [1], [0, 0, 1, 1], [], []>} : vector<8x25xf32>, vector<25x512xf32>, vector<8x512xf32> -> vector<8x512xf32>
    %676 = arith.addf %328, %675 : vector<8x512xf32>
    %c0_329 = arith.constant 0 : index
    %c0_330 = arith.constant 0 : index
    %677 = vector.load %arg11[%c0_329, %c0_330] : memref<128x512xf32, #tpu.memory_space<vmem>>, vector<128x512xf32>
    %cst_331 = arith.constant dense<0.000000e+00> : vector<8x512xf32>
    %678 = tpu.matmul %653, %677, %cst_331 {dimension_numbers = #tpu.dot_dimension_numbers<[1], [0], [0], [1], [0, 0, 1, 1], [], []>} : vector<8x128xf32>, vector<128x512xf32>, vector<8x512xf32> -> vector<8x512xf32>
    %679 = arith.addf %676, %678 : vector<8x512xf32>
    %680 = vector.extract_strided_slice %679 {offsets = [0, 0], sizes = [8, 128], strides = [1, 1]} : vector<8x512xf32> to vector<8x128xf32>
    %cst_332 = arith.constant 5.000000e-01 : f32
    %681 = vector.broadcast %cst_332 : f32 to vector<8x128xf32>
    %682 = arith.mulf %681, %680 : vector<8x128xf32>
    %683 = math.tanh %682 : vector<8x128xf32>
    %cst_333 = arith.constant 1.000000e+00 : f32
    %684 = vector.broadcast %cst_333 : f32 to vector<8x128xf32>
    %685 = arith.addf %683, %684 : vector<8x128xf32>
    %cst_334 = arith.constant 5.000000e-01 : f32
    %686 = vector.broadcast %cst_334 : f32 to vector<8x128xf32>
    %687 = arith.mulf %686, %685 : vector<8x128xf32>
    %688 = vector.extract_strided_slice %679 {offsets = [0, 128], sizes = [8, 128], strides = [1, 1]} : vector<8x512xf32> to vector<8x128xf32>
    %cst_335 = arith.constant 5.000000e-01 : f32
    %689 = vector.broadcast %cst_335 : f32 to vector<8x128xf32>
    %690 = arith.mulf %689, %688 : vector<8x128xf32>
    %691 = math.tanh %690 : vector<8x128xf32>
    %cst_336 = arith.constant 1.000000e+00 : f32
    %692 = vector.broadcast %cst_336 : f32 to vector<8x128xf32>
    %693 = arith.addf %691, %692 : vector<8x128xf32>
    %cst_337 = arith.constant 5.000000e-01 : f32
    %694 = vector.broadcast %cst_337 : f32 to vector<8x128xf32>
    %695 = arith.mulf %694, %693 : vector<8x128xf32>
    %696 = vector.extract_strided_slice %679 {offsets = [0, 256], sizes = [8, 128], strides = [1, 1]} : vector<8x512xf32> to vector<8x128xf32>
    %697 = math.tanh %696 : vector<8x128xf32>
    %698 = vector.extract_strided_slice %679 {offsets = [0, 384], sizes = [8, 128], strides = [1, 1]} : vector<8x512xf32> to vector<8x128xf32>
    %cst_338 = arith.constant 5.000000e-01 : f32
    %699 = vector.broadcast %cst_338 : f32 to vector<8x128xf32>
    %700 = arith.mulf %699, %698 : vector<8x128xf32>
    %701 = math.tanh %700 : vector<8x128xf32>
    %cst_339 = arith.constant 1.000000e+00 : f32
    %702 = vector.broadcast %cst_339 : f32 to vector<8x128xf32>
    %703 = arith.addf %701, %702 : vector<8x128xf32>
    %cst_340 = arith.constant 5.000000e-01 : f32
    %704 = vector.broadcast %cst_340 : f32 to vector<8x128xf32>
    %705 = arith.mulf %704, %703 : vector<8x128xf32>
    %706 = arith.mulf %695, %651 : vector<8x128xf32>
    %707 = arith.mulf %687, %697 : vector<8x128xf32>
    %708 = arith.addf %706, %707 : vector<8x128xf32>
    %709 = math.tanh %708 : vector<8x128xf32>
    %710 = arith.mulf %705, %709 : vector<8x128xf32>
    %c0_341 = arith.constant 0 : index
    %c0_342 = arith.constant 0 : index
    %711 = vector.load %arg13[%c0_341, %c0_342] : memref<128x128xf32, #tpu.memory_space<vmem>>, vector<128x128xf32>
    %cst_343 = arith.constant dense<0.000000e+00> : vector<8x128xf32>
    %712 = tpu.matmul %710, %711, %cst_343 {dimension_numbers = #tpu.dot_dimension_numbers<[1], [0], [0], [1], [0, 0, 1, 1], [], []>} : vector<8x128xf32>, vector<128x128xf32>, vector<8x128xf32> -> vector<8x128xf32>
    %c0_344 = arith.constant 0 : index
    %c0_345 = arith.constant 0 : index
    %713 = vector.load %arg14[%c0_344, %c0_345] : memref<1x128xf32, #tpu.memory_space<vmem>>, vector<1x128xf32>
    %714 = vector.broadcast %713 : vector<1x128xf32> to vector<8x128xf32>
    %715 = arith.addf %712, %714 : vector<8x128xf32>
    %716 = math.tanh %715 : vector<8x128xf32>
    %c0_346 = arith.constant 0 : index
    %c0_347 = arith.constant 0 : index
    %717 = vector.load %arg15[%c0_346, %c0_347] : memref<128x128xf32, #tpu.memory_space<vmem>>, vector<128x128xf32>
    %cst_348 = arith.constant dense<0.000000e+00> : vector<8x128xf32>
    %718 = tpu.matmul %716, %717, %cst_348 {dimension_numbers = #tpu.dot_dimension_numbers<[1], [0], [0], [1], [0, 0, 1, 1], [], []>} : vector<8x128xf32>, vector<128x128xf32>, vector<8x128xf32> -> vector<8x128xf32>
    %c0_349 = arith.constant 0 : index
    %c0_350 = arith.constant 0 : index
    %719 = vector.load %arg16[%c0_349, %c0_350] : memref<1x128xf32, #tpu.memory_space<vmem>>, vector<1x128xf32>
    %720 = vector.broadcast %719 : vector<1x128xf32> to vector<8x128xf32>
    %721 = arith.addf %718, %720 : vector<8x128xf32>
    %722 = math.tanh %721 : vector<8x128xf32>
    %c0_351 = arith.constant 0 : index
    %c0_352 = arith.constant 0 : index
    %723 = vector.load %arg17[%c0_351, %c0_352] : memref<128x25xf32, #tpu.memory_space<vmem>>, vector<128x25xf32>
    %cst_353 = arith.constant dense<0.000000e+00> : vector<8x25xf32>
    %724 = tpu.matmul %722, %723, %cst_353 {dimension_numbers = #tpu.dot_dimension_numbers<[1], [0], [0], [1], [0, 0, 1, 1], [], []>} : vector<8x128xf32>, vector<128x25xf32>, vector<8x25xf32> -> vector<8x25xf32>
    %c0_354 = arith.constant 0 : index
    %c0_355 = arith.constant 0 : index
    %725 = vector.load %arg18[%c0_354, %c0_355] : memref<1x25xf32, #tpu.memory_space<vmem>>, vector<1x25xf32>
    %726 = vector.broadcast %725 : vector<1x25xf32> to vector<8x25xf32>
    %727 = arith.addf %724, %726 : vector<8x25xf32>
    %c6 = arith.constant 6 : index
    %c0_356 = arith.constant 0 : index
    %c0_357 = arith.constant 0 : index
    %728 = vector.load %arg23[%c6, %c0_356, %c0_357] : memref<8x8x25xf32, #tpu.memory_space<vmem>>, vector<1x8x25xf32>
    %729 = vector.shape_cast %728 : vector<1x8x25xf32> to vector<8x25xf32>
    %730 = vector.shape_cast %727 : vector<8x25xf32> to vector<1x8x25xf32>
    tpu.vector_store %arg23[%c6, %c0_356, %c0_357], %730 {strides = array<i32>} : memref<8x8x25xf32, #tpu.memory_space<vmem>>, vector<1x8x25xf32>,
    %c0_358 = arith.constant 0 : index
    %c0_359 = arith.constant 0 : index
    %731 = vector.load %arg10[%c0_358, %c0_359] : memref<25x512xf32, #tpu.memory_space<vmem>>, vector<25x512xf32>
    %cst_360 = arith.constant dense<0.000000e+00> : vector<8x512xf32>
    %732 = tpu.matmul %727, %731, %cst_360 {dimension_numbers = #tpu.dot_dimension_numbers<[1], [0], [0], [1], [0, 0, 1, 1], [], []>} : vector<8x25xf32>, vector<25x512xf32>, vector<8x512xf32> -> vector<8x512xf32>
    %733 = arith.addf %328, %732 : vector<8x512xf32>
    %c0_361 = arith.constant 0 : index
    %c0_362 = arith.constant 0 : index
    %734 = vector.load %arg11[%c0_361, %c0_362] : memref<128x512xf32, #tpu.memory_space<vmem>>, vector<128x512xf32>
    %cst_363 = arith.constant dense<0.000000e+00> : vector<8x512xf32>
    %735 = tpu.matmul %710, %734, %cst_363 {dimension_numbers = #tpu.dot_dimension_numbers<[1], [0], [0], [1], [0, 0, 1, 1], [], []>} : vector<8x128xf32>, vector<128x512xf32>, vector<8x512xf32> -> vector<8x512xf32>
    %736 = arith.addf %733, %735 : vector<8x512xf32>
    %737 = vector.extract_strided_slice %736 {offsets = [0, 0], sizes = [8, 128], strides = [1, 1]} : vector<8x512xf32> to vector<8x128xf32>
    %cst_364 = arith.constant 5.000000e-01 : f32
    %738 = vector.broadcast %cst_364 : f32 to vector<8x128xf32>
    %739 = arith.mulf %738, %737 : vector<8x128xf32>
    %740 = math.tanh %739 : vector<8x128xf32>
    %cst_365 = arith.constant 1.000000e+00 : f32
    %741 = vector.broadcast %cst_365 : f32 to vector<8x128xf32>
    %742 = arith.addf %740, %741 : vector<8x128xf32>
    %cst_366 = arith.constant 5.000000e-01 : f32
    %743 = vector.broadcast %cst_366 : f32 to vector<8x128xf32>
    %744 = arith.mulf %743, %742 : vector<8x128xf32>
    %745 = vector.extract_strided_slice %736 {offsets = [0, 128], sizes = [8, 128], strides = [1, 1]} : vector<8x512xf32> to vector<8x128xf32>
    %cst_367 = arith.constant 5.000000e-01 : f32
    %746 = vector.broadcast %cst_367 : f32 to vector<8x128xf32>
    %747 = arith.mulf %746, %745 : vector<8x128xf32>
    %748 = math.tanh %747 : vector<8x128xf32>
    %cst_368 = arith.constant 1.000000e+00 : f32
    %749 = vector.broadcast %cst_368 : f32 to vector<8x128xf32>
    %750 = arith.addf %748, %749 : vector<8x128xf32>
    %cst_369 = arith.constant 5.000000e-01 : f32
    %751 = vector.broadcast %cst_369 : f32 to vector<8x128xf32>
    %752 = arith.mulf %751, %750 : vector<8x128xf32>
    %753 = vector.extract_strided_slice %736 {offsets = [0, 256], sizes = [8, 128], strides = [1, 1]} : vector<8x512xf32> to vector<8x128xf32>
    %754 = math.tanh %753 : vector<8x128xf32>
    %755 = vector.extract_strided_slice %736 {offsets = [0, 384], sizes = [8, 128], strides = [1, 1]} : vector<8x512xf32> to vector<8x128xf32>
    %cst_370 = arith.constant 5.000000e-01 : f32
    %756 = vector.broadcast %cst_370 : f32 to vector<8x128xf32>
    %757 = arith.mulf %756, %755 : vector<8x128xf32>
    %758 = math.tanh %757 : vector<8x128xf32>
    %cst_371 = arith.constant 1.000000e+00 : f32
    %759 = vector.broadcast %cst_371 : f32 to vector<8x128xf32>
    %760 = arith.addf %758, %759 : vector<8x128xf32>
    %cst_372 = arith.constant 5.000000e-01 : f32
    %761 = vector.broadcast %cst_372 : f32 to vector<8x128xf32>
    %762 = arith.mulf %761, %760 : vector<8x128xf32>
    %763 = arith.mulf %752, %708 : vector<8x128xf32>
    %764 = arith.mulf %744, %754 : vector<8x128xf32>
    %765 = arith.addf %763, %764 : vector<8x128xf32>
    %766 = math.tanh %765 : vector<8x128xf32>
    %767 = arith.mulf %762, %766 : vector<8x128xf32>
    %c0_373 = arith.constant 0 : index
    %c0_374 = arith.constant 0 : index
    %768 = vector.load %arg13[%c0_373, %c0_374] : memref<128x128xf32, #tpu.memory_space<vmem>>, vector<128x128xf32>
    %cst_375 = arith.constant dense<0.000000e+00> : vector<8x128xf32>
    %769 = tpu.matmul %767, %768, %cst_375 {dimension_numbers = #tpu.dot_dimension_numbers<[1], [0], [0], [1], [0, 0, 1, 1], [], []>} : vector<8x128xf32>, vector<128x128xf32>, vector<8x128xf32> -> vector<8x128xf32>
    %c0_376 = arith.constant 0 : index
    %c0_377 = arith.constant 0 : index
    %770 = vector.load %arg14[%c0_376, %c0_377] : memref<1x128xf32, #tpu.memory_space<vmem>>, vector<1x128xf32>
    %771 = vector.broadcast %770 : vector<1x128xf32> to vector<8x128xf32>
    %772 = arith.addf %769, %771 : vector<8x128xf32>
    %773 = math.tanh %772 : vector<8x128xf32>
    %c0_378 = arith.constant 0 : index
    %c0_379 = arith.constant 0 : index
    %774 = vector.load %arg15[%c0_378, %c0_379] : memref<128x128xf32, #tpu.memory_space<vmem>>, vector<128x128xf32>
    %cst_380 = arith.constant dense<0.000000e+00> : vector<8x128xf32>
    %775 = tpu.matmul %773, %774, %cst_380 {dimension_numbers = #tpu.dot_dimension_numbers<[1], [0], [0], [1], [0, 0, 1, 1], [], []>} : vector<8x128xf32>, vector<128x128xf32>, vector<8x128xf32> -> vector<8x128xf32>
    %c0_381 = arith.constant 0 : index
    %c0_382 = arith.constant 0 : index
    %776 = vector.load %arg16[%c0_381, %c0_382] : memref<1x128xf32, #tpu.memory_space<vmem>>, vector<1x128xf32>
    %777 = vector.broadcast %776 : vector<1x128xf32> to vector<8x128xf32>
    %778 = arith.addf %775, %777 : vector<8x128xf32>
    %779 = math.tanh %778 : vector<8x128xf32>
    %c0_383 = arith.constant 0 : index
    %c0_384 = arith.constant 0 : index
    %780 = vector.load %arg17[%c0_383, %c0_384] : memref<128x25xf32, #tpu.memory_space<vmem>>, vector<128x25xf32>
    %cst_385 = arith.constant dense<0.000000e+00> : vector<8x25xf32>
    %781 = tpu.matmul %779, %780, %cst_385 {dimension_numbers = #tpu.dot_dimension_numbers<[1], [0], [0], [1], [0, 0, 1, 1], [], []>} : vector<8x128xf32>, vector<128x25xf32>, vector<8x25xf32> -> vector<8x25xf32>
    %c0_386 = arith.constant 0 : index
    %c0_387 = arith.constant 0 : index
    %782 = vector.load %arg18[%c0_386, %c0_387] : memref<1x25xf32, #tpu.memory_space<vmem>>, vector<1x25xf32>
    %783 = vector.broadcast %782 : vector<1x25xf32> to vector<8x25xf32>
    %784 = arith.addf %781, %783 : vector<8x25xf32>
    %c7 = arith.constant 7 : index
    %c0_388 = arith.constant 0 : index
    %c0_389 = arith.constant 0 : index
    %785 = vector.load %arg23[%c7, %c0_388, %c0_389] : memref<8x8x25xf32, #tpu.memory_space<vmem>>, vector<1x8x25xf32>
    %786 = vector.shape_cast %785 : vector<1x8x25xf32> to vector<8x25xf32>
    %787 = vector.shape_cast %784 : vector<8x25xf32> to vector<1x8x25xf32>
    tpu.vector_store %arg23[%c7, %c0_388, %c0_389], %787 {strides = array<i32>} : memref<8x8x25xf32, #tpu.memory_space<vmem>>, vector<1x8x25xf32>,
    %c0_390 = arith.constant 0 : index
    %c0_391 = arith.constant 0 : index
    %c0_392 = arith.constant 0 : index
    %788 = vector.load %arg23[%c0_390, %c0_391, %c0_392] : memref<8x8x25xf32, #tpu.memory_space<vmem>>, vector<8x8x25xf32>
    %789 = vector.shape_cast %788 : vector<8x8x25xf32> to vector<64x25xf32>
    %c0_393 = arith.constant 0 : index
    %c0_394 = arith.constant 0 : index
    %790 = vector.load %arg19[%c0_393, %c0_394] : memref<25x128xf32, #tpu.memory_space<vmem>>, vector<25x128xf32>
    %cst_395 = arith.constant dense<0.000000e+00> : vector<64x128xf32>
    %791 = tpu.matmul %789, %790, %cst_395 {dimension_numbers = #tpu.dot_dimension_numbers<[1], [0], [0], [1], [0, 0, 1, 1], [], []>} : vector<64x25xf32>, vector<25x128xf32>, vector<64x128xf32> -> vector<64x128xf32>
    %c0_396 = arith.constant 0 : index
    %c0_397 = arith.constant 0 : index
    %792 = vector.load %arg20[%c0_396, %c0_397] : memref<1x128xf32, #tpu.memory_space<vmem>>, vector<1x128xf32>
    %793 = vector.broadcast %792 : vector<1x128xf32> to vector<64x128xf32>
    %794 = arith.addf %791, %793 : vector<64x128xf32>
    %cst_398 = arith.constant 0.000000e+00 : f32
    %795 = vector.broadcast %cst_398 : f32 to vector<64x128xf32>
    %796 = arith.maximumf %794, %795 : vector<64x128xf32>
    %c0_399 = arith.constant 0 : index
    %c0_400 = arith.constant 0 : index
    %797 = vector.load %arg21[%c0_399, %c0_400] : memref<128x58xf32, #tpu.memory_space<vmem>>, vector<128x58xf32>
    %cst_401 = arith.constant dense<0.000000e+00> : vector<64x58xf32>
    %798 = tpu.matmul %796, %797, %cst_401 {dimension_numbers = #tpu.dot_dimension_numbers<[1], [0], [0], [1], [0, 0, 1, 1], [], []>} : vector<64x128xf32>, vector<128x58xf32>, vector<64x58xf32> -> vector<64x58xf32>
    %c0_402 = arith.constant 0 : index
    %c0_403 = arith.constant 0 : index
    %799 = vector.load %arg22[%c0_402, %c0_403] : memref<1x58xf32, #tpu.memory_space<vmem>>, vector<1x58xf32>
    %800 = vector.broadcast %799 : vector<1x58xf32> to vector<64x58xf32>
    %801 = arith.addf %798, %800 : vector<64x58xf32>
    %802 = vector.shape_cast %801 : vector<64x58xf32> to vector<8x8x58xf32>
    %c0_404 = arith.constant 0 : index
    %c0_405 = arith.constant 0 : index
    %c0_406 = arith.constant 0 : index
    %803 = vector.load %arg24[%c0_404, %c0_405, %c0_406] : memref<8x8x58xf32, #tpu.memory_space<vmem>>, vector<8x8x58xf32>
    tpu.vector_store %arg24[%c0_404, %c0_405, %c0_406], %802 {strides = array<i32>} : memref<8x8x58xf32, #tpu.memory_space<vmem>>, vector<8x8x58xf32>,
    return
  }
  func.func @transform_0(%arg0: i32) -> (i32, i32, i32) {
    %c0_i32 = arith.constant 0 : i32
    %c0_i32_0 = arith.constant 0 : i32
    %c0_i32_1 = arith.constant 0 : i32
    return %c0_i32, %arg0, %c0_i32_0 : i32, i32, i32
  }
  func.func @transform_1(%arg0: i32) -> (i32, i32) {
    %c0_i32 = arith.constant 0 : i32
    %c0_i32_0 = arith.constant 0 : i32
    %c0_i32_1 = arith.constant 0 : i32
    return %c0_i32, %c0_i32_0 : i32, i32
  }
  func.func @transform_2(%arg0: i32) -> (i32, i32) {
    %c0_i32 = arith.constant 0 : i32
    %c0_i32_0 = arith.constant 0 : i32
    %c0_i32_1 = arith.constant 0 : i32
    return %c0_i32, %c0_i32_0 : i32, i32
  }
  func.func @transform_3(%arg0: i32) -> (i32, i32) {
    %c0_i32 = arith.constant 0 : i32
    %c0_i32_0 = arith.constant 0 : i32
    %c0_i32_1 = arith.constant 0 : i32
    return %c0_i32, %c0_i32_0 : i32, i32
  }
  func.func @transform_4(%arg0: i32) -> (i32, i32) {
    %c0_i32 = arith.constant 0 : i32
    %c0_i32_0 = arith.constant 0 : i32
    %c0_i32_1 = arith.constant 0 : i32
    return %c0_i32, %c0_i32_0 : i32, i32
  }
  func.func @transform_5(%arg0: i32) -> (i32, i32) {
    %c0_i32 = arith.constant 0 : i32
    %c0_i32_0 = arith.constant 0 : i32
    %c0_i32_1 = arith.constant 0 : i32
    return %c0_i32, %c0_i32_0 : i32, i32
  }
  func.func @transform_6(%arg0: i32) -> (i32, i32) {
    %c0_i32 = arith.constant 0 : i32
    %c0_i32_0 = arith.constant 0 : i32
    %c0_i32_1 = arith.constant 0 : i32
    return %c0_i32, %c0_i32_0 : i32, i32
  }
  func.func @transform_7(%arg0: i32) -> (i32, i32) {
    %c0_i32 = arith.constant 0 : i32
    %c0_i32_0 = arith.constant 0 : i32
    %c0_i32_1 = arith.constant 0 : i32
    return %c0_i32, %c0_i32_0 : i32, i32
  }
  func.func @transform_8(%arg0: i32) -> (i32, i32) {
    %c0_i32 = arith.constant 0 : i32
    %c0_i32_0 = arith.constant 0 : i32
    %c0_i32_1 = arith.constant 0 : i32
    return %c0_i32, %c0_i32_0 : i32, i32
  }
  func.func @transform_9(%arg0: i32) -> (i32, i32) {
    %c0_i32 = arith.constant 0 : i32
    %c0_i32_0 = arith.constant 0 : i32
    %c0_i32_1 = arith.constant 0 : i32
    return %c0_i32, %c0_i32_0 : i32, i32
  }
  func.func @transform_10(%arg0: i32) -> (i32, i32) {
    %c0_i32 = arith.constant 0 : i32
    %c0_i32_0 = arith.constant 0 : i32
    %c0_i32_1 = arith.constant 0 : i32
    return %c0_i32, %c0_i32_0 : i32, i32
  }
  func.func @transform_11(%arg0: i32) -> (i32, i32) {
    %c0_i32 = arith.constant 0 : i32
    %c0_i32_0 = arith.constant 0 : i32
    %c0_i32_1 = arith.constant 0 : i32
    return %c0_i32, %c0_i32_0 : i32, i32
  }
  func.func @transform_12(%arg0: i32) -> (i32, i32) {
    %c0_i32 = arith.constant 0 : i32
    %c0_i32_0 = arith.constant 0 : i32
    %c0_i32_1 = arith.constant 0 : i32
    return %c0_i32, %c0_i32_0 : i32, i32
  }
  func.func @transform_13(%arg0: i32) -> (i32, i32) {
    %c0_i32 = arith.constant 0 : i32
    %c0_i32_0 = arith.constant 0 : i32
    %c0_i32_1 = arith.constant 0 : i32
    return %c0_i32, %c0_i32_0 : i32, i32
  }
  func.func @transform_14(%arg0: i32) -> (i32, i32) {
    %c0_i32 = arith.constant 0 : i32
    %c0_i32_0 = arith.constant 0 : i32
    %c0_i32_1 = arith.constant 0 : i32
    return %c0_i32, %c0_i32_0 : i32, i32
  }
  func.func @transform_15(%arg0: i32) -> (i32, i32) {
    %c0_i32 = arith.constant 0 : i32
    %c0_i32_0 = arith.constant 0 : i32
    %c0_i32_1 = arith.constant 0 : i32
    return %c0_i32, %c0_i32_0 : i32, i32
  }
  func.func @transform_16(%arg0: i32) -> (i32, i32) {
    %c0_i32 = arith.constant 0 : i32
    %c0_i32_0 = arith.constant 0 : i32
    %c0_i32_1 = arith.constant 0 : i32
    return %c0_i32, %c0_i32_0 : i32, i32
  }
  func.func @transform_17(%arg0: i32) -> (i32, i32) {
    %c0_i32 = arith.constant 0 : i32
    %c0_i32_0 = arith.constant 0 : i32
    %c0_i32_1 = arith.constant 0 : i32
    return %c0_i32, %c0_i32_0 : i32, i32
  }
  func.func @transform_18(%arg0: i32) -> (i32, i32) {
    %c0_i32 = arith.constant 0 : i32
    %c0_i32_0 = arith.constant 0 : i32
    %c0_i32_1 = arith.constant 0 : i32
    return %c0_i32, %c0_i32_0 : i32, i32
  }
  func.func @transform_19(%arg0: i32) -> (i32, i32) {
    %c0_i32 = arith.constant 0 : i32
    %c0_i32_0 = arith.constant 0 : i32
    %c0_i32_1 = arith.constant 0 : i32
    return %c0_i32, %c0_i32_0 : i32, i32
  }
  func.func @transform_20(%arg0: i32) -> (i32, i32) {
    %c0_i32 = arith.constant 0 : i32
    %c0_i32_0 = arith.constant 0 : i32
    %c0_i32_1 = arith.constant 0 : i32
    return %c0_i32, %c0_i32_0 : i32, i32
  }
  func.func @transform_21(%arg0: i32) -> (i32, i32) {
    %c0_i32 = arith.constant 0 : i32
    %c0_i32_0 = arith.constant 0 : i32
    %c0_i32_1 = arith.constant 0 : i32
    return %c0_i32, %c0_i32_0 : i32, i32
  }
  func.func @transform_22(%arg0: i32) -> (i32, i32, i32) {
    %c0_i32 = arith.constant 0 : i32
    %c0_i32_0 = arith.constant 0 : i32
    %c0_i32_1 = arith.constant 0 : i32
    return %c0_i32, %arg0, %c0_i32_0 : i32, i32, i32
  }
  func.func @transform_23(%arg0: i32) -> (i32, i32, i32) {
    %c0_i32 = arith.constant 0 : i32
    %c0_i32_0 = arith.constant 0 : i32
    %c0_i32_1 = arith.constant 0 : i32
    return %c0_i32, %arg0, %c0_i32_0 : i32, i32, i32
  }
  func.func @transform_24(%arg0: i32) -> (i32, i32) {
    %c0_i32 = arith.constant 0 : i32
    %c0_i32_0 = arith.constant 0 : i32
    return %arg0, %c0_i32 : i32, i32
  }
  func.func @transform_25(%arg0: i32) -> (i32, i32) {
    %c0_i32 = arith.constant 0 : i32
    %c0_i32_0 = arith.constant 0 : i32
    return %arg0, %c0_i32 : i32, i32
  }
  func.func @transform_26(%arg0: i32) -> (i32, i32) {
    %c0_i32 = arith.constant 0 : i32
    %c0_i32_0 = arith.constant 0 : i32
    return %arg0, %c0_i32 : i32, i32
  }
}

</mosaic_0001>

<llo_original>
// kernel: autoencoder_forward.1
$region0: #{autoencoder_forward.1}
  #allocation0 [shape = 'u32[]', space=smem, size = 0x4, offset = 0x4, fixed_abs, tag = 'smem constant byte address 0x4 - core index']
  #allocation1 [shape = 'u32[72,128]{1,0:T(1,128)}', space=vmem, size = 0x9000, scoped, tag = 'internal scratch']
  %s0 = inlined_call_operand.vmem [shape: f32[8,8,25], index: 0, kind: input, shape index: {}]
  %s1 = inlined_call_operand.vmem [shape: f32[25,512], index: 1, kind: input, shape index: {}]
  %s2 = inlined_call_operand.vmem [shape: f32[128,512], index: 2, kind: input, shape index: {}]
  %s3 = inlined_call_operand.vmem [shape: f32[1,512], index: 3, kind: input, shape index: {}]
  %s4 = inlined_call_operand.vmem [shape: f32[128,200], index: 4, kind: input, shape index: {}]
  %s5 = inlined_call_operand.vmem [shape: f32[1,200], index: 5, kind: input, shape index: {}]
  %s6 = inlined_call_operand.vmem [shape: f32[128,128], index: 6, kind: input, shape index: {}]
  %s7 = inlined_call_operand.vmem [shape: f32[1,128], index: 7, kind: input, shape index: {}]
  %s8 = inlined_call_operand.hbm [shape: f32[128,512], index: 8, kind: input, shape index: {}]
  %s9 = inlined_call_operand.hbm [shape: f32[25,512], index: 9, kind: input, shape index: {}]
  %s10 = inlined_call_operand.hbm [shape: f32[128,512], index: 10, kind: input, shape index: {}]
  %s11 = inlined_call_operand.vmem [shape: f32[1,512], index: 11, kind: input, shape index: {}]
  %s12 = inlined_call_operand.hbm [shape: f32[128,128], index: 12, kind: input, shape index: {}]
  %s13 = inlined_call_operand.hbm [shape: f32[1,128], index: 13, kind: input, shape index: {}]
  %s14 = inlined_call_operand.hbm [shape: f32[128,128], index: 14, kind: input, shape index: {}]
  %s15 = inlined_call_operand.hbm [shape: f32[1,128], index: 15, kind: input, shape index: {}]
  %s16 = inlined_call_operand.vmem [shape: f32[128,25], index: 16, kind: input, shape index: {}]
  %s17 = inlined_call_operand.vmem [shape: f32[1,25], index: 17, kind: input, shape index: {}]
  %s18 = inlined_call_operand.hbm [shape: f32[25,128], index: 18, kind: input, shape index: {}]
  %s19 = inlined_call_operand.vmem [shape: f32[1,128], index: 19, kind: input, shape index: {}]
  %s20 = inlined_call_operand.vmem [shape: f32[128,58], index: 20, kind: input, shape index: {}]
  %s21 = inlined_call_operand.vmem [shape: f32[1,58], index: 21, kind: input, shape index: {}]
  %s22 = inlined_call_operand.vmem [shape: f32[8,8,25], index: 22, kind: output, shape index: {0}]
  %s23 = inlined_call_operand.vmem [shape: f32[8,8,58], index: 23, kind: output, shape index: {1}]
  %s24 = inlined_call_operand.vmem [shape: f32[8,128], index: 24, kind: output, shape index: {2}]
  %s25 = inlined_call_operand.vmem [shape: f32[8,200], index: 25, kind: output, shape index: {3}]
  %s26 = inlined_call_operand.vmem [shape: s32[8,1], index: 26, kind: output, shape index: {4}]
  %27 = xla_tuple %s22, %s23, %s24, %s25, %s26
  %s28 = sld [smem:[#allocation0]]
  $region162: #{autoencoder_forward.1} parent=0
    _
  %s30 = ssub.s32 1, %s28
  %s31 = scalar_select 0, %s30, %s28
  $region1: #{autoencoder_forward.1} parent=0
    #allocation2 [shape = 'u8[262144]{0}', space=vmem, size = 0x40000, scoped, tag = 'input window, operand 8, single buffered']
    #allocation3 [shape = 's32[1]{0}', space=sflag, size = 0x4, scoped, tag = 'scoped memory for autoencoder_forward.1']
    #allocation4 [shape = 'u8[65536]{0}', space=vmem, size = 0x10000, scoped, tag = 'input window, operand 9, single buffered']
    #allocation5 [shape = 's32[1]{0}', space=sflag, size = 0x4, scoped, tag = 'scoped memory for autoencoder_forward.1']
    #allocation6 [shape = 'u8[262144]{0}', space=vmem, size = 0x40000, scoped, tag = 'input window, operand 10, single buffered']
    #allocation7 [shape = 'u8[65536]{0}', space=vmem, size = 0x10000, scoped, tag = 'input window, operand 12, single buffered']
    #allocation8 [shape = 's32[1]{0}', space=sflag, size = 0x4, scoped, tag = 'scoped memory for autoencoder_forward.1']
    #allocation9 [shape = 'u8[512]{0}', space=vmem, size = 0x400, scoped, tag = 'input window, operand 13, single buffered']
    #allocation10 [shape = 'u8[65536]{0}', space=vmem, size = 0x10000, scoped, tag = 'input window, operand 14, single buffered']
    #allocation11 [shape = 's32[1]{0}', space=sflag, size = 0x4, scoped, tag = 'scoped memory for autoencoder_forward.1']
    #allocation12 [shape = 'u8[512]{0}', space=vmem, size = 0x400, scoped, tag = 'input window, operand 15, single buffered']
    #allocation13 [shape = 'u8[16384]{0}', space=vmem, size = 0x4000, scoped, tag = 'input window, operand 18, single buffered']
    #allocation14 [shape = 's32[1]{0}', space=sflag, size = 0x4, scoped, tag = 'scoped memory for autoencoder_forward.1']
    %32 = vsyncpa [#allocation3], 0
    %33 = vsyncpa [#allocation5], 0
    %34 = vsyncpa [#allocation8], 0
    %35 = vsyncpa [#allocation11], 0
    %36 = vsyncpa [#allocation14], 0
    // Predicated region
    $region2: #{autoencoder_forward.1} parent=1 // pred_check
      _
    $region3: #{autoencoder_forward.1} parent=1 // pred_check_branch
      %38 = sbr.rel (0) target = $region5
    $region4: #{autoencoder_forward.1} parent=1 // pred_region
      _
    $region5: #{autoencoder_forward.1} parent=1 // pred_fallthru
      _
    // Predicated region
    $region6: #{autoencoder_forward.1} parent=1 // pred_check
      _
    $region7: #{autoencoder_forward.1} parent=1 // pred_check_branch
      %40 = sbr.rel (0) target = $region9
    $region8: #{autoencoder_forward.1} parent=1 // pred_region
      _
    $region9: #{autoencoder_forward.1} parent=1 // pred_fallthru
      _
    // Predicated region
    $region10: #{autoencoder_forward.1} parent=1 // pred_check
      _
    $region11: #{autoencoder_forward.1} parent=1 // pred_check_branch
      %42 = sbr.rel (0) target = $region13
    $region12: #{autoencoder_forward.1} parent=1 // pred_region
      _
    $region13: #{autoencoder_forward.1} parent=1 // pred_fallthru
      _
    // Predicated region
    $region14: #{autoencoder_forward.1} parent=1 // pred_check
      _
    $region15: #{autoencoder_forward.1} parent=1 // pred_check_branch
      %44 = sbr.rel (0) target = $region17
    $region16: #{autoencoder_forward.1} parent=1 // pred_region
      _
    $region17: #{autoencoder_forward.1} parent=1 // pred_fallthru
      _
    // Predicated region
    $region18: #{autoencoder_forward.1} parent=1 // pred_check
      _
    $region19: #{autoencoder_forward.1} parent=1 // pred_check_branch
      %46 = sbr.rel (0) target = $region21
    $region20: #{autoencoder_forward.1} parent=1 // pred_region
      _
    $region21: #{autoencoder_forward.1} parent=1 // pred_fallthru
      _
    // Predicated region
    $region22: #{autoencoder_forward.1} parent=1 // pred_check
      _
    $region23: #{autoencoder_forward.1} parent=1 // pred_check_branch
      %48 = sbr.rel (0) target = $region25
    $region24: #{autoencoder_forward.1} parent=1 // pred_region
      _
    $region25: #{autoencoder_forward.1} parent=1 // pred_fallthru
      _
    // Predicated region
    $region26: #{autoencoder_forward.1} parent=1 // pred_check
      _
    $region27: #{autoencoder_forward.1} parent=1 // pred_check_branch
      %50 = sbr.rel (0) target = $region29
    $region28: #{autoencoder_forward.1} parent=1 // pred_region
      _
    $region29: #{autoencoder_forward.1} parent=1 // pred_fallthru
      _
    // Predicated region
    $region30: #{autoencoder_forward.1} parent=1 // pred_check
      _
    $region31: #{autoencoder_forward.1} parent=1 // pred_check_branch
      %52 = sbr.rel (0) target = $region33
    $region32: #{autoencoder_forward.1} parent=1 // pred_region
      _
    $region33: #{autoencoder_forward.1} parent=1 // pred_fallthru
      _
    // Predicated region
    $region34: #{autoencoder_forward.1} parent=1 // pred_check
      _
    $region35: #{autoencoder_forward.1} parent=1 // pred_check_branch
      %54 = sbr.rel (0) target = $region37
    $region36: #{autoencoder_forward.1} parent=1 // pred_region
      %56 = vsyncadd [#allocation3], 0
      %s57 = sshll.u32 %s8, 4
      %s58 = int_to_ptr.hbm [resolvable:$true] %s57
      %s59 = sshll.u32 [#allocation2], 4
      %s60 = int_to_ptr.vmem [resolvable:$true] %s59
      %65 = dma.hbm_to_vmem [thread:$0]  %s58, 8192, %s60, [#allocation3], 512, 512, 32
    $region37: #{autoencoder_forward.1} parent=1 // pred_fallthru
      _
    // Predicated region
    $region38: #{autoencoder_forward.1} parent=1 // pred_check
      _
    $region39: #{autoencoder_forward.1} parent=1 // pred_check_branch
      %67 = sbr.rel (0) target = $region41
    $region40: #{autoencoder_forward.1} parent=1 // pred_region
      %69 = vsyncadd [#allocation5], 0
      %s70 = sshll.u32 %s9, 4
      %s71 = int_to_ptr.hbm [resolvable:$true] %s70
      %s72 = sshll.u32 [#allocation4], 4
      %s73 = int_to_ptr.vmem [resolvable:$true] %s72
      %78 = dma.hbm_to_vmem [thread:$0]  %s71, 2048, %s73, [#allocation5], 512, 512, 32
    $region41: #{autoencoder_forward.1} parent=1 // pred_fallthru
      _
    // Predicated region
    $region42: #{autoencoder_forward.1} parent=1 // pred_check
      _
    $region43: #{autoencoder_forward.1} parent=1 // pred_check_branch
      %80 = sbr.rel (0) target = $region45
    $region44: #{autoencoder_forward.1} parent=1 // pred_region
      %82 = vsyncadd [#allocation5], 0
      %s83 = sshll.u32 %s10, 4
      %s84 = int_to_ptr.hbm [resolvable:$true] %s83
      %s85 = sshll.u32 [#allocation6], 4
      %s86 = int_to_ptr.vmem [resolvable:$true] %s85
      %91 = dma.hbm_to_vmem [thread:$0]  %s84, 8192, %s86, [#allocation5], 512, 512, 32
    $region45: #{autoencoder_forward.1} parent=1 // pred_fallthru
      _
    // Predicated region
    $region46: #{autoencoder_forward.1} parent=1 // pred_check
      _
    $region47: #{autoencoder_forward.1} parent=1 // pred_check_branch
      %93 = sbr.rel (0) target = $region49
    $region48: #{autoencoder_forward.1} parent=1 // pred_region
      _
    $region49: #{autoencoder_forward.1} parent=1 // pred_fallthru
      _
    // Predicated region
    $region50: #{autoencoder_forward.1} parent=1 // pred_check
      _
    $region51: #{autoencoder_forward.1} parent=1 // pred_check_branch
      %95 = sbr.rel (0) target = $region53
    $region52: #{autoencoder_forward.1} parent=1 // pred_region
      %97 = vsyncadd [#allocation8], 0
      %s98 = sshll.u32 %s12, 4
      %s99 = int_to_ptr.hbm [resolvable:$true] %s98
      %s100 = sshll.u32 [#allocation7], 4
      %s101 = int_to_ptr.vmem [resolvable:$true] %s100
      %106 = dma.hbm_to_vmem [thread:$0]  %s99, 2048, %s101, [#allocation8], 128, 128, 8
    $region53: #{autoencoder_forward.1} parent=1 // pred_fallthru
      _
    // Predicated region
    $region54: #{autoencoder_forward.1} parent=1 // pred_check
      _
    $region55: #{autoencoder_forward.1} parent=1 // pred_check_branch
      %108 = sbr.rel (0) target = $region57
    $region56: #{autoencoder_forward.1} parent=1 // pred_region
      %110 = vsyncadd [#allocation8], 0
      %s112 = sshll.u32 %s13, 4
      %s113 = int_to_ptr.hbm [resolvable:$true] %s112
      %s114 = sshll.u32 [#allocation9], 4
      %s115 = int_to_ptr.vmem [resolvable:$true] %s114
      %117 = dma.hbm_to_vmem [thread:$0]  %s113, 16, %s115, [#allocation8]
    $region57: #{autoencoder_forward.1} parent=1 // pred_fallthru
      _
    // Predicated region
    $region58: #{autoencoder_forward.1} parent=1 // pred_check
      _
    $region59: #{autoencoder_forward.1} parent=1 // pred_check_branch
      %119 = sbr.rel (0) target = $region61
    $region60: #{autoencoder_forward.1} parent=1 // pred_region
      %121 = vsyncadd [#allocation11], 0
      %s122 = sshll.u32 %s14, 4
      %s123 = int_to_ptr.hbm [resolvable:$true] %s122
      %s124 = sshll.u32 [#allocation10], 4
      %s125 = int_to_ptr.vmem [resolvable:$true] %s124
      %130 = dma.hbm_to_vmem [thread:$0]  %s123, 2048, %s125, [#allocation11], 128, 128, 8
    $region61: #{autoencoder_forward.1} parent=1 // pred_fallthru
      _
    // Predicated region
    $region62: #{autoencoder_forward.1} parent=1 // pred_check
      _
    $region63: #{autoencoder_forward.1} parent=1 // pred_check_branch
      %132 = sbr.rel (0) target = $region65
    $region64: #{autoencoder_forward.1} parent=1 // pred_region
      %134 = vsyncadd [#allocation11], 0
      %s136 = sshll.u32 %s15, 4
      %s137 = int_to_ptr.hbm [resolvable:$true] %s136
      %s138 = sshll.u32 [#allocation12], 4
      %s139 = int_to_ptr.vmem [resolvable:$true] %s138
      %141 = dma.hbm_to_vmem [thread:$0]  %s137, 16, %s139, [#allocation11]
    $region65: #{autoencoder_forward.1} parent=1 // pred_fallthru
      _
    // Predicated region
    $region66: #{autoencoder_forward.1} parent=1 // pred_check
      _
    $region67: #{autoencoder_forward.1} parent=1 // pred_check_branch
      %143 = sbr.rel (0) target = $region69
    $region68: #{autoencoder_forward.1} parent=1 // pred_region
      _
    $region69: #{autoencoder_forward.1} parent=1 // pred_fallthru
      _
    // Predicated region
    $region70: #{autoencoder_forward.1} parent=1 // pred_check
      _
    $region71: #{autoencoder_forward.1} parent=1 // pred_check_branch
      %145 = sbr.rel (0) target = $region73
    $region72: #{autoencoder_forward.1} parent=1 // pred_region
      _
    $region73: #{autoencoder_forward.1} parent=1 // pred_fallthru
      _
    // Predicated region
    $region74: #{autoencoder_forward.1} parent=1 // pred_check
      _
    $region75: #{autoencoder_forward.1} parent=1 // pred_check_branch
      %147 = sbr.rel (0) target = $region77
    $region76: #{autoencoder_forward.1} parent=1 // pred_region
      %149 = vsyncadd [#allocation14], 0
      %s150 = sshll.u32 %s18, 4
      %s151 = int_to_ptr.hbm [resolvable:$true] %s150
      %s152 = sshll.u32 [#allocation13], 4
      %s153 = int_to_ptr.vmem [resolvable:$true] %s152
      %158 = dma.hbm_to_vmem [thread:$0]  %s151, 512, %s153, [#allocation14], 128, 128, 8
    $region77: #{autoencoder_forward.1} parent=1 // pred_fallthru
      _
    // Predicated region
    $region78: #{autoencoder_forward.1} parent=1 // pred_check
      _
    $region79: #{autoencoder_forward.1} parent=1 // pred_check_branch
      %160 = sbr.rel (0) target = $region81
    $region80: #{autoencoder_forward.1} parent=1 // pred_region
      _
    $region81: #{autoencoder_forward.1} parent=1 // pred_fallthru
      _
    // Predicated region
    $region82: #{autoencoder_forward.1} parent=1 // pred_check
      _
    $region83: #{autoencoder_forward.1} parent=1 // pred_check_branch
      %162 = sbr.rel (0) target = $region85
    $region84: #{autoencoder_forward.1} parent=1 // pred_region
      _
    $region85: #{autoencoder_forward.1} parent=1 // pred_fallthru
      _
    // Predicated region
    $region86: #{autoencoder_forward.1} parent=1 // pred_check
      _
    $region87: #{autoencoder_forward.1} parent=1 // pred_check_branch
      %164 = sbr.rel (0) target = $region89
    $region88: #{autoencoder_forward.1} parent=1 // pred_region
      _
    $region89: #{autoencoder_forward.1} parent=1 // pred_fallthru
      _
    // Predicated region
    $region90: #{autoencoder_forward.1} parent=1 // pred_check
      _
    $region91: #{autoencoder_forward.1} parent=1 // pred_check_branch
      %166 = sbr.rel (0) target = $region93
    $region92: #{autoencoder_forward.1} parent=1 // pred_region
      %168 = dma.done [#allocation3], 8192
    $region93: #{autoencoder_forward.1} parent=1 // pred_fallthru
      _
    // Predicated region
    $region94: #{autoencoder_forward.1} parent=1 // pred_check
      _
    $region95: #{autoencoder_forward.1} parent=1 // pred_check_branch
      %170 = sbr.rel (0) target = $region97
    $region96: #{autoencoder_forward.1} parent=1 // pred_region
      %172 = dma.done [#allocation5], 2048
    $region97: #{autoencoder_forward.1} parent=1 // pred_fallthru
      _
    // Predicated region
    $region98: #{autoencoder_forward.1} parent=1 // pred_check
      _
    $region99: #{autoencoder_forward.1} parent=1 // pred_check_branch
      %174 = sbr.rel (0) target = $region101
    $region100: #{autoencoder_forward.1} parent=1 // pred_region
      %176 = dma.done [#allocation5], 8192
    $region101: #{autoencoder_forward.1} parent=1 // pred_fallthru
      _
    // Predicated region
    $region102: #{autoencoder_forward.1} parent=1 // pred_check
      _
    $region103: #{autoencoder_forward.1} parent=1 // pred_check_branch
      %178 = sbr.rel (0) target = $region105
    $region104: #{autoencoder_forward.1} parent=1 // pred_region
      %180 = dma.done [#allocation8], 2048
    $region105: #{autoencoder_forward.1} parent=1 // pred_fallthru
      _
    // Predicated region
    $region106: #{autoencoder_forward.1} parent=1 // pred_check
      _
    $region107: #{autoencoder_forward.1} parent=1 // pred_check_branch
      %182 = sbr.rel (0) target = $region109
    $region108: #{autoencoder_forward.1} parent=1 // pred_region
      %184 = dma.done [#allocation8], 16
    $region109: #{autoencoder_forward.1} parent=1 // pred_fallthru
      _
    // Predicated region
    $region110: #{autoencoder_forward.1} parent=1 // pred_check
      _
    $region111: #{autoencoder_forward.1} parent=1 // pred_check_branch
      %186 = sbr.rel (0) target = $region113
    $region112: #{autoencoder_forward.1} parent=1 // pred_region
      %188 = dma.done [#allocation11], 2048
    $region113: #{autoencoder_forward.1} parent=1 // pred_fallthru
      _
    // Predicated region
    $region114: #{autoencoder_forward.1} parent=1 // pred_check
      _
    $region115: #{autoencoder_forward.1} parent=1 // pred_check_branch
      %190 = sbr.rel (0) target = $region117
    $region116: #{autoencoder_forward.1} parent=1 // pred_region
      %192 = dma.done [#allocation11], 16
    $region117: #{autoencoder_forward.1} parent=1 // pred_fallthru
      _
    // Predicated region
    $region118: #{autoencoder_forward.1} parent=1 // pred_check
      _
    $region119: #{autoencoder_forward.1} parent=1 // pred_check_branch
      %194 = sbr.rel (0) target = $region121
    $region120: #{autoencoder_forward.1} parent=1 // pred_region
      %196 = dma.done [#allocation14], 512
    $region121: #{autoencoder_forward.1} parent=1 // pred_fallthru
      _
    %v197 = vld [vmem:[%s0] sm:$0xff]
    %v198 = vld [vmem:[%s0 + $0x8] sm:$0xff]
    %v199 = vld [vmem:[%s0 + $0x10] sm:$0xff]
    %v200 = vld [vmem:[%s0 + $0x18] sm:$0xff]
    %v201 = vld [vmem:[%s0 + $0x20] sm:$0xff]
    %v202 = vld [vmem:[%s0 + $0x28] sm:$0xff]
    %v203 = vld [vmem:[%s0 + $0x30] sm:$0xff]
    %v204 = vld [vmem:[%s0 + $0x38] sm:$0xff]
    %v205 = vld [vmem:[%s1] sm:$0xff]
    %v206 = vld [vmem:[%s1 + $0x8] sm:$0xff]
    %v207 = vld [vmem:[%s1 + $0x10] sm:$0xff]
    %v208 = vld [vmem:[%s1 + $0x18] sm:$0xff]
    %v209 = vld [vmem:[%s1 + $0x20] sm:$0xff]
    %v210 = vld [vmem:[%s1 + $0x28] sm:$0xff]
    %v211 = vld [vmem:[%s1 + $0x30] sm:$0xff]
    %v212 = vld [vmem:[%s1 + $0x38] sm:$0xff]
    %v213 = vld [vmem:[%s1 + $0x40] sm:$0xff]
    %v214 = vld [vmem:[%s1 + $0x48] sm:$0xff]
    %v215 = vld [vmem:[%s1 + $0x50] sm:$0xff]
    %v216 = vld [vmem:[%s1 + $0x58] sm:$0xff]
    %v217 = vld [vmem:[%s1 + $0x60] sm:$0x1]
    %v218 = vld [vmem:[%s1 + $0x68] sm:$0x1]
    %v219 = vld [vmem:[%s1 + $0x70] sm:$0x1]
    %v220 = vld [vmem:[%s1 + $0x78] sm:$0x1]
    %v221 = vld [vmem:[%s3] sm:$0xf]
    %v223 = vperm.slane %v221, 0
    %v224 = vperm.slane %v221, 1
    %v225 = vperm.slane %v221, 2
    %v226 = vperm.slane %v221, 3
    %vm231 = vcmask 203776
    %v233 = vsel %vm231, %v197, 0
    %v236 = vsel %vm231, %v198, 0
    %v239 = vsel %vm231, %v199, 0
    %v242 = vsel %vm231, %v200, 0
    %v245 = vsel %vm231, %v201, 0
    %v248 = vsel %vm231, %v202, 0
    %v251 = vsel %vm231, %v203, 0
    %v254 = vsel %vm231, %v204, 0
    %vm256 = vcmask 1040384
    %v258 = vsel %vm256, %v217, 0
    %v261 = vsel %vm256, %v218, 0
    %v264 = vsel %vm256, %v219, 0
    %v267 = vsel %vm256, %v220, 0
    %269 = vmatpush.msra.mxu0 0.0
    %270 = vmatpush.msra.mxu0 0.0
    %271 = vmatpush.msra.mxu0 0.0
    %272 = vmatpush.msra.mxu0 0.0
    %273 = vmatpush.msra.mxu0 0.0
    %274 = vmatpush.msra.mxu0 0.0
    %275 = vmatpush.msra.mxu0 0.0
    %276 = vmatpush.msra.mxu0 0.0
    %277 = vmatpush.msra.mxu0 0.0
    %278 = vmatpush.msra.mxu0 0.0
    %279 = vmatpush.msra.mxu0 0.0
    %280 = vmatpush.msra.mxu0 0.0
    %281 = vmatpush.msra.mxu0 %v258
    %282 = vmatpush.msra.mxu0 %v213
    %283 = vmatpush.msra.mxu0 %v209
    %284 = vmatpush.msra.mxu0 %v205
    %285 = vmatmul.f32.gmra.mxu0 %v233
    %v286 = vpop.f32.mrf.mxu0
    %v287 = vadd.f32 %v223, %v286
    %288 = vmatmul.f32.gmra.mxu0 %v236
    %v289 = vpop.f32.mrf.mxu0
    %v290 = vadd.f32 %v223, %v289
    %291 = vmatmul.f32.gmra.mxu0 %v239
    %v292 = vpop.f32.mrf.mxu0
    %v293 = vadd.f32 %v223, %v292
    %294 = vmatmul.f32.gmra.mxu0 %v242
    %v295 = vpop.f32.mrf.mxu0
    %v296 = vadd.f32 %v223, %v295
    %297 = vmatmul.f32.gmra.mxu0 %v245
    %v298 = vpop.f32.mrf.mxu0
    %v299 = vadd.f32 %v223, %v298
    %300 = vmatmul.f32.gmra.mxu0 %v248
    %v301 = vpop.f32.mrf.mxu0
    %v302 = vadd.f32 %v223, %v301
    %303 = vmatmul.f32.gmra.mxu0 %v251
    %v304 = vpop.f32.mrf.mxu0
    %v305 = vadd.f32 %v223, %v304
    %306 = vmatmul.f32.gmra.mxu0 %v254
    %v307 = vpop.f32.mrf.mxu0
    %v308 = vadd.f32 %v223, %v307
    %309 = vdwg.mxu0
    %310 = vmatpush.msra.mxu0 0.0
    %311 = vmatpush.msra.mxu0 0.0
    %312 = vmatpush.msra.mxu0 0.0
    %313 = vmatpush.msra.mxu0 0.0
    %314 = vmatpush.msra.mxu0 0.0
    %315 = vmatpush.msra.mxu0 0.0
    %316 = vmatpush.msra.mxu0 0.0
    %317 = vmatpush.msra.mxu0 0.0
    %318 = vmatpush.msra.mxu0 0.0
    %319 = vmatpush.msra.mxu0 0.0
    %320 = vmatpush.msra.mxu0 0.0
    %321 = vmatpush.msra.mxu0 0.0
    %322 = vmatpush.msra.mxu0 %v261
    %323 = vmatpush.msra.mxu0 %v214
    %324 = vmatpush.msra.mxu0 %v210
    %325 = vmatpush.msra.mxu0 %v206
    %326 = vmatmul.f32.gmra.mxu0 %v233
    %v327 = vpop.f32.mrf.mxu0
    %v328 = vadd.f32 %v224, %v327
    %329 = vmatmul.f32.gmra.mxu0 %v236
    %v330 = vpop.f32.mrf.mxu0
    %v331 = vadd.f32 %v224, %v330
    %332 = vmatmul.f32.gmra.mxu0 %v239
    %v333 = vpop.f32.mrf.mxu0
    %v334 = vadd.f32 %v224, %v333
    %335 = vmatmul.f32.gmra.mxu0 %v242
    %v336 = vpop.f32.mrf.mxu0
    %v337 = vadd.f32 %v224, %v336
    %338 = vmatmul.f32.gmra.mxu0 %v245
    %v339 = vpop.f32.mrf.mxu0
    %v340 = vadd.f32 %v224, %v339
    %341 = vmatmul.f32.gmra.mxu0 %v248
    %v342 = vpop.f32.mrf.mxu0
    %v343 = vadd.f32 %v224, %v342
    %344 = vmatmul.f32.gmra.mxu0 %v251
    %v345 = vpop.f32.mrf.mxu0
    %v346 = vadd.f32 %v224, %v345
    %347 = vmatmul.f32.gmra.mxu0 %v254
    %v348 = vpop.f32.mrf.mxu0
    %v349 = vadd.f32 %v224, %v348
    %350 = vdwg.mxu0
    %351 = vmatpush.msra.mxu0 0.0
    %352 = vmatpush.msra.mxu0 0.0
    %353 = vmatpush.msra.mxu0 0.0
    %354 = vmatpush.msra.mxu0 0.0
    %355 = vmatpush.msra.mxu0 0.0
    %356 = vmatpush.msra.mxu0 0.0
    %357 = vmatpush.msra.mxu0 0.0
    %358 = vmatpush.msra.mxu0 0.0
    %359 = vmatpush.msra.mxu0 0.0
    %360 = vmatpush.msra.mxu0 0.0
    %361 = vmatpush.msra.mxu0 0.0
    %362 = vmatpush.msra.mxu0 0.0
    %363 = vmatpush.msra.mxu0 %v264
    %364 = vmatpush.msra.mxu0 %v215
    %365 = vmatpush.msra.mxu0 %v211
    %366 = vmatpush.msra.mxu0 %v207
    %367 = vmatmul.f32.gmra.mxu0 %v233
    %v368 = vpop.f32.mrf.mxu0
    %v369 = vadd.f32 %v225, %v368
    %370 = vmatmul.f32.gmra.mxu0 %v236
    %v371 = vpop.f32.mrf.mxu0
    %v372 = vadd.f32 %v225, %v371
    %373 = vmatmul.f32.gmra.mxu0 %v239
    %v374 = vpop.f32.mrf.mxu0
    %v375 = vadd.f32 %v225, %v374
    %376 = vmatmul.f32.gmra.mxu0 %v242
    %v377 = vpop.f32.mrf.mxu0
    %v378 = vadd.f32 %v225, %v377
    %379 = vmatmul.f32.gmra.mxu0 %v245
    %v380 = vpop.f32.mrf.mxu0
    %v381 = vadd.f32 %v225, %v380
    %382 = vmatmul.f32.gmra.mxu0 %v248
    %v383 = vpop.f32.mrf.mxu0
    %v384 = vadd.f32 %v225, %v383
    %385 = vmatmul.f32.gmra.mxu0 %v251
    %v386 = vpop.f32.mrf.mxu0
    %v387 = vadd.f32 %v225, %v386
    %388 = vmatmul.f32.gmra.mxu0 %v254
    %v389 = vpop.f32.mrf.mxu0
    %v390 = vadd.f32 %v225, %v389
    %391 = vdwg.mxu0
    %392 = vmatpush.msra.mxu0 0.0
    %393 = vmatpush.msra.mxu0 0.0
    %394 = vmatpush.msra.mxu0 0.0
    %395 = vmatpush.msra.mxu0 0.0
    %396 = vmatpush.msra.mxu0 0.0
    %397 = vmatpush.msra.mxu0 0.0
    %398 = vmatpush.msra.mxu0 0.0
    %399 = vmatpush.msra.mxu0 0.0
    %400 = vmatpush.msra.mxu0 0.0
    %401 = vmatpush.msra.mxu0 0.0
    %402 = vmatpush.msra.mxu0 0.0
    %403 = vmatpush.msra.mxu0 0.0
    %404 = vmatpush.msra.mxu0 %v267
    %405 = vmatpush.msra.mxu0 %v216
    %406 = vmatpush.msra.mxu0 %v212
    %407 = vmatpush.msra.mxu0 %v208
    %408 = vmatmul.f32.gmra.mxu0 %v233
    %v409 = vpop.f32.mrf.mxu0
    %v410 = vadd.f32 %v226, %v409
    %411 = vmatmul.f32.gmra.mxu0 %v236
    %v412 = vpop.f32.mrf.mxu0
    %v413 = vadd.f32 %v226, %v412
    %414 = vmatmul.f32.gmra.mxu0 %v239
    %v415 = vpop.f32.mrf.mxu0
    %v416 = vadd.f32 %v226, %v415
    %417 = vmatmul.f32.gmra.mxu0 %v242
    %v418 = vpop.f32.mrf.mxu0
    %v419 = vadd.f32 %v226, %v418
    %420 = vmatmul.f32.gmra.mxu0 %v245
    %v421 = vpop.f32.mrf.mxu0
    %v422 = vadd.f32 %v226, %v421
    %423 = vmatmul.f32.gmra.mxu0 %v248
    %v424 = vpop.f32.mrf.mxu0
    %v425 = vadd.f32 %v226, %v424
    %426 = vmatmul.f32.gmra.mxu0 %v251
    %v427 = vpop.f32.mrf.mxu0
    %v428 = vadd.f32 %v226, %v427
    %429 = vmatmul.f32.gmra.mxu0 %v254
    %v430 = vpop.f32.mrf.mxu0
    %v431 = vadd.f32 %v226, %v430
    %432 = vdwg.mxu0
    %v433 = vld [vmem:[%s2] sm:$0xff]
    %v434 = vld [vmem:[%s2 + $0x8] sm:$0xff]
    %v435 = vld [vmem:[%s2 + $0x10] sm:$0xff]
    %v436 = vld [vmem:[%s2 + $0x18] sm:$0xff]
    %v437 = vld [vmem:[%s2 + $0x20] sm:$0xff]
    %v438 = vld [vmem:[%s2 + $0x28] sm:$0xff]
    %v439 = vld [vmem:[%s2 + $0x30] sm:$0xff]
    %v440 = vld [vmem:[%s2 + $0x38] sm:$0xff]
    %v441 = vld [vmem:[%s2 + $0x40] sm:$0xff]
    %v442 = vld [vmem:[%s2 + $0x48] sm:$0xff]
    %v443 = vld [vmem:[%s2 + $0x50] sm:$0xff]
    %v444 = vld [vmem:[%s2 + $0x58] sm:$0xff]
    %v445 = vld [vmem:[%s2 + $0x60] sm:$0xff]
    %v446 = vld [vmem:[%s2 + $0x68] sm:$0xff]
    %v447 = vld [vmem:[%s2 + $0x70] sm:$0xff]
    %v448 = vld [vmem:[%s2 + $0x78] sm:$0xff]
    %v449 = vld [vmem:[%s2 + $0x80] sm:$0xff]
    %v450 = vld [vmem:[%s2 + $0x88] sm:$0xff]
    %v451 = vld [vmem:[%s2 + $0x90] sm:$0xff]
    %v452 = vld [vmem:[%s2 + $0x98] sm:$0xff]
    %v453 = vld [vmem:[%s2 + $0xa0] sm:$0xff]
    %v454 = vld [vmem:[%s2 + $0xa8] sm:$0xff]
    %v455 = vld [vmem:[%s2 + $0xb0] sm:$0xff]
    %v456 = vld [vmem:[%s2 + $0xb8] sm:$0xff]
    %v457 = vld [vmem:[%s2 + $0xc0] sm:$0xff]
    %v458 = vld [vmem:[%s2 + $0xc8] sm:$0xff]
    %v459 = vld [vmem:[%s2 + $0xd0] sm:$0xff]
    %v460 = vld [vmem:[%s2 + $0xd8] sm:$0xff]
    %v461 = vld [vmem:[%s2 + $0xe0] sm:$0xff]
    %v462 = vld [vmem:[%s2 + $0xe8] sm:$0xff]
    %v463 = vld [vmem:[%s2 + $0xf0] sm:$0xff]
    %v464 = vld [vmem:[%s2 + $0xf8] sm:$0xff]
    %v465 = vld [vmem:[%s2 + $0x100] sm:$0xff]
    %v466 = vld [vmem:[%s2 + $0x108] sm:$0xff]
    %v467 = vld [vmem:[%s2 + $0x110] sm:$0xff]
    %v468 = vld [vmem:[%s2 + $0x118] sm:$0xff]
    %v469 = vld [vmem:[%s2 + $0x120] sm:$0xff]
    %v470 = vld [vmem:[%s2 + $0x128] sm:$0xff]
    %v471 = vld [vmem:[%s2 + $0x130] sm:$0xff]
    %v472 = vld [vmem:[%s2 + $0x138] sm:$0xff]
    %v473 = vld [vmem:[%s2 + $0x140] sm:$0xff]
    %v474 = vld [vmem:[%s2 + $0x148] sm:$0xff]
    %v475 = vld [vmem:[%s2 + $0x150] sm:$0xff]
    %v476 = vld [vmem:[%s2 + $0x158] sm:$0xff]
    %v477 = vld [vmem:[%s2 + $0x160] sm:$0xff]
    %v478 = vld [vmem:[%s2 + $0x168] sm:$0xff]
    %v479 = vld [vmem:[%s2 + $0x170] sm:$0xff]
    %v480 = vld [vmem:[%s2 + $0x178] sm:$0xff]
    %v481 = vld [vmem:[%s2 + $0x180] sm:$0xff]
    %v482 = vld [vmem:[%s2 + $0x188] sm:$0xff]
    %v483 = vld [vmem:[%s2 + $0x190] sm:$0xff]
    %v484 = vld [vmem:[%s2 + $0x198] sm:$0xff]
    %v485 = vld [vmem:[%s2 + $0x1a0] sm:$0xff]
    %v486 = vld [vmem:[%s2 + $0x1a8] sm:$0xff]
    %v487 = vld [vmem:[%s2 + $0x1b0] sm:$0xff]
    %v488 = vld [vmem:[%s2 + $0x1b8] sm:$0xff]
    %v489 = vld [vmem:[%s2 + $0x1c0] sm:$0xff]
    %v490 = vld [vmem:[%s2 + $0x1c8] sm:$0xff]
    %v491 = vld [vmem:[%s2 + $0x1d0] sm:$0xff]
    %v492 = vld [vmem:[%s2 + $0x1d8] sm:$0xff]
    %v493 = vld [vmem:[%s2 + $0x1e0] sm:$0xff]
    %v494 = vld [vmem:[%s2 + $0x1e8] sm:$0xff]
    %v495 = vld [vmem:[%s2 + $0x1f0] sm:$0xff]
    %v496 = vld [vmem:[%s2 + $0x1f8] sm:$0xff]
    %497 = vmatpush.msra.mxu0 %v493
    %498 = vmatpush.msra.mxu0 %v489
    %499 = vmatpush.msra.mxu0 %v485
    %500 = vmatpush.msra.mxu0 %v481
    %501 = vmatpush.msra.mxu0 %v477
    %502 = vmatpush.msra.mxu0 %v473
    %503 = vmatpush.msra.mxu0 %v469
    %504 = vmatpush.msra.mxu0 %v465
    %505 = vmatpush.msra.mxu0 %v461
    %506 = vmatpush.msra.mxu0 %v457
    %507 = vmatpush.msra.mxu0 %v453
    %508 = vmatpush.msra.mxu0 %v449
    %509 = vmatpush.msra.mxu0 %v445
    %510 = vmatpush.msra.mxu0 %v441
    %511 = vmatpush.msra.mxu0 %v437
    %512 = vmatpush.msra.mxu0 %v433
    %513 = vmatmul.f32.gmra.mxu0 0.0
    %v514 = vpop.f32.mrf.mxu0
    %v515 = vadd.f32 0.0, %v514
    %516 = vdwg.mxu0
    %517 = vmatpush.msra.mxu0 %v494
    %518 = vmatpush.msra.mxu0 %v490
    %519 = vmatpush.msra.mxu0 %v486
    %520 = vmatpush.msra.mxu0 %v482
    %521 = vmatpush.msra.mxu0 %v478
    %522 = vmatpush.msra.mxu0 %v474
    %523 = vmatpush.msra.mxu0 %v470
    %524 = vmatpush.msra.mxu0 %v466
    %525 = vmatpush.msra.mxu0 %v462
    %526 = vmatpush.msra.mxu0 %v458
    %527 = vmatpush.msra.mxu0 %v454
    %528 = vmatpush.msra.mxu0 %v450
    %529 = vmatpush.msra.mxu0 %v446
    %530 = vmatpush.msra.mxu0 %v442
    %531 = vmatpush.msra.mxu0 %v438
    %532 = vmatpush.msra.mxu0 %v434
    %533 = vmatmul.f32.gmra.mxu0 0.0
    %v534 = vpop.f32.mrf.mxu0
    %v535 = vadd.f32 0.0, %v534
    %536 = vdwg.mxu0
    %537 = vmatpush.msra.mxu0 %v495
    %538 = vmatpush.msra.mxu0 %v491
    %539 = vmatpush.msra.mxu0 %v487
    %540 = vmatpush.msra.mxu0 %v483
    %541 = vmatpush.msra.mxu0 %v479
    %542 = vmatpush.msra.mxu0 %v475
    %543 = vmatpush.msra.mxu0 %v471
    %544 = vmatpush.msra.mxu0 %v467
    %545 = vmatpush.msra.mxu0 %v463
    %546 = vmatpush.msra.mxu0 %v459
    %547 = vmatpush.msra.mxu0 %v455
    %548 = vmatpush.msra.mxu0 %v451
    %549 = vmatpush.msra.mxu0 %v447
    %550 = vmatpush.msra.mxu0 %v443
    %551 = vmatpush.msra.mxu0 %v439
    %552 = vmatpush.msra.mxu0 %v435
    %553 = vmatmul.f32.gmra.mxu0 0.0
    %v554 = vpop.f32.mrf.mxu0
    %v555 = vadd.f32 0.0, %v554
    %556 = vdwg.mxu0
    %557 = vmatpush.msra.mxu0 %v496
    %558 = vmatpush.msra.mxu0 %v492
    %559 = vmatpush.msra.mxu0 %v488
    %560 = vmatpush.msra.mxu0 %v484
    %561 = vmatpush.msra.mxu0 %v480
    %562 = vmatpush.msra.mxu0 %v476
    %563 = vmatpush.msra.mxu0 %v472
    %564 = vmatpush.msra.mxu0 %v468
    %565 = vmatpush.msra.mxu0 %v464
    %566 = vmatpush.msra.mxu0 %v460
    %567 = vmatpush.msra.mxu0 %v456
    %568 = vmatpush.msra.mxu0 %v452
    %569 = vmatpush.msra.mxu0 %v448
    %570 = vmatpush.msra.mxu0 %v444
    %571 = vmatpush.msra.mxu0 %v440
    %572 = vmatpush.msra.mxu0 %v436
    %573 = vmatmul.f32.gmra.mxu0 0.0
    %v574 = vpop.f32.mrf.mxu0
    %v575 = vadd.f32 0.0, %v574
    %576 = vdwg.mxu0
    %v577 = vadd.f32 %v287, %v515
    %v578 = vadd.f32 %v328, %v535
    %v579 = vadd.f32 %v369, %v555
    %v580 = vadd.f32 %v410, %v575
    %v581 = vmul.f32 %v577, 0.5
    %v582 = vtanh.pop %v581
    %v583 = vadd.f32 %v582, 1.0
    %v584 = vmul.f32 %v583, 0.5
    %v585 = vmul.f32 %v578, 0.5
    %v586 = vtanh.pop %v585
    %v587 = vadd.f32 %v586, 1.0
    %v588 = vmul.f32 %v587, 0.5
    %v589 = vtanh.pop %v579
    %v590 = vmul.f32 %v580, 0.5
    %v591 = vtanh.pop %v590
    %v592 = vadd.f32 %v591, 1.0
    %v593 = vmul.f32 %v592, 0.5
    %v594 = vmul.f32 %v588, 0.0
    %v595 = vmul.f32 %v584, %v589
    %v596 = vadd.f32 %v594, %v595
    %v597 = vtanh.pop %v596
    %v598 = vmul.f32 %v593, %v597
    %599 = vmatpush.msra.mxu0 %v493
    %600 = vmatpush.msra.mxu0 %v489
    %601 = vmatpush.msra.mxu0 %v485
    %602 = vmatpush.msra.mxu0 %v481
    %603 = vmatpush.msra.mxu0 %v477
    %604 = vmatpush.msra.mxu0 %v473
    %605 = vmatpush.msra.mxu0 %v469
    %606 = vmatpush.msra.mxu0 %v465
    %607 = vmatpush.msra.mxu0 %v461
    %608 = vmatpush.msra.mxu0 %v457
    %609 = vmatpush.msra.mxu0 %v453
    %610 = vmatpush.msra.mxu0 %v449
    %611 = vmatpush.msra.mxu0 %v445
    %612 = vmatpush.msra.mxu0 %v441
    %613 = vmatpush.msra.mxu0 %v437
    %614 = vmatpush.msra.mxu0 %v433
    %615 = vmatmul.f32.gmra.mxu0 %v598
    %v616 = vpop.f32.mrf.mxu0
    %v617 = vadd.f32 0.0, %v616
    %618 = vdwg.mxu0
    %619 = vmatpush.msra.mxu0 %v494
    %620 = vmatpush.msra.mxu0 %v490
    %621 = vmatpush.msra.mxu0 %v486
    %622 = vmatpush.msra.mxu0 %v482
    %623 = vmatpush.msra.mxu0 %v478
    %624 = vmatpush.msra.mxu0 %v474
    %625 = vmatpush.msra.mxu0 %v470
    %626 = vmatpush.msra.mxu0 %v466
    %627 = vmatpush.msra.mxu0 %v462
    %628 = vmatpush.msra.mxu0 %v458
    %629 = vmatpush.msra.mxu0 %v454
    %630 = vmatpush.msra.mxu0 %v450
    %631 = vmatpush.msra.mxu0 %v446
    %632 = vmatpush.msra.mxu0 %v442
    %633 = vmatpush.msra.mxu0 %v438
    %634 = vmatpush.msra.mxu0 %v434
    %635 = vmatmul.f32.gmra.mxu0 %v598
    %v636 = vpop.f32.mrf.mxu0
    %v637 = vadd.f32 0.0, %v636
    %638 = vdwg.mxu0
    %639 = vmatpush.msra.mxu0 %v495
    %640 = vmatpush.msra.mxu0 %v491
    %641 = vmatpush.msra.mxu0 %v487
    %642 = vmatpush.msra.mxu0 %v483
    %643 = vmatpush.msra.mxu0 %v479
    %644 = vmatpush.msra.mxu0 %v475
    %645 = vmatpush.msra.mxu0 %v471
    %646 = vmatpush.msra.mxu0 %v467
    %647 = vmatpush.msra.mxu0 %v463
    %648 = vmatpush.msra.mxu0 %v459
    %649 = vmatpush.msra.mxu0 %v455
    %650 = vmatpush.msra.mxu0 %v451
    %651 = vmatpush.msra.mxu0 %v447
    %652 = vmatpush.msra.mxu0 %v443
    %653 = vmatpush.msra.mxu0 %v439
    %654 = vmatpush.msra.mxu0 %v435
    %655 = vmatmul.f32.gmra.mxu0 %v598
    %v656 = vpop.f32.mrf.mxu0
    %v657 = vadd.f32 0.0, %v656
    %658 = vdwg.mxu0
    %659 = vmatpush.msra.mxu0 %v496
    %660 = vmatpush.msra.mxu0 %v492
    %661 = vmatpush.msra.mxu0 %v488
    %662 = vmatpush.msra.mxu0 %v484
    %663 = vmatpush.msra.mxu0 %v480
    %664 = vmatpush.msra.mxu0 %v476
    %665 = vmatpush.msra.mxu0 %v472
    %666 = vmatpush.msra.mxu0 %v468
    %667 = vmatpush.msra.mxu0 %v464
    %668 = vmatpush.msra.mxu0 %v460
    %669 = vmatpush.msra.mxu0 %v456
    %670 = vmatpush.msra.mxu0 %v452
    %671 = vmatpush.msra.mxu0 %v448
    %672 = vmatpush.msra.mxu0 %v444
    %673 = vmatpush.msra.mxu0 %v440
    %674 = vmatpush.msra.mxu0 %v436
    %675 = vmatmul.f32.gmra.mxu0 %v598
    %v676 = vpop.f32.mrf.mxu0
    %v677 = vadd.f32 0.0, %v676
    %678 = vdwg.mxu0
    %v679 = vadd.f32 %v290, %v617
    %v680 = vadd.f32 %v331, %v637
    %v681 = vadd.f32 %v372, %v657
    %v682 = vadd.f32 %v413, %v677
    %v683 = vmul.f32 %v679, 0.5
    %v684 = vtanh.pop %v683
    %v685 = vadd.f32 %v684, 1.0
    %v686 = vmul.f32 %v685, 0.5
    %v687 = vmul.f32 %v680, 0.5
    %v688 = vtanh.pop %v687
    %v689 = vadd.f32 %v688, 1.0
    %v690 = vmul.f32 %v689, 0.5
    %v691 = vtanh.pop %v681
    %v692 = vmul.f32 %v682, 0.5
    %v693 = vtanh.pop %v692
    %v694 = vadd.f32 %v693, 1.0
    %v695 = vmul.f32 %v694, 0.5
    %v696 = vmul.f32 %v690, %v596
    %v697 = vmul.f32 %v686, %v691
    %v698 = vadd.f32 %v696, %v697
    %v699 = vtanh.pop %v698
    %v700 = vmul.f32 %v695, %v699
    %701 = vmatpush.msra.mxu0 %v493
    %702 = vmatpush.msra.mxu0 %v489
    %703 = vmatpush.msra.mxu0 %v485
    %704 = vmatpush.msra.mxu0 %v481
    %705 = vmatpush.msra.mxu0 %v477
    %706 = vmatpush.msra.mxu0 %v473
    %707 = vmatpush.msra.mxu0 %v469
    %708 = vmatpush.msra.mxu0 %v465
    %709 = vmatpush.msra.mxu0 %v461
    %710 = vmatpush.msra.mxu0 %v457
    %711 = vmatpush.msra.mxu0 %v453
    %712 = vmatpush.msra.mxu0 %v449
    %713 = vmatpush.msra.mxu0 %v445
    %714 = vmatpush.msra.mxu0 %v441
    %715 = vmatpush.msra.mxu0 %v437
    %716 = vmatpush.msra.mxu0 %v433
    %717 = vmatmul.f32.gmra.mxu0 %v700
    %v718 = vpop.f32.mrf.mxu0
    %v719 = vadd.f32 0.0, %v718
    %720 = vdwg.mxu0
    %721 = vmatpush.msra.mxu0 %v494
    %722 = vmatpush.msra.mxu0 %v490
    %723 = vmatpush.msra.mxu0 %v486
    %724 = vmatpush.msra.mxu0 %v482
    %725 = vmatpush.msra.mxu0 %v478
    %726 = vmatpush.msra.mxu0 %v474
    %727 = vmatpush.msra.mxu0 %v470
    %728 = vmatpush.msra.mxu0 %v466
    %729 = vmatpush.msra.mxu0 %v462
    %730 = vmatpush.msra.mxu0 %v458
    %731 = vmatpush.msra.mxu0 %v454
    %732 = vmatpush.msra.mxu0 %v450
    %733 = vmatpush.msra.mxu0 %v446
    %734 = vmatpush.msra.mxu0 %v442
    %735 = vmatpush.msra.mxu0 %v438
    %736 = vmatpush.msra.mxu0 %v434
    %737 = vmatmul.f32.gmra.mxu0 %v700
    %v738 = vpop.f32.mrf.mxu0
    %v739 = vadd.f32 0.0, %v738
    %740 = vdwg.mxu0
    %741 = vmatpush.msra.mxu0 %v495
    %742 = vmatpush.msra.mxu0 %v491
    %743 = vmatpush.msra.mxu0 %v487
    %744 = vmatpush.msra.mxu0 %v483
    %745 = vmatpush.msra.mxu0 %v479
    %746 = vmatpush.msra.mxu0 %v475
    %747 = vmatpush.msra.mxu0 %v471
    %748 = vmatpush.msra.mxu0 %v467
    %749 = vmatpush.msra.mxu0 %v463
    %750 = vmatpush.msra.mxu0 %v459
    %751 = vmatpush.msra.mxu0 %v455
    %752 = vmatpush.msra.mxu0 %v451
    %753 = vmatpush.msra.mxu0 %v447
    %754 = vmatpush.msra.mxu0 %v443
    %755 = vmatpush.msra.mxu0 %v439
    %756 = vmatpush.msra.mxu0 %v435
    %757 = vmatmul.f32.gmra.mxu0 %v700
    %v758 = vpop.f32.mrf.mxu0
    %v759 = vadd.f32 0.0, %v758
    %760 = vdwg.mxu0
    %761 = vmatpush.msra.mxu0 %v496
    %762 = vmatpush.msra.mxu0 %v492
    %763 = vmatpush.msra.mxu0 %v488
    %764 = vmatpush.msra.mxu0 %v484
    %765 = vmatpush.msra.mxu0 %v480
    %766 = vmatpush.msra.mxu0 %v476
    %767 = vmatpush.msra.mxu0 %v472
    %768 = vmatpush.msra.mxu0 %v468
    %769 = vmatpush.msra.mxu0 %v464
    %770 = vmatpush.msra.mxu0 %v460
    %771 = vmatpush.msra.mxu0 %v456
    %772 = vmatpush.msra.mxu0 %v452
    %773 = vmatpush.msra.mxu0 %v448
    %774 = vmatpush.msra.mxu0 %v444
    %775 = vmatpush.msra.mxu0 %v440
    %776 = vmatpush.msra.mxu0 %v436
    %777 = vmatmul.f32.gmra.mxu0 %v700
    %v778 = vpop.f32.mrf.mxu0
    %v779 = vadd.f32 0.0, %v778
    %780 = vdwg.mxu0
    %v781 = vadd.f32 %v293, %v719
    %v782 = vadd.f32 %v334, %v739
    %v783 = vadd.f32 %v375, %v759
    %v784 = vadd.f32 %v416, %v779
    %v785 = vmul.f32 %v781, 0.5
    %v786 = vtanh.pop %v785
    %v787 = vadd.f32 %v786, 1.0
    %v788 = vmul.f32 %v787, 0.5
    %v789 = vmul.f32 %v782, 0.5
    %v790 = vtanh.pop %v789
    %v791 = vadd.f32 %v790, 1.0
    %v792 = vmul.f32 %v791, 0.5
    %v793 = vtanh.pop %v783
    %v794 = vmul.f32 %v784, 0.5
    %v795 = vtanh.pop %v794
    %v796 = vadd.f32 %v795, 1.0
    %v797 = vmul.f32 %v796, 0.5
    %v798 = vmul.f32 %v792, %v698
    %v799 = vmul.f32 %v788, %v793
    %v800 = vadd.f32 %v798, %v799
    %v801 = vtanh.pop %v800
    %v802 = vmul.f32 %v797, %v801
    %803 = vmatpush.msra.mxu0 %v493
    %804 = vmatpush.msra.mxu0 %v489
    %805 = vmatpush.msra.mxu0 %v485
    %806 = vmatpush.msra.mxu0 %v481
    %807 = vmatpush.msra.mxu0 %v477
    %808 = vmatpush.msra.mxu0 %v473
    %809 = vmatpush.msra.mxu0 %v469
    %810 = vmatpush.msra.mxu0 %v465
    %811 = vmatpush.msra.mxu0 %v461
    %812 = vmatpush.msra.mxu0 %v457
    %813 = vmatpush.msra.mxu0 %v453
    %814 = vmatpush.msra.mxu0 %v449
    %815 = vmatpush.msra.mxu0 %v445
    %816 = vmatpush.msra.mxu0 %v441
    %817 = vmatpush.msra.mxu0 %v437
    %818 = vmatpush.msra.mxu0 %v433
    %819 = vmatmul.f32.gmra.mxu0 %v802
    %v820 = vpop.f32.mrf.mxu0
    %v821 = vadd.f32 0.0, %v820
    %822 = vdwg.mxu0
    %823 = vmatpush.msra.mxu0 %v494
    %824 = vmatpush.msra.mxu0 %v490
    %825 = vmatpush.msra.mxu0 %v486
    %826 = vmatpush.msra.mxu0 %v482
    %827 = vmatpush.msra.mxu0 %v478
    %828 = vmatpush.msra.mxu0 %v474
    %829 = vmatpush.msra.mxu0 %v470
    %830 = vmatpush.msra.mxu0 %v466
    %831 = vmatpush.msra.mxu0 %v462
    %832 = vmatpush.msra.mxu0 %v458
    %833 = vmatpush.msra.mxu0 %v454
    %834 = vmatpush.msra.mxu0 %v450
    %835 = vmatpush.msra.mxu0 %v446
    %836 = vmatpush.msra.mxu0 %v442
    %837 = vmatpush.msra.mxu0 %v438
    %838 = vmatpush.msra.mxu0 %v434
    %839 = vmatmul.f32.gmra.mxu0 %v802
    %v840 = vpop.f32.mrf.mxu0
    %v841 = vadd.f32 0.0, %v840
    %842 = vdwg.mxu0
    %843 = vmatpush.msra.mxu0 %v495
    %844 = vmatpush.msra.mxu0 %v491
    %845 = vmatpush.msra.mxu0 %v487
    %846 = vmatpush.msra.mxu0 %v483
    %847 = vmatpush.msra.mxu0 %v479
    %848 = vmatpush.msra.mxu0 %v475
    %849 = vmatpush.msra.mxu0 %v471
    %850 = vmatpush.msra.mxu0 %v467
    %851 = vmatpush.msra.mxu0 %v463
    %852 = vmatpush.msra.mxu0 %v459
    %853 = vmatpush.msra.mxu0 %v455
    %854 = vmatpush.msra.mxu0 %v451
    %855 = vmatpush.msra.mxu0 %v447
    %856 = vmatpush.msra.mxu0 %v443
    %857 = vmatpush.msra.mxu0 %v439
    %858 = vmatpush.msra.mxu0 %v435
    %859 = vmatmul.f32.gmra.mxu0 %v802
    %v860 = vpop.f32.mrf.mxu0
    %v861 = vadd.f32 0.0, %v860
    %862 = vdwg.mxu0
    %863 = vmatpush.msra.mxu0 %v496
    %864 = vmatpush.msra.mxu0 %v492
    %865 = vmatpush.msra.mxu0 %v488
    %866 = vmatpush.msra.mxu0 %v484
    %867 = vmatpush.msra.mxu0 %v480
    %868 = vmatpush.msra.mxu0 %v476
    %869 = vmatpush.msra.mxu0 %v472
    %870 = vmatpush.msra.mxu0 %v468
    %871 = vmatpush.msra.mxu0 %v464
    %872 = vmatpush.msra.mxu0 %v460
    %873 = vmatpush.msra.mxu0 %v456
    %874 = vmatpush.msra.mxu0 %v452
    %875 = vmatpush.msra.mxu0 %v448
    %876 = vmatpush.msra.mxu0 %v444
    %877 = vmatpush.msra.mxu0 %v440
    %878 = vmatpush.msra.mxu0 %v436
    %879 = vmatmul.f32.gmra.mxu0 %v802
    %v880 = vpop.f32.mrf.mxu0
    %v881 = vadd.f32 0.0, %v880
    %882 = vdwg.mxu0
    %v883 = vadd.f32 %v296, %v821
    %v884 = vadd.f32 %v337, %v841
    %v885 = vadd.f32 %v378, %v861
    %v886 = vadd.f32 %v419, %v881
    %v887 = vmul.f32 %v883, 0.5
    %v888 = vtanh.pop %v887
    %v889 = vadd.f32 %v888, 1.0
    %v890 = vmul.f32 %v889, 0.5
    %v891 = vmul.f32 %v884, 0.5
    %v892 = vtanh.pop %v891
    %v893 = vadd.f32 %v892, 1.0
    %v894 = vmul.f32 %v893, 0.5
    %v895 = vtanh.pop %v885
    %v896 = vmul.f32 %v886, 0.5
    %v897 = vtanh.pop %v896
    %v898 = vadd.f32 %v897, 1.0
    %v899 = vmul.f32 %v898, 0.5
    %v900 = vmul.f32 %v894, %v800
    %v901 = vmul.f32 %v890, %v895
    %v902 = vadd.f32 %v900, %v901
    %v903 = vtanh.pop %v902
    %v904 = vmul.f32 %v899, %v903
    %905 = vmatpush.msra.mxu0 %v493
    %906 = vmatpush.msra.mxu0 %v489
    %907 = vmatpush.msra.mxu0 %v485
    %908 = vmatpush.msra.mxu0 %v481
    %909 = vmatpush.msra.mxu0 %v477
    %910 = vmatpush.msra.mxu0 %v473
    %911 = vmatpush.msra.mxu0 %v469
    %912 = vmatpush.msra.mxu0 %v465
    %913 = vmatpush.msra.mxu0 %v461
    %914 = vmatpush.msra.mxu0 %v457
    %915 = vmatpush.msra.mxu0 %v453
    %916 = vmatpush.msra.mxu0 %v449
    %917 = vmatpush.msra.mxu0 %v445
    %918 = vmatpush.msra.mxu0 %v441
    %919 = vmatpush.msra.mxu0 %v437
    %920 = vmatpush.msra.mxu0 %v433
    %921 = vmatmul.f32.gmra.mxu0 %v904
    %v922 = vpop.f32.mrf.mxu0
    %v923 = vadd.f32 0.0, %v922
    %924 = vdwg.mxu0
    %925 = vmatpush.msra.mxu0 %v494
    %926 = vmatpush.msra.mxu0 %v490
    %927 = vmatpush.msra.mxu0 %v486
    %928 = vmatpush.msra.mxu0 %v482
    %929 = vmatpush.msra.mxu0 %v478
    %930 = vmatpush.msra.mxu0 %v474
    %931 = vmatpush.msra.mxu0 %v470
    %932 = vmatpush.msra.mxu0 %v466
    %933 = vmatpush.msra.mxu0 %v462
    %934 = vmatpush.msra.mxu0 %v458
    %935 = vmatpush.msra.mxu0 %v454
    %936 = vmatpush.msra.mxu0 %v450
    %937 = vmatpush.msra.mxu0 %v446
    %938 = vmatpush.msra.mxu0 %v442
    %939 = vmatpush.msra.mxu0 %v438
    %940 = vmatpush.msra.mxu0 %v434
    %941 = vmatmul.f32.gmra.mxu0 %v904
    %v942 = vpop.f32.mrf.mxu0
    %v943 = vadd.f32 0.0, %v942
    %944 = vdwg.mxu0
    %945 = vmatpush.msra.mxu0 %v495
    %946 = vmatpush.msra.mxu0 %v491
    %947 = vmatpush.msra.mxu0 %v487
    %948 = vmatpush.msra.mxu0 %v483
    %949 = vmatpush.msra.mxu0 %v479
    %950 = vmatpush.msra.mxu0 %v475
    %951 = vmatpush.msra.mxu0 %v471
    %952 = vmatpush.msra.mxu0 %v467
    %953 = vmatpush.msra.mxu0 %v463
    %954 = vmatpush.msra.mxu0 %v459
    %955 = vmatpush.msra.mxu0 %v455
    %956 = vmatpush.msra.mxu0 %v451
    %957 = vmatpush.msra.mxu0 %v447
    %958 = vmatpush.msra.mxu0 %v443
    %959 = vmatpush.msra.mxu0 %v439
    %960 = vmatpush.msra.mxu0 %v435
    %961 = vmatmul.f32.gmra.mxu0 %v904
    %v962 = vpop.f32.mrf.mxu0
    %v963 = vadd.f32 0.0, %v962
    %964 = vdwg.mxu0
    %965 = vmatpush.msra.mxu0 %v496
    %966 = vmatpush.msra.mxu0 %v492
    %967 = vmatpush.msra.mxu0 %v488
    %968 = vmatpush.msra.mxu0 %v484
    %969 = vmatpush.msra.mxu0 %v480
    %970 = vmatpush.msra.mxu0 %v476
    %971 = vmatpush.msra.mxu0 %v472
    %972 = vmatpush.msra.mxu0 %v468
    %973 = vmatpush.msra.mxu0 %v464
    %974 = vmatpush.msra.mxu0 %v460
    %975 = vmatpush.msra.mxu0 %v456
    %976 = vmatpush.msra.mxu0 %v452
    %977 = vmatpush.msra.mxu0 %v448
    %978 = vmatpush.msra.mxu0 %v444
    %979 = vmatpush.msra.mxu0 %v440
    %980 = vmatpush.msra.mxu0 %v436
    %981 = vmatmul.f32.gmra.mxu0 %v904
    %v982 = vpop.f32.mrf.mxu0
    %v983 = vadd.f32 0.0, %v982
    %984 = vdwg.mxu0
    %v985 = vadd.f32 %v299, %v923
    %v986 = vadd.f32 %v340, %v943
    %v987 = vadd.f32 %v381, %v963
    %v988 = vadd.f32 %v422, %v983
    %v989 = vmul.f32 %v985, 0.5
    %v990 = vtanh.pop %v989
    %v991 = vadd.f32 %v990, 1.0
    %v992 = vmul.f32 %v991, 0.5
    %v993 = vmul.f32 %v986, 0.5
    %v994 = vtanh.pop %v993
    %v995 = vadd.f32 %v994, 1.0
    %v996 = vmul.f32 %v995, 0.5
    %v997 = vtanh.pop %v987
    %v998 = vmul.f32 %v988, 0.5
    %v999 = vtanh.pop %v998
    %v1000 = vadd.f32 %v999, 1.0
    %v1001 = vmul.f32 %v1000, 0.5
    %v1002 = vmul.f32 %v996, %v902
    %v1003 = vmul.f32 %v992, %v997
    %v1004 = vadd.f32 %v1002, %v1003
    %v1005 = vtanh.pop %v1004
    %v1006 = vmul.f32 %v1001, %v1005
    %1007 = vmatpush.msra.mxu0 %v493
    %1008 = vmatpush.msra.mxu0 %v489
    %1009 = vmatpush.msra.mxu0 %v485
    %1010 = vmatpush.msra.mxu0 %v481
    %1011 = vmatpush.msra.mxu0 %v477
    %1012 = vmatpush.msra.mxu0 %v473
    %1013 = vmatpush.msra.mxu0 %v469
    %1014 = vmatpush.msra.mxu0 %v465
    %1015 = vmatpush.msra.mxu0 %v461
    %1016 = vmatpush.msra.mxu0 %v457
    %1017 = vmatpush.msra.mxu0 %v453
    %1018 = vmatpush.msra.mxu0 %v449
    %1019 = vmatpush.msra.mxu0 %v445
    %1020 = vmatpush.msra.mxu0 %v441
    %1021 = vmatpush.msra.mxu0 %v437
    %1022 = vmatpush.msra.mxu0 %v433
    %1023 = vmatmul.f32.gmra.mxu0 %v1006
    %v1024 = vpop.f32.mrf.mxu0
    %v1025 = vadd.f32 0.0, %v1024
    %1026 = vdwg.mxu0
    %1027 = vmatpush.msra.mxu0 %v494
    %1028 = vmatpush.msra.mxu0 %v490
    %1029 = vmatpush.msra.mxu0 %v486
    %1030 = vmatpush.msra.mxu0 %v482
    %1031 = vmatpush.msra.mxu0 %v478
    %1032 = vmatpush.msra.mxu0 %v474
    %1033 = vmatpush.msra.mxu0 %v470
    %1034 = vmatpush.msra.mxu0 %v466
    %1035 = vmatpush.msra.mxu0 %v462
    %1036 = vmatpush.msra.mxu0 %v458
    %1037 = vmatpush.msra.mxu0 %v454
    %1038 = vmatpush.msra.mxu0 %v450
    %1039 = vmatpush.msra.mxu0 %v446
    %1040 = vmatpush.msra.mxu0 %v442
    %1041 = vmatpush.msra.mxu0 %v438
    %1042 = vmatpush.msra.mxu0 %v434
    %1043 = vmatmul.f32.gmra.mxu0 %v1006
    %v1044 = vpop.f32.mrf.mxu0
    %v1045 = vadd.f32 0.0, %v1044
    %1046 = vdwg.mxu0
    %1047 = vmatpush.msra.mxu0 %v495
    %1048 = vmatpush.msra.mxu0 %v491
    %1049 = vmatpush.msra.mxu0 %v487
    %1050 = vmatpush.msra.mxu0 %v483
    %1051 = vmatpush.msra.mxu0 %v479
    %1052 = vmatpush.msra.mxu0 %v475
    %1053 = vmatpush.msra.mxu0 %v471
    %1054 = vmatpush.msra.mxu0 %v467
    %1055 = vmatpush.msra.mxu0 %v463
    %1056 = vmatpush.msra.mxu0 %v459
    %1057 = vmatpush.msra.mxu0 %v455
    %1058 = vmatpush.msra.mxu0 %v451
    %1059 = vmatpush.msra.mxu0 %v447
    %1060 = vmatpush.msra.mxu0 %v443
    %1061 = vmatpush.msra.mxu0 %v439
    %1062 = vmatpush.msra.mxu0 %v435
    %1063 = vmatmul.f32.gmra.mxu0 %v1006
    %v1064 = vpop.f32.mrf.mxu0
    %v1065 = vadd.f32 0.0, %v1064
    %1066 = vdwg.mxu0
    %1067 = vmatpush.msra.mxu0 %v496
    %1068 = vmatpush.msra.mxu0 %v492
    %1069 = vmatpush.msra.mxu0 %v488
    %1070 = vmatpush.msra.mxu0 %v484
    %1071 = vmatpush.msra.mxu0 %v480
    %1072 = vmatpush.msra.mxu0 %v476
    %1073 = vmatpush.msra.mxu0 %v472
    %1074 = vmatpush.msra.mxu0 %v468
    %1075 = vmatpush.msra.mxu0 %v464
    %1076 = vmatpush.msra.mxu0 %v460
    %1077 = vmatpush.msra.mxu0 %v456
    %1078 = vmatpush.msra.mxu0 %v452
    %1079 = vmatpush.msra.mxu0 %v448
    %1080 = vmatpush.msra.mxu0 %v444
    %1081 = vmatpush.msra.mxu0 %v440
    %1082 = vmatpush.msra.mxu0 %v436
    %1083 = vmatmul.f32.gmra.mxu0 %v1006
    %v1084 = vpop.f32.mrf.mxu0
    %v1085 = vadd.f32 0.0, %v1084
    %1086 = vdwg.mxu0
    %v1087 = vadd.f32 %v302, %v1025
    %v1088 = vadd.f32 %v343, %v1045
    %v1089 = vadd.f32 %v384, %v1065
    %v1090 = vadd.f32 %v425, %v1085
    %v1091 = vmul.f32 %v1087, 0.5
    %v1092 = vtanh.pop %v1091
    %v1093 = vadd.f32 %v1092, 1.0
    %v1094 = vmul.f32 %v1093, 0.5
    %v1095 = vmul.f32 %v1088, 0.5
    %v1096 = vtanh.pop %v1095
    %v1097 = vadd.f32 %v1096, 1.0
    %v1098 = vmul.f32 %v1097, 0.5
    %v1099 = vtanh.pop %v1089
    %v1100 = vmul.f32 %v1090, 0.5
    %v1101 = vtanh.pop %v1100
    %v1102 = vadd.f32 %v1101, 1.0
    %v1103 = vmul.f32 %v1102, 0.5
    %v1104 = vmul.f32 %v1098, %v1004
    %v1105 = vmul.f32 %v1094, %v1099
    %v1106 = vadd.f32 %v1104, %v1105
    %v1107 = vtanh.pop %v1106
    %v1108 = vmul.f32 %v1103, %v1107
    %1109 = vmatpush.msra.mxu0 %v493
    %1110 = vmatpush.msra.mxu0 %v489
    %1111 = vmatpush.msra.mxu0 %v485
    %1112 = vmatpush.msra.mxu0 %v481
    %1113 = vmatpush.msra.mxu0 %v477
    %1114 = vmatpush.msra.mxu0 %v473
    %1115 = vmatpush.msra.mxu0 %v469
    %1116 = vmatpush.msra.mxu0 %v465
    %1117 = vmatpush.msra.mxu0 %v461
    %1118 = vmatpush.msra.mxu0 %v457
    %1119 = vmatpush.msra.mxu0 %v453
    %1120 = vmatpush.msra.mxu0 %v449
    %1121 = vmatpush.msra.mxu0 %v445
    %1122 = vmatpush.msra.mxu0 %v441
    %1123 = vmatpush.msra.mxu0 %v437
    %1124 = vmatpush.msra.mxu0 %v433
    %1125 = vmatmul.f32.gmra.mxu0 %v1108
    %v1126 = vpop.f32.mrf.mxu0
    %v1127 = vadd.f32 0.0, %v1126
    %1128 = vdwg.mxu0
    %1129 = vmatpush.msra.mxu0 %v494
    %1130 = vmatpush.msra.mxu0 %v490
    %1131 = vmatpush.msra.mxu0 %v486
    %1132 = vmatpush.msra.mxu0 %v482
    %1133 = vmatpush.msra.mxu0 %v478
    %1134 = vmatpush.msra.mxu0 %v474
    %1135 = vmatpush.msra.mxu0 %v470
    %1136 = vmatpush.msra.mxu0 %v466
    %1137 = vmatpush.msra.mxu0 %v462
    %1138 = vmatpush.msra.mxu0 %v458
    %1139 = vmatpush.msra.mxu0 %v454
    %1140 = vmatpush.msra.mxu0 %v450
    %1141 = vmatpush.msra.mxu0 %v446
    %1142 = vmatpush.msra.mxu0 %v442
    %1143 = vmatpush.msra.mxu0 %v438
    %1144 = vmatpush.msra.mxu0 %v434
    %1145 = vmatmul.f32.gmra.mxu0 %v1108
    %v1146 = vpop.f32.mrf.mxu0
    %v1147 = vadd.f32 0.0, %v1146
    %1148 = vdwg.mxu0
    %1149 = vmatpush.msra.mxu0 %v495
    %1150 = vmatpush.msra.mxu0 %v491
    %1151 = vmatpush.msra.mxu0 %v487
    %1152 = vmatpush.msra.mxu0 %v483
    %1153 = vmatpush.msra.mxu0 %v479
    %1154 = vmatpush.msra.mxu0 %v475
    %1155 = vmatpush.msra.mxu0 %v471
    %1156 = vmatpush.msra.mxu0 %v467
    %1157 = vmatpush.msra.mxu0 %v463
    %1158 = vmatpush.msra.mxu0 %v459
    %1159 = vmatpush.msra.mxu0 %v455
    %1160 = vmatpush.msra.mxu0 %v451
    %1161 = vmatpush.msra.mxu0 %v447
    %1162 = vmatpush.msra.mxu0 %v443
    %1163 = vmatpush.msra.mxu0 %v439
    %1164 = vmatpush.msra.mxu0 %v435
    %1165 = vmatmul.f32.gmra.mxu0 %v1108
    %v1166 = vpop.f32.mrf.mxu0
    %v1167 = vadd.f32 0.0, %v1166
    %1168 = vdwg.mxu0
    %1169 = vmatpush.msra.mxu0 %v496
    %1170 = vmatpush.msra.mxu0 %v492
    %1171 = vmatpush.msra.mxu0 %v488
    %1172 = vmatpush.msra.mxu0 %v484
    %1173 = vmatpush.msra.mxu0 %v480
    %1174 = vmatpush.msra.mxu0 %v476
    %1175 = vmatpush.msra.mxu0 %v472
    %1176 = vmatpush.msra.mxu0 %v468
    %1177 = vmatpush.msra.mxu0 %v464
    %1178 = vmatpush.msra.mxu0 %v460
    %1179 = vmatpush.msra.mxu0 %v456
    %1180 = vmatpush.msra.mxu0 %v452
    %1181 = vmatpush.msra.mxu0 %v448
    %1182 = vmatpush.msra.mxu0 %v444
    %1183 = vmatpush.msra.mxu0 %v440
    %1184 = vmatpush.msra.mxu0 %v436
    %1185 = vmatmul.f32.gmra.mxu0 %v1108
    %v1186 = vpop.f32.mrf.mxu0
    %v1187 = vadd.f32 0.0, %v1186
    %1188 = vdwg.mxu0
    %v1189 = vadd.f32 %v305, %v1127
    %v1190 = vadd.f32 %v346, %v1147
    %v1191 = vadd.f32 %v387, %v1167
    %v1192 = vadd.f32 %v428, %v1187
    %v1193 = vmul.f32 %v1189, 0.5
    %v1194 = vtanh.pop %v1193
    %v1195 = vadd.f32 %v1194, 1.0
    %v1196 = vmul.f32 %v1195, 0.5
    %v1197 = vmul.f32 %v1190, 0.5
    %v1198 = vtanh.pop %v1197
    %v1199 = vadd.f32 %v1198, 1.0
    %v1200 = vmul.f32 %v1199, 0.5
    %v1201 = vtanh.pop %v1191
    %v1202 = vmul.f32 %v1192, 0.5
    %v1203 = vtanh.pop %v1202
    %v1204 = vadd.f32 %v1203, 1.0
    %v1205 = vmul.f32 %v1204, 0.5
    %v1206 = vmul.f32 %v1200, %v1106
    %v1207 = vmul.f32 %v1196, %v1201
    %v1208 = vadd.f32 %v1206, %v1207
    %v1209 = vtanh.pop %v1208
    %v1210 = vmul.f32 %v1205, %v1209
    %1211 = vmatpush.msra.mxu0 %v493
    %1212 = vmatpush.msra.mxu0 %v489
    %1213 = vmatpush.msra.mxu0 %v485
    %1214 = vmatpush.msra.mxu0 %v481
    %1215 = vmatpush.msra.mxu0 %v477
    %1216 = vmatpush.msra.mxu0 %v473
    %1217 = vmatpush.msra.mxu0 %v469
    %1218 = vmatpush.msra.mxu0 %v465
    %1219 = vmatpush.msra.mxu0 %v461
    %1220 = vmatpush.msra.mxu0 %v457
    %1221 = vmatpush.msra.mxu0 %v453
    %1222 = vmatpush.msra.mxu0 %v449
    %1223 = vmatpush.msra.mxu0 %v445
    %1224 = vmatpush.msra.mxu0 %v441
    %1225 = vmatpush.msra.mxu0 %v437
    %1226 = vmatpush.msra.mxu0 %v433
    %1227 = vmatmul.f32.gmra.mxu0 %v1210
    %v1228 = vpop.f32.mrf.mxu0
    %v1229 = vadd.f32 0.0, %v1228
    %1230 = vdwg.mxu0
    %1231 = vmatpush.msra.mxu0 %v494
    %1232 = vmatpush.msra.mxu0 %v490
    %1233 = vmatpush.msra.mxu0 %v486
    %1234 = vmatpush.msra.mxu0 %v482
    %1235 = vmatpush.msra.mxu0 %v478
    %1236 = vmatpush.msra.mxu0 %v474
    %1237 = vmatpush.msra.mxu0 %v470
    %1238 = vmatpush.msra.mxu0 %v466
    %1239 = vmatpush.msra.mxu0 %v462
    %1240 = vmatpush.msra.mxu0 %v458
    %1241 = vmatpush.msra.mxu0 %v454
    %1242 = vmatpush.msra.mxu0 %v450
    %1243 = vmatpush.msra.mxu0 %v446
    %1244 = vmatpush.msra.mxu0 %v442
    %1245 = vmatpush.msra.mxu0 %v438
    %1246 = vmatpush.msra.mxu0 %v434
    %1247 = vmatmul.f32.gmra.mxu0 %v1210
    %v1248 = vpop.f32.mrf.mxu0
    %v1249 = vadd.f32 0.0, %v1248
    %1250 = vdwg.mxu0
    %1251 = vmatpush.msra.mxu0 %v495
    %1252 = vmatpush.msra.mxu0 %v491
    %1253 = vmatpush.msra.mxu0 %v487
    %1254 = vmatpush.msra.mxu0 %v483
    %1255 = vmatpush.msra.mxu0 %v479
    %1256 = vmatpush.msra.mxu0 %v475
    %1257 = vmatpush.msra.mxu0 %v471
    %1258 = vmatpush.msra.mxu0 %v467
    %1259 = vmatpush.msra.mxu0 %v463
    %1260 = vmatpush.msra.mxu0 %v459
    %1261 = vmatpush.msra.mxu0 %v455
    %1262 = vmatpush.msra.mxu0 %v451
    %1263 = vmatpush.msra.mxu0 %v447
    %1264 = vmatpush.msra.mxu0 %v443
    %1265 = vmatpush.msra.mxu0 %v439
    %1266 = vmatpush.msra.mxu0 %v435
    %1267 = vmatmul.f32.gmra.mxu0 %v1210
    %v1268 = vpop.f32.mrf.mxu0
    %v1269 = vadd.f32 0.0, %v1268
    %1270 = vdwg.mxu0
    %1271 = vmatpush.msra.mxu0 %v496
    %1272 = vmatpush.msra.mxu0 %v492
    %1273 = vmatpush.msra.mxu0 %v488
    %1274 = vmatpush.msra.mxu0 %v484
    %1275 = vmatpush.msra.mxu0 %v480
    %1276 = vmatpush.msra.mxu0 %v476
    %1277 = vmatpush.msra.mxu0 %v472
    %1278 = vmatpush.msra.mxu0 %v468
    %1279 = vmatpush.msra.mxu0 %v464
    %1280 = vmatpush.msra.mxu0 %v460
    %1281 = vmatpush.msra.mxu0 %v456
    %1282 = vmatpush.msra.mxu0 %v452
    %1283 = vmatpush.msra.mxu0 %v448
    %1284 = vmatpush.msra.mxu0 %v444
    %1285 = vmatpush.msra.mxu0 %v440
    %1286 = vmatpush.msra.mxu0 %v436
    %1287 = vmatmul.f32.gmra.mxu0 %v1210
    %v1288 = vpop.f32.mrf.mxu0
    %v1289 = vadd.f32 0.0, %v1288
    %1290 = vdwg.mxu0
    %v1291 = vadd.f32 %v308, %v1229
    %v1292 = vadd.f32 %v349, %v1249
    %v1293 = vadd.f32 %v390, %v1269
    %v1294 = vadd.f32 %v431, %v1289
    %v1295 = vmul.f32 %v1291, 0.5
    %v1296 = vtanh.pop %v1295
    %v1297 = vadd.f32 %v1296, 1.0
    %v1298 = vmul.f32 %v1297, 0.5
    %v1299 = vmul.f32 %v1292, 0.5
    %v1300 = vtanh.pop %v1299
    %v1301 = vadd.f32 %v1300, 1.0
    %v1302 = vmul.f32 %v1301, 0.5
    %v1303 = vtanh.pop %v1293
    %v1304 = vmul.f32 %v1294, 0.5
    %v1305 = vtanh.pop %v1304
    %v1306 = vadd.f32 %v1305, 1.0
    %v1307 = vmul.f32 %v1306, 0.5
    %v1308 = vmul.f32 %v1302, %v1208
    %v1309 = vmul.f32 %v1298, %v1303
    %v1310 = vadd.f32 %v1308, %v1309
    %v1311 = vtanh.pop %v1310
    %v1312 = vmul.f32 %v1307, %v1311
    %1313 = vst [vmem:[%s24] sm:$0xff] %v1312
    %v1314 = vmul.f32 %v1312, %v1312
    %1315 = vadd.xlane.f32.xlu0 %v1314
    %v1316 = vpop.xlane.xlu0 %1315
    %v1317 = vld [vmem:[%s5] sm:$0x3]
    %v1319 = vperm.slane %v1317, 0
    %v1320 = vperm.slane %v1317, 1
    %v1323 = vadd.f32 %v1316, %v1319
    %v1324 = vadd.f32 %v1316, %v1320
    %v1325 = vld [vmem:[%s4] sm:$0xff]
    %v1326 = vld [vmem:[%s4 + $0x8] sm:$0xff]
    %v1327 = vld [vmem:[%s4 + $0x10] sm:$0xff]
    %v1328 = vld [vmem:[%s4 + $0x18] sm:$0xff]
    %v1329 = vld [vmem:[%s4 + $0x20] sm:$0xff]
    %v1330 = vld [vmem:[%s4 + $0x28] sm:$0xff]
    %v1331 = vld [vmem:[%s4 + $0x30] sm:$0xff]
    %v1332 = vld [vmem:[%s4 + $0x38] sm:$0xff]
    %v1333 = vld [vmem:[%s4 + $0x40] sm:$0xff]
    %v1334 = vld [vmem:[%s4 + $0x48] sm:$0xff]
    %v1335 = vld [vmem:[%s4 + $0x50] sm:$0xff]
    %v1336 = vld [vmem:[%s4 + $0x58] sm:$0xff]
    %v1337 = vld [vmem:[%s4 + $0x60] sm:$0xff]
    %v1338 = vld [vmem:[%s4 + $0x68] sm:$0xff]
    %v1339 = vld [vmem:[%s4 + $0x70] sm:$0xff]
    %v1340 = vld [vmem:[%s4 + $0x78] sm:$0xff]
    %v1341 = vld [vmem:[%s4 + $0x80] sm:$0xff]
    %v1342 = vld [vmem:[%s4 + $0x88] sm:$0xff]
    %v1343 = vld [vmem:[%s4 + $0x90] sm:$0xff]
    %v1344 = vld [vmem:[%s4 + $0x98] sm:$0xff]
    %v1345 = vld [vmem:[%s4 + $0xa0] sm:$0xff]
    %v1346 = vld [vmem:[%s4 + $0xa8] sm:$0xff]
    %v1347 = vld [vmem:[%s4 + $0xb0] sm:$0xff]
    %v1348 = vld [vmem:[%s4 + $0xb8] sm:$0xff]
    %v1349 = vld [vmem:[%s4 + $0xc0] sm:$0xff]
    %v1350 = vld [vmem:[%s4 + $0xc8] sm:$0xff]
    %v1351 = vld [vmem:[%s4 + $0xd0] sm:$0xff]
    %v1352 = vld [vmem:[%s4 + $0xd8] sm:$0xff]
    %v1353 = vld [vmem:[%s4 + $0xe0] sm:$0xff]
    %v1354 = vld [vmem:[%s4 + $0xe8] sm:$0xff]
    %v1355 = vld [vmem:[%s4 + $0xf0] sm:$0xff]
    %v1356 = vld [vmem:[%s4 + $0xf8] sm:$0xff]
    %1357 = vmatpush.msra.mxu0 %v1355
    %1358 = vmatpush.msra.mxu0 %v1353
    %1359 = vmatpush.msra.mxu0 %v1351
    %1360 = vmatpush.msra.mxu0 %v1349
    %1361 = vmatpush.msra.mxu0 %v1347
    %1362 = vmatpush.msra.mxu0 %v1345
    %1363 = vmatpush.msra.mxu0 %v1343
    %1364 = vmatpush.msra.mxu0 %v1341
    %1365 = vmatpush.msra.mxu0 %v1339
    %1366 = vmatpush.msra.mxu0 %v1337
    %1367 = vmatpush.msra.mxu0 %v1335
    %1368 = vmatpush.msra.mxu0 %v1333
    %1369 = vmatpush.msra.mxu0 %v1331
    %1370 = vmatpush.msra.mxu0 %v1329
    %1371 = vmatpush.msra.mxu0 %v1327
    %1372 = vmatpush.msra.mxu0 %v1325
    %1373 = vmatmul.f32.gmra.mxu0 %v1312
    %v1374 = vpop.f32.mrf.mxu0
    %v1375 = vadd.f32 0.0, %v1374
    %1376 = vdwg.mxu0
    %1377 = vmatpush.msra.mxu0 %v1356
    %1378 = vmatpush.msra.mxu0 %v1354
    %1379 = vmatpush.msra.mxu0 %v1352
    %1380 = vmatpush.msra.mxu0 %v1350
    %1381 = vmatpush.msra.mxu0 %v1348
    %1382 = vmatpush.msra.mxu0 %v1346
    %1383 = vmatpush.msra.mxu0 %v1344
    %1384 = vmatpush.msra.mxu0 %v1342
    %1385 = vmatpush.msra.mxu0 %v1340
    %1386 = vmatpush.msra.mxu0 %v1338
    %1387 = vmatpush.msra.mxu0 %v1336
    %1388 = vmatpush.msra.mxu0 %v1334
    %1389 = vmatpush.msra.mxu0 %v1332
    %1390 = vmatpush.msra.mxu0 %v1330
    %1391 = vmatpush.msra.mxu0 %v1328
    %1392 = vmatpush.msra.mxu0 %v1326
    %1393 = vmatmul.f32.gmra.mxu0 %v1312
    %v1394 = vpop.f32.mrf.mxu0
    %v1395 = vadd.f32 0.0, %v1394
    %1396 = vdwg.mxu0
    %v1397 = vmul.f32 %v1375, 2.0
    %v1398 = vmul.f32 %v1395, 2.0
    %v1399 = vsub.f32 %v1323, %v1397
    %v1400 = vsub.f32 %v1324, %v1398
    %vm1401 = vcmask 588800
    %v1402 = vsel %vm1401, %v1400, inf
    %v1403 = vmin.f32 %v1399, %v1402
    %1404 = vmin.xlane.f32.xlu0 %v1403
    %v1405 = vpop.xlane.xlu0 %1404
    %v1406 = vlaneseq
    %v1407 = vand.u32 %v1406, 127
    %v1408 = vadd.s32 %v1407, 128
    %v1409 = vcvt.s32.f32 %v1407
    %v1410 = vcvt.s32.f32 %v1408
    %vm1411 = vcmp.le.f32.partialorder %v1399, %v1405
    %vm1412 = vcmp.le.f32.partialorder %v1400, %v1405
    %v1413 = vsel %vm1411, %v1409, 200.0
    %v1414 = vsel %vm1412, %v1410, 200.0
    %v1415 = vsel %vm1401, %v1414, inf
    %v1416 = vmin.f32 %v1413, %v1415
    %1417 = vmin.xlane.f32.xlu0 %v1416
    %v1418 = vpop.xlane.xlu0 %1417
    %vm1419 = vcmp.eq.f32.partialorder %v1409, %v1418
    %vm1420 = vcmp.eq.f32.partialorder %v1410, %v1418
    %v1421 = vsel %vm1419, 1, 0
    %v1422 = vsel %vm1420, 1, 0
    %v1423 = vcvt.s32.f32 %v1421
    %v1424 = vcvt.s32.f32 %v1422
    %1425 = vst [vmem:[%s25] sm:$0xff] %v1423
    %1426 = vst.msk [vmem:[%s25 + $0x8] sm:$0xff] %vm1401, %v1424
    %v1427 = vcvt.f32.s32.to.zero.pseudo %v1418
    %vm1428 = vcmask 7168
    %1429 = vst.msk [vmem:[%s26] sm:$0xff] %vm1428, %v1427
    %v1430 = vld [vmem:[%s6] sm:$0xff]
    %v1431 = vld [vmem:[%s6 + $0x8] sm:$0xff]
    %v1432 = vld [vmem:[%s6 + $0x10] sm:$0xff]
    %v1433 = vld [vmem:[%s6 + $0x18] sm:$0xff]
    %v1434 = vld [vmem:[%s6 + $0x20] sm:$0xff]
    %v1435 = vld [vmem:[%s6 + $0x28] sm:$0xff]
    %v1436 = vld [vmem:[%s6 + $0x30] sm:$0xff]
    %v1437 = vld [vmem:[%s6 + $0x38] sm:$0xff]
    %v1438 = vld [vmem:[%s6 + $0x40] sm:$0xff]
    %v1439 = vld [vmem:[%s6 + $0x48] sm:$0xff]
    %v1440 = vld [vmem:[%s6 + $0x50] sm:$0xff]
    %v1441 = vld [vmem:[%s6 + $0x58] sm:$0xff]
    %v1442 = vld [vmem:[%s6 + $0x60] sm:$0xff]
    %v1443 = vld [vmem:[%s6 + $0x68] sm:$0xff]
    %v1444 = vld [vmem:[%s6 + $0x70] sm:$0xff]
    %v1445 = vld [vmem:[%s6 + $0x78] sm:$0xff]
    %v1446 = vld [vmem:[%s7] sm:$0x1]
    %v1448 = vperm.slane %v1446, 0
    %1450 = vmatpush.msra.mxu0 %v1445
    %1451 = vmatpush.msra.mxu0 %v1444
    %1452 = vmatpush.msra.mxu0 %v1443
    %1453 = vmatpush.msra.mxu0 %v1442
    %1454 = vmatpush.msra.mxu0 %v1441
    %1455 = vmatpush.msra.mxu0 %v1440
    %1456 = vmatpush.msra.mxu0 %v1439
    %1457 = vmatpush.msra.mxu0 %v1438
    %1458 = vmatpush.msra.mxu0 %v1437
    %1459 = vmatpush.msra.mxu0 %v1436
    %1460 = vmatpush.msra.mxu0 %v1435
    %1461 = vmatpush.msra.mxu0 %v1434
    %1462 = vmatpush.msra.mxu0 %v1433
    %1463 = vmatpush.msra.mxu0 %v1432
    %1464 = vmatpush.msra.mxu0 %v1431
    %1465 = vmatpush.msra.mxu0 %v1430
    %1466 = vmatmul.f32.gmra.mxu0 %v1312
    %v1467 = vpop.f32.mrf.mxu0
    %v1468 = vadd.f32 %v1448, %v1467
    %1469 = vdwg.mxu0
    %v1470 = vld [vmem:[#allocation2] sm:$0xff]
    %v1471 = vld [vmem:[#allocation2 + $0x8] sm:$0xff]
    %v1472 = vld [vmem:[#allocation2 + $0x10] sm:$0xff]
    %v1473 = vld [vmem:[#allocation2 + $0x18] sm:$0xff]
    %v1474 = vld [vmem:[#allocation2 + $0x20] sm:$0xff]
    %v1475 = vld [vmem:[#allocation2 + $0x28] sm:$0xff]
    %v1476 = vld [vmem:[#allocation2 + $0x30] sm:$0xff]
    %v1477 = vld [vmem:[#allocation2 + $0x38] sm:$0xff]
    %v1478 = vld [vmem:[#allocation2 + $0x40] sm:$0xff]
    %v1479 = vld [vmem:[#allocation2 + $0x48] sm:$0xff]
    %v1480 = vld [vmem:[#allocation2 + $0x50] sm:$0xff]
    %v1481 = vld [vmem:[#allocation2 + $0x58] sm:$0xff]
    %v1482 = vld [vmem:[#allocation2 + $0x60] sm:$0xff]
    %v1483 = vld [vmem:[#allocation2 + $0x68] sm:$0xff]
    %v1484 = vld [vmem:[#allocation2 + $0x70] sm:$0xff]
    %v1485 = vld [vmem:[#allocation2 + $0x78] sm:$0xff]
    %v1486 = vld [vmem:[#allocation2 + $0x80] sm:$0xff]
    %v1487 = vld [vmem:[#allocation2 + $0x88] sm:$0xff]
    %v1488 = vld [vmem:[#allocation2 + $0x90] sm:$0xff]
    %v1489 = vld [vmem:[#allocation2 + $0x98] sm:$0xff]
    %v1490 = vld [vmem:[#allocation2 + $0xa0] sm:$0xff]
    %v1491 = vld [vmem:[#allocation2 + $0xa8] sm:$0xff]
    %v1492 = vld [vmem:[#allocation2 + $0xb0] sm:$0xff]
    %v1493 = vld [vmem:[#allocation2 + $0xb8] sm:$0xff]
    %v1494 = vld [vmem:[#allocation2 + $0xc0] sm:$0xff]
    %v1495 = vld [vmem:[#allocation2 + $0xc8] sm:$0xff]
    %v1496 = vld [vmem:[#allocation2 + $0xd0] sm:$0xff]
    %v1497 = vld [vmem:[#allocation2 + $0xd8] sm:$0xff]
    %v1498 = vld [vmem:[#allocation2 + $0xe0] sm:$0xff]
    %v1499 = vld [vmem:[#allocation2 + $0xe8] sm:$0xff]
    %v1500 = vld [vmem:[#allocation2 + $0xf0] sm:$0xff]
    %v1501 = vld [vmem:[#allocation2 + $0xf8] sm:$0xff]
    %v1502 = vld [vmem:[#allocation2 + $0x100] sm:$0xff]
    %v1503 = vld [vmem:[#allocation2 + $0x108] sm:$0xff]
    %v1504 = vld [vmem:[#allocation2 + $0x110] sm:$0xff]
    %v1505 = vld [vmem:[#allocation2 + $0x118] sm:$0xff]
    %v1506 = vld [vmem:[#allocation2 + $0x120] sm:$0xff]
    %v1507 = vld [vmem:[#allocation2 + $0x128] sm:$0xff]
    %v1508 = vld [vmem:[#allocation2 + $0x130] sm:$0xff]
    %v1509 = vld [vmem:[#allocation2 + $0x138] sm:$0xff]
    %v1510 = vld [vmem:[#allocation2 + $0x140] sm:$0xff]
    %v1511 = vld [vmem:[#allocation2 + $0x148] sm:$0xff]
    %v1512 = vld [vmem:[#allocation2 + $0x150] sm:$0xff]
    %v1513 = vld [vmem:[#allocation2 + $0x158] sm:$0xff]
    %v1514 = vld [vmem:[#allocation2 + $0x160] sm:$0xff]
    %v1515 = vld [vmem:[#allocation2 + $0x168] sm:$0xff]
    %v1516 = vld [vmem:[#allocation2 + $0x170] sm:$0xff]
    %v1517 = vld [vmem:[#allocation2 + $0x178] sm:$0xff]
    %v1518 = vld [vmem:[#allocation2 + $0x180] sm:$0xff]
    %v1519 = vld [vmem:[#allocation2 + $0x188] sm:$0xff]
    %v1520 = vld [vmem:[#allocation2 + $0x190] sm:$0xff]
    %v1521 = vld [vmem:[#allocation2 + $0x198] sm:$0xff]
    %v1522 = vld [vmem:[#allocation2 + $0x1a0] sm:$0xff]
    %v1523 = vld [vmem:[#allocation2 + $0x1a8] sm:$0xff]
    %v1524 = vld [vmem:[#allocation2 + $0x1b0] sm:$0xff]
    %v1525 = vld [vmem:[#allocation2 + $0x1b8] sm:$0xff]
    %v1526 = vld [vmem:[#allocation2 + $0x1c0] sm:$0xff]
    %v1527 = vld [vmem:[#allocation2 + $0x1c8] sm:$0xff]
    %v1528 = vld [vmem:[#allocation2 + $0x1d0] sm:$0xff]
    %v1529 = vld [vmem:[#allocation2 + $0x1d8] sm:$0xff]
    %v1530 = vld [vmem:[#allocation2 + $0x1e0] sm:$0xff]
    %v1531 = vld [vmem:[#allocation2 + $0x1e8] sm:$0xff]
    %v1532 = vld [vmem:[#allocation2 + $0x1f0] sm:$0xff]
    %v1533 = vld [vmem:[#allocation2 + $0x1f8] sm:$0xff]
    %v1534 = vld [vmem:[%s11] sm:$0xf]
    %v1536 = vperm.slane %v1534, 0
    %v1537 = vperm.slane %v1534, 1
    %v1538 = vperm.slane %v1534, 2
    %v1539 = vperm.slane %v1534, 3
    %1544 = vmatpush.msra.mxu0 %v1530
    %1545 = vmatpush.msra.mxu0 %v1526
    %1546 = vmatpush.msra.mxu0 %v1522
    %1547 = vmatpush.msra.mxu0 %v1518
    %1548 = vmatpush.msra.mxu0 %v1514
    %1549 = vmatpush.msra.mxu0 %v1510
    %1550 = vmatpush.msra.mxu0 %v1506
    %1551 = vmatpush.msra.mxu0 %v1502
    %1552 = vmatpush.msra.mxu0 %v1498
    %1553 = vmatpush.msra.mxu0 %v1494
    %1554 = vmatpush.msra.mxu0 %v1490
    %1555 = vmatpush.msra.mxu0 %v1486
    %1556 = vmatpush.msra.mxu0 %v1482
    %1557 = vmatpush.msra.mxu0 %v1478
    %1558 = vmatpush.msra.mxu0 %v1474
    %1559 = vmatpush.msra.mxu0 %v1470
    %1560 = vmatmul.f32.gmra.mxu0 %v1468
    %v1561 = vpop.f32.mrf.mxu0
    %v1562 = vadd.f32 %v1536, %v1561
    %1563 = vdwg.mxu0
    %1564 = vmatpush.msra.mxu0 %v1531
    %1565 = vmatpush.msra.mxu0 %v1527
    %1566 = vmatpush.msra.mxu0 %v1523
    %1567 = vmatpush.msra.mxu0 %v1519
    %1568 = vmatpush.msra.mxu0 %v1515
    %1569 = vmatpush.msra.mxu0 %v1511
    %1570 = vmatpush.msra.mxu0 %v1507
    %1571 = vmatpush.msra.mxu0 %v1503
    %1572 = vmatpush.msra.mxu0 %v1499
    %1573 = vmatpush.msra.mxu0 %v1495
    %1574 = vmatpush.msra.mxu0 %v1491
    %1575 = vmatpush.msra.mxu0 %v1487
    %1576 = vmatpush.msra.mxu0 %v1483
    %1577 = vmatpush.msra.mxu0 %v1479
    %1578 = vmatpush.msra.mxu0 %v1475
    %1579 = vmatpush.msra.mxu0 %v1471
    %1580 = vmatmul.f32.gmra.mxu0 %v1468
    %v1581 = vpop.f32.mrf.mxu0
    %v1582 = vadd.f32 %v1537, %v1581
    %1583 = vdwg.mxu0
    %1584 = vmatpush.msra.mxu0 %v1532
    %1585 = vmatpush.msra.mxu0 %v1528
    %1586 = vmatpush.msra.mxu0 %v1524
    %1587 = vmatpush.msra.mxu0 %v1520
    %1588 = vmatpush.msra.mxu0 %v1516
    %1589 = vmatpush.msra.mxu0 %v1512
    %1590 = vmatpush.msra.mxu0 %v1508
    %1591 = vmatpush.msra.mxu0 %v1504
    %1592 = vmatpush.msra.mxu0 %v1500
    %1593 = vmatpush.msra.mxu0 %v1496
    %1594 = vmatpush.msra.mxu0 %v1492
    %1595 = vmatpush.msra.mxu0 %v1488
    %1596 = vmatpush.msra.mxu0 %v1484
    %1597 = vmatpush.msra.mxu0 %v1480
    %1598 = vmatpush.msra.mxu0 %v1476
    %1599 = vmatpush.msra.mxu0 %v1472
    %1600 = vmatmul.f32.gmra.mxu0 %v1468
    %v1601 = vpop.f32.mrf.mxu0
    %v1602 = vadd.f32 %v1538, %v1601
    %1603 = vdwg.mxu0
    %1604 = vmatpush.msra.mxu0 %v1533
    %1605 = vmatpush.msra.mxu0 %v1529
    %1606 = vmatpush.msra.mxu0 %v1525
    %1607 = vmatpush.msra.mxu0 %v1521
    %1608 = vmatpush.msra.mxu0 %v1517
    %1609 = vmatpush.msra.mxu0 %v1513
    %1610 = vmatpush.msra.mxu0 %v1509
    %1611 = vmatpush.msra.mxu0 %v1505
    %1612 = vmatpush.msra.mxu0 %v1501
    %1613 = vmatpush.msra.mxu0 %v1497
    %1614 = vmatpush.msra.mxu0 %v1493
    %1615 = vmatpush.msra.mxu0 %v1489
    %1616 = vmatpush.msra.mxu0 %v1485
    %1617 = vmatpush.msra.mxu0 %v1481
    %1618 = vmatpush.msra.mxu0 %v1477
    %1619 = vmatpush.msra.mxu0 %v1473
    %1620 = vmatmul.f32.gmra.mxu0 %v1468
    %v1621 = vpop.f32.mrf.mxu0
    %v1622 = vadd.f32 %v1539, %v1621
    %1623 = vdwg.mxu0
    %v1624 = vld [vmem:[#allocation4] sm:$0xff]
    %v1625 = vld [vmem:[#allocation4 + $0x8] sm:$0xff]
    %v1626 = vld [vmem:[#allocation4 + $0x10] sm:$0xff]
    %v1627 = vld [vmem:[#allocation4 + $0x18] sm:$0xff]
    %v1628 = vld [vmem:[#allocation4 + $0x20] sm:$0xff]
    %v1629 = vld [vmem:[#allocation4 + $0x28] sm:$0xff]
    %v1630 = vld [vmem:[#allocation4 + $0x30] sm:$0xff]
    %v1631 = vld [vmem:[#allocation4 + $0x38] sm:$0xff]
    %v1632 = vld [vmem:[#allocation4 + $0x40] sm:$0xff]
    %v1633 = vld [vmem:[#allocation4 + $0x48] sm:$0xff]
    %v1634 = vld [vmem:[#allocation4 + $0x50] sm:$0xff]
    %v1635 = vld [vmem:[#allocation4 + $0x58] sm:$0xff]
    %v1636 = vld [vmem:[#allocation4 + $0x60] sm:$0x1]
    %v1637 = vld [vmem:[#allocation4 + $0x68] sm:$0x1]
    %v1638 = vld [vmem:[#allocation4 + $0x70] sm:$0x1]
    %v1639 = vld [vmem:[#allocation4 + $0x78] sm:$0x1]
    %v1641 = vsel %vm231, 0.0, 0
    %v1644 = vsel %vm256, %v1636, 0
    %v1647 = vsel %vm256, %v1637, 0
    %v1650 = vsel %vm256, %v1638, 0
    %v1653 = vsel %vm256, %v1639, 0
    %1655 = vmatpush.msra.mxu0 0.0
    %1656 = vmatpush.msra.mxu0 0.0
    %1657 = vmatpush.msra.mxu0 0.0
    %1658 = vmatpush.msra.mxu0 0.0
    %1659 = vmatpush.msra.mxu0 0.0
    %1660 = vmatpush.msra.mxu0 0.0
    %1661 = vmatpush.msra.mxu0 0.0
    %1662 = vmatpush.msra.mxu0 0.0
    %1663 = vmatpush.msra.mxu0 0.0
    %1664 = vmatpush.msra.mxu0 0.0
    %1665 = vmatpush.msra.mxu0 0.0
    %1666 = vmatpush.msra.mxu0 0.0
    %1667 = vmatpush.msra.mxu0 %v1644
    %1668 = vmatpush.msra.mxu0 %v1632
    %1669 = vmatpush.msra.mxu0 %v1628
    %1670 = vmatpush.msra.mxu0 %v1624
    %1671 = vmatmul.f32.gmra.mxu0 %v1641
    %v1672 = vpop.f32.mrf.mxu0
    %v1673 = vadd.f32 0.0, %v1672
    %1674 = vdwg.mxu0
    %1675 = vmatpush.msra.mxu0 0.0
    %1676 = vmatpush.msra.mxu0 0.0
    %1677 = vmatpush.msra.mxu0 0.0
    %1678 = vmatpush.msra.mxu0 0.0
    %1679 = vmatpush.msra.mxu0 0.0
    %1680 = vmatpush.msra.mxu0 0.0
    %1681 = vmatpush.msra.mxu0 0.0
    %1682 = vmatpush.msra.mxu0 0.0
    %1683 = vmatpush.msra.mxu0 0.0
    %1684 = vmatpush.msra.mxu0 0.0
    %1685 = vmatpush.msra.mxu0 0.0
    %1686 = vmatpush.msra.mxu0 0.0
    %1687 = vmatpush.msra.mxu0 %v1647
    %1688 = vmatpush.msra.mxu0 %v1633
    %1689 = vmatpush.msra.mxu0 %v1629
    %1690 = vmatpush.msra.mxu0 %v1625
    %1691 = vmatmul.f32.gmra.mxu0 %v1641
    %v1692 = vpop.f32.mrf.mxu0
    %v1693 = vadd.f32 0.0, %v1692
    %1694 = vdwg.mxu0
    %1695 = vmatpush.msra.mxu0 0.0
    %1696 = vmatpush.msra.mxu0 0.0
    %1697 = vmatpush.msra.mxu0 0.0
    %1698 = vmatpush.msra.mxu0 0.0
    %1699 = vmatpush.msra.mxu0 0.0
    %1700 = vmatpush.msra.mxu0 0.0
    %1701 = vmatpush.msra.mxu0 0.0
    %1702 = vmatpush.msra.mxu0 0.0
    %1703 = vmatpush.msra.mxu0 0.0
    %1704 = vmatpush.msra.mxu0 0.0
    %1705 = vmatpush.msra.mxu0 0.0
    %1706 = vmatpush.msra.mxu0 0.0
    %1707 = vmatpush.msra.mxu0 %v1650
    %1708 = vmatpush.msra.mxu0 %v1634
    %1709 = vmatpush.msra.mxu0 %v1630
    %1710 = vmatpush.msra.mxu0 %v1626
    %1711 = vmatmul.f32.gmra.mxu0 %v1641
    %v1712 = vpop.f32.mrf.mxu0
    %v1713 = vadd.f32 0.0, %v1712
    %1714 = vdwg.mxu0
    %1715 = vmatpush.msra.mxu0 0.0
    %1716 = vmatpush.msra.mxu0 0.0
    %1717 = vmatpush.msra.mxu0 0.0
    %1718 = vmatpush.msra.mxu0 0.0
    %1719 = vmatpush.msra.mxu0 0.0
    %1720 = vmatpush.msra.mxu0 0.0
    %1721 = vmatpush.msra.mxu0 0.0
    %1722 = vmatpush.msra.mxu0 0.0
    %1723 = vmatpush.msra.mxu0 0.0
    %1724 = vmatpush.msra.mxu0 0.0
    %1725 = vmatpush.msra.mxu0 0.0
    %1726 = vmatpush.msra.mxu0 0.0
    %1727 = vmatpush.msra.mxu0 %v1653
    %1728 = vmatpush.msra.mxu0 %v1635
    %1729 = vmatpush.msra.mxu0 %v1631
    %1730 = vmatpush.msra.mxu0 %v1627
    %1731 = vmatmul.f32.gmra.mxu0 %v1641
    %v1732 = vpop.f32.mrf.mxu0
    %v1733 = vadd.f32 0.0, %v1732
    %1734 = vdwg.mxu0
    %v1735 = vadd.f32 %v1562, %v1673
    %v1736 = vadd.f32 %v1582, %v1693
    %v1737 = vadd.f32 %v1602, %v1713
    %v1738 = vadd.f32 %v1622, %v1733
    %v1739 = vld [vmem:[#allocation6] sm:$0xff]
    %v1740 = vld [vmem:[#allocation6 + $0x8] sm:$0xff]
    %v1741 = vld [vmem:[#allocation6 + $0x10] sm:$0xff]
    %v1742 = vld [vmem:[#allocation6 + $0x18] sm:$0xff]
    %v1743 = vld [vmem:[#allocation6 + $0x20] sm:$0xff]
    %v1744 = vld [vmem:[#allocation6 + $0x28] sm:$0xff]
    %v1745 = vld [vmem:[#allocation6 + $0x30] sm:$0xff]
    %v1746 = vld [vmem:[#allocation6 + $0x38] sm:$0xff]
    %v1747 = vld [vmem:[#allocation6 + $0x40] sm:$0xff]
    %v1748 = vld [vmem:[#allocation6 + $0x48] sm:$0xff]
    %v1749 = vld [vmem:[#allocation6 + $0x50] sm:$0xff]
    %v1750 = vld [vmem:[#allocation6 + $0x58] sm:$0xff]
    %v1751 = vld [vmem:[#allocation6 + $0x60] sm:$0xff]
    %v1752 = vld [vmem:[#allocation6 + $0x68] sm:$0xff]
    %v1753 = vld [vmem:[#allocation6 + $0x70] sm:$0xff]
    %v1754 = vld [vmem:[#allocation6 + $0x78] sm:$0xff]
    %v1755 = vld [vmem:[#allocation6 + $0x80] sm:$0xff]
    %v1756 = vld [vmem:[#allocation6 + $0x88] sm:$0xff]
    %v1757 = vld [vmem:[#allocation6 + $0x90] sm:$0xff]
    %v1758 = vld [vmem:[#allocation6 + $0x98] sm:$0xff]
    %v1759 = vld [vmem:[#allocation6 + $0xa0] sm:$0xff]
    %v1760 = vld [vmem:[#allocation6 + $0xa8] sm:$0xff]
    %v1761 = vld [vmem:[#allocation6 + $0xb0] sm:$0xff]
    %v1762 = vld [vmem:[#allocation6 + $0xb8] sm:$0xff]
    %v1763 = vld [vmem:[#allocation6 + $0xc0] sm:$0xff]
    %v1764 = vld [vmem:[#allocation6 + $0xc8] sm:$0xff]
    %v1765 = vld [vmem:[#allocation6 + $0xd0] sm:$0xff]
    %v1766 = vld [vmem:[#allocation6 + $0xd8] sm:$0xff]
    %v1767 = vld [vmem:[#allocation6 + $0xe0] sm:$0xff]
    %v1768 = vld [vmem:[#allocation6 + $0xe8] sm:$0xff]
    %v1769 = vld [vmem:[#allocation6 + $0xf0] sm:$0xff]
    %v1770 = vld [vmem:[#allocation6 + $0xf8] sm:$0xff]
    %v1771 = vld [vmem:[#allocation6 + $0x100] sm:$0xff]
    %v1772 = vld [vmem:[#allocation6 + $0x108] sm:$0xff]
    %v1773 = vld [vmem:[#allocation6 + $0x110] sm:$0xff]
    %v1774 = vld [vmem:[#allocation6 + $0x118] sm:$0xff]
    %v1775 = vld [vmem:[#allocation6 + $0x120] sm:$0xff]
    %v1776 = vld [vmem:[#allocation6 + $0x128] sm:$0xff]
    %v1777 = vld [vmem:[#allocation6 + $0x130] sm:$0xff]
    %v1778 = vld [vmem:[#allocation6 + $0x138] sm:$0xff]
    %v1779 = vld [vmem:[#allocation6 + $0x140] sm:$0xff]
    %v1780 = vld [vmem:[#allocation6 + $0x148] sm:$0xff]
    %v1781 = vld [vmem:[#allocation6 + $0x150] sm:$0xff]
    %v1782 = vld [vmem:[#allocation6 + $0x158] sm:$0xff]
    %v1783 = vld [vmem:[#allocation6 + $0x160] sm:$0xff]
    %v1784 = vld [vmem:[#allocation6 + $0x168] sm:$0xff]
    %v1785 = vld [vmem:[#allocation6 + $0x170] sm:$0xff]
    %v1786 = vld [vmem:[#allocation6 + $0x178] sm:$0xff]
    %v1787 = vld [vmem:[#allocation6 + $0x180] sm:$0xff]
    %v1788 = vld [vmem:[#allocation6 + $0x188] sm:$0xff]
    %v1789 = vld [vmem:[#allocation6 + $0x190] sm:$0xff]
    %v1790 = vld [vmem:[#allocation6 + $0x198] sm:$0xff]
    %v1791 = vld [vmem:[#allocation6 + $0x1a0] sm:$0xff]
    %v1792 = vld [vmem:[#allocation6 + $0x1a8] sm:$0xff]
    %v1793 = vld [vmem:[#allocation6 + $0x1b0] sm:$0xff]
    %v1794 = vld [vmem:[#allocation6 + $0x1b8] sm:$0xff]
    %v1795 = vld [vmem:[#allocation6 + $0x1c0] sm:$0xff]
    %v1796 = vld [vmem:[#allocation6 + $0x1c8] sm:$0xff]
    %v1797 = vld [vmem:[#allocation6 + $0x1d0] sm:$0xff]
    %v1798 = vld [vmem:[#allocation6 + $0x1d8] sm:$0xff]
    %v1799 = vld [vmem:[#allocation6 + $0x1e0] sm:$0xff]
    %v1800 = vld [vmem:[#allocation6 + $0x1e8] sm:$0xff]
    %v1801 = vld [vmem:[#allocation6 + $0x1f0] sm:$0xff]
    %v1802 = vld [vmem:[#allocation6 + $0x1f8] sm:$0xff]
    %1803 = vmatpush.msra.mxu0 %v1799
    %1804 = vmatpush.msra.mxu0 %v1795
    %1805 = vmatpush.msra.mxu0 %v1791
    %1806 = vmatpush.msra.mxu0 %v1787
    %1807 = vmatpush.msra.mxu0 %v1783
    %1808 = vmatpush.msra.mxu0 %v1779
    %1809 = vmatpush.msra.mxu0 %v1775
    %1810 = vmatpush.msra.mxu0 %v1771
    %1811 = vmatpush.msra.mxu0 %v1767
    %1812 = vmatpush.msra.mxu0 %v1763
    %1813 = vmatpush.msra.mxu0 %v1759
    %1814 = vmatpush.msra.mxu0 %v1755
    %1815 = vmatpush.msra.mxu0 %v1751
    %1816 = vmatpush.msra.mxu0 %v1747
    %1817 = vmatpush.msra.mxu0 %v1743
    %1818 = vmatpush.msra.mxu0 %v1739
    %1819 = vmatmul.f32.gmra.mxu0 0.0
    %v1820 = vpop.f32.mrf.mxu0
    %v1821 = vadd.f32 0.0, %v1820
    %1822 = vdwg.mxu0
    %1823 = vmatpush.msra.mxu0 %v1800
    %1824 = vmatpush.msra.mxu0 %v1796
    %1825 = vmatpush.msra.mxu0 %v1792
    %1826 = vmatpush.msra.mxu0 %v1788
    %1827 = vmatpush.msra.mxu0 %v1784
    %1828 = vmatpush.msra.mxu0 %v1780
    %1829 = vmatpush.msra.mxu0 %v1776
    %1830 = vmatpush.msra.mxu0 %v1772
    %1831 = vmatpush.msra.mxu0 %v1768
    %1832 = vmatpush.msra.mxu0 %v1764
    %1833 = vmatpush.msra.mxu0 %v1760
    %1834 = vmatpush.msra.mxu0 %v1756
    %1835 = vmatpush.msra.mxu0 %v1752
    %1836 = vmatpush.msra.mxu0 %v1748
    %1837 = vmatpush.msra.mxu0 %v1744
    %1838 = vmatpush.msra.mxu0 %v1740
    %1839 = vmatmul.f32.gmra.mxu0 0.0
    %v1840 = vpop.f32.mrf.mxu0
    %v1841 = vadd.f32 0.0, %v1840
    %1842 = vdwg.mxu0
    %1843 = vmatpush.msra.mxu0 %v1801
    %1844 = vmatpush.msra.mxu0 %v1797
    %1845 = vmatpush.msra.mxu0 %v1793
    %1846 = vmatpush.msra.mxu0 %v1789
    %1847 = vmatpush.msra.mxu0 %v1785
    %1848 = vmatpush.msra.mxu0 %v1781
    %1849 = vmatpush.msra.mxu0 %v1777
    %1850 = vmatpush.msra.mxu0 %v1773
    %1851 = vmatpush.msra.mxu0 %v1769
    %1852 = vmatpush.msra.mxu0 %v1765
    %1853 = vmatpush.msra.mxu0 %v1761
    %1854 = vmatpush.msra.mxu0 %v1757
    %1855 = vmatpush.msra.mxu0 %v1753
    %1856 = vmatpush.msra.mxu0 %v1749
    %1857 = vmatpush.msra.mxu0 %v1745
    %1858 = vmatpush.msra.mxu0 %v1741
    %1859 = vmatmul.f32.gmra.mxu0 0.0
    %v1860 = vpop.f32.mrf.mxu0
    %v1861 = vadd.f32 0.0, %v1860
    %1862 = vdwg.mxu0
    %1863 = vmatpush.msra.mxu0 %v1802
    %1864 = vmatpush.msra.mxu0 %v1798
    %1865 = vmatpush.msra.mxu0 %v1794
    %1866 = vmatpush.msra.mxu0 %v1790
    %1867 = vmatpush.msra.mxu0 %v1786
    %1868 = vmatpush.msra.mxu0 %v1782
    %1869 = vmatpush.msra.mxu0 %v1778
    %1870 = vmatpush.msra.mxu0 %v1774
    %1871 = vmatpush.msra.mxu0 %v1770
    %1872 = vmatpush.msra.mxu0 %v1766
    %1873 = vmatpush.msra.mxu0 %v1762
    %1874 = vmatpush.msra.mxu0 %v1758
    %1875 = vmatpush.msra.mxu0 %v1754
    %1876 = vmatpush.msra.mxu0 %v1750
    %1877 = vmatpush.msra.mxu0 %v1746
    %1878 = vmatpush.msra.mxu0 %v1742
    %1879 = vmatmul.f32.gmra.mxu0 0.0
    %v1880 = vpop.f32.mrf.mxu0
    %v1881 = vadd.f32 0.0, %v1880
    %1882 = vdwg.mxu0
    %v1883 = vadd.f32 %v1735, %v1821
    %v1884 = vadd.f32 %v1736, %v1841
    %v1885 = vadd.f32 %v1737, %v1861
    %v1886 = vadd.f32 %v1738, %v1881
    %v1887 = vmul.f32 %v1883, 0.5
    %v1888 = vtanh.pop %v1887
    %v1889 = vadd.f32 %v1888, 1.0
    %v1890 = vmul.f32 %v1889, 0.5
    %v1891 = vmul.f32 %v1884, 0.5
    %v1892 = vtanh.pop %v1891
    %v1893 = vadd.f32 %v1892, 1.0
    %v1894 = vmul.f32 %v1893, 0.5
    %v1895 = vtanh.pop %v1885
    %v1896 = vmul.f32 %v1886, 0.5
    %v1897 = vtanh.pop %v1896
    %v1898 = vadd.f32 %v1897, 1.0
    %v1899 = vmul.f32 %v1898, 0.5
    %v1900 = vmul.f32 %v1894, 0.0
    %v1901 = vmul.f32 %v1890, %v1895
    %v1902 = vadd.f32 %v1900, %v1901
    %v1903 = vtanh.pop %v1902
    %v1904 = vmul.f32 %v1899, %v1903
    %v1905 = vld [vmem:[#allocation7] sm:$0xff]
    %v1906 = vld [vmem:[#allocation7 + $0x8] sm:$0xff]
    %v1907 = vld [vmem:[#allocation7 + $0x10] sm:$0xff]
    %v1908 = vld [vmem:[#allocation7 + $0x18] sm:$0xff]
    %v1909 = vld [vmem:[#allocation7 + $0x20] sm:$0xff]
    %v1910 = vld [vmem:[#allocation7 + $0x28] sm:$0xff]
    %v1911 = vld [vmem:[#allocation7 + $0x30] sm:$0xff]
    %v1912 = vld [vmem:[#allocation7 + $0x38] sm:$0xff]
    %v1913 = vld [vmem:[#allocation7 + $0x40] sm:$0xff]
    %v1914 = vld [vmem:[#allocation7 + $0x48] sm:$0xff]
    %v1915 = vld [vmem:[#allocation7 + $0x50] sm:$0xff]
    %v1916 = vld [vmem:[#allocation7 + $0x58] sm:$0xff]
    %v1917 = vld [vmem:[#allocation7 + $0x60] sm:$0xff]
    %v1918 = vld [vmem:[#allocation7 + $0x68] sm:$0xff]
    %v1919 = vld [vmem:[#allocation7 + $0x70] sm:$0xff]
    %v1920 = vld [vmem:[#allocation7 + $0x78] sm:$0xff]
    %v1921 = vld [vmem:[#allocation9] sm:$0x1]
    %v1923 = vperm.slane %v1921, 0
    %1925 = vmatpush.msra.mxu0 %v1920
    %1926 = vmatpush.msra.mxu0 %v1919
    %1927 = vmatpush.msra.mxu0 %v1918
    %1928 = vmatpush.msra.mxu0 %v1917
    %1929 = vmatpush.msra.mxu0 %v1916
    %1930 = vmatpush.msra.mxu0 %v1915
    %1931 = vmatpush.msra.mxu0 %v1914
    %1932 = vmatpush.msra.mxu0 %v1913
    %1933 = vmatpush.msra.mxu0 %v1912
    %1934 = vmatpush.msra.mxu0 %v1911
    %1935 = vmatpush.msra.mxu0 %v1910
    %1936 = vmatpush.msra.mxu0 %v1909
    %1937 = vmatpush.msra.mxu0 %v1908
    %1938 = vmatpush.msra.mxu0 %v1907
    %1939 = vmatpush.msra.mxu0 %v1906
    %1940 = vmatpush.msra.mxu0 %v1905
    %1941 = vmatmul.f32.gmra.mxu0 %v1904
    %v1942 = vpop.f32.mrf.mxu0
    %v1943 = vadd.f32 %v1923, %v1942
    %1944 = vdwg.mxu0
    %v1945 = vtanh.pop %v1943
    %v1946 = vld [vmem:[#allocation10] sm:$0xff]
    %v1947 = vld [vmem:[#allocation10 + $0x8] sm:$0xff]
    %v1948 = vld [vmem:[#allocation10 + $0x10] sm:$0xff]
    %v1949 = vld [vmem:[#allocation10 + $0x18] sm:$0xff]
    %v1950 = vld [vmem:[#allocation10 + $0x20] sm:$0xff]
    %v1951 = vld [vmem:[#allocation10 + $0x28] sm:$0xff]
    %v1952 = vld [vmem:[#allocation10 + $0x30] sm:$0xff]
    %v1953 = vld [vmem:[#allocation10 + $0x38] sm:$0xff]
    %v1954 = vld [vmem:[#allocation10 + $0x40] sm:$0xff]
    %v1955 = vld [vmem:[#allocation10 + $0x48] sm:$0xff]
    %v1956 = vld [vmem:[#allocation10 + $0x50] sm:$0xff]
    %v1957 = vld [vmem:[#allocation10 + $0x58] sm:$0xff]
    %v1958 = vld [vmem:[#allocation10 + $0x60] sm:$0xff]
    %v1959 = vld [vmem:[#allocation10 + $0x68] sm:$0xff]
    %v1960 = vld [vmem:[#allocation10 + $0x70] sm:$0xff]
    %v1961 = vld [vmem:[#allocation10 + $0x78] sm:$0xff]
    %v1962 = vld [vmem:[#allocation12] sm:$0x1]
    %v1964 = vperm.slane %v1962, 0
    %1966 = vmatpush.msra.mxu0 %v1961
    %1967 = vmatpush.msra.mxu0 %v1960
    %1968 = vmatpush.msra.mxu0 %v1959
    %1969 = vmatpush.msra.mxu0 %v1958
    %1970 = vmatpush.msra.mxu0 %v1957
    %1971 = vmatpush.msra.mxu0 %v1956
    %1972 = vmatpush.msra.mxu0 %v1955
    %1973 = vmatpush.msra.mxu0 %v1954
    %1974 = vmatpush.msra.mxu0 %v1953
    %1975 = vmatpush.msra.mxu0 %v1952
    %1976 = vmatpush.msra.mxu0 %v1951
    %1977 = vmatpush.msra.mxu0 %v1950
    %1978 = vmatpush.msra.mxu0 %v1949
    %1979 = vmatpush.msra.mxu0 %v1948
    %1980 = vmatpush.msra.mxu0 %v1947
    %1981 = vmatpush.msra.mxu0 %v1946
    %1982 = vmatmul.f32.gmra.mxu0 %v1945
    %v1983 = vpop.f32.mrf.mxu0
    %v1984 = vadd.f32 %v1964, %v1983
    %1985 = vdwg.mxu0
    %v1986 = vtanh.pop %v1984
    %v1987 = vld [vmem:[%s16] sm:$0xff]
    %v1988 = vld [vmem:[%s16 + $0x8] sm:$0xff]
    %v1989 = vld [vmem:[%s16 + $0x10] sm:$0xff]
    %v1990 = vld [vmem:[%s16 + $0x18] sm:$0xff]
    %v1991 = vld [vmem:[%s16 + $0x20] sm:$0xff]
    %v1992 = vld [vmem:[%s16 + $0x28] sm:$0xff]
    %v1993 = vld [vmem:[%s16 + $0x30] sm:$0xff]
    %v1994 = vld [vmem:[%s16 + $0x38] sm:$0xff]
    %v1995 = vld [vmem:[%s16 + $0x40] sm:$0xff]
    %v1996 = vld [vmem:[%s16 + $0x48] sm:$0xff]
    %v1997 = vld [vmem:[%s16 + $0x50] sm:$0xff]
    %v1998 = vld [vmem:[%s16 + $0x58] sm:$0xff]
    %v1999 = vld [vmem:[%s16 + $0x60] sm:$0xff]
    %v2000 = vld [vmem:[%s16 + $0x68] sm:$0xff]
    %v2001 = vld [vmem:[%s16 + $0x70] sm:$0xff]
    %v2002 = vld [vmem:[%s16 + $0x78] sm:$0xff]
    %v2003 = vld [vmem:[%s17] sm:$0x1]
    %v2005 = vperm.slane %v2003, 0
    %2007 = vmatpush.msra.mxu0 %v2002
    %2008 = vmatpush.msra.mxu0 %v2001
    %2009 = vmatpush.msra.mxu0 %v2000
    %2010 = vmatpush.msra.mxu0 %v1999
    %2011 = vmatpush.msra.mxu0 %v1998
    %2012 = vmatpush.msra.mxu0 %v1997
    %2013 = vmatpush.msra.mxu0 %v1996
    %2014 = vmatpush.msra.mxu0 %v1995
    %2015 = vmatpush.msra.mxu0 %v1994
    %2016 = vmatpush.msra.mxu0 %v1993
    %2017 = vmatpush.msra.mxu0 %v1992
    %2018 = vmatpush.msra.mxu0 %v1991
    %2019 = vmatpush.msra.mxu0 %v1990
    %2020 = vmatpush.msra.mxu0 %v1989
    %2021 = vmatpush.msra.mxu0 %v1988
    %2022 = vmatpush.msra.mxu0 %v1987
    %2023 = vmatmul.f32.gmra.mxu0 %v1986
    %v2024 = vpop.f32.mrf.mxu0
    %v2025 = vadd.f32 %v2005, %v2024
    %2026 = vdwg.mxu0
    %2027 = vst.msk [vmem:[%s22] sm:$0xff] %vm231, %v2025
    %v2028 = vld [vmem:[#allocation4] sm:$0xff]
    %v2029 = vld [vmem:[#allocation4 + $0x8] sm:$0xff]
    %v2030 = vld [vmem:[#allocation4 + $0x10] sm:$0xff]
    %v2031 = vld [vmem:[#allocation4 + $0x18] sm:$0xff]
    %v2032 = vld [vmem:[#allocation4 + $0x20] sm:$0xff]
    %v2033 = vld [vmem:[#allocation4 + $0x28] sm:$0xff]
    %v2034 = vld [vmem:[#allocation4 + $0x30] sm:$0xff]
    %v2035 = vld [vmem:[#allocation4 + $0x38] sm:$0xff]
    %v2036 = vld [vmem:[#allocation4 + $0x40] sm:$0xff]
    %v2037 = vld [vmem:[#allocation4 + $0x48] sm:$0xff]
    %v2038 = vld [vmem:[#allocation4 + $0x50] sm:$0xff]
    %v2039 = vld [vmem:[#allocation4 + $0x58] sm:$0xff]
    %v2040 = vld [vmem:[#allocation4 + $0x60] sm:$0x1]
    %v2041 = vld [vmem:[#allocation4 + $0x68] sm:$0x1]
    %v2042 = vld [vmem:[#allocation4 + $0x70] sm:$0x1]
    %v2043 = vld [vmem:[#allocation4 + $0x78] sm:$0x1]
    %v2045 = vsel %vm231, %v2025, 0
    %v2048 = vsel %vm256, %v2040, 0
    %v2051 = vsel %vm256, %v2041, 0
    %v2054 = vsel %vm256, %v2042, 0
    %v2057 = vsel %vm256, %v2043, 0
    %2059 = vmatpush.msra.mxu0 0.0
    %2060 = vmatpush.msra.mxu0 0.0
    %2061 = vmatpush.msra.mxu0 0.0
    %2062 = vmatpush.msra.mxu0 0.0
    %2063 = vmatpush.msra.mxu0 0.0
    %2064 = vmatpush.msra.mxu0 0.0
    %2065 = vmatpush.msra.mxu0 0.0
    %2066 = vmatpush.msra.mxu0 0.0
    %2067 = vmatpush.msra.mxu0 0.0
    %2068 = vmatpush.msra.mxu0 0.0
    %2069 = vmatpush.msra.mxu0 0.0
    %2070 = vmatpush.msra.mxu0 0.0
    %2071 = vmatpush.msra.mxu0 %v2048
    %2072 = vmatpush.msra.mxu0 %v2036
    %2073 = vmatpush.msra.mxu0 %v2032
    %2074 = vmatpush.msra.mxu0 %v2028
    %2075 = vmatmul.f32.gmra.mxu0 %v2045
    %v2076 = vpop.f32.mrf.mxu0
    %v2077 = vadd.f32 0.0, %v2076
    %2078 = vdwg.mxu0
    %2079 = vmatpush.msra.mxu0 0.0
    %2080 = vmatpush.msra.mxu0 0.0
    %2081 = vmatpush.msra.mxu0 0.0
    %2082 = vmatpush.msra.mxu0 0.0
    %2083 = vmatpush.msra.mxu0 0.0
    %2084 = vmatpush.msra.mxu0 0.0
    %2085 = vmatpush.msra.mxu0 0.0
    %2086 = vmatpush.msra.mxu0 0.0
    %2087 = vmatpush.msra.mxu0 0.0
    %2088 = vmatpush.msra.mxu0 0.0
    %2089 = vmatpush.msra.mxu0 0.0
    %2090 = vmatpush.msra.mxu0 0.0
    %2091 = vmatpush.msra.mxu0 %v2051
    %2092 = vmatpush.msra.mxu0 %v2037
    %2093 = vmatpush.msra.mxu0 %v2033
    %2094 = vmatpush.msra.mxu0 %v2029
    %2095 = vmatmul.f32.gmra.mxu0 %v2045
    %v2096 = vpop.f32.mrf.mxu0
    %v2097 = vadd.f32 0.0, %v2096
    %2098 = vdwg.mxu0
    %2099 = vmatpush.msra.mxu0 0.0
    %2100 = vmatpush.msra.mxu0 0.0
    %2101 = vmatpush.msra.mxu0 0.0
    %2102 = vmatpush.msra.mxu0 0.0
    %2103 = vmatpush.msra.mxu0 0.0
    %2104 = vmatpush.msra.mxu0 0.0
    %2105 = vmatpush.msra.mxu0 0.0
    %2106 = vmatpush.msra.mxu0 0.0
    %2107 = vmatpush.msra.mxu0 0.0
    %2108 = vmatpush.msra.mxu0 0.0
    %2109 = vmatpush.msra.mxu0 0.0
    %2110 = vmatpush.msra.mxu0 0.0
    %2111 = vmatpush.msra.mxu0 %v2054
    %2112 = vmatpush.msra.mxu0 %v2038
    %2113 = vmatpush.msra.mxu0 %v2034
    %2114 = vmatpush.msra.mxu0 %v2030
    %2115 = vmatmul.f32.gmra.mxu0 %v2045
    %v2116 = vpop.f32.mrf.mxu0
    %v2117 = vadd.f32 0.0, %v2116
    %2118 = vdwg.mxu0
    %2119 = vmatpush.msra.mxu0 0.0
    %2120 = vmatpush.msra.mxu0 0.0
    %2121 = vmatpush.msra.mxu0 0.0
    %2122 = vmatpush.msra.mxu0 0.0
    %2123 = vmatpush.msra.mxu0 0.0
    %2124 = vmatpush.msra.mxu0 0.0
    %2125 = vmatpush.msra.mxu0 0.0
    %2126 = vmatpush.msra.mxu0 0.0
    %2127 = vmatpush.msra.mxu0 0.0
    %2128 = vmatpush.msra.mxu0 0.0
    %2129 = vmatpush.msra.mxu0 0.0
    %2130 = vmatpush.msra.mxu0 0.0
    %2131 = vmatpush.msra.mxu0 %v2057
    %2132 = vmatpush.msra.mxu0 %v2039
    %2133 = vmatpush.msra.mxu0 %v2035
    %2134 = vmatpush.msra.mxu0 %v2031
    %2135 = vmatmul.f32.gmra.mxu0 %v2045
    %v2136 = vpop.f32.mrf.mxu0
    %v2137 = vadd.f32 0.0, %v2136
    %2138 = vdwg.mxu0
    %v2139 = vadd.f32 %v1562, %v2077
    %v2140 = vadd.f32 %v1582, %v2097
    %v2141 = vadd.f32 %v1602, %v2117
    %v2142 = vadd.f32 %v1622, %v2137
    %v2143 = vld [vmem:[#allocation6] sm:$0xff]
    %v2144 = vld [vmem:[#allocation6 + $0x8] sm:$0xff]
    %v2145 = vld [vmem:[#allocation6 + $0x10] sm:$0xff]
    %v2146 = vld [vmem:[#allocation6 + $0x18] sm:$0xff]
    %v2147 = vld [vmem:[#allocation6 + $0x20] sm:$0xff]
    %v2148 = vld [vmem:[#allocation6 + $0x28] sm:$0xff]
    %v2149 = vld [vmem:[#allocation6 + $0x30] sm:$0xff]
    %v2150 = vld [vmem:[#allocation6 + $0x38] sm:$0xff]
    %v2151 = vld [vmem:[#allocation6 + $0x40] sm:$0xff]
    %v2152 = vld [vmem:[#allocation6 + $0x48] sm:$0xff]
    %v2153 = vld [vmem:[#allocation6 + $0x50] sm:$0xff]
    %v2154 = vld [vmem:[#allocation6 + $0x58] sm:$0xff]
    %v2155 = vld [vmem:[#allocation6 + $0x60] sm:$0xff]
    %v2156 = vld [vmem:[#allocation6 + $0x68] sm:$0xff]
    %v2157 = vld [vmem:[#allocation6 + $0x70] sm:$0xff]
    %v2158 = vld [vmem:[#allocation6 + $0x78] sm:$0xff]
    %v2159 = vld [vmem:[#allocation6 + $0x80] sm:$0xff]
    %v2160 = vld [vmem:[#allocation6 + $0x88] sm:$0xff]
    %v2161 = vld [vmem:[#allocation6 + $0x90] sm:$0xff]
    %v2162 = vld [vmem:[#allocation6 + $0x98] sm:$0xff]
    %v2163 = vld [vmem:[#allocation6 + $0xa0] sm:$0xff]
    %v2164 = vld [vmem:[#allocation6 + $0xa8] sm:$0xff]
    %v2165 = vld [vmem:[#allocation6 + $0xb0] sm:$0xff]
    %v2166 = vld [vmem:[#allocation6 + $0xb8] sm:$0xff]
    %v2167 = vld [vmem:[#allocation6 + $0xc0] sm:$0xff]
    %v2168 = vld [vmem:[#allocation6 + $0xc8] sm:$0xff]
    %v2169 = vld [vmem:[#allocation6 + $0xd0] sm:$0xff]
    %v2170 = vld [vmem:[#allocation6 + $0xd8] sm:$0xff]
    %v2171 = vld [vmem:[#allocation6 + $0xe0] sm:$0xff]
    %v2172 = vld [vmem:[#allocation6 + $0xe8] sm:$0xff]
    %v2173 = vld [vmem:[#allocation6 + $0xf0] sm:$0xff]
    %v2174 = vld [vmem:[#allocation6 + $0xf8] sm:$0xff]
    %v2175 = vld [vmem:[#allocation6 + $0x100] sm:$0xff]
    %v2176 = vld [vmem:[#allocation6 + $0x108] sm:$0xff]
    %v2177 = vld [vmem:[#allocation6 + $0x110] sm:$0xff]
    %v2178 = vld [vmem:[#allocation6 + $0x118] sm:$0xff]
    %v2179 = vld [vmem:[#allocation6 + $0x120] sm:$0xff]
    %v2180 = vld [vmem:[#allocation6 + $0x128] sm:$0xff]
    %v2181 = vld [vmem:[#allocation6 + $0x130] sm:$0xff]
    %v2182 = vld [vmem:[#allocation6 + $0x138] sm:$0xff]
    %v2183 = vld [vmem:[#allocation6 + $0x140] sm:$0xff]
    %v2184 = vld [vmem:[#allocation6 + $0x148] sm:$0xff]
    %v2185 = vld [vmem:[#allocation6 + $0x150] sm:$0xff]
    %v2186 = vld [vmem:[#allocation6 + $0x158] sm:$0xff]
    %v2187 = vld [vmem:[#allocation6 + $0x160] sm:$0xff]
    %v2188 = vld [vmem:[#allocation6 + $0x168] sm:$0xff]
    %v2189 = vld [vmem:[#allocation6 + $0x170] sm:$0xff]
    %v2190 = vld [vmem:[#allocation6 + $0x178] sm:$0xff]
    %v2191 = vld [vmem:[#allocation6 + $0x180] sm:$0xff]
    %v2192 = vld [vmem:[#allocation6 + $0x188] sm:$0xff]
    %v2193 = vld [vmem:[#allocation6 + $0x190] sm:$0xff]
    %v2194 = vld [vmem:[#allocation6 + $0x198] sm:$0xff]
    %v2195 = vld [vmem:[#allocation6 + $0x1a0] sm:$0xff]
    %v2196 = vld [vmem:[#allocation6 + $0x1a8] sm:$0xff]
    %v2197 = vld [vmem:[#allocation6 + $0x1b0] sm:$0xff]
    %v2198 = vld [vmem:[#allocation6 + $0x1b8] sm:$0xff]
    %v2199 = vld [vmem:[#allocation6 + $0x1c0] sm:$0xff]
    %v2200 = vld [vmem:[#allocation6 + $0x1c8] sm:$0xff]
    %v2201 = vld [vmem:[#allocation6 + $0x1d0] sm:$0xff]
    %v2202 = vld [vmem:[#allocation6 + $0x1d8] sm:$0xff]
    %v2203 = vld [vmem:[#allocation6 + $0x1e0] sm:$0xff]
    %v2204 = vld [vmem:[#allocation6 + $0x1e8] sm:$0xff]
    %v2205 = vld [vmem:[#allocation6 + $0x1f0] sm:$0xff]
    %v2206 = vld [vmem:[#allocation6 + $0x1f8] sm:$0xff]
    %2207 = vmatpush.msra.mxu0 %v2203
    %2208 = vmatpush.msra.mxu0 %v2199
    %2209 = vmatpush.msra.mxu0 %v2195
    %2210 = vmatpush.msra.mxu0 %v2191
    %2211 = vmatpush.msra.mxu0 %v2187
    %2212 = vmatpush.msra.mxu0 %v2183
    %2213 = vmatpush.msra.mxu0 %v2179
    %2214 = vmatpush.msra.mxu0 %v2175
    %2215 = vmatpush.msra.mxu0 %v2171
    %2216 = vmatpush.msra.mxu0 %v2167
    %2217 = vmatpush.msra.mxu0 %v2163
    %2218 = vmatpush.msra.mxu0 %v2159
    %2219 = vmatpush.msra.mxu0 %v2155
    %2220 = vmatpush.msra.mxu0 %v2151
    %2221 = vmatpush.msra.mxu0 %v2147
    %2222 = vmatpush.msra.mxu0 %v2143
    %2223 = vmatmul.f32.gmra.mxu0 %v1904
    %v2224 = vpop.f32.mrf.mxu0
    %v2225 = vadd.f32 0.0, %v2224
    %2226 = vdwg.mxu0
    %2227 = vmatpush.msra.mxu0 %v2204
    %2228 = vmatpush.msra.mxu0 %v2200
    %2229 = vmatpush.msra.mxu0 %v2196
    %2230 = vmatpush.msra.mxu0 %v2192
    %2231 = vmatpush.msra.mxu0 %v2188
    %2232 = vmatpush.msra.mxu0 %v2184
    %2233 = vmatpush.msra.mxu0 %v2180
    %2234 = vmatpush.msra.mxu0 %v2176
    %2235 = vmatpush.msra.mxu0 %v2172
    %2236 = vmatpush.msra.mxu0 %v2168
    %2237 = vmatpush.msra.mxu0 %v2164
    %2238 = vmatpush.msra.mxu0 %v2160
    %2239 = vmatpush.msra.mxu0 %v2156
    %2240 = vmatpush.msra.mxu0 %v2152
    %2241 = vmatpush.msra.mxu0 %v2148
    %2242 = vmatpush.msra.mxu0 %v2144
    %2243 = vmatmul.f32.gmra.mxu0 %v1904
    %v2244 = vpop.f32.mrf.mxu0
    %v2245 = vadd.f32 0.0, %v2244
    %2246 = vdwg.mxu0
    %2247 = vmatpush.msra.mxu0 %v2205
    %2248 = vmatpush.msra.mxu0 %v2201
    %2249 = vmatpush.msra.mxu0 %v2197
    %2250 = vmatpush.msra.mxu0 %v2193
    %2251 = vmatpush.msra.mxu0 %v2189
    %2252 = vmatpush.msra.mxu0 %v2185
    %2253 = vmatpush.msra.mxu0 %v2181
    %2254 = vmatpush.msra.mxu0 %v2177
    %2255 = vmatpush.msra.mxu0 %v2173
    %2256 = vmatpush.msra.mxu0 %v2169
    %2257 = vmatpush.msra.mxu0 %v2165
    %2258 = vmatpush.msra.mxu0 %v2161
    %2259 = vmatpush.msra.mxu0 %v2157
    %2260 = vmatpush.msra.mxu0 %v2153
    %2261 = vmatpush.msra.mxu0 %v2149
    %2262 = vmatpush.msra.mxu0 %v2145
    %2263 = vmatmul.f32.gmra.mxu0 %v1904
    %v2264 = vpop.f32.mrf.mxu0
    %v2265 = vadd.f32 0.0, %v2264
    %2266 = vdwg.mxu0
    %2267 = vmatpush.msra.mxu0 %v2206
    %2268 = vmatpush.msra.mxu0 %v2202
    %2269 = vmatpush.msra.mxu0 %v2198
    %2270 = vmatpush.msra.mxu0 %v2194
    %2271 = vmatpush.msra.mxu0 %v2190
    %2272 = vmatpush.msra.mxu0 %v2186
    %2273 = vmatpush.msra.mxu0 %v2182
    %2274 = vmatpush.msra.mxu0 %v2178
    %2275 = vmatpush.msra.mxu0 %v2174
    %2276 = vmatpush.msra.mxu0 %v2170
    %2277 = vmatpush.msra.mxu0 %v2166
    %2278 = vmatpush.msra.mxu0 %v2162
    %2279 = vmatpush.msra.mxu0 %v2158
    %2280 = vmatpush.msra.mxu0 %v2154
    %2281 = vmatpush.msra.mxu0 %v2150
    %2282 = vmatpush.msra.mxu0 %v2146
    %2283 = vmatmul.f32.gmra.mxu0 %v1904
    %v2284 = vpop.f32.mrf.mxu0
    %v2285 = vadd.f32 0.0, %v2284
    %2286 = vdwg.mxu0
    %v2287 = vadd.f32 %v2139, %v2225
    %v2288 = vadd.f32 %v2140, %v2245
    %v2289 = vadd.f32 %v2141, %v2265
    %v2290 = vadd.f32 %v2142, %v2285
    %v2291 = vmul.f32 %v2287, 0.5
    %v2292 = vtanh.pop %v2291
    %v2293 = vadd.f32 %v2292, 1.0
    %v2294 = vmul.f32 %v2293, 0.5
    %v2295 = vmul.f32 %v2288, 0.5
    %v2296 = vtanh.pop %v2295
    %v2297 = vadd.f32 %v2296, 1.0
    %v2298 = vmul.f32 %v2297, 0.5
    %v2299 = vtanh.pop %v2289
    %v2300 = vmul.f32 %v2290, 0.5
    %v2301 = vtanh.pop %v2300
    %v2302 = vadd.f32 %v2301, 1.0
    %v2303 = vmul.f32 %v2302, 0.5
    %v2304 = vmul.f32 %v2298, %v1902
    %v2305 = vmul.f32 %v2294, %v2299
    %v2306 = vadd.f32 %v2304, %v2305
    %v2307 = vtanh.pop %v2306
    %v2308 = vmul.f32 %v2303, %v2307
    %v2309 = vld [vmem:[#allocation7] sm:$0xff]
    %v2310 = vld [vmem:[#allocation7 + $0x8] sm:$0xff]
    %v2311 = vld [vmem:[#allocation7 + $0x10] sm:$0xff]
    %v2312 = vld [vmem:[#allocation7 + $0x18] sm:$0xff]
    %v2313 = vld [vmem:[#allocation7 + $0x20] sm:$0xff]
    %v2314 = vld [vmem:[#allocation7 + $0x28] sm:$0xff]
    %v2315 = vld [vmem:[#allocation7 + $0x30] sm:$0xff]
    %v2316 = vld [vmem:[#allocation7 + $0x38] sm:$0xff]
    %v2317 = vld [vmem:[#allocation7 + $0x40] sm:$0xff]
    %v2318 = vld [vmem:[#allocation7 + $0x48] sm:$0xff]
    %v2319 = vld [vmem:[#allocation7 + $0x50] sm:$0xff]
    %v2320 = vld [vmem:[#allocation7 + $0x58] sm:$0xff]
    %v2321 = vld [vmem:[#allocation7 + $0x60] sm:$0xff]
    %v2322 = vld [vmem:[#allocation7 + $0x68] sm:$0xff]
    %v2323 = vld [vmem:[#allocation7 + $0x70] sm:$0xff]
    %v2324 = vld [vmem:[#allocation7 + $0x78] sm:$0xff]
    %v2325 = vld [vmem:[#allocation9] sm:$0x1]
    %v2327 = vperm.slane %v2325, 0
    %2329 = vmatpush.msra.mxu0 %v2324
    %2330 = vmatpush.msra.mxu0 %v2323
    %2331 = vmatpush.msra.mxu0 %v2322
    %2332 = vmatpush.msra.mxu0 %v2321
    %2333 = vmatpush.msra.mxu0 %v2320
    %2334 = vmatpush.msra.mxu0 %v2319
    %2335 = vmatpush.msra.mxu0 %v2318
    %2336 = vmatpush.msra.mxu0 %v2317
    %2337 = vmatpush.msra.mxu0 %v2316
    %2338 = vmatpush.msra.mxu0 %v2315
    %2339 = vmatpush.msra.mxu0 %v2314
    %2340 = vmatpush.msra.mxu0 %v2313
    %2341 = vmatpush.msra.mxu0 %v2312
    %2342 = vmatpush.msra.mxu0 %v2311
    %2343 = vmatpush.msra.mxu0 %v2310
    %2344 = vmatpush.msra.mxu0 %v2309
    %2345 = vmatmul.f32.gmra.mxu0 %v2308
    %v2346 = vpop.f32.mrf.mxu0
    %v2347 = vadd.f32 %v2327, %v2346
    %2348 = vdwg.mxu0
    %v2349 = vtanh.pop %v2347
    %v2350 = vld [vmem:[#allocation10] sm:$0xff]
    %v2351 = vld [vmem:[#allocation10 + $0x8] sm:$0xff]
    %v2352 = vld [vmem:[#allocation10 + $0x10] sm:$0xff]
    %v2353 = vld [vmem:[#allocation10 + $0x18] sm:$0xff]
    %v2354 = vld [vmem:[#allocation10 + $0x20] sm:$0xff]
    %v2355 = vld [vmem:[#allocation10 + $0x28] sm:$0xff]
    %v2356 = vld [vmem:[#allocation10 + $0x30] sm:$0xff]
    %v2357 = vld [vmem:[#allocation10 + $0x38] sm:$0xff]
    %v2358 = vld [vmem:[#allocation10 + $0x40] sm:$0xff]
    %v2359 = vld [vmem:[#allocation10 + $0x48] sm:$0xff]
    %v2360 = vld [vmem:[#allocation10 + $0x50] sm:$0xff]
    %v2361 = vld [vmem:[#allocation10 + $0x58] sm:$0xff]
    %v2362 = vld [vmem:[#allocation10 + $0x60] sm:$0xff]
    %v2363 = vld [vmem:[#allocation10 + $0x68] sm:$0xff]
    %v2364 = vld [vmem:[#allocation10 + $0x70] sm:$0xff]
    %v2365 = vld [vmem:[#allocation10 + $0x78] sm:$0xff]
    %v2366 = vld [vmem:[#allocation12] sm:$0x1]
    %v2368 = vperm.slane %v2366, 0
    %2370 = vmatpush.msra.mxu0 %v2365
    %2371 = vmatpush.msra.mxu0 %v2364
    %2372 = vmatpush.msra.mxu0 %v2363
    %2373 = vmatpush.msra.mxu0 %v2362
    %2374 = vmatpush.msra.mxu0 %v2361
    %2375 = vmatpush.msra.mxu0 %v2360
    %2376 = vmatpush.msra.mxu0 %v2359
    %2377 = vmatpush.msra.mxu0 %v2358
    %2378 = vmatpush.msra.mxu0 %v2357
    %2379 = vmatpush.msra.mxu0 %v2356
    %2380 = vmatpush.msra.mxu0 %v2355
    %2381 = vmatpush.msra.mxu0 %v2354
    %2382 = vmatpush.msra.mxu0 %v2353
    %2383 = vmatpush.msra.mxu0 %v2352
    %2384 = vmatpush.msra.mxu0 %v2351
    %2385 = vmatpush.msra.mxu0 %v2350
    %2386 = vmatmul.f32.gmra.mxu0 %v2349
    %v2387 = vpop.f32.mrf.mxu0
    %v2388 = vadd.f32 %v2368, %v2387
    %2389 = vdwg.mxu0
    %v2390 = vtanh.pop %v2388
    %v2391 = vld [vmem:[%s16] sm:$0xff]
    %v2392 = vld [vmem:[%s16 + $0x8] sm:$0xff]
    %v2393 = vld [vmem:[%s16 + $0x10] sm:$0xff]
    %v2394 = vld [vmem:[%s16 + $0x18] sm:$0xff]
    %v2395 = vld [vmem:[%s16 + $0x20] sm:$0xff]
    %v2396 = vld [vmem:[%s16 + $0x28] sm:$0xff]
    %v2397 = vld [vmem:[%s16 + $0x30] sm:$0xff]
    %v2398 = vld [vmem:[%s16 + $0x38] sm:$0xff]
    %v2399 = vld [vmem:[%s16 + $0x40] sm:$0xff]
    %v2400 = vld [vmem:[%s16 + $0x48] sm:$0xff]
    %v2401 = vld [vmem:[%s16 + $0x50] sm:$0xff]
    %v2402 = vld [vmem:[%s16 + $0x58] sm:$0xff]
    %v2403 = vld [vmem:[%s16 + $0x60] sm:$0xff]
    %v2404 = vld [vmem:[%s16 + $0x68] sm:$0xff]
    %v2405 = vld [vmem:[%s16 + $0x70] sm:$0xff]
    %v2406 = vld [vmem:[%s16 + $0x78] sm:$0xff]
    %v2407 = vld [vmem:[%s17] sm:$0x1]
    %v2409 = vperm.slane %v2407, 0
    %2411 = vmatpush.msra.mxu0 %v2406
    %2412 = vmatpush.msra.mxu0 %v2405
    %2413 = vmatpush.msra.mxu0 %v2404
    %2414 = vmatpush.msra.mxu0 %v2403
    %2415 = vmatpush.msra.mxu0 %v2402
    %2416 = vmatpush.msra.mxu0 %v2401
    %2417 = vmatpush.msra.mxu0 %v2400
    %2418 = vmatpush.msra.mxu0 %v2399
    %2419 = vmatpush.msra.mxu0 %v2398
    %2420 = vmatpush.msra.mxu0 %v2397
    %2421 = vmatpush.msra.mxu0 %v2396
    %2422 = vmatpush.msra.mxu0 %v2395
    %2423 = vmatpush.msra.mxu0 %v2394
    %2424 = vmatpush.msra.mxu0 %v2393
    %2425 = vmatpush.msra.mxu0 %v2392
    %2426 = vmatpush.msra.mxu0 %v2391
    %2427 = vmatmul.f32.gmra.mxu0 %v2390
    %v2428 = vpop.f32.mrf.mxu0
    %v2429 = vadd.f32 %v2409, %v2428
    %2430 = vdwg.mxu0
    %s2431 = scalar_lea.vmem %s22, 8
    %2432 = vst.msk [vmem:[%s2431] sm:$0xff] %vm231, %v2429
    %v2433 = vld [vmem:[#allocation4] sm:$0xff]
    %v2434 = vld [vmem:[#allocation4 + $0x8] sm:$0xff]
    %v2435 = vld [vmem:[#allocation4 + $0x10] sm:$0xff]
    %v2436 = vld [vmem:[#allocation4 + $0x18] sm:$0xff]
    %v2437 = vld [vmem:[#allocation4 + $0x20] sm:$0xff]
    %v2438 = vld [vmem:[#allocation4 + $0x28] sm:$0xff]
    %v2439 = vld [vmem:[#allocation4 + $0x30] sm:$0xff]
    %v2440 = vld [vmem:[#allocation4 + $0x38] sm:$0xff]
    %v2441 = vld [vmem:[#allocation4 + $0x40] sm:$0xff]
    %v2442 = vld [vmem:[#allocation4 + $0x48] sm:$0xff]
    %v2443 = vld [vmem:[#allocation4 + $0x50] sm:$0xff]
    %v2444 = vld [vmem:[#allocation4 + $0x58] sm:$0xff]
    %v2445 = vld [vmem:[#allocation4 + $0x60] sm:$0x1]
    %v2446 = vld [vmem:[#allocation4 + $0x68] sm:$0x1]
    %v2447 = vld [vmem:[#allocation4 + $0x70] sm:$0x1]
    %v2448 = vld [vmem:[#allocation4 + $0x78] sm:$0x1]
    %v2450 = vsel %vm231, %v2429, 0
    %v2453 = vsel %vm256, %v2445, 0
    %v2456 = vsel %vm256, %v2446, 0
    %v2459 = vsel %vm256, %v2447, 0
    %v2462 = vsel %vm256, %v2448, 0
    %2464 = vmatpush.msra.mxu0 0.0
    %2465 = vmatpush.msra.mxu0 0.0
    %2466 = vmatpush.msra.mxu0 0.0
    %2467 = vmatpush.msra.mxu0 0.0
    %2468 = vmatpush.msra.mxu0 0.0
    %2469 = vmatpush.msra.mxu0 0.0
    %2470 = vmatpush.msra.mxu0 0.0
    %2471 = vmatpush.msra.mxu0 0.0
    %2472 = vmatpush.msra.mxu0 0.0
    %2473 = vmatpush.msra.mxu0 0.0
    %2474 = vmatpush.msra.mxu0 0.0
    %2475 = vmatpush.msra.mxu0 0.0
    %2476 = vmatpush.msra.mxu0 %v2453
    %2477 = vmatpush.msra.mxu0 %v2441
    %2478 = vmatpush.msra.mxu0 %v2437
    %2479 = vmatpush.msra.mxu0 %v2433
    %2480 = vmatmul.f32.gmra.mxu0 %v2450
    %v2481 = vpop.f32.mrf.mxu0
    %v2482 = vadd.f32 0.0, %v2481
    %2483 = vdwg.mxu0
    %2484 = vmatpush.msra.mxu0 0.0
    %2485 = vmatpush.msra.mxu0 0.0
    %2486 = vmatpush.msra.mxu0 0.0
    %2487 = vmatpush.msra.mxu0 0.0
    %2488 = vmatpush.msra.mxu0 0.0
    %2489 = vmatpush.msra.mxu0 0.0
    %2490 = vmatpush.msra.mxu0 0.0
    %2491 = vmatpush.msra.mxu0 0.0
    %2492 = vmatpush.msra.mxu0 0.0
    %2493 = vmatpush.msra.mxu0 0.0
    %2494 = vmatpush.msra.mxu0 0.0
    %2495 = vmatpush.msra.mxu0 0.0
    %2496 = vmatpush.msra.mxu0 %v2456
    %2497 = vmatpush.msra.mxu0 %v2442
    %2498 = vmatpush.msra.mxu0 %v2438
    %2499 = vmatpush.msra.mxu0 %v2434
    %2500 = vmatmul.f32.gmra.mxu0 %v2450
    %v2501 = vpop.f32.mrf.mxu0
    %v2502 = vadd.f32 0.0, %v2501
    %2503 = vdwg.mxu0
    %2504 = vmatpush.msra.mxu0 0.0
    %2505 = vmatpush.msra.mxu0 0.0
    %2506 = vmatpush.msra.mxu0 0.0
    %2507 = vmatpush.msra.mxu0 0.0
    %2508 = vmatpush.msra.mxu0 0.0
    %2509 = vmatpush.msra.mxu0 0.0
    %2510 = vmatpush.msra.mxu0 0.0
    %2511 = vmatpush.msra.mxu0 0.0
    %2512 = vmatpush.msra.mxu0 0.0
    %2513 = vmatpush.msra.mxu0 0.0
    %2514 = vmatpush.msra.mxu0 0.0
    %2515 = vmatpush.msra.mxu0 0.0
    %2516 = vmatpush.msra.mxu0 %v2459
    %2517 = vmatpush.msra.mxu0 %v2443
    %2518 = vmatpush.msra.mxu0 %v2439
    %2519 = vmatpush.msra.mxu0 %v2435
    %2520 = vmatmul.f32.gmra.mxu0 %v2450
    %v2521 = vpop.f32.mrf.mxu0
    %v2522 = vadd.f32 0.0, %v2521
    %2523 = vdwg.mxu0
    %2524 = vmatpush.msra.mxu0 0.0
    %2525 = vmatpush.msra.mxu0 0.0
    %2526 = vmatpush.msra.mxu0 0.0
    %2527 = vmatpush.msra.mxu0 0.0
    %2528 = vmatpush.msra.mxu0 0.0
    %2529 = vmatpush.msra.mxu0 0.0
    %2530 = vmatpush.msra.mxu0 0.0
    %2531 = vmatpush.msra.mxu0 0.0
    %2532 = vmatpush.msra.mxu0 0.0
    %2533 = vmatpush.msra.mxu0 0.0
    %2534 = vmatpush.msra.mxu0 0.0
    %2535 = vmatpush.msra.mxu0 0.0
    %2536 = vmatpush.msra.mxu0 %v2462
    %2537 = vmatpush.msra.mxu0 %v2444
    %2538 = vmatpush.msra.mxu0 %v2440
    %2539 = vmatpush.msra.mxu0 %v2436
    %2540 = vmatmul.f32.gmra.mxu0 %v2450
    %v2541 = vpop.f32.mrf.mxu0
    %v2542 = vadd.f32 0.0, %v2541
    %2543 = vdwg.mxu0
    %v2544 = vadd.f32 %v1562, %v2482
    %v2545 = vadd.f32 %v1582, %v2502
    %v2546 = vadd.f32 %v1602, %v2522
    %v2547 = vadd.f32 %v1622, %v2542
    %v2548 = vld [vmem:[#allocation6] sm:$0xff]
    %v2549 = vld [vmem:[#allocation6 + $0x8] sm:$0xff]
    %v2550 = vld [vmem:[#allocation6 + $0x10] sm:$0xff]
    %v2551 = vld [vmem:[#allocation6 + $0x18] sm:$0xff]
    %v2552 = vld [vmem:[#allocation6 + $0x20] sm:$0xff]
    %v2553 = vld [vmem:[#allocation6 + $0x28] sm:$0xff]
    %v2554 = vld [vmem:[#allocation6 + $0x30] sm:$0xff]
    %v2555 = vld [vmem:[#allocation6 + $0x38] sm:$0xff]
    %v2556 = vld [vmem:[#allocation6 + $0x40] sm:$0xff]
    %v2557 = vld [vmem:[#allocation6 + $0x48] sm:$0xff]
    %v2558 = vld [vmem:[#allocation6 + $0x50] sm:$0xff]
    %v2559 = vld [vmem:[#allocation6 + $0x58] sm:$0xff]
    %v2560 = vld [vmem:[#allocation6 + $0x60] sm:$0xff]
    %v2561 = vld [vmem:[#allocation6 + $0x68] sm:$0xff]
    %v2562 = vld [vmem:[#allocation6 + $0x70] sm:$0xff]
    %v2563 = vld [vmem:[#allocation6 + $0x78] sm:$0xff]
    %v2564 = vld [vmem:[#allocation6 + $0x80] sm:$0xff]
    %v2565 = vld [vmem:[#allocation6 + $0x88] sm:$0xff]
    %v2566 = vld [vmem:[#allocation6 + $0x90] sm:$0xff]
    %v2567 = vld [vmem:[#allocation6 + $0x98] sm:$0xff]
    %v2568 = vld [vmem:[#allocation6 + $0xa0] sm:$0xff]
    %v2569 = vld [vmem:[#allocation6 + $0xa8] sm:$0xff]
    %v2570 = vld [vmem:[#allocation6 + $0xb0] sm:$0xff]
    %v2571 = vld [vmem:[#allocation6 + $0xb8] sm:$0xff]
    %v2572 = vld [vmem:[#allocation6 + $0xc0] sm:$0xff]
    %v2573 = vld [vmem:[#allocation6 + $0xc8] sm:$0xff]
    %v2574 = vld [vmem:[#allocation6 + $0xd0] sm:$0xff]
    %v2575 = vld [vmem:[#allocation6 + $0xd8] sm:$0xff]
    %v2576 = vld [vmem:[#allocation6 + $0xe0] sm:$0xff]
    %v2577 = vld [vmem:[#allocation6 + $0xe8] sm:$0xff]
    %v2578 = vld [vmem:[#allocation6 + $0xf0] sm:$0xff]
    %v2579 = vld [vmem:[#allocation6 + $0xf8] sm:$0xff]
    %v2580 = vld [vmem:[#allocation6 + $0x100] sm:$0xff]
    %v2581 = vld [vmem:[#allocation6 + $0x108] sm:$0xff]
    %v2582 = vld [vmem:[#allocation6 + $0x110] sm:$0xff]
    %v2583 = vld [vmem:[#allocation6 + $0x118] sm:$0xff]
    %v2584 = vld [vmem:[#allocation6 + $0x120] sm:$0xff]
    %v2585 = vld [vmem:[#allocation6 + $0x128] sm:$0xff]
    %v2586 = vld [vmem:[#allocation6 + $0x130] sm:$0xff]
    %v2587 = vld [vmem:[#allocation6 + $0x138] sm:$0xff]
    %v2588 = vld [vmem:[#allocation6 + $0x140] sm:$0xff]
    %v2589 = vld [vmem:[#allocation6 + $0x148] sm:$0xff]
    %v2590 = vld [vmem:[#allocation6 + $0x150] sm:$0xff]
    %v2591 = vld [vmem:[#allocation6 + $0x158] sm:$0xff]
    %v2592 = vld [vmem:[#allocation6 + $0x160] sm:$0xff]
    %v2593 = vld [vmem:[#allocation6 + $0x168] sm:$0xff]
    %v2594 = vld [vmem:[#allocation6 + $0x170] sm:$0xff]
    %v2595 = vld [vmem:[#allocation6 + $0x178] sm:$0xff]
    %v2596 = vld [vmem:[#allocation6 + $0x180] sm:$0xff]
    %v2597 = vld [vmem:[#allocation6 + $0x188] sm:$0xff]
    %v2598 = vld [vmem:[#allocation6 + $0x190] sm:$0xff]
    %v2599 = vld [vmem:[#allocation6 + $0x198] sm:$0xff]
    %v2600 = vld [vmem:[#allocation6 + $0x1a0] sm:$0xff]
    %v2601 = vld [vmem:[#allocation6 + $0x1a8] sm:$0xff]
    %v2602 = vld [vmem:[#allocation6 + $0x1b0] sm:$0xff]
    %v2603 = vld [vmem:[#allocation6 + $0x1b8] sm:$0xff]
    %v2604 = vld [vmem:[#allocation6 + $0x1c0] sm:$0xff]
    %v2605 = vld [vmem:[#allocation6 + $0x1c8] sm:$0xff]
    %v2606 = vld [vmem:[#allocation6 + $0x1d0] sm:$0xff]
    %v2607 = vld [vmem:[#allocation6 + $0x1d8] sm:$0xff]
    %v2608 = vld [vmem:[#allocation6 + $0x1e0] sm:$0xff]
    %v2609 = vld [vmem:[#allocation6 + $0x1e8] sm:$0xff]
    %v2610 = vld [vmem:[#allocation6 + $0x1f0] sm:$0xff]
    %v2611 = vld [vmem:[#allocation6 + $0x1f8] sm:$0xff]
    %2612 = vmatpush.msra.mxu0 %v2608
    %2613 = vmatpush.msra.mxu0 %v2604
    %2614 = vmatpush.msra.mxu0 %v2600
    %2615 = vmatpush.msra.mxu0 %v2596
    %2616 = vmatpush.msra.mxu0 %v2592
    %2617 = vmatpush.msra.mxu0 %v2588
    %2618 = vmatpush.msra.mxu0 %v2584
    %2619 = vmatpush.msra.mxu0 %v2580
    %2620 = vmatpush.msra.mxu0 %v2576
    %2621 = vmatpush.msra.mxu0 %v2572
    %2622 = vmatpush.msra.mxu0 %v2568
    %2623 = vmatpush.msra.mxu0 %v2564
    %2624 = vmatpush.msra.mxu0 %v2560
    %2625 = vmatpush.msra.mxu0 %v2556
    %2626 = vmatpush.msra.mxu0 %v2552
    %2627 = vmatpush.msra.mxu0 %v2548
    %2628 = vmatmul.f32.gmra.mxu0 %v2308
    %v2629 = vpop.f32.mrf.mxu0
    %v2630 = vadd.f32 0.0, %v2629
    %2631 = vdwg.mxu0
    %2632 = vmatpush.msra.mxu0 %v2609
    %2633 = vmatpush.msra.mxu0 %v2605
    %2634 = vmatpush.msra.mxu0 %v2601
    %2635 = vmatpush.msra.mxu0 %v2597
    %2636 = vmatpush.msra.mxu0 %v2593
    %2637 = vmatpush.msra.mxu0 %v2589
    %2638 = vmatpush.msra.mxu0 %v2585
    %2639 = vmatpush.msra.mxu0 %v2581
    %2640 = vmatpush.msra.mxu0 %v2577
    %2641 = vmatpush.msra.mxu0 %v2573
    %2642 = vmatpush.msra.mxu0 %v2569
    %2643 = vmatpush.msra.mxu0 %v2565
    %2644 = vmatpush.msra.mxu0 %v2561
    %2645 = vmatpush.msra.mxu0 %v2557
    %2646 = vmatpush.msra.mxu0 %v2553
    %2647 = vmatpush.msra.mxu0 %v2549
    %2648 = vmatmul.f32.gmra.mxu0 %v2308
    %v2649 = vpop.f32.mrf.mxu0
    %v2650 = vadd.f32 0.0, %v2649
    %2651 = vdwg.mxu0
    %2652 = vmatpush.msra.mxu0 %v2610
    %2653 = vmatpush.msra.mxu0 %v2606
    %2654 = vmatpush.msra.mxu0 %v2602
    %2655 = vmatpush.msra.mxu0 %v2598
    %2656 = vmatpush.msra.mxu0 %v2594
    %2657 = vmatpush.msra.mxu0 %v2590
    %2658 = vmatpush.msra.mxu0 %v2586
    %2659 = vmatpush.msra.mxu0 %v2582
    %2660 = vmatpush.msra.mxu0 %v2578
    %2661 = vmatpush.msra.mxu0 %v2574
    %2662 = vmatpush.msra.mxu0 %v2570
    %2663 = vmatpush.msra.mxu0 %v2566
    %2664 = vmatpush.msra.mxu0 %v2562
    %2665 = vmatpush.msra.mxu0 %v2558
    %2666 = vmatpush.msra.mxu0 %v2554
    %2667 = vmatpush.msra.mxu0 %v2550
    %2668 = vmatmul.f32.gmra.mxu0 %v2308
    %v2669 = vpop.f32.mrf.mxu0
    %v2670 = vadd.f32 0.0, %v2669
    %2671 = vdwg.mxu0
    %2672 = vmatpush.msra.mxu0 %v2611
    %2673 = vmatpush.msra.mxu0 %v2607
    %2674 = vmatpush.msra.mxu0 %v2603
    %2675 = vmatpush.msra.mxu0 %v2599
    %2676 = vmatpush.msra.mxu0 %v2595
    %2677 = vmatpush.msra.mxu0 %v2591
    %2678 = vmatpush.msra.mxu0 %v2587
    %2679 = vmatpush.msra.mxu0 %v2583
    %2680 = vmatpush.msra.mxu0 %v2579
    %2681 = vmatpush.msra.mxu0 %v2575
    %2682 = vmatpush.msra.mxu0 %v2571
    %2683 = vmatpush.msra.mxu0 %v2567
    %2684 = vmatpush.msra.mxu0 %v2563
    %2685 = vmatpush.msra.mxu0 %v2559
    %2686 = vmatpush.msra.mxu0 %v2555
    %2687 = vmatpush.msra.mxu0 %v2551
    %2688 = vmatmul.f32.gmra.mxu0 %v2308
    %v2689 = vpop.f32.mrf.mxu0
    %v2690 = vadd.f32 0.0, %v2689
    %2691 = vdwg.mxu0
    %v2692 = vadd.f32 %v2544, %v2630
    %v2693 = vadd.f32 %v2545, %v2650
    %v2694 = vadd.f32 %v2546, %v2670
    %v2695 = vadd.f32 %v2547, %v2690
    %v2696 = vmul.f32 %v2692, 0.5
    %v2697 = vtanh.pop %v2696
    %v2698 = vadd.f32 %v2697, 1.0
    %v2699 = vmul.f32 %v2698, 0.5
    %v2700 = vmul.f32 %v2693, 0.5
    %v2701 = vtanh.pop %v2700
    %v2702 = vadd.f32 %v2701, 1.0
    %v2703 = vmul.f32 %v2702, 0.5
    %v2704 = vtanh.pop %v2694
    %v2705 = vmul.f32 %v2695, 0.5
    %v2706 = vtanh.pop %v2705
    %v2707 = vadd.f32 %v2706, 1.0
    %v2708 = vmul.f32 %v2707, 0.5
    %v2709 = vmul.f32 %v2703, %v2306
    %v2710 = vmul.f32 %v2699, %v2704
    %v2711 = vadd.f32 %v2709, %v2710
    %v2712 = vtanh.pop %v2711
    %v2713 = vmul.f32 %v2708, %v2712
    %v2714 = vld [vmem:[#allocation7] sm:$0xff]
    %v2715 = vld [vmem:[#allocation7 + $0x8] sm:$0xff]
    %v2716 = vld [vmem:[#allocation7 + $0x10] sm:$0xff]
    %v2717 = vld [vmem:[#allocation7 + $0x18] sm:$0xff]
    %v2718 = vld [vmem:[#allocation7 + $0x20] sm:$0xff]
    %v2719 = vld [vmem:[#allocation7 + $0x28] sm:$0xff]
    %v2720 = vld [vmem:[#allocation7 + $0x30] sm:$0xff]
    %v2721 = vld [vmem:[#allocation7 + $0x38] sm:$0xff]
    %v2722 = vld [vmem:[#allocation7 + $0x40] sm:$0xff]
    %v2723 = vld [vmem:[#allocation7 + $0x48] sm:$0xff]
    %v2724 = vld [vmem:[#allocation7 + $0x50] sm:$0xff]
    %v2725 = vld [vmem:[#allocation7 + $0x58] sm:$0xff]
    %v2726 = vld [vmem:[#allocation7 + $0x60] sm:$0xff]
    %v2727 = vld [vmem:[#allocation7 + $0x68] sm:$0xff]
    %v2728 = vld [vmem:[#allocation7 + $0x70] sm:$0xff]
    %v2729 = vld [vmem:[#allocation7 + $0x78] sm:$0xff]
    %v2730 = vld [vmem:[#allocation9] sm:$0x1]
    %v2732 = vperm.slane %v2730, 0
    %2734 = vmatpush.msra.mxu0 %v2729
    %2735 = vmatpush.msra.mxu0 %v2728
    %2736 = vmatpush.msra.mxu0 %v2727
    %2737 = vmatpush.msra.mxu0 %v2726
    %2738 = vmatpush.msra.mxu0 %v2725
    %2739 = vmatpush.msra.mxu0 %v2724
    %2740 = vmatpush.msra.mxu0 %v2723
    %2741 = vmatpush.msra.mxu0 %v2722
    %2742 = vmatpush.msra.mxu0 %v2721
    %2743 = vmatpush.msra.mxu0 %v2720
    %2744 = vmatpush.msra.mxu0 %v2719
    %2745 = vmatpush.msra.mxu0 %v2718
    %2746 = vmatpush.msra.mxu0 %v2717
    %2747 = vmatpush.msra.mxu0 %v2716
    %2748 = vmatpush.msra.mxu0 %v2715
    %2749 = vmatpush.msra.mxu0 %v2714
    %2750 = vmatmul.f32.gmra.mxu0 %v2713
    %v2751 = vpop.f32.mrf.mxu0
    %v2752 = vadd.f32 %v2732, %v2751
    %2753 = vdwg.mxu0
    %v2754 = vtanh.pop %v2752
    %v2755 = vld [vmem:[#allocation10] sm:$0xff]
    %v2756 = vld [vmem:[#allocation10 + $0x8] sm:$0xff]
    %v2757 = vld [vmem:[#allocation10 + $0x10] sm:$0xff]
    %v2758 = vld [vmem:[#allocation10 + $0x18] sm:$0xff]
    %v2759 = vld [vmem:[#allocation10 + $0x20] sm:$0xff]
    %v2760 = vld [vmem:[#allocation10 + $0x28] sm:$0xff]
    %v2761 = vld [vmem:[#allocation10 + $0x30] sm:$0xff]
    %v2762 = vld [vmem:[#allocation10 + $0x38] sm:$0xff]
    %v2763 = vld [vmem:[#allocation10 + $0x40] sm:$0xff]
    %v2764 = vld [vmem:[#allocation10 + $0x48] sm:$0xff]
    %v2765 = vld [vmem:[#allocation10 + $0x50] sm:$0xff]
    %v2766 = vld [vmem:[#allocation10 + $0x58] sm:$0xff]
    %v2767 = vld [vmem:[#allocation10 + $0x60] sm:$0xff]
    %v2768 = vld [vmem:[#allocation10 + $0x68] sm:$0xff]
    %v2769 = vld [vmem:[#allocation10 + $0x70] sm:$0xff]
    %v2770 = vld [vmem:[#allocation10 + $0x78] sm:$0xff]
    %v2771 = vld [vmem:[#allocation12] sm:$0x1]
    %v2773 = vperm.slane %v2771, 0
    %2775 = vmatpush.msra.mxu0 %v2770
    %2776 = vmatpush.msra.mxu0 %v2769
    %2777 = vmatpush.msra.mxu0 %v2768
    %2778 = vmatpush.msra.mxu0 %v2767
    %2779 = vmatpush.msra.mxu0 %v2766
    %2780 = vmatpush.msra.mxu0 %v2765
    %2781 = vmatpush.msra.mxu0 %v2764
    %2782 = vmatpush.msra.mxu0 %v2763
    %2783 = vmatpush.msra.mxu0 %v2762
    %2784 = vmatpush.msra.mxu0 %v2761
    %2785 = vmatpush.msra.mxu0 %v2760
    %2786 = vmatpush.msra.mxu0 %v2759
    %2787 = vmatpush.msra.mxu0 %v2758
    %2788 = vmatpush.msra.mxu0 %v2757
    %2789 = vmatpush.msra.mxu0 %v2756
    %2790 = vmatpush.msra.mxu0 %v2755
    %2791 = vmatmul.f32.gmra.mxu0 %v2754
    %v2792 = vpop.f32.mrf.mxu0
    %v2793 = vadd.f32 %v2773, %v2792
    %2794 = vdwg.mxu0
    %v2795 = vtanh.pop %v2793
    %v2796 = vld [vmem:[%s16] sm:$0xff]
    %v2797 = vld [vmem:[%s16 + $0x8] sm:$0xff]
    %v2798 = vld [vmem:[%s16 + $0x10] sm:$0xff]
    %v2799 = vld [vmem:[%s16 + $0x18] sm:$0xff]
    %v2800 = vld [vmem:[%s16 + $0x20] sm:$0xff]
    %v2801 = vld [vmem:[%s16 + $0x28] sm:$0xff]
    %v2802 = vld [vmem:[%s16 + $0x30] sm:$0xff]
    %v2803 = vld [vmem:[%s16 + $0x38] sm:$0xff]
    %v2804 = vld [vmem:[%s16 + $0x40] sm:$0xff]
    %v2805 = vld [vmem:[%s16 + $0x48] sm:$0xff]
    %v2806 = vld [vmem:[%s16 + $0x50] sm:$0xff]
    %v2807 = vld [vmem:[%s16 + $0x58] sm:$0xff]
    %v2808 = vld [vmem:[%s16 + $0x60] sm:$0xff]
    %v2809 = vld [vmem:[%s16 + $0x68] sm:$0xff]
    %v2810 = vld [vmem:[%s16 + $0x70] sm:$0xff]
    %v2811 = vld [vmem:[%s16 + $0x78] sm:$0xff]
    %v2812 = vld [vmem:[%s17] sm:$0x1]
    %v2814 = vperm.slane %v2812, 0
    %2816 = vmatpush.msra.mxu0 %v2811
    %2817 = vmatpush.msra.mxu0 %v2810
    %2818 = vmatpush.msra.mxu0 %v2809
    %2819 = vmatpush.msra.mxu0 %v2808
    %2820 = vmatpush.msra.mxu0 %v2807
    %2821 = vmatpush.msra.mxu0 %v2806
    %2822 = vmatpush.msra.mxu0 %v2805
    %2823 = vmatpush.msra.mxu0 %v2804
    %2824 = vmatpush.msra.mxu0 %v2803
    %2825 = vmatpush.msra.mxu0 %v2802
    %2826 = vmatpush.msra.mxu0 %v2801
    %2827 = vmatpush.msra.mxu0 %v2800
    %2828 = vmatpush.msra.mxu0 %v2799
    %2829 = vmatpush.msra.mxu0 %v2798
    %2830 = vmatpush.msra.mxu0 %v2797
    %2831 = vmatpush.msra.mxu0 %v2796
    %2832 = vmatmul.f32.gmra.mxu0 %v2795
    %v2833 = vpop.f32.mrf.mxu0
    %v2834 = vadd.f32 %v2814, %v2833
    %2835 = vdwg.mxu0
    %s2836 = scalar_lea.vmem %s22, 16
    %2837 = vst.msk [vmem:[%s2836] sm:$0xff] %vm231, %v2834
    %v2838 = vld [vmem:[#allocation4] sm:$0xff]
    %v2839 = vld [vmem:[#allocation4 + $0x8] sm:$0xff]
    %v2840 = vld [vmem:[#allocation4 + $0x10] sm:$0xff]
    %v2841 = vld [vmem:[#allocation4 + $0x18] sm:$0xff]
    %v2842 = vld [vmem:[#allocation4 + $0x20] sm:$0xff]
    %v2843 = vld [vmem:[#allocation4 + $0x28] sm:$0xff]
    %v2844 = vld [vmem:[#allocation4 + $0x30] sm:$0xff]
    %v2845 = vld [vmem:[#allocation4 + $0x38] sm:$0xff]
    %v2846 = vld [vmem:[#allocation4 + $0x40] sm:$0xff]
    %v2847 = vld [vmem:[#allocation4 + $0x48] sm:$0xff]
    %v2848 = vld [vmem:[#allocation4 + $0x50] sm:$0xff]
    %v2849 = vld [vmem:[#allocation4 + $0x58] sm:$0xff]
    %v2850 = vld [vmem:[#allocation4 + $0x60] sm:$0x1]
    %v2851 = vld [vmem:[#allocation4 + $0x68] sm:$0x1]
    %v2852 = vld [vmem:[#allocation4 + $0x70] sm:$0x1]
    %v2853 = vld [vmem:[#allocation4 + $0x78] sm:$0x1]
    %v2855 = vsel %vm231, %v2834, 0
    %v2858 = vsel %vm256, %v2850, 0
    %v2861 = vsel %vm256, %v2851, 0
    %v2864 = vsel %vm256, %v2852, 0
    %v2867 = vsel %vm256, %v2853, 0
    %2869 = vmatpush.msra.mxu0 0.0
    %2870 = vmatpush.msra.mxu0 0.0
    %2871 = vmatpush.msra.mxu0 0.0
    %2872 = vmatpush.msra.mxu0 0.0
    %2873 = vmatpush.msra.mxu0 0.0
    %2874 = vmatpush.msra.mxu0 0.0
    %2875 = vmatpush.msra.mxu0 0.0
    %2876 = vmatpush.msra.mxu0 0.0
    %2877 = vmatpush.msra.mxu0 0.0
    %2878 = vmatpush.msra.mxu0 0.0
    %2879 = vmatpush.msra.mxu0 0.0
    %2880 = vmatpush.msra.mxu0 0.0
    %2881 = vmatpush.msra.mxu0 %v2858
    %2882 = vmatpush.msra.mxu0 %v2846
    %2883 = vmatpush.msra.mxu0 %v2842
    %2884 = vmatpush.msra.mxu0 %v2838
    %2885 = vmatmul.f32.gmra.mxu0 %v2855
    %v2886 = vpop.f32.mrf.mxu0
    %v2887 = vadd.f32 0.0, %v2886
    %2888 = vdwg.mxu0
    %2889 = vmatpush.msra.mxu0 0.0
    %2890 = vmatpush.msra.mxu0 0.0
    %2891 = vmatpush.msra.mxu0 0.0
    %2892 = vmatpush.msra.mxu0 0.0
    %2893 = vmatpush.msra.mxu0 0.0
    %2894 = vmatpush.msra.mxu0 0.0
    %2895 = vmatpush.msra.mxu0 0.0
    %2896 = vmatpush.msra.mxu0 0.0
    %2897 = vmatpush.msra.mxu0 0.0
    %2898 = vmatpush.msra.mxu0 0.0
    %2899 = vmatpush.msra.mxu0 0.0
    %2900 = vmatpush.msra.mxu0 0.0
    %2901 = vmatpush.msra.mxu0 %v2861
    %2902 = vmatpush.msra.mxu0 %v2847
    %2903 = vmatpush.msra.mxu0 %v2843
    %2904 = vmatpush.msra.mxu0 %v2839
    %2905 = vmatmul.f32.gmra.mxu0 %v2855
    %v2906 = vpop.f32.mrf.mxu0
    %v2907 = vadd.f32 0.0, %v2906
    %2908 = vdwg.mxu0
    %2909 = vmatpush.msra.mxu0 0.0
    %2910 = vmatpush.msra.mxu0 0.0
    %2911 = vmatpush.msra.mxu0 0.0
    %2912 = vmatpush.msra.mxu0 0.0
    %2913 = vmatpush.msra.mxu0 0.0
    %2914 = vmatpush.msra.mxu0 0.0
    %2915 = vmatpush.msra.mxu0 0.0
    %2916 = vmatpush.msra.mxu0 0.0
    %2917 = vmatpush.msra.mxu0 0.0
    %2918 = vmatpush.msra.mxu0 0.0
    %2919 = vmatpush.msra.mxu0 0.0
    %2920 = vmatpush.msra.mxu0 0.0
    %2921 = vmatpush.msra.mxu0 %v2864
    %2922 = vmatpush.msra.mxu0 %v2848
    %2923 = vmatpush.msra.mxu0 %v2844
    %2924 = vmatpush.msra.mxu0 %v2840
    %2925 = vmatmul.f32.gmra.mxu0 %v2855
    %v2926 = vpop.f32.mrf.mxu0
    %v2927 = vadd.f32 0.0, %v2926
    %2928 = vdwg.mxu0
    %2929 = vmatpush.msra.mxu0 0.0
    %2930 = vmatpush.msra.mxu0 0.0
    %2931 = vmatpush.msra.mxu0 0.0
    %2932 = vmatpush.msra.mxu0 0.0
    %2933 = vmatpush.msra.mxu0 0.0
    %2934 = vmatpush.msra.mxu0 0.0
    %2935 = vmatpush.msra.mxu0 0.0
    %2936 = vmatpush.msra.mxu0 0.0
    %2937 = vmatpush.msra.mxu0 0.0
    %2938 = vmatpush.msra.mxu0 0.0
    %2939 = vmatpush.msra.mxu0 0.0
    %2940 = vmatpush.msra.mxu0 0.0
    %2941 = vmatpush.msra.mxu0 %v2867
    %2942 = vmatpush.msra.mxu0 %v2849
    %2943 = vmatpush.msra.mxu0 %v2845
    %2944 = vmatpush.msra.mxu0 %v2841
    %2945 = vmatmul.f32.gmra.mxu0 %v2855
    %v2946 = vpop.f32.mrf.mxu0
    %v2947 = vadd.f32 0.0, %v2946
    %2948 = vdwg.mxu0
    %v2949 = vadd.f32 %v1562, %v2887
    %v2950 = vadd.f32 %v1582, %v2907
    %v2951 = vadd.f32 %v1602, %v2927
    %v2952 = vadd.f32 %v1622, %v2947
    %v2953 = vld [vmem:[#allocation6] sm:$0xff]
    %v2954 = vld [vmem:[#allocation6 + $0x8] sm:$0xff]
    %v2955 = vld [vmem:[#allocation6 + $0x10] sm:$0xff]
    %v2956 = vld [vmem:[#allocation6 + $0x18] sm:$0xff]
    %v2957 = vld [vmem:[#allocation6 + $0x20] sm:$0xff]
    %v2958 = vld [vmem:[#allocation6 + $0x28] sm:$0xff]
    %v2959 = vld [vmem:[#allocation6 + $0x30] sm:$0xff]
    %v2960 = vld [vmem:[#allocation6 + $0x38] sm:$0xff]
    %v2961 = vld [vmem:[#allocation6 + $0x40] sm:$0xff]
    %v2962 = vld [vmem:[#allocation6 + $0x48] sm:$0xff]
    %v2963 = vld [vmem:[#allocation6 + $0x50] sm:$0xff]
    %v2964 = vld [vmem:[#allocation6 + $0x58] sm:$0xff]
    %v2965 = vld [vmem:[#allocation6 + $0x60] sm:$0xff]
    %v2966 = vld [vmem:[#allocation6 + $0x68] sm:$0xff]
    %v2967 = vld [vmem:[#allocation6 + $0x70] sm:$0xff]
    %v2968 = vld [vmem:[#allocation6 + $0x78] sm:$0xff]
    %v2969 = vld [vmem:[#allocation6 + $0x80] sm:$0xff]
    %v2970 = vld [vmem:[#allocation6 + $0x88] sm:$0xff]
    %v2971 = vld [vmem:[#allocation6 + $0x90] sm:$0xff]
    %v2972 = vld [vmem:[#allocation6 + $0x98] sm:$0xff]
    %v2973 = vld [vmem:[#allocation6 + $0xa0] sm:$0xff]
    %v2974 = vld [vmem:[#allocation6 + $0xa8] sm:$0xff]
    %v2975 = vld [vmem:[#allocation6 + $0xb0] sm:$0xff]
    %v2976 = vld [vmem:[#allocation6 + $0xb8] sm:$0xff]
    %v2977 = vld [vmem:[#allocation6 + $0xc0] sm:$0xff]
    %v2978 = vld [vmem:[#allocation6 + $0xc8] sm:$0xff]
    %v2979 = vld [vmem:[#allocation6 + $0xd0] sm:$0xff]
    %v2980 = vld [vmem:[#allocation6 + $0xd8] sm:$0xff]
    %v2981 = vld [vmem:[#allocation6 + $0xe0] sm:$0xff]
    %v2982 = vld [vmem:[#allocation6 + $0xe8] sm:$0xff]
    %v2983 = vld [vmem:[#allocation6 + $0xf0] sm:$0xff]
    %v2984 = vld [vmem:[#allocation6 + $0xf8] sm:$0xff]
    %v2985 = vld [vmem:[#allocation6 + $0x100] sm:$0xff]
    %v2986 = vld [vmem:[#allocation6 + $0x108] sm:$0xff]
    %v2987 = vld [vmem:[#allocation6 + $0x110] sm:$0xff]
    %v2988 = vld [vmem:[#allocation6 + $0x118] sm:$0xff]
    %v2989 = vld [vmem:[#allocation6 + $0x120] sm:$0xff]
    %v2990 = vld [vmem:[#allocation6 + $0x128] sm:$0xff]
    %v2991 = vld [vmem:[#allocation6 + $0x130] sm:$0xff]
    %v2992 = vld [vmem:[#allocation6 + $0x138] sm:$0xff]
    %v2993 = vld [vmem:[#allocation6 + $0x140] sm:$0xff]
    %v2994 = vld [vmem:[#allocation6 + $0x148] sm:$0xff]
    %v2995 = vld [vmem:[#allocation6 + $0x150] sm:$0xff]
    %v2996 = vld [vmem:[#allocation6 + $0x158] sm:$0xff]
    %v2997 = vld [vmem:[#allocation6 + $0x160] sm:$0xff]
    %v2998 = vld [vmem:[#allocation6 + $0x168] sm:$0xff]
    %v2999 = vld [vmem:[#allocation6 + $0x170] sm:$0xff]
    %v3000 = vld [vmem:[#allocation6 + $0x178] sm:$0xff]
    %v3001 = vld [vmem:[#allocation6 + $0x180] sm:$0xff]
    %v3002 = vld [vmem:[#allocation6 + $0x188] sm:$0xff]
    %v3003 = vld [vmem:[#allocation6 + $0x190] sm:$0xff]
    %v3004 = vld [vmem:[#allocation6 + $0x198] sm:$0xff]
    %v3005 = vld [vmem:[#allocation6 + $0x1a0] sm:$0xff]
    %v3006 = vld [vmem:[#allocation6 + $0x1a8] sm:$0xff]
    %v3007 = vld [vmem:[#allocation6 + $0x1b0] sm:$0xff]
    %v3008 = vld [vmem:[#allocation6 + $0x1b8] sm:$0xff]
    %v3009 = vld [vmem:[#allocation6 + $0x1c0] sm:$0xff]
    %v3010 = vld [vmem:[#allocation6 + $0x1c8] sm:$0xff]
    %v3011 = vld [vmem:[#allocation6 + $0x1d0] sm:$0xff]
    %v3012 = vld [vmem:[#allocation6 + $0x1d8] sm:$0xff]
    %v3013 = vld [vmem:[#allocation6 + $0x1e0] sm:$0xff]
    %v3014 = vld [vmem:[#allocation6 + $0x1e8] sm:$0xff]
    %v3015 = vld [vmem:[#allocation6 + $0x1f0] sm:$0xff]
    %v3016 = vld [vmem:[#allocation6 + $0x1f8] sm:$0xff]
    %3017 = vmatpush.msra.mxu0 %v3013
    %3018 = vmatpush.msra.mxu0 %v3009
    %3019 = vmatpush.msra.mxu0 %v3005
    %3020 = vmatpush.msra.mxu0 %v3001
    %3021 = vmatpush.msra.mxu0 %v2997
    %3022 = vmatpush.msra.mxu0 %v2993
    %3023 = vmatpush.msra.mxu0 %v2989
    %3024 = vmatpush.msra.mxu0 %v2985
    %3025 = vmatpush.msra.mxu0 %v2981
    %3026 = vmatpush.msra.mxu0 %v2977
    %3027 = vmatpush.msra.mxu0 %v2973
    %3028 = vmatpush.msra.mxu0 %v2969
    %3029 = vmatpush.msra.mxu0 %v2965
    %3030 = vmatpush.msra.mxu0 %v2961
    %3031 = vmatpush.msra.mxu0 %v2957
    %3032 = vmatpush.msra.mxu0 %v2953
    %3033 = vmatmul.f32.gmra.mxu0 %v2713
    %v3034 = vpop.f32.mrf.mxu0
    %v3035 = vadd.f32 0.0, %v3034
    %3036 = vdwg.mxu0
    %3037 = vmatpush.msra.mxu0 %v3014
    %3038 = vmatpush.msra.mxu0 %v3010
    %3039 = vmatpush.msra.mxu0 %v3006
    %3040 = vmatpush.msra.mxu0 %v3002
    %3041 = vmatpush.msra.mxu0 %v2998
    %3042 = vmatpush.msra.mxu0 %v2994
    %3043 = vmatpush.msra.mxu0 %v2990
    %3044 = vmatpush.msra.mxu0 %v2986
    %3045 = vmatpush.msra.mxu0 %v2982
    %3046 = vmatpush.msra.mxu0 %v2978
    %3047 = vmatpush.msra.mxu0 %v2974
    %3048 = vmatpush.msra.mxu0 %v2970
    %3049 = vmatpush.msra.mxu0 %v2966
    %3050 = vmatpush.msra.mxu0 %v2962
    %3051 = vmatpush.msra.mxu0 %v2958
    %3052 = vmatpush.msra.mxu0 %v2954
    %3053 = vmatmul.f32.gmra.mxu0 %v2713
    %v3054 = vpop.f32.mrf.mxu0
    %v3055 = vadd.f32 0.0, %v3054
    %3056 = vdwg.mxu0
    %3057 = vmatpush.msra.mxu0 %v3015
    %3058 = vmatpush.msra.mxu0 %v3011
    %3059 = vmatpush.msra.mxu0 %v3007
    %3060 = vmatpush.msra.mxu0 %v3003
    %3061 = vmatpush.msra.mxu0 %v2999
    %3062 = vmatpush.msra.mxu0 %v2995
    %3063 = vmatpush.msra.mxu0 %v2991
    %3064 = vmatpush.msra.mxu0 %v2987
    %3065 = vmatpush.msra.mxu0 %v2983
    %3066 = vmatpush.msra.mxu0 %v2979
    %3067 = vmatpush.msra.mxu0 %v2975
    %3068 = vmatpush.msra.mxu0 %v2971
    %3069 = vmatpush.msra.mxu0 %v2967
    %3070 = vmatpush.msra.mxu0 %v2963
    %3071 = vmatpush.msra.mxu0 %v2959
    %3072 = vmatpush.msra.mxu0 %v2955
    %3073 = vmatmul.f32.gmra.mxu0 %v2713
    %v3074 = vpop.f32.mrf.mxu0
    %v3075 = vadd.f32 0.0, %v3074
    %3076 = vdwg.mxu0
    %3077 = vmatpush.msra.mxu0 %v3016
    %3078 = vmatpush.msra.mxu0 %v3012
    %3079 = vmatpush.msra.mxu0 %v3008
    %3080 = vmatpush.msra.mxu0 %v3004
    %3081 = vmatpush.msra.mxu0 %v3000
    %3082 = vmatpush.msra.mxu0 %v2996
    %3083 = vmatpush.msra.mxu0 %v2992
    %3084 = vmatpush.msra.mxu0 %v2988
    %3085 = vmatpush.msra.mxu0 %v2984
    %3086 = vmatpush.msra.mxu0 %v2980
    %3087 = vmatpush.msra.mxu0 %v2976
    %3088 = vmatpush.msra.mxu0 %v2972
    %3089 = vmatpush.msra.mxu0 %v2968
    %3090 = vmatpush.msra.mxu0 %v2964
    %3091 = vmatpush.msra.mxu0 %v2960
    %3092 = vmatpush.msra.mxu0 %v2956
    %3093 = vmatmul.f32.gmra.mxu0 %v2713
    %v3094 = vpop.f32.mrf.mxu0
    %v3095 = vadd.f32 0.0, %v3094
    %3096 = vdwg.mxu0
    %v3097 = vadd.f32 %v2949, %v3035
    %v3098 = vadd.f32 %v2950, %v3055
    %v3099 = vadd.f32 %v2951, %v3075
    %v3100 = vadd.f32 %v2952, %v3095
    %v3101 = vmul.f32 %v3097, 0.5
    %v3102 = vtanh.pop %v3101
    %v3103 = vadd.f32 %v3102, 1.0
    %v3104 = vmul.f32 %v3103, 0.5
    %v3105 = vmul.f32 %v3098, 0.5
    %v3106 = vtanh.pop %v3105
    %v3107 = vadd.f32 %v3106, 1.0
    %v3108 = vmul.f32 %v3107, 0.5
    %v3109 = vtanh.pop %v3099
    %v3110 = vmul.f32 %v3100, 0.5
    %v3111 = vtanh.pop %v3110
    %v3112 = vadd.f32 %v3111, 1.0
    %v3113 = vmul.f32 %v3112, 0.5
    %v3114 = vmul.f32 %v3108, %v2711
    %v3115 = vmul.f32 %v3104, %v3109
    %v3116 = vadd.f32 %v3114, %v3115
    %v3117 = vtanh.pop %v3116
    %v3118 = vmul.f32 %v3113, %v3117
    %v3119 = vld [vmem:[#allocation7] sm:$0xff]
    %v3120 = vld [vmem:[#allocation7 + $0x8] sm:$0xff]
    %v3121 = vld [vmem:[#allocation7 + $0x10] sm:$0xff]
    %v3122 = vld [vmem:[#allocation7 + $0x18] sm:$0xff]
    %v3123 = vld [vmem:[#allocation7 + $0x20] sm:$0xff]
    %v3124 = vld [vmem:[#allocation7 + $0x28] sm:$0xff]
    %v3125 = vld [vmem:[#allocation7 + $0x30] sm:$0xff]
    %v3126 = vld [vmem:[#allocation7 + $0x38] sm:$0xff]
    %v3127 = vld [vmem:[#allocation7 + $0x40] sm:$0xff]
    %v3128 = vld [vmem:[#allocation7 + $0x48] sm:$0xff]
    %v3129 = vld [vmem:[#allocation7 + $0x50] sm:$0xff]
    %v3130 = vld [vmem:[#allocation7 + $0x58] sm:$0xff]
    %v3131 = vld [vmem:[#allocation7 + $0x60] sm:$0xff]
    %v3132 = vld [vmem:[#allocation7 + $0x68] sm:$0xff]
    %v3133 = vld [vmem:[#allocation7 + $0x70] sm:$0xff]
    %v3134 = vld [vmem:[#allocation7 + $0x78] sm:$0xff]
    %v3135 = vld [vmem:[#allocation9] sm:$0x1]
    %v3137 = vperm.slane %v3135, 0
    %3139 = vmatpush.msra.mxu0 %v3134
    %3140 = vmatpush.msra.mxu0 %v3133
    %3141 = vmatpush.msra.mxu0 %v3132
    %3142 = vmatpush.msra.mxu0 %v3131
    %3143 = vmatpush.msra.mxu0 %v3130
    %3144 = vmatpush.msra.mxu0 %v3129
    %3145 = vmatpush.msra.mxu0 %v3128
    %3146 = vmatpush.msra.mxu0 %v3127
    %3147 = vmatpush.msra.mxu0 %v3126
    %3148 = vmatpush.msra.mxu0 %v3125
    %3149 = vmatpush.msra.mxu0 %v3124
    %3150 = vmatpush.msra.mxu0 %v3123
    %3151 = vmatpush.msra.mxu0 %v3122
    %3152 = vmatpush.msra.mxu0 %v3121
    %3153 = vmatpush.msra.mxu0 %v3120
    %3154 = vmatpush.msra.mxu0 %v3119
    %3155 = vmatmul.f32.gmra.mxu0 %v3118
    %v3156 = vpop.f32.mrf.mxu0
    %v3157 = vadd.f32 %v3137, %v3156
    %3158 = vdwg.mxu0
    %v3159 = vtanh.pop %v3157
    %v3160 = vld [vmem:[#allocation10] sm:$0xff]
    %v3161 = vld [vmem:[#allocation10 + $0x8] sm:$0xff]
    %v3162 = vld [vmem:[#allocation10 + $0x10] sm:$0xff]
    %v3163 = vld [vmem:[#allocation10 + $0x18] sm:$0xff]
    %v3164 = vld [vmem:[#allocation10 + $0x20] sm:$0xff]
    %v3165 = vld [vmem:[#allocation10 + $0x28] sm:$0xff]
    %v3166 = vld [vmem:[#allocation10 + $0x30] sm:$0xff]
    %v3167 = vld [vmem:[#allocation10 + $0x38] sm:$0xff]
    %v3168 = vld [vmem:[#allocation10 + $0x40] sm:$0xff]
    %v3169 = vld [vmem:[#allocation10 + $0x48] sm:$0xff]
    %v3170 = vld [vmem:[#allocation10 + $0x50] sm:$0xff]
    %v3171 = vld [vmem:[#allocation10 + $0x58] sm:$0xff]
    %v3172 = vld [vmem:[#allocation10 + $0x60] sm:$0xff]
    %v3173 = vld [vmem:[#allocation10 + $0x68] sm:$0xff]
    %v3174 = vld [vmem:[#allocation10 + $0x70] sm:$0xff]
    %v3175 = vld [vmem:[#allocation10 + $0x78] sm:$0xff]
    %v3176 = vld [vmem:[#allocation12] sm:$0x1]
    %v3178 = vperm.slane %v3176, 0
    %3180 = vmatpush.msra.mxu0 %v3175
    %3181 = vmatpush.msra.mxu0 %v3174
    %3182 = vmatpush.msra.mxu0 %v3173
    %3183 = vmatpush.msra.mxu0 %v3172
    %3184 = vmatpush.msra.mxu0 %v3171
    %3185 = vmatpush.msra.mxu0 %v3170
    %3186 = vmatpush.msra.mxu0 %v3169
    %3187 = vmatpush.msra.mxu0 %v3168
    %3188 = vmatpush.msra.mxu0 %v3167
    %3189 = vmatpush.msra.mxu0 %v3166
    %3190 = vmatpush.msra.mxu0 %v3165
    %3191 = vmatpush.msra.mxu0 %v3164
    %3192 = vmatpush.msra.mxu0 %v3163
    %3193 = vmatpush.msra.mxu0 %v3162
    %3194 = vmatpush.msra.mxu0 %v3161
    %3195 = vmatpush.msra.mxu0 %v3160
    %3196 = vmatmul.f32.gmra.mxu0 %v3159
    %v3197 = vpop.f32.mrf.mxu0
    %v3198 = vadd.f32 %v3178, %v3197
    %3199 = vdwg.mxu0
    %v3200 = vtanh.pop %v3198
    %v3201 = vld [vmem:[%s16] sm:$0xff]
    %v3202 = vld [vmem:[%s16 + $0x8] sm:$0xff]
    %v3203 = vld [vmem:[%s16 + $0x10] sm:$0xff]
    %v3204 = vld [vmem:[%s16 + $0x18] sm:$0xff]
    %v3205 = vld [vmem:[%s16 + $0x20] sm:$0xff]
    %v3206 = vld [vmem:[%s16 + $0x28] sm:$0xff]
    %v3207 = vld [vmem:[%s16 + $0x30] sm:$0xff]
    %v3208 = vld [vmem:[%s16 + $0x38] sm:$0xff]
    %v3209 = vld [vmem:[%s16 + $0x40] sm:$0xff]
    %v3210 = vld [vmem:[%s16 + $0x48] sm:$0xff]
    %v3211 = vld [vmem:[%s16 + $0x50] sm:$0xff]
    %v3212 = vld [vmem:[%s16 + $0x58] sm:$0xff]
    %v3213 = vld [vmem:[%s16 + $0x60] sm:$0xff]
    %v3214 = vld [vmem:[%s16 + $0x68] sm:$0xff]
    %v3215 = vld [vmem:[%s16 + $0x70] sm:$0xff]
    %v3216 = vld [vmem:[%s16 + $0x78] sm:$0xff]
    %v3217 = vld [vmem:[%s17] sm:$0x1]
    %v3219 = vperm.slane %v3217, 0
    %3221 = vmatpush.msra.mxu0 %v3216
    %3222 = vmatpush.msra.mxu0 %v3215
    %3223 = vmatpush.msra.mxu0 %v3214
    %3224 = vmatpush.msra.mxu0 %v3213
    %3225 = vmatpush.msra.mxu0 %v3212
    %3226 = vmatpush.msra.mxu0 %v3211
    %3227 = vmatpush.msra.mxu0 %v3210
    %3228 = vmatpush.msra.mxu0 %v3209
    %3229 = vmatpush.msra.mxu0 %v3208
    %3230 = vmatpush.msra.mxu0 %v3207
    %3231 = vmatpush.msra.mxu0 %v3206
    %3232 = vmatpush.msra.mxu0 %v3205
    %3233 = vmatpush.msra.mxu0 %v3204
    %3234 = vmatpush.msra.mxu0 %v3203
    %3235 = vmatpush.msra.mxu0 %v3202
    %3236 = vmatpush.msra.mxu0 %v3201
    %3237 = vmatmul.f32.gmra.mxu0 %v3200
    %v3238 = vpop.f32.mrf.mxu0
    %v3239 = vadd.f32 %v3219, %v3238
    %3240 = vdwg.mxu0
    %s3241 = scalar_lea.vmem %s22, 24
    %3242 = vst.msk [vmem:[%s3241] sm:$0xff] %vm231, %v3239
    %v3243 = vld [vmem:[#allocation4] sm:$0xff]
    %v3244 = vld [vmem:[#allocation4 + $0x8] sm:$0xff]
    %v3245 = vld [vmem:[#allocation4 + $0x10] sm:$0xff]
    %v3246 = vld [vmem:[#allocation4 + $0x18] sm:$0xff]
    %v3247 = vld [vmem:[#allocation4 + $0x20] sm:$0xff]
    %v3248 = vld [vmem:[#allocation4 + $0x28] sm:$0xff]
    %v3249 = vld [vmem:[#allocation4 + $0x30] sm:$0xff]
    %v3250 = vld [vmem:[#allocation4 + $0x38] sm:$0xff]
    %v3251 = vld [vmem:[#allocation4 + $0x40] sm:$0xff]
    %v3252 = vld [vmem:[#allocation4 + $0x48] sm:$0xff]
    %v3253 = vld [vmem:[#allocation4 + $0x50] sm:$0xff]
    %v3254 = vld [vmem:[#allocation4 + $0x58] sm:$0xff]
    %v3255 = vld [vmem:[#allocation4 + $0x60] sm:$0x1]
    %v3256 = vld [vmem:[#allocation4 + $0x68] sm:$0x1]
    %v3257 = vld [vmem:[#allocation4 + $0x70] sm:$0x1]
    %v3258 = vld [vmem:[#allocation4 + $0x78] sm:$0x1]
    %v3260 = vsel %vm231, %v3239, 0
    %v3263 = vsel %vm256, %v3255, 0
    %v3266 = vsel %vm256, %v3256, 0
    %v3269 = vsel %vm256, %v3257, 0
    %v3272 = vsel %vm256, %v3258, 0
    %3274 = vmatpush.msra.mxu0 0.0
    %3275 = vmatpush.msra.mxu0 0.0
    %3276 = vmatpush.msra.mxu0 0.0
    %3277 = vmatpush.msra.mxu0 0.0
    %3278 = vmatpush.msra.mxu0 0.0
    %3279 = vmatpush.msra.mxu0 0.0
    %3280 = vmatpush.msra.mxu0 0.0
    %3281 = vmatpush.msra.mxu0 0.0
    %3282 = vmatpush.msra.mxu0 0.0
    %3283 = vmatpush.msra.mxu0 0.0
    %3284 = vmatpush.msra.mxu0 0.0
    %3285 = vmatpush.msra.mxu0 0.0
    %3286 = vmatpush.msra.mxu0 %v3263
    %3287 = vmatpush.msra.mxu0 %v3251
    %3288 = vmatpush.msra.mxu0 %v3247
    %3289 = vmatpush.msra.mxu0 %v3243
    %3290 = vmatmul.f32.gmra.mxu0 %v3260
    %v3291 = vpop.f32.mrf.mxu0
    %v3292 = vadd.f32 0.0, %v3291
    %3293 = vdwg.mxu0
    %3294 = vmatpush.msra.mxu0 0.0
    %3295 = vmatpush.msra.mxu0 0.0
    %3296 = vmatpush.msra.mxu0 0.0
    %3297 = vmatpush.msra.mxu0 0.0
    %3298 = vmatpush.msra.mxu0 0.0
    %3299 = vmatpush.msra.mxu0 0.0
    %3300 = vmatpush.msra.mxu0 0.0
    %3301 = vmatpush.msra.mxu0 0.0
    %3302 = vmatpush.msra.mxu0 0.0
    %3303 = vmatpush.msra.mxu0 0.0
    %3304 = vmatpush.msra.mxu0 0.0
    %3305 = vmatpush.msra.mxu0 0.0
    %3306 = vmatpush.msra.mxu0 %v3266
    %3307 = vmatpush.msra.mxu0 %v3252
    %3308 = vmatpush.msra.mxu0 %v3248
    %3309 = vmatpush.msra.mxu0 %v3244
    %3310 = vmatmul.f32.gmra.mxu0 %v3260
    %v3311 = vpop.f32.mrf.mxu0
    %v3312 = vadd.f32 0.0, %v3311
    %3313 = vdwg.mxu0
    %3314 = vmatpush.msra.mxu0 0.0
    %3315 = vmatpush.msra.mxu0 0.0
    %3316 = vmatpush.msra.mxu0 0.0
    %3317 = vmatpush.msra.mxu0 0.0
    %3318 = vmatpush.msra.mxu0 0.0
    %3319 = vmatpush.msra.mxu0 0.0
    %3320 = vmatpush.msra.mxu0 0.0
    %3321 = vmatpush.msra.mxu0 0.0
    %3322 = vmatpush.msra.mxu0 0.0
    %3323 = vmatpush.msra.mxu0 0.0
    %3324 = vmatpush.msra.mxu0 0.0
    %3325 = vmatpush.msra.mxu0 0.0
    %3326 = vmatpush.msra.mxu0 %v3269
    %3327 = vmatpush.msra.mxu0 %v3253
    %3328 = vmatpush.msra.mxu0 %v3249
    %3329 = vmatpush.msra.mxu0 %v3245
    %3330 = vmatmul.f32.gmra.mxu0 %v3260
    %v3331 = vpop.f32.mrf.mxu0
    %v3332 = vadd.f32 0.0, %v3331
    %3333 = vdwg.mxu0
    %3334 = vmatpush.msra.mxu0 0.0
    %3335 = vmatpush.msra.mxu0 0.0
    %3336 = vmatpush.msra.mxu0 0.0
    %3337 = vmatpush.msra.mxu0 0.0
    %3338 = vmatpush.msra.mxu0 0.0
    %3339 = vmatpush.msra.mxu0 0.0
    %3340 = vmatpush.msra.mxu0 0.0
    %3341 = vmatpush.msra.mxu0 0.0
    %3342 = vmatpush.msra.mxu0 0.0
    %3343 = vmatpush.msra.mxu0 0.0
    %3344 = vmatpush.msra.mxu0 0.0
    %3345 = vmatpush.msra.mxu0 0.0
    %3346 = vmatpush.msra.mxu0 %v3272
    %3347 = vmatpush.msra.mxu0 %v3254
    %3348 = vmatpush.msra.mxu0 %v3250
    %3349 = vmatpush.msra.mxu0 %v3246
    %3350 = vmatmul.f32.gmra.mxu0 %v3260
    %v3351 = vpop.f32.mrf.mxu0
    %v3352 = vadd.f32 0.0, %v3351
    %3353 = vdwg.mxu0
    %v3354 = vadd.f32 %v1562, %v3292
    %v3355 = vadd.f32 %v1582, %v3312
    %v3356 = vadd.f32 %v1602, %v3332
    %v3357 = vadd.f32 %v1622, %v3352
    %v3358 = vld [vmem:[#allocation6] sm:$0xff]
    %v3359 = vld [vmem:[#allocation6 + $0x8] sm:$0xff]
    %v3360 = vld [vmem:[#allocation6 + $0x10] sm:$0xff]
    %v3361 = vld [vmem:[#allocation6 + $0x18] sm:$0xff]
    %v3362 = vld [vmem:[#allocation6 + $0x20] sm:$0xff]
    %v3363 = vld [vmem:[#allocation6 + $0x28] sm:$0xff]
    %v3364 = vld [vmem:[#allocation6 + $0x30] sm:$0xff]
    %v3365 = vld [vmem:[#allocation6 + $0x38] sm:$0xff]
    %v3366 = vld [vmem:[#allocation6 + $0x40] sm:$0xff]
    %v3367 = vld [vmem:[#allocation6 + $0x48] sm:$0xff]
    %v3368 = vld [vmem:[#allocation6 + $0x50] sm:$0xff]
    %v3369 = vld [vmem:[#allocation6 + $0x58] sm:$0xff]
    %v3370 = vld [vmem:[#allocation6 + $0x60] sm:$0xff]
    %v3371 = vld [vmem:[#allocation6 + $0x68] sm:$0xff]
    %v3372 = vld [vmem:[#allocation6 + $0x70] sm:$0xff]
    %v3373 = vld [vmem:[#allocation6 + $0x78] sm:$0xff]
    %v3374 = vld [vmem:[#allocation6 + $0x80] sm:$0xff]
    %v3375 = vld [vmem:[#allocation6 + $0x88] sm:$0xff]
    %v3376 = vld [vmem:[#allocation6 + $0x90] sm:$0xff]
    %v3377 = vld [vmem:[#allocation6 + $0x98] sm:$0xff]
    %v3378 = vld [vmem:[#allocation6 + $0xa0] sm:$0xff]
    %v3379 = vld [vmem:[#allocation6 + $0xa8] sm:$0xff]
    %v3380 = vld [vmem:[#allocation6 + $0xb0] sm:$0xff]
    %v3381 = vld [vmem:[#allocation6 + $0xb8] sm:$0xff]
    %v3382 = vld [vmem:[#allocation6 + $0xc0] sm:$0xff]
    %v3383 = vld [vmem:[#allocation6 + $0xc8] sm:$0xff]
    %v3384 = vld [vmem:[#allocation6 + $0xd0] sm:$0xff]
    %v3385 = vld [vmem:[#allocation6 + $0xd8] sm:$0xff]
    %v3386 = vld [vmem:[#allocation6 + $0xe0] sm:$0xff]
    %v3387 = vld [vmem:[#allocation6 + $0xe8] sm:$0xff]
    %v3388 = vld [vmem:[#allocation6 + $0xf0] sm:$0xff]
    %v3389 = vld [vmem:[#allocation6 + $0xf8] sm:$0xff]
    %v3390 = vld [vmem:[#allocation6 + $0x100] sm:$0xff]
    %v3391 = vld [vmem:[#allocation6 + $0x108] sm:$0xff]
    %v3392 = vld [vmem:[#allocation6 + $0x110] sm:$0xff]
    %v3393 = vld [vmem:[#allocation6 + $0x118] sm:$0xff]
    %v3394 = vld [vmem:[#allocation6 + $0x120] sm:$0xff]
    %v3395 = vld [vmem:[#allocation6 + $0x128] sm:$0xff]
    %v3396 = vld [vmem:[#allocation6 + $0x130] sm:$0xff]
    %v3397 = vld [vmem:[#allocation6 + $0x138] sm:$0xff]
    %v3398 = vld [vmem:[#allocation6 + $0x140] sm:$0xff]
    %v3399 = vld [vmem:[#allocation6 + $0x148] sm:$0xff]
    %v3400 = vld [vmem:[#allocation6 + $0x150] sm:$0xff]
    %v3401 = vld [vmem:[#allocation6 + $0x158] sm:$0xff]
    %v3402 = vld [vmem:[#allocation6 + $0x160] sm:$0xff]
    %v3403 = vld [vmem:[#allocation6 + $0x168] sm:$0xff]
    %v3404 = vld [vmem:[#allocation6 + $0x170] sm:$0xff]
    %v3405 = vld [vmem:[#allocation6 + $0x178] sm:$0xff]
    %v3406 = vld [vmem:[#allocation6 + $0x180] sm:$0xff]
    %v3407 = vld [vmem:[#allocation6 + $0x188] sm:$0xff]
    %v3408 = vld [vmem:[#allocation6 + $0x190] sm:$0xff]
    %v3409 = vld [vmem:[#allocation6 + $0x198] sm:$0xff]
    %v3410 = vld [vmem:[#allocation6 + $0x1a0] sm:$0xff]
    %v3411 = vld [vmem:[#allocation6 + $0x1a8] sm:$0xff]
    %v3412 = vld [vmem:[#allocation6 + $0x1b0] sm:$0xff]
    %v3413 = vld [vmem:[#allocation6 + $0x1b8] sm:$0xff]
    %v3414 = vld [vmem:[#allocation6 + $0x1c0] sm:$0xff]
    %v3415 = vld [vmem:[#allocation6 + $0x1c8] sm:$0xff]
    %v3416 = vld [vmem:[#allocation6 + $0x1d0] sm:$0xff]
    %v3417 = vld [vmem:[#allocation6 + $0x1d8] sm:$0xff]
    %v3418 = vld [vmem:[#allocation6 + $0x1e0] sm:$0xff]
    %v3419 = vld [vmem:[#allocation6 + $0x1e8] sm:$0xff]
    %v3420 = vld [vmem:[#allocation6 + $0x1f0] sm:$0xff]
    %v3421 = vld [vmem:[#allocation6 + $0x1f8] sm:$0xff]
    %3422 = vmatpush.msra.mxu0 %v3418
    %3423 = vmatpush.msra.mxu0 %v3414
    %3424 = vmatpush.msra.mxu0 %v3410
    %3425 = vmatpush.msra.mxu0 %v3406
    %3426 = vmatpush.msra.mxu0 %v3402
    %3427 = vmatpush.msra.mxu0 %v3398
    %3428 = vmatpush.msra.mxu0 %v3394
    %3429 = vmatpush.msra.mxu0 %v3390
    %3430 = vmatpush.msra.mxu0 %v3386
    %3431 = vmatpush.msra.mxu0 %v3382
    %3432 = vmatpush.msra.mxu0 %v3378
    %3433 = vmatpush.msra.mxu0 %v3374
    %3434 = vmatpush.msra.mxu0 %v3370
    %3435 = vmatpush.msra.mxu0 %v3366
    %3436 = vmatpush.msra.mxu0 %v3362
    %3437 = vmatpush.msra.mxu0 %v3358
    %3438 = vmatmul.f32.gmra.mxu0 %v3118
    %v3439 = vpop.f32.mrf.mxu0
    %v3440 = vadd.f32 0.0, %v3439
    %3441 = vdwg.mxu0
    %3442 = vmatpush.msra.mxu0 %v3419
    %3443 = vmatpush.msra.mxu0 %v3415
    %3444 = vmatpush.msra.mxu0 %v3411
    %3445 = vmatpush.msra.mxu0 %v3407
    %3446 = vmatpush.msra.mxu0 %v3403
    %3447 = vmatpush.msra.mxu0 %v3399
    %3448 = vmatpush.msra.mxu0 %v3395
    %3449 = vmatpush.msra.mxu0 %v3391
    %3450 = vmatpush.msra.mxu0 %v3387
    %3451 = vmatpush.msra.mxu0 %v3383
    %3452 = vmatpush.msra.mxu0 %v3379
    %3453 = vmatpush.msra.mxu0 %v3375
    %3454 = vmatpush.msra.mxu0 %v3371
    %3455 = vmatpush.msra.mxu0 %v3367
    %3456 = vmatpush.msra.mxu0 %v3363
    %3457 = vmatpush.msra.mxu0 %v3359
    %3458 = vmatmul.f32.gmra.mxu0 %v3118
    %v3459 = vpop.f32.mrf.mxu0
    %v3460 = vadd.f32 0.0, %v3459
    %3461 = vdwg.mxu0
    %3462 = vmatpush.msra.mxu0 %v3420
    %3463 = vmatpush.msra.mxu0 %v3416
    %3464 = vmatpush.msra.mxu0 %v3412
    %3465 = vmatpush.msra.mxu0 %v3408
    %3466 = vmatpush.msra.mxu0 %v3404
    %3467 = vmatpush.msra.mxu0 %v3400
    %3468 = vmatpush.msra.mxu0 %v3396
    %3469 = vmatpush.msra.mxu0 %v3392
    %3470 = vmatpush.msra.mxu0 %v3388
    %3471 = vmatpush.msra.mxu0 %v3384
    %3472 = vmatpush.msra.mxu0 %v3380
    %3473 = vmatpush.msra.mxu0 %v3376
    %3474 = vmatpush.msra.mxu0 %v3372
    %3475 = vmatpush.msra.mxu0 %v3368
    %3476 = vmatpush.msra.mxu0 %v3364
    %3477 = vmatpush.msra.mxu0 %v3360
    %3478 = vmatmul.f32.gmra.mxu0 %v3118
    %v3479 = vpop.f32.mrf.mxu0
    %v3480 = vadd.f32 0.0, %v3479
    %3481 = vdwg.mxu0
    %3482 = vmatpush.msra.mxu0 %v3421
    %3483 = vmatpush.msra.mxu0 %v3417
    %3484 = vmatpush.msra.mxu0 %v3413
    %3485 = vmatpush.msra.mxu0 %v3409
    %3486 = vmatpush.msra.mxu0 %v3405
    %3487 = vmatpush.msra.mxu0 %v3401
    %3488 = vmatpush.msra.mxu0 %v3397
    %3489 = vmatpush.msra.mxu0 %v3393
    %3490 = vmatpush.msra.mxu0 %v3389
    %3491 = vmatpush.msra.mxu0 %v3385
    %3492 = vmatpush.msra.mxu0 %v3381
    %3493 = vmatpush.msra.mxu0 %v3377
    %3494 = vmatpush.msra.mxu0 %v3373
    %3495 = vmatpush.msra.mxu0 %v3369
    %3496 = vmatpush.msra.mxu0 %v3365
    %3497 = vmatpush.msra.mxu0 %v3361
    %3498 = vmatmul.f32.gmra.mxu0 %v3118
    %v3499 = vpop.f32.mrf.mxu0
    %v3500 = vadd.f32 0.0, %v3499
    %3501 = vdwg.mxu0
    %v3502 = vadd.f32 %v3354, %v3440
    %v3503 = vadd.f32 %v3355, %v3460
    %v3504 = vadd.f32 %v3356, %v3480
    %v3505 = vadd.f32 %v3357, %v3500
    %v3506 = vmul.f32 %v3502, 0.5
    %v3507 = vtanh.pop %v3506
    %v3508 = vadd.f32 %v3507, 1.0
    %v3509 = vmul.f32 %v3508, 0.5
    %v3510 = vmul.f32 %v3503, 0.5
    %v3511 = vtanh.pop %v3510
    %v3512 = vadd.f32 %v3511, 1.0
    %v3513 = vmul.f32 %v3512, 0.5
    %v3514 = vtanh.pop %v3504
    %v3515 = vmul.f32 %v3505, 0.5
    %v3516 = vtanh.pop %v3515
    %v3517 = vadd.f32 %v3516, 1.0
    %v3518 = vmul.f32 %v3517, 0.5
    %v3519 = vmul.f32 %v3513, %v3116
    %v3520 = vmul.f32 %v3509, %v3514
    %v3521 = vadd.f32 %v3519, %v3520
    %v3522 = vtanh.pop %v3521
    %v3523 = vmul.f32 %v3518, %v3522
    %v3524 = vld [vmem:[#allocation7] sm:$0xff]
    %v3525 = vld [vmem:[#allocation7 + $0x8] sm:$0xff]
    %v3526 = vld [vmem:[#allocation7 + $0x10] sm:$0xff]
    %v3527 = vld [vmem:[#allocation7 + $0x18] sm:$0xff]
    %v3528 = vld [vmem:[#allocation7 + $0x20] sm:$0xff]
    %v3529 = vld [vmem:[#allocation7 + $0x28] sm:$0xff]
    %v3530 = vld [vmem:[#allocation7 + $0x30] sm:$0xff]
    %v3531 = vld [vmem:[#allocation7 + $0x38] sm:$0xff]
    %v3532 = vld [vmem:[#allocation7 + $0x40] sm:$0xff]
    %v3533 = vld [vmem:[#allocation7 + $0x48] sm:$0xff]
    %v3534 = vld [vmem:[#allocation7 + $0x50] sm:$0xff]
    %v3535 = vld [vmem:[#allocation7 + $0x58] sm:$0xff]
    %v3536 = vld [vmem:[#allocation7 + $0x60] sm:$0xff]
    %v3537 = vld [vmem:[#allocation7 + $0x68] sm:$0xff]
    %v3538 = vld [vmem:[#allocation7 + $0x70] sm:$0xff]
    %v3539 = vld [vmem:[#allocation7 + $0x78] sm:$0xff]
    %v3540 = vld [vmem:[#allocation9] sm:$0x1]
    %v3542 = vperm.slane %v3540, 0
    %3544 = vmatpush.msra.mxu0 %v3539
    %3545 = vmatpush.msra.mxu0 %v3538
    %3546 = vmatpush.msra.mxu0 %v3537
    %3547 = vmatpush.msra.mxu0 %v3536
    %3548 = vmatpush.msra.mxu0 %v3535
    %3549 = vmatpush.msra.mxu0 %v3534
    %3550 = vmatpush.msra.mxu0 %v3533
    %3551 = vmatpush.msra.mxu0 %v3532
    %3552 = vmatpush.msra.mxu0 %v3531
    %3553 = vmatpush.msra.mxu0 %v3530
    %3554 = vmatpush.msra.mxu0 %v3529
    %3555 = vmatpush.msra.mxu0 %v3528
    %3556 = vmatpush.msra.mxu0 %v3527
    %3557 = vmatpush.msra.mxu0 %v3526
    %3558 = vmatpush.msra.mxu0 %v3525
    %3559 = vmatpush.msra.mxu0 %v3524
    %3560 = vmatmul.f32.gmra.mxu0 %v3523
    %v3561 = vpop.f32.mrf.mxu0
    %v3562 = vadd.f32 %v3542, %v3561
    %3563 = vdwg.mxu0
    %v3564 = vtanh.pop %v3562
    %v3565 = vld [vmem:[#allocation10] sm:$0xff]
    %v3566 = vld [vmem:[#allocation10 + $0x8] sm:$0xff]
    %v3567 = vld [vmem:[#allocation10 + $0x10] sm:$0xff]
    %v3568 = vld [vmem:[#allocation10 + $0x18] sm:$0xff]
    %v3569 = vld [vmem:[#allocation10 + $0x20] sm:$0xff]
    %v3570 = vld [vmem:[#allocation10 + $0x28] sm:$0xff]
    %v3571 = vld [vmem:[#allocation10 + $0x30] sm:$0xff]
    %v3572 = vld [vmem:[#allocation10 + $0x38] sm:$0xff]
    %v3573 = vld [vmem:[#allocation10 + $0x40] sm:$0xff]
    %v3574 = vld [vmem:[#allocation10 + $0x48] sm:$0xff]
    %v3575 = vld [vmem:[#allocation10 + $0x50] sm:$0xff]
    %v3576 = vld [vmem:[#allocation10 + $0x58] sm:$0xff]
    %v3577 = vld [vmem:[#allocation10 + $0x60] sm:$0xff]
    %v3578 = vld [vmem:[#allocation10 + $0x68] sm:$0xff]
    %v3579 = vld [vmem:[#allocation10 + $0x70] sm:$0xff]
    %v3580 = vld [vmem:[#allocation10 + $0x78] sm:$0xff]
    %v3581 = vld [vmem:[#allocation12] sm:$0x1]
    %v3583 = vperm.slane %v3581, 0
    %3585 = vmatpush.msra.mxu0 %v3580
    %3586 = vmatpush.msra.mxu0 %v3579
    %3587 = vmatpush.msra.mxu0 %v3578
    %3588 = vmatpush.msra.mxu0 %v3577
    %3589 = vmatpush.msra.mxu0 %v3576
    %3590 = vmatpush.msra.mxu0 %v3575
    %3591 = vmatpush.msra.mxu0 %v3574
    %3592 = vmatpush.msra.mxu0 %v3573
    %3593 = vmatpush.msra.mxu0 %v3572
    %3594 = vmatpush.msra.mxu0 %v3571
    %3595 = vmatpush.msra.mxu0 %v3570
    %3596 = vmatpush.msra.mxu0 %v3569
    %3597 = vmatpush.msra.mxu0 %v3568
    %3598 = vmatpush.msra.mxu0 %v3567
    %3599 = vmatpush.msra.mxu0 %v3566
    %3600 = vmatpush.msra.mxu0 %v3565
    %3601 = vmatmul.f32.gmra.mxu0 %v3564
    %v3602 = vpop.f32.mrf.mxu0
    %v3603 = vadd.f32 %v3583, %v3602
    %3604 = vdwg.mxu0
    %v3605 = vtanh.pop %v3603
    %v3606 = vld [vmem:[%s16] sm:$0xff]
    %v3607 = vld [vmem:[%s16 + $0x8] sm:$0xff]
    %v3608 = vld [vmem:[%s16 + $0x10] sm:$0xff]
    %v3609 = vld [vmem:[%s16 + $0x18] sm:$0xff]
    %v3610 = vld [vmem:[%s16 + $0x20] sm:$0xff]
    %v3611 = vld [vmem:[%s16 + $0x28] sm:$0xff]
    %v3612 = vld [vmem:[%s16 + $0x30] sm:$0xff]
    %v3613 = vld [vmem:[%s16 + $0x38] sm:$0xff]
    %v3614 = vld [vmem:[%s16 + $0x40] sm:$0xff]
    %v3615 = vld [vmem:[%s16 + $0x48] sm:$0xff]
    %v3616 = vld [vmem:[%s16 + $0x50] sm:$0xff]
    %v3617 = vld [vmem:[%s16 + $0x58] sm:$0xff]
    %v3618 = vld [vmem:[%s16 + $0x60] sm:$0xff]
    %v3619 = vld [vmem:[%s16 + $0x68] sm:$0xff]
    %v3620 = vld [vmem:[%s16 + $0x70] sm:$0xff]
    %v3621 = vld [vmem:[%s16 + $0x78] sm:$0xff]
    %v3622 = vld [vmem:[%s17] sm:$0x1]
    %v3624 = vperm.slane %v3622, 0
    %3626 = vmatpush.msra.mxu0 %v3621
    %3627 = vmatpush.msra.mxu0 %v3620
    %3628 = vmatpush.msra.mxu0 %v3619
    %3629 = vmatpush.msra.mxu0 %v3618
    %3630 = vmatpush.msra.mxu0 %v3617
    %3631 = vmatpush.msra.mxu0 %v3616
    %3632 = vmatpush.msra.mxu0 %v3615
    %3633 = vmatpush.msra.mxu0 %v3614
    %3634 = vmatpush.msra.mxu0 %v3613
    %3635 = vmatpush.msra.mxu0 %v3612
    %3636 = vmatpush.msra.mxu0 %v3611
    %3637 = vmatpush.msra.mxu0 %v3610
    %3638 = vmatpush.msra.mxu0 %v3609
    %3639 = vmatpush.msra.mxu0 %v3608
    %3640 = vmatpush.msra.mxu0 %v3607
    %3641 = vmatpush.msra.mxu0 %v3606
    %3642 = vmatmul.f32.gmra.mxu0 %v3605
    %v3643 = vpop.f32.mrf.mxu0
    %v3644 = vadd.f32 %v3624, %v3643
    %3645 = vdwg.mxu0
    %s3646 = scalar_lea.vmem %s22, 32
    %3647 = vst.msk [vmem:[%s3646] sm:$0xff] %vm231, %v3644
    %v3648 = vld [vmem:[#allocation4] sm:$0xff]
    %v3649 = vld [vmem:[#allocation4 + $0x8] sm:$0xff]
    %v3650 = vld [vmem:[#allocation4 + $0x10] sm:$0xff]
    %v3651 = vld [vmem:[#allocation4 + $0x18] sm:$0xff]
    %v3652 = vld [vmem:[#allocation4 + $0x20] sm:$0xff]
    %v3653 = vld [vmem:[#allocation4 + $0x28] sm:$0xff]
    %v3654 = vld [vmem:[#allocation4 + $0x30] sm:$0xff]
    %v3655 = vld [vmem:[#allocation4 + $0x38] sm:$0xff]
    %v3656 = vld [vmem:[#allocation4 + $0x40] sm:$0xff]
    %v3657 = vld [vmem:[#allocation4 + $0x48] sm:$0xff]
    %v3658 = vld [vmem:[#allocation4 + $0x50] sm:$0xff]
    %v3659 = vld [vmem:[#allocation4 + $0x58] sm:$0xff]
    %v3660 = vld [vmem:[#allocation4 + $0x60] sm:$0x1]
    %v3661 = vld [vmem:[#allocation4 + $0x68] sm:$0x1]
    %v3662 = vld [vmem:[#allocation4 + $0x70] sm:$0x1]
    %v3663 = vld [vmem:[#allocation4 + $0x78] sm:$0x1]
    %v3665 = vsel %vm231, %v3644, 0
    %v3668 = vsel %vm256, %v3660, 0
    %v3671 = vsel %vm256, %v3661, 0
    %v3674 = vsel %vm256, %v3662, 0
    %v3677 = vsel %vm256, %v3663, 0
    %3679 = vmatpush.msra.mxu0 0.0
    %3680 = vmatpush.msra.mxu0 0.0
    %3681 = vmatpush.msra.mxu0 0.0
    %3682 = vmatpush.msra.mxu0 0.0
    %3683 = vmatpush.msra.mxu0 0.0
    %3684 = vmatpush.msra.mxu0 0.0
    %3685 = vmatpush.msra.mxu0 0.0
    %3686 = vmatpush.msra.mxu0 0.0
    %3687 = vmatpush.msra.mxu0 0.0
    %3688 = vmatpush.msra.mxu0 0.0
    %3689 = vmatpush.msra.mxu0 0.0
    %3690 = vmatpush.msra.mxu0 0.0
    %3691 = vmatpush.msra.mxu0 %v3668
    %3692 = vmatpush.msra.mxu0 %v3656
    %3693 = vmatpush.msra.mxu0 %v3652
    %3694 = vmatpush.msra.mxu0 %v3648
    %3695 = vmatmul.f32.gmra.mxu0 %v3665
    %v3696 = vpop.f32.mrf.mxu0
    %v3697 = vadd.f32 0.0, %v3696
    %3698 = vdwg.mxu0
    %3699 = vmatpush.msra.mxu0 0.0
    %3700 = vmatpush.msra.mxu0 0.0
    %3701 = vmatpush.msra.mxu0 0.0
    %3702 = vmatpush.msra.mxu0 0.0
    %3703 = vmatpush.msra.mxu0 0.0
    %3704 = vmatpush.msra.mxu0 0.0
    %3705 = vmatpush.msra.mxu0 0.0
    %3706 = vmatpush.msra.mxu0 0.0
    %3707 = vmatpush.msra.mxu0 0.0
    %3708 = vmatpush.msra.mxu0 0.0
    %3709 = vmatpush.msra.mxu0 0.0
    %3710 = vmatpush.msra.mxu0 0.0
    %3711 = vmatpush.msra.mxu0 %v3671
    %3712 = vmatpush.msra.mxu0 %v3657
    %3713 = vmatpush.msra.mxu0 %v3653
    %3714 = vmatpush.msra.mxu0 %v3649
    %3715 = vmatmul.f32.gmra.mxu0 %v3665
    %v3716 = vpop.f32.mrf.mxu0
    %v3717 = vadd.f32 0.0, %v3716
    %3718 = vdwg.mxu0
    %3719 = vmatpush.msra.mxu0 0.0
    %3720 = vmatpush.msra.mxu0 0.0
    %3721 = vmatpush.msra.mxu0 0.0
    %3722 = vmatpush.msra.mxu0 0.0
    %3723 = vmatpush.msra.mxu0 0.0
    %3724 = vmatpush.msra.mxu0 0.0
    %3725 = vmatpush.msra.mxu0 0.0
    %3726 = vmatpush.msra.mxu0 0.0
    %3727 = vmatpush.msra.mxu0 0.0
    %3728 = vmatpush.msra.mxu0 0.0
    %3729 = vmatpush.msra.mxu0 0.0
    %3730 = vmatpush.msra.mxu0 0.0
    %3731 = vmatpush.msra.mxu0 %v3674
    %3732 = vmatpush.msra.mxu0 %v3658
    %3733 = vmatpush.msra.mxu0 %v3654
    %3734 = vmatpush.msra.mxu0 %v3650
    %3735 = vmatmul.f32.gmra.mxu0 %v3665
    %v3736 = vpop.f32.mrf.mxu0
    %v3737 = vadd.f32 0.0, %v3736
    %3738 = vdwg.mxu0
    %3739 = vmatpush.msra.mxu0 0.0
    %3740 = vmatpush.msra.mxu0 0.0
    %3741 = vmatpush.msra.mxu0 0.0
    %3742 = vmatpush.msra.mxu0 0.0
    %3743 = vmatpush.msra.mxu0 0.0
    %3744 = vmatpush.msra.mxu0 0.0
    %3745 = vmatpush.msra.mxu0 0.0
    %3746 = vmatpush.msra.mxu0 0.0
    %3747 = vmatpush.msra.mxu0 0.0
    %3748 = vmatpush.msra.mxu0 0.0
    %3749 = vmatpush.msra.mxu0 0.0
    %3750 = vmatpush.msra.mxu0 0.0
    %3751 = vmatpush.msra.mxu0 %v3677
    %3752 = vmatpush.msra.mxu0 %v3659
    %3753 = vmatpush.msra.mxu0 %v3655
    %3754 = vmatpush.msra.mxu0 %v3651
    %3755 = vmatmul.f32.gmra.mxu0 %v3665
    %v3756 = vpop.f32.mrf.mxu0
    %v3757 = vadd.f32 0.0, %v3756
    %3758 = vdwg.mxu0
    %v3759 = vadd.f32 %v1562, %v3697
    %v3760 = vadd.f32 %v1582, %v3717
    %v3761 = vadd.f32 %v1602, %v3737
    %v3762 = vadd.f32 %v1622, %v3757
    %v3763 = vld [vmem:[#allocation6] sm:$0xff]
    %v3764 = vld [vmem:[#allocation6 + $0x8] sm:$0xff]
    %v3765 = vld [vmem:[#allocation6 + $0x10] sm:$0xff]
    %v3766 = vld [vmem:[#allocation6 + $0x18] sm:$0xff]
    %v3767 = vld [vmem:[#allocation6 + $0x20] sm:$0xff]
    %v3768 = vld [vmem:[#allocation6 + $0x28] sm:$0xff]
    %v3769 = vld [vmem:[#allocation6 + $0x30] sm:$0xff]
    %v3770 = vld [vmem:[#allocation6 + $0x38] sm:$0xff]
    %v3771 = vld [vmem:[#allocation6 + $0x40] sm:$0xff]
    %v3772 = vld [vmem:[#allocation6 + $0x48] sm:$0xff]
    %v3773 = vld [vmem:[#allocation6 + $0x50] sm:$0xff]
    %v3774 = vld [vmem:[#allocation6 + $0x58] sm:$0xff]
    %v3775 = vld [vmem:[#allocation6 + $0x60] sm:$0xff]
    %v3776 = vld [vmem:[#allocation6 + $0x68] sm:$0xff]
    %v3777 = vld [vmem:[#allocation6 + $0x70] sm:$0xff]
    %v3778 = vld [vmem:[#allocation6 + $0x78] sm:$0xff]
    %v3779 = vld [vmem:[#allocation6 + $0x80] sm:$0xff]
    %v3780 = vld [vmem:[#allocation6 + $0x88] sm:$0xff]
    %v3781 = vld [vmem:[#allocation6 + $0x90] sm:$0xff]
    %v3782 = vld [vmem:[#allocation6 + $0x98] sm:$0xff]
    %v3783 = vld [vmem:[#allocation6 + $0xa0] sm:$0xff]
    %v3784 = vld [vmem:[#allocation6 + $0xa8] sm:$0xff]
    %v3785 = vld [vmem:[#allocation6 + $0xb0] sm:$0xff]
    %v3786 = vld [vmem:[#allocation6 + $0xb8] sm:$0xff]
    %v3787 = vld [vmem:[#allocation6 + $0xc0] sm:$0xff]
    %v3788 = vld [vmem:[#allocation6 + $0xc8] sm:$0xff]
    %v3789 = vld [vmem:[#allocation6 + $0xd0] sm:$0xff]
    %v3790 = vld [vmem:[#allocation6 + $0xd8] sm:$0xff]
    %v3791 = vld [vmem:[#allocation6 + $0xe0] sm:$0xff]
    %v3792 = vld [vmem:[#allocation6 + $0xe8] sm:$0xff]
    %v3793 = vld [vmem:[#allocation6 + $0xf0] sm:$0xff]
    %v3794 = vld [vmem:[#allocation6 + $0xf8] sm:$0xff]
    %v3795 = vld [vmem:[#allocation6 + $0x100] sm:$0xff]
    %v3796 = vld [vmem:[#allocation6 + $0x108] sm:$0xff]
    %v3797 = vld [vmem:[#allocation6 + $0x110] sm:$0xff]
    %v3798 = vld [vmem:[#allocation6 + $0x118] sm:$0xff]
    %v3799 = vld [vmem:[#allocation6 + $0x120] sm:$0xff]
    %v3800 = vld [vmem:[#allocation6 + $0x128] sm:$0xff]
    %v3801 = vld [vmem:[#allocation6 + $0x130] sm:$0xff]
    %v3802 = vld [vmem:[#allocation6 + $0x138] sm:$0xff]
    %v3803 = vld [vmem:[#allocation6 + $0x140] sm:$0xff]
    %v3804 = vld [vmem:[#allocation6 + $0x148] sm:$0xff]
    %v3805 = vld [vmem:[#allocation6 + $0x150] sm:$0xff]
    %v3806 = vld [vmem:[#allocation6 + $0x158] sm:$0xff]
    %v3807 = vld [vmem:[#allocation6 + $0x160] sm:$0xff]
    %v3808 = vld [vmem:[#allocation6 + $0x168] sm:$0xff]
    %v3809 = vld [vmem:[#allocation6 + $0x170] sm:$0xff]
    %v3810 = vld [vmem:[#allocation6 + $0x178] sm:$0xff]
    %v3811 = vld [vmem:[#allocation6 + $0x180] sm:$0xff]
    %v3812 = vld [vmem:[#allocation6 + $0x188] sm:$0xff]
    %v3813 = vld [vmem:[#allocation6 + $0x190] sm:$0xff]
    %v3814 = vld [vmem:[#allocation6 + $0x198] sm:$0xff]
    %v3815 = vld [vmem:[#allocation6 + $0x1a0] sm:$0xff]
    %v3816 = vld [vmem:[#allocation6 + $0x1a8] sm:$0xff]
    %v3817 = vld [vmem:[#allocation6 + $0x1b0] sm:$0xff]
    %v3818 = vld [vmem:[#allocation6 + $0x1b8] sm:$0xff]
    %v3819 = vld [vmem:[#allocation6 + $0x1c0] sm:$0xff]
    %v3820 = vld [vmem:[#allocation6 + $0x1c8] sm:$0xff]
    %v3821 = vld [vmem:[#allocation6 + $0x1d0] sm:$0xff]
    %v3822 = vld [vmem:[#allocation6 + $0x1d8] sm:$0xff]
    %v3823 = vld [vmem:[#allocation6 + $0x1e0] sm:$0xff]
    %v3824 = vld [vmem:[#allocation6 + $0x1e8] sm:$0xff]
    %v3825 = vld [vmem:[#allocation6 + $0x1f0] sm:$0xff]
    %v3826 = vld [vmem:[#allocation6 + $0x1f8] sm:$0xff]
    %3827 = vmatpush.msra.mxu0 %v3823
    %3828 = vmatpush.msra.mxu0 %v3819
    %3829 = vmatpush.msra.mxu0 %v3815
    %3830 = vmatpush.msra.mxu0 %v3811
    %3831 = vmatpush.msra.mxu0 %v3807
    %3832 = vmatpush.msra.mxu0 %v3803
    %3833 = vmatpush.msra.mxu0 %v3799
    %3834 = vmatpush.msra.mxu0 %v3795
    %3835 = vmatpush.msra.mxu0 %v3791
    %3836 = vmatpush.msra.mxu0 %v3787
    %3837 = vmatpush.msra.mxu0 %v3783
    %3838 = vmatpush.msra.mxu0 %v3779
    %3839 = vmatpush.msra.mxu0 %v3775
    %3840 = vmatpush.msra.mxu0 %v3771
    %3841 = vmatpush.msra.mxu0 %v3767
    %3842 = vmatpush.msra.mxu0 %v3763
    %3843 = vmatmul.f32.gmra.mxu0 %v3523
    %v3844 = vpop.f32.mrf.mxu0
    %v3845 = vadd.f32 0.0, %v3844
    %3846 = vdwg.mxu0
    %3847 = vmatpush.msra.mxu0 %v3824
    %3848 = vmatpush.msra.mxu0 %v3820
    %3849 = vmatpush.msra.mxu0 %v3816
    %3850 = vmatpush.msra.mxu0 %v3812
    %3851 = vmatpush.msra.mxu0 %v3808
    %3852 = vmatpush.msra.mxu0 %v3804
    %3853 = vmatpush.msra.mxu0 %v3800
    %3854 = vmatpush.msra.mxu0 %v3796
    %3855 = vmatpush.msra.mxu0 %v3792
    %3856 = vmatpush.msra.mxu0 %v3788
    %3857 = vmatpush.msra.mxu0 %v3784
    %3858 = vmatpush.msra.mxu0 %v3780
    %3859 = vmatpush.msra.mxu0 %v3776
    %3860 = vmatpush.msra.mxu0 %v3772
    %3861 = vmatpush.msra.mxu0 %v3768
    %3862 = vmatpush.msra.mxu0 %v3764
    %3863 = vmatmul.f32.gmra.mxu0 %v3523
    %v3864 = vpop.f32.mrf.mxu0
    %v3865 = vadd.f32 0.0, %v3864
    %3866 = vdwg.mxu0
    %3867 = vmatpush.msra.mxu0 %v3825
    %3868 = vmatpush.msra.mxu0 %v3821
    %3869 = vmatpush.msra.mxu0 %v3817
    %3870 = vmatpush.msra.mxu0 %v3813
    %3871 = vmatpush.msra.mxu0 %v3809
    %3872 = vmatpush.msra.mxu0 %v3805
    %3873 = vmatpush.msra.mxu0 %v3801
    %3874 = vmatpush.msra.mxu0 %v3797
    %3875 = vmatpush.msra.mxu0 %v3793
    %3876 = vmatpush.msra.mxu0 %v3789
    %3877 = vmatpush.msra.mxu0 %v3785
    %3878 = vmatpush.msra.mxu0 %v3781
    %3879 = vmatpush.msra.mxu0 %v3777
    %3880 = vmatpush.msra.mxu0 %v3773
    %3881 = vmatpush.msra.mxu0 %v3769
    %3882 = vmatpush.msra.mxu0 %v3765
    %3883 = vmatmul.f32.gmra.mxu0 %v3523
    %v3884 = vpop.f32.mrf.mxu0
    %v3885 = vadd.f32 0.0, %v3884
    %3886 = vdwg.mxu0
    %3887 = vmatpush.msra.mxu0 %v3826
    %3888 = vmatpush.msra.mxu0 %v3822
    %3889 = vmatpush.msra.mxu0 %v3818
    %3890 = vmatpush.msra.mxu0 %v3814
    %3891 = vmatpush.msra.mxu0 %v3810
    %3892 = vmatpush.msra.mxu0 %v3806
    %3893 = vmatpush.msra.mxu0 %v3802
    %3894 = vmatpush.msra.mxu0 %v3798
    %3895 = vmatpush.msra.mxu0 %v3794
    %3896 = vmatpush.msra.mxu0 %v3790
    %3897 = vmatpush.msra.mxu0 %v3786
    %3898 = vmatpush.msra.mxu0 %v3782
    %3899 = vmatpush.msra.mxu0 %v3778
    %3900 = vmatpush.msra.mxu0 %v3774
    %3901 = vmatpush.msra.mxu0 %v3770
    %3902 = vmatpush.msra.mxu0 %v3766
    %3903 = vmatmul.f32.gmra.mxu0 %v3523
    %v3904 = vpop.f32.mrf.mxu0
    %v3905 = vadd.f32 0.0, %v3904
    %3906 = vdwg.mxu0
    %v3907 = vadd.f32 %v3759, %v3845
    %v3908 = vadd.f32 %v3760, %v3865
    %v3909 = vadd.f32 %v3761, %v3885
    %v3910 = vadd.f32 %v3762, %v3905
    %v3911 = vmul.f32 %v3907, 0.5
    %v3912 = vtanh.pop %v3911
    %v3913 = vadd.f32 %v3912, 1.0
    %v3914 = vmul.f32 %v3913, 0.5
    %v3915 = vmul.f32 %v3908, 0.5
    %v3916 = vtanh.pop %v3915
    %v3917 = vadd.f32 %v3916, 1.0
    %v3918 = vmul.f32 %v3917, 0.5
    %v3919 = vtanh.pop %v3909
    %v3920 = vmul.f32 %v3910, 0.5
    %v3921 = vtanh.pop %v3920
    %v3922 = vadd.f32 %v3921, 1.0
    %v3923 = vmul.f32 %v3922, 0.5
    %v3924 = vmul.f32 %v3918, %v3521
    %v3925 = vmul.f32 %v3914, %v3919
    %v3926 = vadd.f32 %v3924, %v3925
    %v3927 = vtanh.pop %v3926
    %v3928 = vmul.f32 %v3923, %v3927
    %v3929 = vld [vmem:[#allocation7] sm:$0xff]
    %v3930 = vld [vmem:[#allocation7 + $0x8] sm:$0xff]
    %v3931 = vld [vmem:[#allocation7 + $0x10] sm:$0xff]
    %v3932 = vld [vmem:[#allocation7 + $0x18] sm:$0xff]
    %v3933 = vld [vmem:[#allocation7 + $0x20] sm:$0xff]
    %v3934 = vld [vmem:[#allocation7 + $0x28] sm:$0xff]
    %v3935 = vld [vmem:[#allocation7 + $0x30] sm:$0xff]
    %v3936 = vld [vmem:[#allocation7 + $0x38] sm:$0xff]
    %v3937 = vld [vmem:[#allocation7 + $0x40] sm:$0xff]
    %v3938 = vld [vmem:[#allocation7 + $0x48] sm:$0xff]
    %v3939 = vld [vmem:[#allocation7 + $0x50] sm:$0xff]
    %v3940 = vld [vmem:[#allocation7 + $0x58] sm:$0xff]
    %v3941 = vld [vmem:[#allocation7 + $0x60] sm:$0xff]
    %v3942 = vld [vmem:[#allocation7 + $0x68] sm:$0xff]
    %v3943 = vld [vmem:[#allocation7 + $0x70] sm:$0xff]
    %v3944 = vld [vmem:[#allocation7 + $0x78] sm:$0xff]
    %v3945 = vld [vmem:[#allocation9] sm:$0x1]
    %v3947 = vperm.slane %v3945, 0
    %3949 = vmatpush.msra.mxu0 %v3944
    %3950 = vmatpush.msra.mxu0 %v3943
    %3951 = vmatpush.msra.mxu0 %v3942
    %3952 = vmatpush.msra.mxu0 %v3941
    %3953 = vmatpush.msra.mxu0 %v3940
    %3954 = vmatpush.msra.mxu0 %v3939
    %3955 = vmatpush.msra.mxu0 %v3938
    %3956 = vmatpush.msra.mxu0 %v3937
    %3957 = vmatpush.msra.mxu0 %v3936
    %3958 = vmatpush.msra.mxu0 %v3935
    %3959 = vmatpush.msra.mxu0 %v3934
    %3960 = vmatpush.msra.mxu0 %v3933
    %3961 = vmatpush.msra.mxu0 %v3932
    %3962 = vmatpush.msra.mxu0 %v3931
    %3963 = vmatpush.msra.mxu0 %v3930
    %3964 = vmatpush.msra.mxu0 %v3929
    %3965 = vmatmul.f32.gmra.mxu0 %v3928
    %v3966 = vpop.f32.mrf.mxu0
    %v3967 = vadd.f32 %v3947, %v3966
    %3968 = vdwg.mxu0
    %v3969 = vtanh.pop %v3967
    %v3970 = vld [vmem:[#allocation10] sm:$0xff]
    %v3971 = vld [vmem:[#allocation10 + $0x8] sm:$0xff]
    %v3972 = vld [vmem:[#allocation10 + $0x10] sm:$0xff]
    %v3973 = vld [vmem:[#allocation10 + $0x18] sm:$0xff]
    %v3974 = vld [vmem:[#allocation10 + $0x20] sm:$0xff]
    %v3975 = vld [vmem:[#allocation10 + $0x28] sm:$0xff]
    %v3976 = vld [vmem:[#allocation10 + $0x30] sm:$0xff]
    %v3977 = vld [vmem:[#allocation10 + $0x38] sm:$0xff]
    %v3978 = vld [vmem:[#allocation10 + $0x40] sm:$0xff]
    %v3979 = vld [vmem:[#allocation10 + $0x48] sm:$0xff]
    %v3980 = vld [vmem:[#allocation10 + $0x50] sm:$0xff]
    %v3981 = vld [vmem:[#allocation10 + $0x58] sm:$0xff]
    %v3982 = vld [vmem:[#allocation10 + $0x60] sm:$0xff]
    %v3983 = vld [vmem:[#allocation10 + $0x68] sm:$0xff]
    %v3984 = vld [vmem:[#allocation10 + $0x70] sm:$0xff]
    %v3985 = vld [vmem:[#allocation10 + $0x78] sm:$0xff]
    %v3986 = vld [vmem:[#allocation12] sm:$0x1]
    %v3988 = vperm.slane %v3986, 0
    %3990 = vmatpush.msra.mxu0 %v3985
    %3991 = vmatpush.msra.mxu0 %v3984
    %3992 = vmatpush.msra.mxu0 %v3983
    %3993 = vmatpush.msra.mxu0 %v3982
    %3994 = vmatpush.msra.mxu0 %v3981
    %3995 = vmatpush.msra.mxu0 %v3980
    %3996 = vmatpush.msra.mxu0 %v3979
    %3997 = vmatpush.msra.mxu0 %v3978
    %3998 = vmatpush.msra.mxu0 %v3977
    %3999 = vmatpush.msra.mxu0 %v3976
    %4000 = vmatpush.msra.mxu0 %v3975
    %4001 = vmatpush.msra.mxu0 %v3974
    %4002 = vmatpush.msra.mxu0 %v3973
    %4003 = vmatpush.msra.mxu0 %v3972
    %4004 = vmatpush.msra.mxu0 %v3971
    %4005 = vmatpush.msra.mxu0 %v3970
    %4006 = vmatmul.f32.gmra.mxu0 %v3969
    %v4007 = vpop.f32.mrf.mxu0
    %v4008 = vadd.f32 %v3988, %v4007
    %4009 = vdwg.mxu0
    %v4010 = vtanh.pop %v4008
    %v4011 = vld [vmem:[%s16] sm:$0xff]
    %v4012 = vld [vmem:[%s16 + $0x8] sm:$0xff]
    %v4013 = vld [vmem:[%s16 + $0x10] sm:$0xff]
    %v4014 = vld [vmem:[%s16 + $0x18] sm:$0xff]
    %v4015 = vld [vmem:[%s16 + $0x20] sm:$0xff]
    %v4016 = vld [vmem:[%s16 + $0x28] sm:$0xff]
    %v4017 = vld [vmem:[%s16 + $0x30] sm:$0xff]
    %v4018 = vld [vmem:[%s16 + $0x38] sm:$0xff]
    %v4019 = vld [vmem:[%s16 + $0x40] sm:$0xff]
    %v4020 = vld [vmem:[%s16 + $0x48] sm:$0xff]
    %v4021 = vld [vmem:[%s16 + $0x50] sm:$0xff]
    %v4022 = vld [vmem:[%s16 + $0x58] sm:$0xff]
    %v4023 = vld [vmem:[%s16 + $0x60] sm:$0xff]
    %v4024 = vld [vmem:[%s16 + $0x68] sm:$0xff]
    %v4025 = vld [vmem:[%s16 + $0x70] sm:$0xff]
    %v4026 = vld [vmem:[%s16 + $0x78] sm:$0xff]
    %v4027 = vld [vmem:[%s17] sm:$0x1]
    %v4029 = vperm.slane %v4027, 0
    %4031 = vmatpush.msra.mxu0 %v4026
    %4032 = vmatpush.msra.mxu0 %v4025
    %4033 = vmatpush.msra.mxu0 %v4024
    %4034 = vmatpush.msra.mxu0 %v4023
    %4035 = vmatpush.msra.mxu0 %v4022
    %4036 = vmatpush.msra.mxu0 %v4021
    %4037 = vmatpush.msra.mxu0 %v4020
    %4038 = vmatpush.msra.mxu0 %v4019
    %4039 = vmatpush.msra.mxu0 %v4018
    %4040 = vmatpush.msra.mxu0 %v4017
    %4041 = vmatpush.msra.mxu0 %v4016
    %4042 = vmatpush.msra.mxu0 %v4015
    %4043 = vmatpush.msra.mxu0 %v4014
    %4044 = vmatpush.msra.mxu0 %v4013
    %4045 = vmatpush.msra.mxu0 %v4012
    %4046 = vmatpush.msra.mxu0 %v4011
    %4047 = vmatmul.f32.gmra.mxu0 %v4010
    %v4048 = vpop.f32.mrf.mxu0
    %v4049 = vadd.f32 %v4029, %v4048
    %4050 = vdwg.mxu0
    %s4051 = scalar_lea.vmem %s22, 40
    %4052 = vst.msk [vmem:[%s4051] sm:$0xff] %vm231, %v4049
    %v4053 = vld [vmem:[#allocation4] sm:$0xff]
    %v4054 = vld [vmem:[#allocation4 + $0x8] sm:$0xff]
    %v4055 = vld [vmem:[#allocation4 + $0x10] sm:$0xff]
    %v4056 = vld [vmem:[#allocation4 + $0x18] sm:$0xff]
    %v4057 = vld [vmem:[#allocation4 + $0x20] sm:$0xff]
    %v4058 = vld [vmem:[#allocation4 + $0x28] sm:$0xff]
    %v4059 = vld [vmem:[#allocation4 + $0x30] sm:$0xff]
    %v4060 = vld [vmem:[#allocation4 + $0x38] sm:$0xff]
    %v4061 = vld [vmem:[#allocation4 + $0x40] sm:$0xff]
    %v4062 = vld [vmem:[#allocation4 + $0x48] sm:$0xff]
    %v4063 = vld [vmem:[#allocation4 + $0x50] sm:$0xff]
    %v4064 = vld [vmem:[#allocation4 + $0x58] sm:$0xff]
    %v4065 = vld [vmem:[#allocation4 + $0x60] sm:$0x1]
    %v4066 = vld [vmem:[#allocation4 + $0x68] sm:$0x1]
    %v4067 = vld [vmem:[#allocation4 + $0x70] sm:$0x1]
    %v4068 = vld [vmem:[#allocation4 + $0x78] sm:$0x1]
    %v4070 = vsel %vm231, %v4049, 0
    %v4073 = vsel %vm256, %v4065, 0
    %v4076 = vsel %vm256, %v4066, 0
    %v4079 = vsel %vm256, %v4067, 0
    %v4082 = vsel %vm256, %v4068, 0
    %4084 = vmatpush.msra.mxu0 0.0
    %4085 = vmatpush.msra.mxu0 0.0
    %4086 = vmatpush.msra.mxu0 0.0
    %4087 = vmatpush.msra.mxu0 0.0
    %4088 = vmatpush.msra.mxu0 0.0
    %4089 = vmatpush.msra.mxu0 0.0
    %4090 = vmatpush.msra.mxu0 0.0
    %4091 = vmatpush.msra.mxu0 0.0
    %4092 = vmatpush.msra.mxu0 0.0
    %4093 = vmatpush.msra.mxu0 0.0
    %4094 = vmatpush.msra.mxu0 0.0
    %4095 = vmatpush.msra.mxu0 0.0
    %4096 = vmatpush.msra.mxu0 %v4073
    %4097 = vmatpush.msra.mxu0 %v4061
    %4098 = vmatpush.msra.mxu0 %v4057
    %4099 = vmatpush.msra.mxu0 %v4053
    %4100 = vmatmul.f32.gmra.mxu0 %v4070
    %v4101 = vpop.f32.mrf.mxu0
    %v4102 = vadd.f32 0.0, %v4101
    %4103 = vdwg.mxu0
    %4104 = vmatpush.msra.mxu0 0.0
    %4105 = vmatpush.msra.mxu0 0.0
    %4106 = vmatpush.msra.mxu0 0.0
    %4107 = vmatpush.msra.mxu0 0.0
    %4108 = vmatpush.msra.mxu0 0.0
    %4109 = vmatpush.msra.mxu0 0.0
    %4110 = vmatpush.msra.mxu0 0.0
    %4111 = vmatpush.msra.mxu0 0.0
    %4112 = vmatpush.msra.mxu0 0.0
    %4113 = vmatpush.msra.mxu0 0.0
    %4114 = vmatpush.msra.mxu0 0.0
    %4115 = vmatpush.msra.mxu0 0.0
    %4116 = vmatpush.msra.mxu0 %v4076
    %4117 = vmatpush.msra.mxu0 %v4062
    %4118 = vmatpush.msra.mxu0 %v4058
    %4119 = vmatpush.msra.mxu0 %v4054
    %4120 = vmatmul.f32.gmra.mxu0 %v4070
    %v4121 = vpop.f32.mrf.mxu0
    %v4122 = vadd.f32 0.0, %v4121
    %4123 = vdwg.mxu0
    %4124 = vmatpush.msra.mxu0 0.0
    %4125 = vmatpush.msra.mxu0 0.0
    %4126 = vmatpush.msra.mxu0 0.0
    %4127 = vmatpush.msra.mxu0 0.0
    %4128 = vmatpush.msra.mxu0 0.0
    %4129 = vmatpush.msra.mxu0 0.0
    %4130 = vmatpush.msra.mxu0 0.0
    %4131 = vmatpush.msra.mxu0 0.0
    %4132 = vmatpush.msra.mxu0 0.0
    %4133 = vmatpush.msra.mxu0 0.0
    %4134 = vmatpush.msra.mxu0 0.0
    %4135 = vmatpush.msra.mxu0 0.0
    %4136 = vmatpush.msra.mxu0 %v4079
    %4137 = vmatpush.msra.mxu0 %v4063
    %4138 = vmatpush.msra.mxu0 %v4059
    %4139 = vmatpush.msra.mxu0 %v4055
    %4140 = vmatmul.f32.gmra.mxu0 %v4070
    %v4141 = vpop.f32.mrf.mxu0
    %v4142 = vadd.f32 0.0, %v4141
    %4143 = vdwg.mxu0
    %4144 = vmatpush.msra.mxu0 0.0
    %4145 = vmatpush.msra.mxu0 0.0
    %4146 = vmatpush.msra.mxu0 0.0
    %4147 = vmatpush.msra.mxu0 0.0
    %4148 = vmatpush.msra.mxu0 0.0
    %4149 = vmatpush.msra.mxu0 0.0
    %4150 = vmatpush.msra.mxu0 0.0
    %4151 = vmatpush.msra.mxu0 0.0
    %4152 = vmatpush.msra.mxu0 0.0
    %4153 = vmatpush.msra.mxu0 0.0
    %4154 = vmatpush.msra.mxu0 0.0
    %4155 = vmatpush.msra.mxu0 0.0
    %4156 = vmatpush.msra.mxu0 %v4082
    %4157 = vmatpush.msra.mxu0 %v4064
    %4158 = vmatpush.msra.mxu0 %v4060
    %4159 = vmatpush.msra.mxu0 %v4056
    %4160 = vmatmul.f32.gmra.mxu0 %v4070
    %v4161 = vpop.f32.mrf.mxu0
    %v4162 = vadd.f32 0.0, %v4161
    %4163 = vdwg.mxu0
    %v4164 = vadd.f32 %v1562, %v4102
    %v4165 = vadd.f32 %v1582, %v4122
    %v4166 = vadd.f32 %v1602, %v4142
    %v4167 = vadd.f32 %v1622, %v4162
    %v4168 = vld [vmem:[#allocation6] sm:$0xff]
    %v4169 = vld [vmem:[#allocation6 + $0x8] sm:$0xff]
    %v4170 = vld [vmem:[#allocation6 + $0x10] sm:$0xff]
    %v4171 = vld [vmem:[#allocation6 + $0x18] sm:$0xff]
    %v4172 = vld [vmem:[#allocation6 + $0x20] sm:$0xff]
    %v4173 = vld [vmem:[#allocation6 + $0x28] sm:$0xff]
    %v4174 = vld [vmem:[#allocation6 + $0x30] sm:$0xff]
    %v4175 = vld [vmem:[#allocation6 + $0x38] sm:$0xff]
    %v4176 = vld [vmem:[#allocation6 + $0x40] sm:$0xff]
    %v4177 = vld [vmem:[#allocation6 + $0x48] sm:$0xff]
    %v4178 = vld [vmem:[#allocation6 + $0x50] sm:$0xff]
    %v4179 = vld [vmem:[#allocation6 + $0x58] sm:$0xff]
    %v4180 = vld [vmem:[#allocation6 + $0x60] sm:$0xff]
    %v4181 = vld [vmem:[#allocation6 + $0x68] sm:$0xff]
    %v4182 = vld [vmem:[#allocation6 + $0x70] sm:$0xff]
    %v4183 = vld [vmem:[#allocation6 + $0x78] sm:$0xff]
    %v4184 = vld [vmem:[#allocation6 + $0x80] sm:$0xff]
    %v4185 = vld [vmem:[#allocation6 + $0x88] sm:$0xff]
    %v4186 = vld [vmem:[#allocation6 + $0x90] sm:$0xff]
    %v4187 = vld [vmem:[#allocation6 + $0x98] sm:$0xff]
    %v4188 = vld [vmem:[#allocation6 + $0xa0] sm:$0xff]
    %v4189 = vld [vmem:[#allocation6 + $0xa8] sm:$0xff]
    %v4190 = vld [vmem:[#allocation6 + $0xb0] sm:$0xff]
    %v4191 = vld [vmem:[#allocation6 + $0xb8] sm:$0xff]
    %v4192 = vld [vmem:[#allocation6 + $0xc0] sm:$0xff]
    %v4193 = vld [vmem:[#allocation6 + $0xc8] sm:$0xff]
    %v4194 = vld [vmem:[#allocation6 + $0xd0] sm:$0xff]
    %v4195 = vld [vmem:[#allocation6 + $0xd8] sm:$0xff]
    %v4196 = vld [vmem:[#allocation6 + $0xe0] sm:$0xff]
    %v4197 = vld [vmem:[#allocation6 + $0xe8] sm:$0xff]
    %v4198 = vld [vmem:[#allocation6 + $0xf0] sm:$0xff]
    %v4199 = vld [vmem:[#allocation6 + $0xf8] sm:$0xff]
    %v4200 = vld [vmem:[#allocation6 + $0x100] sm:$0xff]
    %v4201 = vld [vmem:[#allocation6 + $0x108] sm:$0xff]
    %v4202 = vld [vmem:[#allocation6 + $0x110] sm:$0xff]
    %v4203 = vld [vmem:[#allocation6 + $0x118] sm:$0xff]
    %v4204 = vld [vmem:[#allocation6 + $0x120] sm:$0xff]
    %v4205 = vld [vmem:[#allocation6 + $0x128] sm:$0xff]
    %v4206 = vld [vmem:[#allocation6 + $0x130] sm:$0xff]
    %v4207 = vld [vmem:[#allocation6 + $0x138] sm:$0xff]
    %v4208 = vld [vmem:[#allocation6 + $0x140] sm:$0xff]
    %v4209 = vld [vmem:[#allocation6 + $0x148] sm:$0xff]
    %v4210 = vld [vmem:[#allocation6 + $0x150] sm:$0xff]
    %v4211 = vld [vmem:[#allocation6 + $0x158] sm:$0xff]
    %v4212 = vld [vmem:[#allocation6 + $0x160] sm:$0xff]
    %v4213 = vld [vmem:[#allocation6 + $0x168] sm:$0xff]
    %v4214 = vld [vmem:[#allocation6 + $0x170] sm:$0xff]
    %v4215 = vld [vmem:[#allocation6 + $0x178] sm:$0xff]
    %v4216 = vld [vmem:[#allocation6 + $0x180] sm:$0xff]
    %v4217 = vld [vmem:[#allocation6 + $0x188] sm:$0xff]
    %v4218 = vld [vmem:[#allocation6 + $0x190] sm:$0xff]
    %v4219 = vld [vmem:[#allocation6 + $0x198] sm:$0xff]
    %v4220 = vld [vmem:[#allocation6 + $0x1a0] sm:$0xff]
    %v4221 = vld [vmem:[#allocation6 + $0x1a8] sm:$0xff]
    %v4222 = vld [vmem:[#allocation6 + $0x1b0] sm:$0xff]
    %v4223 = vld [vmem:[#allocation6 + $0x1b8] sm:$0xff]
    %v4224 = vld [vmem:[#allocation6 + $0x1c0] sm:$0xff]
    %v4225 = vld [vmem:[#allocation6 + $0x1c8] sm:$0xff]
    %v4226 = vld [vmem:[#allocation6 + $0x1d0] sm:$0xff]
    %v4227 = vld [vmem:[#allocation6 + $0x1d8] sm:$0xff]
    %v4228 = vld [vmem:[#allocation6 + $0x1e0] sm:$0xff]
    %v4229 = vld [vmem:[#allocation6 + $0x1e8] sm:$0xff]
    %v4230 = vld [vmem:[#allocation6 + $0x1f0] sm:$0xff]
    %v4231 = vld [vmem:[#allocation6 + $0x1f8] sm:$0xff]
    %4232 = vmatpush.msra.mxu0 %v4228
    %4233 = vmatpush.msra.mxu0 %v4224
    %4234 = vmatpush.msra.mxu0 %v4220
    %4235 = vmatpush.msra.mxu0 %v4216
    %4236 = vmatpush.msra.mxu0 %v4212
    %4237 = vmatpush.msra.mxu0 %v4208
    %4238 = vmatpush.msra.mxu0 %v4204
    %4239 = vmatpush.msra.mxu0 %v4200
    %4240 = vmatpush.msra.mxu0 %v4196
    %4241 = vmatpush.msra.mxu0 %v4192
    %4242 = vmatpush.msra.mxu0 %v4188
    %4243 = vmatpush.msra.mxu0 %v4184
    %4244 = vmatpush.msra.mxu0 %v4180
    %4245 = vmatpush.msra.mxu0 %v4176
    %4246 = vmatpush.msra.mxu0 %v4172
    %4247 = vmatpush.msra.mxu0 %v4168
    %4248 = vmatmul.f32.gmra.mxu0 %v3928
    %v4249 = vpop.f32.mrf.mxu0
    %v4250 = vadd.f32 0.0, %v4249
    %4251 = vdwg.mxu0
    %4252 = vmatpush.msra.mxu0 %v4229
    %4253 = vmatpush.msra.mxu0 %v4225
    %4254 = vmatpush.msra.mxu0 %v4221
    %4255 = vmatpush.msra.mxu0 %v4217
    %4256 = vmatpush.msra.mxu0 %v4213
    %4257 = vmatpush.msra.mxu0 %v4209
    %4258 = vmatpush.msra.mxu0 %v4205
    %4259 = vmatpush.msra.mxu0 %v4201
    %4260 = vmatpush.msra.mxu0 %v4197
    %4261 = vmatpush.msra.mxu0 %v4193
    %4262 = vmatpush.msra.mxu0 %v4189
    %4263 = vmatpush.msra.mxu0 %v4185
    %4264 = vmatpush.msra.mxu0 %v4181
    %4265 = vmatpush.msra.mxu0 %v4177
    %4266 = vmatpush.msra.mxu0 %v4173
    %4267 = vmatpush.msra.mxu0 %v4169
    %4268 = vmatmul.f32.gmra.mxu0 %v3928
    %v4269 = vpop.f32.mrf.mxu0
    %v4270 = vadd.f32 0.0, %v4269
    %4271 = vdwg.mxu0
    %4272 = vmatpush.msra.mxu0 %v4230
    %4273 = vmatpush.msra.mxu0 %v4226
    %4274 = vmatpush.msra.mxu0 %v4222
    %4275 = vmatpush.msra.mxu0 %v4218
    %4276 = vmatpush.msra.mxu0 %v4214
    %4277 = vmatpush.msra.mxu0 %v4210
    %4278 = vmatpush.msra.mxu0 %v4206
    %4279 = vmatpush.msra.mxu0 %v4202
    %4280 = vmatpush.msra.mxu0 %v4198
    %4281 = vmatpush.msra.mxu0 %v4194
    %4282 = vmatpush.msra.mxu0 %v4190
    %4283 = vmatpush.msra.mxu0 %v4186
    %4284 = vmatpush.msra.mxu0 %v4182
    %4285 = vmatpush.msra.mxu0 %v4178
    %4286 = vmatpush.msra.mxu0 %v4174
    %4287 = vmatpush.msra.mxu0 %v4170
    %4288 = vmatmul.f32.gmra.mxu0 %v3928
    %v4289 = vpop.f32.mrf.mxu0
    %v4290 = vadd.f32 0.0, %v4289
    %4291 = vdwg.mxu0
    %4292 = vmatpush.msra.mxu0 %v4231
    %4293 = vmatpush.msra.mxu0 %v4227
    %4294 = vmatpush.msra.mxu0 %v4223
    %4295 = vmatpush.msra.mxu0 %v4219
    %4296 = vmatpush.msra.mxu0 %v4215
    %4297 = vmatpush.msra.mxu0 %v4211
    %4298 = vmatpush.msra.mxu0 %v4207
    %4299 = vmatpush.msra.mxu0 %v4203
    %4300 = vmatpush.msra.mxu0 %v4199
    %4301 = vmatpush.msra.mxu0 %v4195
    %4302 = vmatpush.msra.mxu0 %v4191
    %4303 = vmatpush.msra.mxu0 %v4187
    %4304 = vmatpush.msra.mxu0 %v4183
    %4305 = vmatpush.msra.mxu0 %v4179
    %4306 = vmatpush.msra.mxu0 %v4175
    %4307 = vmatpush.msra.mxu0 %v4171
    %4308 = vmatmul.f32.gmra.mxu0 %v3928
    %v4309 = vpop.f32.mrf.mxu0
    %v4310 = vadd.f32 0.0, %v4309
    %4311 = vdwg.mxu0
    %v4312 = vadd.f32 %v4164, %v4250
    %v4313 = vadd.f32 %v4165, %v4270
    %v4314 = vadd.f32 %v4166, %v4290
    %v4315 = vadd.f32 %v4167, %v4310
    %v4316 = vmul.f32 %v4312, 0.5
    %v4317 = vtanh.pop %v4316
    %v4318 = vadd.f32 %v4317, 1.0
    %v4319 = vmul.f32 %v4318, 0.5
    %v4320 = vmul.f32 %v4313, 0.5
    %v4321 = vtanh.pop %v4320
    %v4322 = vadd.f32 %v4321, 1.0
    %v4323 = vmul.f32 %v4322, 0.5
    %v4324 = vtanh.pop %v4314
    %v4325 = vmul.f32 %v4315, 0.5
    %v4326 = vtanh.pop %v4325
    %v4327 = vadd.f32 %v4326, 1.0
    %v4328 = vmul.f32 %v4327, 0.5
    %v4329 = vmul.f32 %v4323, %v3926
    %v4330 = vmul.f32 %v4319, %v4324
    %v4331 = vadd.f32 %v4329, %v4330
    %v4332 = vtanh.pop %v4331
    %v4333 = vmul.f32 %v4328, %v4332
    %v4334 = vld [vmem:[#allocation7] sm:$0xff]
    %v4335 = vld [vmem:[#allocation7 + $0x8] sm:$0xff]
    %v4336 = vld [vmem:[#allocation7 + $0x10] sm:$0xff]
    %v4337 = vld [vmem:[#allocation7 + $0x18] sm:$0xff]
    %v4338 = vld [vmem:[#allocation7 + $0x20] sm:$0xff]
    %v4339 = vld [vmem:[#allocation7 + $0x28] sm:$0xff]
    %v4340 = vld [vmem:[#allocation7 + $0x30] sm:$0xff]
    %v4341 = vld [vmem:[#allocation7 + $0x38] sm:$0xff]
    %v4342 = vld [vmem:[#allocation7 + $0x40] sm:$0xff]
    %v4343 = vld [vmem:[#allocation7 + $0x48] sm:$0xff]
    %v4344 = vld [vmem:[#allocation7 + $0x50] sm:$0xff]
    %v4345 = vld [vmem:[#allocation7 + $0x58] sm:$0xff]
    %v4346 = vld [vmem:[#allocation7 + $0x60] sm:$0xff]
    %v4347 = vld [vmem:[#allocation7 + $0x68] sm:$0xff]
    %v4348 = vld [vmem:[#allocation7 + $0x70] sm:$0xff]
    %v4349 = vld [vmem:[#allocation7 + $0x78] sm:$0xff]
    %v4350 = vld [vmem:[#allocation9] sm:$0x1]
    %v4352 = vperm.slane %v4350, 0
    %4354 = vmatpush.msra.mxu0 %v4349
    %4355 = vmatpush.msra.mxu0 %v4348
    %4356 = vmatpush.msra.mxu0 %v4347
    %4357 = vmatpush.msra.mxu0 %v4346
    %4358 = vmatpush.msra.mxu0 %v4345
    %4359 = vmatpush.msra.mxu0 %v4344
    %4360 = vmatpush.msra.mxu0 %v4343
    %4361 = vmatpush.msra.mxu0 %v4342
    %4362 = vmatpush.msra.mxu0 %v4341
    %4363 = vmatpush.msra.mxu0 %v4340
    %4364 = vmatpush.msra.mxu0 %v4339
    %4365 = vmatpush.msra.mxu0 %v4338
    %4366 = vmatpush.msra.mxu0 %v4337
    %4367 = vmatpush.msra.mxu0 %v4336
    %4368 = vmatpush.msra.mxu0 %v4335
    %4369 = vmatpush.msra.mxu0 %v4334
    %4370 = vmatmul.f32.gmra.mxu0 %v4333
    %v4371 = vpop.f32.mrf.mxu0
    %v4372 = vadd.f32 %v4352, %v4371
    %4373 = vdwg.mxu0
    %v4374 = vtanh.pop %v4372
    %v4375 = vld [vmem:[#allocation10] sm:$0xff]
    %v4376 = vld [vmem:[#allocation10 + $0x8] sm:$0xff]
    %v4377 = vld [vmem:[#allocation10 + $0x10] sm:$0xff]
    %v4378 = vld [vmem:[#allocation10 + $0x18] sm:$0xff]
    %v4379 = vld [vmem:[#allocation10 + $0x20] sm:$0xff]
    %v4380 = vld [vmem:[#allocation10 + $0x28] sm:$0xff]
    %v4381 = vld [vmem:[#allocation10 + $0x30] sm:$0xff]
    %v4382 = vld [vmem:[#allocation10 + $0x38] sm:$0xff]
    %v4383 = vld [vmem:[#allocation10 + $0x40] sm:$0xff]
    %v4384 = vld [vmem:[#allocation10 + $0x48] sm:$0xff]
    %v4385 = vld [vmem:[#allocation10 + $0x50] sm:$0xff]
    %v4386 = vld [vmem:[#allocation10 + $0x58] sm:$0xff]
    %v4387 = vld [vmem:[#allocation10 + $0x60] sm:$0xff]
    %v4388 = vld [vmem:[#allocation10 + $0x68] sm:$0xff]
    %v4389 = vld [vmem:[#allocation10 + $0x70] sm:$0xff]
    %v4390 = vld [vmem:[#allocation10 + $0x78] sm:$0xff]
    %v4391 = vld [vmem:[#allocation12] sm:$0x1]
    %v4393 = vperm.slane %v4391, 0
    %4395 = vmatpush.msra.mxu0 %v4390
    %4396 = vmatpush.msra.mxu0 %v4389
    %4397 = vmatpush.msra.mxu0 %v4388
    %4398 = vmatpush.msra.mxu0 %v4387
    %4399 = vmatpush.msra.mxu0 %v4386
    %4400 = vmatpush.msra.mxu0 %v4385
    %4401 = vmatpush.msra.mxu0 %v4384
    %4402 = vmatpush.msra.mxu0 %v4383
    %4403 = vmatpush.msra.mxu0 %v4382
    %4404 = vmatpush.msra.mxu0 %v4381
    %4405 = vmatpush.msra.mxu0 %v4380
    %4406 = vmatpush.msra.mxu0 %v4379
    %4407 = vmatpush.msra.mxu0 %v4378
    %4408 = vmatpush.msra.mxu0 %v4377
    %4409 = vmatpush.msra.mxu0 %v4376
    %4410 = vmatpush.msra.mxu0 %v4375
    %4411 = vmatmul.f32.gmra.mxu0 %v4374
    %v4412 = vpop.f32.mrf.mxu0
    %v4413 = vadd.f32 %v4393, %v4412
    %4414 = vdwg.mxu0
    %v4415 = vtanh.pop %v4413
    %v4416 = vld [vmem:[%s16] sm:$0xff]
    %v4417 = vld [vmem:[%s16 + $0x8] sm:$0xff]
    %v4418 = vld [vmem:[%s16 + $0x10] sm:$0xff]
    %v4419 = vld [vmem:[%s16 + $0x18] sm:$0xff]
    %v4420 = vld [vmem:[%s16 + $0x20] sm:$0xff]
    %v4421 = vld [vmem:[%s16 + $0x28] sm:$0xff]
    %v4422 = vld [vmem:[%s16 + $0x30] sm:$0xff]
    %v4423 = vld [vmem:[%s16 + $0x38] sm:$0xff]
    %v4424 = vld [vmem:[%s16 + $0x40] sm:$0xff]
    %v4425 = vld [vmem:[%s16 + $0x48] sm:$0xff]
    %v4426 = vld [vmem:[%s16 + $0x50] sm:$0xff]
    %v4427 = vld [vmem:[%s16 + $0x58] sm:$0xff]
    %v4428 = vld [vmem:[%s16 + $0x60] sm:$0xff]
    %v4429 = vld [vmem:[%s16 + $0x68] sm:$0xff]
    %v4430 = vld [vmem:[%s16 + $0x70] sm:$0xff]
    %v4431 = vld [vmem:[%s16 + $0x78] sm:$0xff]
    %v4432 = vld [vmem:[%s17] sm:$0x1]
    %v4434 = vperm.slane %v4432, 0
    %4436 = vmatpush.msra.mxu0 %v4431
    %4437 = vmatpush.msra.mxu0 %v4430
    %4438 = vmatpush.msra.mxu0 %v4429
    %4439 = vmatpush.msra.mxu0 %v4428
    %4440 = vmatpush.msra.mxu0 %v4427
    %4441 = vmatpush.msra.mxu0 %v4426
    %4442 = vmatpush.msra.mxu0 %v4425
    %4443 = vmatpush.msra.mxu0 %v4424
    %4444 = vmatpush.msra.mxu0 %v4423
    %4445 = vmatpush.msra.mxu0 %v4422
    %4446 = vmatpush.msra.mxu0 %v4421
    %4447 = vmatpush.msra.mxu0 %v4420
    %4448 = vmatpush.msra.mxu0 %v4419
    %4449 = vmatpush.msra.mxu0 %v4418
    %4450 = vmatpush.msra.mxu0 %v4417
    %4451 = vmatpush.msra.mxu0 %v4416
    %4452 = vmatmul.f32.gmra.mxu0 %v4415
    %v4453 = vpop.f32.mrf.mxu0
    %v4454 = vadd.f32 %v4434, %v4453
    %4455 = vdwg.mxu0
    %s4456 = scalar_lea.vmem %s22, 48
    %4457 = vst.msk [vmem:[%s4456] sm:$0xff] %vm231, %v4454
    %v4458 = vld [vmem:[#allocation4] sm:$0xff]
    %v4459 = vld [vmem:[#allocation4 + $0x8] sm:$0xff]
    %v4460 = vld [vmem:[#allocation4 + $0x10] sm:$0xff]
    %v4461 = vld [vmem:[#allocation4 + $0x18] sm:$0xff]
    %v4462 = vld [vmem:[#allocation4 + $0x20] sm:$0xff]
    %v4463 = vld [vmem:[#allocation4 + $0x28] sm:$0xff]
    %v4464 = vld [vmem:[#allocation4 + $0x30] sm:$0xff]
    %v4465 = vld [vmem:[#allocation4 + $0x38] sm:$0xff]
    %v4466 = vld [vmem:[#allocation4 + $0x40] sm:$0xff]
    %v4467 = vld [vmem:[#allocation4 + $0x48] sm:$0xff]
    %v4468 = vld [vmem:[#allocation4 + $0x50] sm:$0xff]
    %v4469 = vld [vmem:[#allocation4 + $0x58] sm:$0xff]
    %v4470 = vld [vmem:[#allocation4 + $0x60] sm:$0x1]
    %v4471 = vld [vmem:[#allocation4 + $0x68] sm:$0x1]
    %v4472 = vld [vmem:[#allocation4 + $0x70] sm:$0x1]
    %v4473 = vld [vmem:[#allocation4 + $0x78] sm:$0x1]
    %v4475 = vsel %vm231, %v4454, 0
    %v4478 = vsel %vm256, %v4470, 0
    %v4481 = vsel %vm256, %v4471, 0
    %v4484 = vsel %vm256, %v4472, 0
    %v4487 = vsel %vm256, %v4473, 0
    %4489 = vmatpush.msra.mxu0 0.0
    %4490 = vmatpush.msra.mxu0 0.0
    %4491 = vmatpush.msra.mxu0 0.0
    %4492 = vmatpush.msra.mxu0 0.0
    %4493 = vmatpush.msra.mxu0 0.0
    %4494 = vmatpush.msra.mxu0 0.0
    %4495 = vmatpush.msra.mxu0 0.0
    %4496 = vmatpush.msra.mxu0 0.0
    %4497 = vmatpush.msra.mxu0 0.0
    %4498 = vmatpush.msra.mxu0 0.0
    %4499 = vmatpush.msra.mxu0 0.0
    %4500 = vmatpush.msra.mxu0 0.0
    %4501 = vmatpush.msra.mxu0 %v4478
    %4502 = vmatpush.msra.mxu0 %v4466
    %4503 = vmatpush.msra.mxu0 %v4462
    %4504 = vmatpush.msra.mxu0 %v4458
    %4505 = vmatmul.f32.gmra.mxu0 %v4475
    %v4506 = vpop.f32.mrf.mxu0
    %v4507 = vadd.f32 0.0, %v4506
    %4508 = vdwg.mxu0
    %4509 = vmatpush.msra.mxu0 0.0
    %4510 = vmatpush.msra.mxu0 0.0
    %4511 = vmatpush.msra.mxu0 0.0
    %4512 = vmatpush.msra.mxu0 0.0
    %4513 = vmatpush.msra.mxu0 0.0
    %4514 = vmatpush.msra.mxu0 0.0
    %4515 = vmatpush.msra.mxu0 0.0
    %4516 = vmatpush.msra.mxu0 0.0
    %4517 = vmatpush.msra.mxu0 0.0
    %4518 = vmatpush.msra.mxu0 0.0
    %4519 = vmatpush.msra.mxu0 0.0
    %4520 = vmatpush.msra.mxu0 0.0
    %4521 = vmatpush.msra.mxu0 %v4481
    %4522 = vmatpush.msra.mxu0 %v4467
    %4523 = vmatpush.msra.mxu0 %v4463
    %4524 = vmatpush.msra.mxu0 %v4459
    %4525 = vmatmul.f32.gmra.mxu0 %v4475
    %v4526 = vpop.f32.mrf.mxu0
    %v4527 = vadd.f32 0.0, %v4526
    %4528 = vdwg.mxu0
    %4529 = vmatpush.msra.mxu0 0.0
    %4530 = vmatpush.msra.mxu0 0.0
    %4531 = vmatpush.msra.mxu0 0.0
    %4532 = vmatpush.msra.mxu0 0.0
    %4533 = vmatpush.msra.mxu0 0.0
    %4534 = vmatpush.msra.mxu0 0.0
    %4535 = vmatpush.msra.mxu0 0.0
    %4536 = vmatpush.msra.mxu0 0.0
    %4537 = vmatpush.msra.mxu0 0.0
    %4538 = vmatpush.msra.mxu0 0.0
    %4539 = vmatpush.msra.mxu0 0.0
    %4540 = vmatpush.msra.mxu0 0.0
    %4541 = vmatpush.msra.mxu0 %v4484
    %4542 = vmatpush.msra.mxu0 %v4468
    %4543 = vmatpush.msra.mxu0 %v4464
    %4544 = vmatpush.msra.mxu0 %v4460
    %4545 = vmatmul.f32.gmra.mxu0 %v4475
    %v4546 = vpop.f32.mrf.mxu0
    %v4547 = vadd.f32 0.0, %v4546
    %4548 = vdwg.mxu0
    %4549 = vmatpush.msra.mxu0 0.0
    %4550 = vmatpush.msra.mxu0 0.0
    %4551 = vmatpush.msra.mxu0 0.0
    %4552 = vmatpush.msra.mxu0 0.0
    %4553 = vmatpush.msra.mxu0 0.0
    %4554 = vmatpush.msra.mxu0 0.0
    %4555 = vmatpush.msra.mxu0 0.0
    %4556 = vmatpush.msra.mxu0 0.0
    %4557 = vmatpush.msra.mxu0 0.0
    %4558 = vmatpush.msra.mxu0 0.0
    %4559 = vmatpush.msra.mxu0 0.0
    %4560 = vmatpush.msra.mxu0 0.0
    %4561 = vmatpush.msra.mxu0 %v4487
    %4562 = vmatpush.msra.mxu0 %v4469
    %4563 = vmatpush.msra.mxu0 %v4465
    %4564 = vmatpush.msra.mxu0 %v4461
    %4565 = vmatmul.f32.gmra.mxu0 %v4475
    %v4566 = vpop.f32.mrf.mxu0
    %v4567 = vadd.f32 0.0, %v4566
    %4568 = vdwg.mxu0
    %v4569 = vadd.f32 %v1562, %v4507
    %v4570 = vadd.f32 %v1582, %v4527
    %v4571 = vadd.f32 %v1602, %v4547
    %v4572 = vadd.f32 %v1622, %v4567
    %v4573 = vld [vmem:[#allocation6] sm:$0xff]
    %v4574 = vld [vmem:[#allocation6 + $0x8] sm:$0xff]
    %v4575 = vld [vmem:[#allocation6 + $0x10] sm:$0xff]
    %v4576 = vld [vmem:[#allocation6 + $0x18] sm:$0xff]
    %v4577 = vld [vmem:[#allocation6 + $0x20] sm:$0xff]
    %v4578 = vld [vmem:[#allocation6 + $0x28] sm:$0xff]
    %v4579 = vld [vmem:[#allocation6 + $0x30] sm:$0xff]
    %v4580 = vld [vmem:[#allocation6 + $0x38] sm:$0xff]
    %v4581 = vld [vmem:[#allocation6 + $0x40] sm:$0xff]
    %v4582 = vld [vmem:[#allocation6 + $0x48] sm:$0xff]
    %v4583 = vld [vmem:[#allocation6 + $0x50] sm:$0xff]
    %v4584 = vld [vmem:[#allocation6 + $0x58] sm:$0xff]
    %v4585 = vld [vmem:[#allocation6 + $0x60] sm:$0xff]
    %v4586 = vld [vmem:[#allocation6 + $0x68] sm:$0xff]
    %v4587 = vld [vmem:[#allocation6 + $0x70] sm:$0xff]
    %v4588 = vld [vmem:[#allocation6 + $0x78] sm:$0xff]
    %v4589 = vld [vmem:[#allocation6 + $0x80] sm:$0xff]
    %v4590 = vld [vmem:[#allocation6 + $0x88] sm:$0xff]
    %v4591 = vld [vmem:[#allocation6 + $0x90] sm:$0xff]
    %v4592 = vld [vmem:[#allocation6 + $0x98] sm:$0xff]
    %v4593 = vld [vmem:[#allocation6 + $0xa0] sm:$0xff]
    %v4594 = vld [vmem:[#allocation6 + $0xa8] sm:$0xff]
    %v4595 = vld [vmem:[#allocation6 + $0xb0] sm:$0xff]
    %v4596 = vld [vmem:[#allocation6 + $0xb8] sm:$0xff]
    %v4597 = vld [vmem:[#allocation6 + $0xc0] sm:$0xff]
    %v4598 = vld [vmem:[#allocation6 + $0xc8] sm:$0xff]
    %v4599 = vld [vmem:[#allocation6 + $0xd0] sm:$0xff]
    %v4600 = vld [vmem:[#allocation6 + $0xd8] sm:$0xff]
    %v4601 = vld [vmem:[#allocation6 + $0xe0] sm:$0xff]
    %v4602 = vld [vmem:[#allocation6 + $0xe8] sm:$0xff]
    %v4603 = vld [vmem:[#allocation6 + $0xf0] sm:$0xff]
    %v4604 = vld [vmem:[#allocation6 + $0xf8] sm:$0xff]
    %v4605 = vld [vmem:[#allocation6 + $0x100] sm:$0xff]
    %v4606 = vld [vmem:[#allocation6 + $0x108] sm:$0xff]
    %v4607 = vld [vmem:[#allocation6 + $0x110] sm:$0xff]
    %v4608 = vld [vmem:[#allocation6 + $0x118] sm:$0xff]
    %v4609 = vld [vmem:[#allocation6 + $0x120] sm:$0xff]
    %v4610 = vld [vmem:[#allocation6 + $0x128] sm:$0xff]
    %v4611 = vld [vmem:[#allocation6 + $0x130] sm:$0xff]
    %v4612 = vld [vmem:[#allocation6 + $0x138] sm:$0xff]
    %v4613 = vld [vmem:[#allocation6 + $0x140] sm:$0xff]
    %v4614 = vld [vmem:[#allocation6 + $0x148] sm:$0xff]
    %v4615 = vld [vmem:[#allocation6 + $0x150] sm:$0xff]
    %v4616 = vld [vmem:[#allocation6 + $0x158] sm:$0xff]
    %v4617 = vld [vmem:[#allocation6 + $0x160] sm:$0xff]
    %v4618 = vld [vmem:[#allocation6 + $0x168] sm:$0xff]
    %v4619 = vld [vmem:[#allocation6 + $0x170] sm:$0xff]
    %v4620 = vld [vmem:[#allocation6 + $0x178] sm:$0xff]
    %v4621 = vld [vmem:[#allocation6 + $0x180] sm:$0xff]
    %v4622 = vld [vmem:[#allocation6 + $0x188] sm:$0xff]
    %v4623 = vld [vmem:[#allocation6 + $0x190] sm:$0xff]
    %v4624 = vld [vmem:[#allocation6 + $0x198] sm:$0xff]
    %v4625 = vld [vmem:[#allocation6 + $0x1a0] sm:$0xff]
    %v4626 = vld [vmem:[#allocation6 + $0x1a8] sm:$0xff]
    %v4627 = vld [vmem:[#allocation6 + $0x1b0] sm:$0xff]
    %v4628 = vld [vmem:[#allocation6 + $0x1b8] sm:$0xff]
    %v4629 = vld [vmem:[#allocation6 + $0x1c0] sm:$0xff]
    %v4630 = vld [vmem:[#allocation6 + $0x1c8] sm:$0xff]
    %v4631 = vld [vmem:[#allocation6 + $0x1d0] sm:$0xff]
    %v4632 = vld [vmem:[#allocation6 + $0x1d8] sm:$0xff]
    %v4633 = vld [vmem:[#allocation6 + $0x1e0] sm:$0xff]
    %v4634 = vld [vmem:[#allocation6 + $0x1e8] sm:$0xff]
    %v4635 = vld [vmem:[#allocation6 + $0x1f0] sm:$0xff]
    %v4636 = vld [vmem:[#allocation6 + $0x1f8] sm:$0xff]
    %4637 = vmatpush.msra.mxu0 %v4633
    %4638 = vmatpush.msra.mxu0 %v4629
    %4639 = vmatpush.msra.mxu0 %v4625
    %4640 = vmatpush.msra.mxu0 %v4621
    %4641 = vmatpush.msra.mxu0 %v4617
    %4642 = vmatpush.msra.mxu0 %v4613
    %4643 = vmatpush.msra.mxu0 %v4609
    %4644 = vmatpush.msra.mxu0 %v4605
    %4645 = vmatpush.msra.mxu0 %v4601
    %4646 = vmatpush.msra.mxu0 %v4597
    %4647 = vmatpush.msra.mxu0 %v4593
    %4648 = vmatpush.msra.mxu0 %v4589
    %4649 = vmatpush.msra.mxu0 %v4585
    %4650 = vmatpush.msra.mxu0 %v4581
    %4651 = vmatpush.msra.mxu0 %v4577
    %4652 = vmatpush.msra.mxu0 %v4573
    %4653 = vmatmul.f32.gmra.mxu0 %v4333
    %v4654 = vpop.f32.mrf.mxu0
    %v4655 = vadd.f32 0.0, %v4654
    %4656 = vdwg.mxu0
    %4657 = vmatpush.msra.mxu0 %v4634
    %4658 = vmatpush.msra.mxu0 %v4630
    %4659 = vmatpush.msra.mxu0 %v4626
    %4660 = vmatpush.msra.mxu0 %v4622
    %4661 = vmatpush.msra.mxu0 %v4618
    %4662 = vmatpush.msra.mxu0 %v4614
    %4663 = vmatpush.msra.mxu0 %v4610
    %4664 = vmatpush.msra.mxu0 %v4606
    %4665 = vmatpush.msra.mxu0 %v4602
    %4666 = vmatpush.msra.mxu0 %v4598
    %4667 = vmatpush.msra.mxu0 %v4594
    %4668 = vmatpush.msra.mxu0 %v4590
    %4669 = vmatpush.msra.mxu0 %v4586
    %4670 = vmatpush.msra.mxu0 %v4582
    %4671 = vmatpush.msra.mxu0 %v4578
    %4672 = vmatpush.msra.mxu0 %v4574
    %4673 = vmatmul.f32.gmra.mxu0 %v4333
    %v4674 = vpop.f32.mrf.mxu0
    %v4675 = vadd.f32 0.0, %v4674
    %4676 = vdwg.mxu0
    %4677 = vmatpush.msra.mxu0 %v4635
    %4678 = vmatpush.msra.mxu0 %v4631
    %4679 = vmatpush.msra.mxu0 %v4627
    %4680 = vmatpush.msra.mxu0 %v4623
    %4681 = vmatpush.msra.mxu0 %v4619
    %4682 = vmatpush.msra.mxu0 %v4615
    %4683 = vmatpush.msra.mxu0 %v4611
    %4684 = vmatpush.msra.mxu0 %v4607
    %4685 = vmatpush.msra.mxu0 %v4603
    %4686 = vmatpush.msra.mxu0 %v4599
    %4687 = vmatpush.msra.mxu0 %v4595
    %4688 = vmatpush.msra.mxu0 %v4591
    %4689 = vmatpush.msra.mxu0 %v4587
    %4690 = vmatpush.msra.mxu0 %v4583
    %4691 = vmatpush.msra.mxu0 %v4579
    %4692 = vmatpush.msra.mxu0 %v4575
    %4693 = vmatmul.f32.gmra.mxu0 %v4333
    %v4694 = vpop.f32.mrf.mxu0
    %v4695 = vadd.f32 0.0, %v4694
    %4696 = vdwg.mxu0
    %4697 = vmatpush.msra.mxu0 %v4636
    %4698 = vmatpush.msra.mxu0 %v4632
    %4699 = vmatpush.msra.mxu0 %v4628
    %4700 = vmatpush.msra.mxu0 %v4624
    %4701 = vmatpush.msra.mxu0 %v4620
    %4702 = vmatpush.msra.mxu0 %v4616
    %4703 = vmatpush.msra.mxu0 %v4612
    %4704 = vmatpush.msra.mxu0 %v4608
    %4705 = vmatpush.msra.mxu0 %v4604
    %4706 = vmatpush.msra.mxu0 %v4600
    %4707 = vmatpush.msra.mxu0 %v4596
    %4708 = vmatpush.msra.mxu0 %v4592
    %4709 = vmatpush.msra.mxu0 %v4588
    %4710 = vmatpush.msra.mxu0 %v4584
    %4711 = vmatpush.msra.mxu0 %v4580
    %4712 = vmatpush.msra.mxu0 %v4576
    %4713 = vmatmul.f32.gmra.mxu0 %v4333
    %v4714 = vpop.f32.mrf.mxu0
    %v4715 = vadd.f32 0.0, %v4714
    %4716 = vdwg.mxu0
    %v4717 = vadd.f32 %v4569, %v4655
    %v4718 = vadd.f32 %v4570, %v4675
    %v4719 = vadd.f32 %v4571, %v4695
    %v4720 = vadd.f32 %v4572, %v4715
    %v4721 = vmul.f32 %v4717, 0.5
    %v4722 = vtanh.pop %v4721
    %v4723 = vadd.f32 %v4722, 1.0
    %v4724 = vmul.f32 %v4723, 0.5
    %v4725 = vmul.f32 %v4718, 0.5
    %v4726 = vtanh.pop %v4725
    %v4727 = vadd.f32 %v4726, 1.0
    %v4728 = vmul.f32 %v4727, 0.5
    %v4729 = vtanh.pop %v4719
    %v4730 = vmul.f32 %v4720, 0.5
    %v4731 = vtanh.pop %v4730
    %v4732 = vadd.f32 %v4731, 1.0
    %v4733 = vmul.f32 %v4732, 0.5
    %v4734 = vmul.f32 %v4728, %v4331
    %v4735 = vmul.f32 %v4724, %v4729
    %v4736 = vadd.f32 %v4734, %v4735
    %v4737 = vtanh.pop %v4736
    %v4738 = vmul.f32 %v4733, %v4737
    %v4739 = vld [vmem:[#allocation7] sm:$0xff]
    %v4740 = vld [vmem:[#allocation7 + $0x8] sm:$0xff]
    %v4741 = vld [vmem:[#allocation7 + $0x10] sm:$0xff]
    %v4742 = vld [vmem:[#allocation7 + $0x18] sm:$0xff]
    %v4743 = vld [vmem:[#allocation7 + $0x20] sm:$0xff]
    %v4744 = vld [vmem:[#allocation7 + $0x28] sm:$0xff]
    %v4745 = vld [vmem:[#allocation7 + $0x30] sm:$0xff]
    %v4746 = vld [vmem:[#allocation7 + $0x38] sm:$0xff]
    %v4747 = vld [vmem:[#allocation7 + $0x40] sm:$0xff]
    %v4748 = vld [vmem:[#allocation7 + $0x48] sm:$0xff]
    %v4749 = vld [vmem:[#allocation7 + $0x50] sm:$0xff]
    %v4750 = vld [vmem:[#allocation7 + $0x58] sm:$0xff]
    %v4751 = vld [vmem:[#allocation7 + $0x60] sm:$0xff]
    %v4752 = vld [vmem:[#allocation7 + $0x68] sm:$0xff]
    %v4753 = vld [vmem:[#allocation7 + $0x70] sm:$0xff]
    %v4754 = vld [vmem:[#allocation7 + $0x78] sm:$0xff]
    %v4755 = vld [vmem:[#allocation9] sm:$0x1]
    %v4757 = vperm.slane %v4755, 0
    %4759 = vmatpush.msra.mxu0 %v4754
    %4760 = vmatpush.msra.mxu0 %v4753
    %4761 = vmatpush.msra.mxu0 %v4752
    %4762 = vmatpush.msra.mxu0 %v4751
    %4763 = vmatpush.msra.mxu0 %v4750
    %4764 = vmatpush.msra.mxu0 %v4749
    %4765 = vmatpush.msra.mxu0 %v4748
    %4766 = vmatpush.msra.mxu0 %v4747
    %4767 = vmatpush.msra.mxu0 %v4746
    %4768 = vmatpush.msra.mxu0 %v4745
    %4769 = vmatpush.msra.mxu0 %v4744
    %4770 = vmatpush.msra.mxu0 %v4743
    %4771 = vmatpush.msra.mxu0 %v4742
    %4772 = vmatpush.msra.mxu0 %v4741
    %4773 = vmatpush.msra.mxu0 %v4740
    %4774 = vmatpush.msra.mxu0 %v4739
    %4775 = vmatmul.f32.gmra.mxu0 %v4738
    %v4776 = vpop.f32.mrf.mxu0
    %v4777 = vadd.f32 %v4757, %v4776
    %4778 = vdwg.mxu0
    %v4779 = vtanh.pop %v4777
    %v4780 = vld [vmem:[#allocation10] sm:$0xff]
    %v4781 = vld [vmem:[#allocation10 + $0x8] sm:$0xff]
    %v4782 = vld [vmem:[#allocation10 + $0x10] sm:$0xff]
    %v4783 = vld [vmem:[#allocation10 + $0x18] sm:$0xff]
    %v4784 = vld [vmem:[#allocation10 + $0x20] sm:$0xff]
    %v4785 = vld [vmem:[#allocation10 + $0x28] sm:$0xff]
    %v4786 = vld [vmem:[#allocation10 + $0x30] sm:$0xff]
    %v4787 = vld [vmem:[#allocation10 + $0x38] sm:$0xff]
    %v4788 = vld [vmem:[#allocation10 + $0x40] sm:$0xff]
    %v4789 = vld [vmem:[#allocation10 + $0x48] sm:$0xff]
    %v4790 = vld [vmem:[#allocation10 + $0x50] sm:$0xff]
    %v4791 = vld [vmem:[#allocation10 + $0x58] sm:$0xff]
    %v4792 = vld [vmem:[#allocation10 + $0x60] sm:$0xff]
    %v4793 = vld [vmem:[#allocation10 + $0x68] sm:$0xff]
    %v4794 = vld [vmem:[#allocation10 + $0x70] sm:$0xff]
    %v4795 = vld [vmem:[#allocation10 + $0x78] sm:$0xff]
    %v4796 = vld [vmem:[#allocation12] sm:$0x1]
    %v4798 = vperm.slane %v4796, 0
    %4800 = vmatpush.msra.mxu0 %v4795
    %4801 = vmatpush.msra.mxu0 %v4794
    %4802 = vmatpush.msra.mxu0 %v4793
    %4803 = vmatpush.msra.mxu0 %v4792
    %4804 = vmatpush.msra.mxu0 %v4791
    %4805 = vmatpush.msra.mxu0 %v4790
    %4806 = vmatpush.msra.mxu0 %v4789
    %4807 = vmatpush.msra.mxu0 %v4788
    %4808 = vmatpush.msra.mxu0 %v4787
    %4809 = vmatpush.msra.mxu0 %v4786
    %4810 = vmatpush.msra.mxu0 %v4785
    %4811 = vmatpush.msra.mxu0 %v4784
    %4812 = vmatpush.msra.mxu0 %v4783
    %4813 = vmatpush.msra.mxu0 %v4782
    %4814 = vmatpush.msra.mxu0 %v4781
    %4815 = vmatpush.msra.mxu0 %v4780
    %4816 = vmatmul.f32.gmra.mxu0 %v4779
    %v4817 = vpop.f32.mrf.mxu0
    %v4818 = vadd.f32 %v4798, %v4817
    %4819 = vdwg.mxu0
    %v4820 = vtanh.pop %v4818
    %v4821 = vld [vmem:[%s16] sm:$0xff]
    %v4822 = vld [vmem:[%s16 + $0x8] sm:$0xff]
    %v4823 = vld [vmem:[%s16 + $0x10] sm:$0xff]
    %v4824 = vld [vmem:[%s16 + $0x18] sm:$0xff]
    %v4825 = vld [vmem:[%s16 + $0x20] sm:$0xff]
    %v4826 = vld [vmem:[%s16 + $0x28] sm:$0xff]
    %v4827 = vld [vmem:[%s16 + $0x30] sm:$0xff]
    %v4828 = vld [vmem:[%s16 + $0x38] sm:$0xff]
    %v4829 = vld [vmem:[%s16 + $0x40] sm:$0xff]
    %v4830 = vld [vmem:[%s16 + $0x48] sm:$0xff]
    %v4831 = vld [vmem:[%s16 + $0x50] sm:$0xff]
    %v4832 = vld [vmem:[%s16 + $0x58] sm:$0xff]
    %v4833 = vld [vmem:[%s16 + $0x60] sm:$0xff]
    %v4834 = vld [vmem:[%s16 + $0x68] sm:$0xff]
    %v4835 = vld [vmem:[%s16 + $0x70] sm:$0xff]
    %v4836 = vld [vmem:[%s16 + $0x78] sm:$0xff]
    %v4837 = vld [vmem:[%s17] sm:$0x1]
    %v4839 = vperm.slane %v4837, 0
    %4841 = vmatpush.msra.mxu0 %v4836
    %4842 = vmatpush.msra.mxu0 %v4835
    %4843 = vmatpush.msra.mxu0 %v4834
    %4844 = vmatpush.msra.mxu0 %v4833
    %4845 = vmatpush.msra.mxu0 %v4832
    %4846 = vmatpush.msra.mxu0 %v4831
    %4847 = vmatpush.msra.mxu0 %v4830
    %4848 = vmatpush.msra.mxu0 %v4829
    %4849 = vmatpush.msra.mxu0 %v4828
    %4850 = vmatpush.msra.mxu0 %v4827
    %4851 = vmatpush.msra.mxu0 %v4826
    %4852 = vmatpush.msra.mxu0 %v4825
    %4853 = vmatpush.msra.mxu0 %v4824
    %4854 = vmatpush.msra.mxu0 %v4823
    %4855 = vmatpush.msra.mxu0 %v4822
    %4856 = vmatpush.msra.mxu0 %v4821
    %4857 = vmatmul.f32.gmra.mxu0 %v4820
    %v4858 = vpop.f32.mrf.mxu0
    %v4859 = vadd.f32 %v4839, %v4858
    %4860 = vdwg.mxu0
    %s4861 = scalar_lea.vmem %s22, 56
    %4862 = vst.msk [vmem:[%s4861] sm:$0xff] %vm231, %v4859
    %v4863 = vld [vmem:[%s22] sm:$0xff]
    %v4864 = vld [vmem:[%s22 + $0x8] sm:$0xff]
    %v4865 = vld [vmem:[%s22 + $0x10] sm:$0xff]
    %v4866 = vld [vmem:[%s22 + $0x18] sm:$0xff]
    %v4867 = vld [vmem:[%s22 + $0x20] sm:$0xff]
    %v4868 = vld [vmem:[%s22 + $0x28] sm:$0xff]
    %v4869 = vld [vmem:[%s22 + $0x30] sm:$0xff]
    %v4870 = vld [vmem:[%s22 + $0x38] sm:$0xff]
    %v4871 = vld [vmem:[#allocation13] sm:$0xff]
    %v4872 = vld [vmem:[#allocation13 + $0x8] sm:$0xff]
    %v4873 = vld [vmem:[#allocation13 + $0x10] sm:$0xff]
    %v4874 = vld [vmem:[#allocation13 + $0x18] sm:$0x1]
    %v4875 = vld [vmem:[%s19] sm:$0x1]
    %v4877 = vperm.slane %v4875, 0
    %v4880 = vsel %vm231, %v4863, 0
    %v4883 = vsel %vm231, %v4864, 0
    %v4886 = vsel %vm231, %v4865, 0
    %v4889 = vsel %vm231, %v4866, 0
    %v4892 = vsel %vm231, %v4867, 0
    %v4895 = vsel %vm231, %v4868, 0
    %v4898 = vsel %vm231, %v4869, 0
    %v4901 = vsel %vm231, %v4870, 0
    %v4904 = vsel %vm256, %v4874, 0
    %4906 = vmatpush.msra.mxu0 0.0
    %4907 = vmatpush.msra.mxu0 0.0
    %4908 = vmatpush.msra.mxu0 0.0
    %4909 = vmatpush.msra.mxu0 0.0
    %4910 = vmatpush.msra.mxu0 0.0
    %4911 = vmatpush.msra.mxu0 0.0
    %4912 = vmatpush.msra.mxu0 0.0
    %4913 = vmatpush.msra.mxu0 0.0
    %4914 = vmatpush.msra.mxu0 0.0
    %4915 = vmatpush.msra.mxu0 0.0
    %4916 = vmatpush.msra.mxu0 0.0
    %4917 = vmatpush.msra.mxu0 0.0
    %4918 = vmatpush.msra.mxu0 %v4904
    %4919 = vmatpush.msra.mxu0 %v4873
    %4920 = vmatpush.msra.mxu0 %v4872
    %4921 = vmatpush.msra.mxu0 %v4871
    %4922 = vmatmul.f32.gmra.mxu0 %v4880
    %v4923 = vpop.f32.mrf.mxu0
    %v4924 = vadd.f32 %v4877, %v4923
    %4925 = vmatmul.f32.gmra.mxu0 %v4883
    %v4926 = vpop.f32.mrf.mxu0
    %v4927 = vadd.f32 %v4877, %v4926
    %4928 = vmatmul.f32.gmra.mxu0 %v4886
    %v4929 = vpop.f32.mrf.mxu0
    %v4930 = vadd.f32 %v4877, %v4929
    %4931 = vmatmul.f32.gmra.mxu0 %v4889
    %v4932 = vpop.f32.mrf.mxu0
    %v4933 = vadd.f32 %v4877, %v4932
    %4934 = vmatmul.f32.gmra.mxu0 %v4892
    %v4935 = vpop.f32.mrf.mxu0
    %v4936 = vadd.f32 %v4877, %v4935
    %4937 = vmatmul.f32.gmra.mxu0 %v4895
    %v4938 = vpop.f32.mrf.mxu0
    %v4939 = vadd.f32 %v4877, %v4938
    %4940 = vmatmul.f32.gmra.mxu0 %v4898
    %v4941 = vpop.f32.mrf.mxu0
    %v4942 = vadd.f32 %v4877, %v4941
    %4943 = vmatmul.f32.gmra.mxu0 %v4901
    %v4944 = vpop.f32.mrf.mxu0
    %v4945 = vadd.f32 %v4877, %v4944
    %4946 = vdwg.mxu0
    %v4947 = vmax.f32 %v4924, 0.0
    %v4948 = vmax.f32 %v4927, 0.0
    %v4949 = vmax.f32 %v4930, 0.0
    %v4950 = vmax.f32 %v4933, 0.0
    %v4951 = vmax.f32 %v4936, 0.0
    %v4952 = vmax.f32 %v4939, 0.0
    %v4953 = vmax.f32 %v4942, 0.0
    %v4954 = vmax.f32 %v4945, 0.0
    %v4955 = vld [vmem:[%s20] sm:$0xff]
    %v4956 = vld [vmem:[%s20 + $0x8] sm:$0xff]
    %v4957 = vld [vmem:[%s20 + $0x10] sm:$0xff]
    %v4958 = vld [vmem:[%s20 + $0x18] sm:$0xff]
    %v4959 = vld [vmem:[%s20 + $0x20] sm:$0xff]
    %v4960 = vld [vmem:[%s20 + $0x28] sm:$0xff]
    %v4961 = vld [vmem:[%s20 + $0x30] sm:$0xff]
    %v4962 = vld [vmem:[%s20 + $0x38] sm:$0xff]
    %v4963 = vld [vmem:[%s20 + $0x40] sm:$0xff]
    %v4964 = vld [vmem:[%s20 + $0x48] sm:$0xff]
    %v4965 = vld [vmem:[%s20 + $0x50] sm:$0xff]
    %v4966 = vld [vmem:[%s20 + $0x58] sm:$0xff]
    %v4967 = vld [vmem:[%s20 + $0x60] sm:$0xff]
    %v4968 = vld [vmem:[%s20 + $0x68] sm:$0xff]
    %v4969 = vld [vmem:[%s20 + $0x70] sm:$0xff]
    %v4970 = vld [vmem:[%s20 + $0x78] sm:$0xff]
    %v4971 = vld [vmem:[%s21] sm:$0x1]
    %v4973 = vperm.slane %v4971, 0
    %4975 = vmatpush.msra.mxu0 %v4970
    %4976 = vmatpush.msra.mxu0 %v4969
    %4977 = vmatpush.msra.mxu0 %v4968
    %4978 = vmatpush.msra.mxu0 %v4967
    %4979 = vmatpush.msra.mxu0 %v4966
    %4980 = vmatpush.msra.mxu0 %v4965
    %4981 = vmatpush.msra.mxu0 %v4964
    %4982 = vmatpush.msra.mxu0 %v4963
    %4983 = vmatpush.msra.mxu0 %v4962
    %4984 = vmatpush.msra.mxu0 %v4961
    %4985 = vmatpush.msra.mxu0 %v4960
    %4986 = vmatpush.msra.mxu0 %v4959
    %4987 = vmatpush.msra.mxu0 %v4958
    %4988 = vmatpush.msra.mxu0 %v4957
    %4989 = vmatpush.msra.mxu0 %v4956
    %4990 = vmatpush.msra.mxu0 %v4955
    %4991 = vmatmul.f32.gmra.mxu0 %v4947
    %v4992 = vpop.f32.mrf.mxu0
    %v4993 = vadd.f32 %v4973, %v4992
    %4994 = vmatmul.f32.gmra.mxu0 %v4948
    %v4995 = vpop.f32.mrf.mxu0
    %v4996 = vadd.f32 %v4973, %v4995
    %4997 = vmatmul.f32.gmra.mxu0 %v4949
    %v4998 = vpop.f32.mrf.mxu0
    %v4999 = vadd.f32 %v4973, %v4998
    %5000 = vmatmul.f32.gmra.mxu0 %v4950
    %v5001 = vpop.f32.mrf.mxu0
    %v5002 = vadd.f32 %v4973, %v5001
    %5003 = vmatmul.f32.gmra.mxu0 %v4951
    %v5004 = vpop.f32.mrf.mxu0
    %v5005 = vadd.f32 %v4973, %v5004
    %5006 = vmatmul.f32.gmra.mxu0 %v4952
    %v5007 = vpop.f32.mrf.mxu0
    %v5008 = vadd.f32 %v4973, %v5007
    %5009 = vmatmul.f32.gmra.mxu0 %v4953
    %v5010 = vpop.f32.mrf.mxu0
    %v5011 = vadd.f32 %v4973, %v5010
    %5012 = vmatmul.f32.gmra.mxu0 %v4954
    %v5013 = vpop.f32.mrf.mxu0
    %v5014 = vadd.f32 %v4973, %v5013
    %5015 = vdwg.mxu0
    %vm5016 = vcmask 474112
    %5017 = vst.msk [vmem:[%s23] sm:$0xff] %vm5016, %v4993
    %5018 = vst.msk [vmem:[%s23 + $0x8] sm:$0xff] %vm5016, %v4996
    %5019 = vst.msk [vmem:[%s23 + $0x10] sm:$0xff] %vm5016, %v4999
    %5020 = vst.msk [vmem:[%s23 + $0x18] sm:$0xff] %vm5016, %v5002
    %5021 = vst.msk [vmem:[%s23 + $0x20] sm:$0xff] %vm5016, %v5005
    %5022 = vst.msk [vmem:[%s23 + $0x28] sm:$0xff] %vm5016, %v5008
    %5023 = vst.msk [vmem:[%s23 + $0x30] sm:$0xff] %vm5016, %v5011
    %5024 = vst.msk [vmem:[%s23 + $0x38] sm:$0xff] %vm5016, %v5014
    // Predicated region
    $region122: #{autoencoder_forward.1} parent=1 // pred_check
      _
    $region123: #{autoencoder_forward.1} parent=1 // pred_check_branch
      %5026 = sbr.rel (0) target = $region125
    $region124: #{autoencoder_forward.1} parent=1 // pred_region
      _
    $region125: #{autoencoder_forward.1} parent=1 // pred_fallthru
      _
    // Predicated region
    $region126: #{autoencoder_forward.1} parent=1 // pred_check
      _
    $region127: #{autoencoder_forward.1} parent=1 // pred_check_branch
      %5028 = sbr.rel (0) target = $region129
    $region128: #{autoencoder_forward.1} parent=1 // pred_region
      _
    $region129: #{autoencoder_forward.1} parent=1 // pred_fallthru
      _
    // Predicated region
    $region130: #{autoencoder_forward.1} parent=1 // pred_check
      _
    $region131: #{autoencoder_forward.1} parent=1 // pred_check_branch
      %5030 = sbr.rel (0) target = $region133
    $region132: #{autoencoder_forward.1} parent=1 // pred_region
      _
    $region133: #{autoencoder_forward.1} parent=1 // pred_fallthru
      _
    // Predicated region
    $region134: #{autoencoder_forward.1} parent=1 // pred_check
      _
    $region135: #{autoencoder_forward.1} parent=1 // pred_check_branch
      %5032 = sbr.rel (0) target = $region137
    $region136: #{autoencoder_forward.1} parent=1 // pred_region
      _
    $region137: #{autoencoder_forward.1} parent=1 // pred_fallthru
      _
    // Predicated region
    $region138: #{autoencoder_forward.1} parent=1 // pred_check
      _
    $region139: #{autoencoder_forward.1} parent=1 // pred_check_branch
      %5034 = sbr.rel (0) target = $region141
    $region140: #{autoencoder_forward.1} parent=1 // pred_region
      _
    $region141: #{autoencoder_forward.1} parent=1 // pred_fallthru
      _
    // Predicated region
    $region142: #{autoencoder_forward.1} parent=1 // pred_check
      _
    $region143: #{autoencoder_forward.1} parent=1 // pred_check_branch
      %5036 = sbr.rel (0) target = $region145
    $region144: #{autoencoder_forward.1} parent=1 // pred_region
      _
    $region145: #{autoencoder_forward.1} parent=1 // pred_fallthru
      _
    // Predicated region
    $region146: #{autoencoder_forward.1} parent=1 // pred_check
      _
    $region147: #{autoencoder_forward.1} parent=1 // pred_check_branch
      %5038 = sbr.rel (0) target = $region149
    $region148: #{autoencoder_forward.1} parent=1 // pred_region
      _
    $region149: #{autoencoder_forward.1} parent=1 // pred_fallthru
      _
    // Predicated region
    $region150: #{autoencoder_forward.1} parent=1 // pred_check
      _
    $region151: #{autoencoder_forward.1} parent=1 // pred_check_branch
      %5040 = sbr.rel (0) target = $region153
    $region152: #{autoencoder_forward.1} parent=1 // pred_region
      _
    $region153: #{autoencoder_forward.1} parent=1 // pred_fallthru
      _
    // Predicated region
    $region154: #{autoencoder_forward.1} parent=1 // pred_check
      _
    $region155: #{autoencoder_forward.1} parent=1 // pred_check_branch
      %5042 = sbr.rel (0) target = $region157
    $region156: #{autoencoder_forward.1} parent=1 // pred_region
      _
    $region157: #{autoencoder_forward.1} parent=1 // pred_fallthru
      _
    // Predicated region
    $region158: #{autoencoder_forward.1} parent=1 // pred_check
      _
    $region159: #{autoencoder_forward.1} parent=1 // pred_check_branch
      %5044 = sbr.rel (0) target = $region161
    $region160: #{autoencoder_forward.1} parent=1 // pred_region
      _
    $region161: #{autoencoder_forward.1} parent=1 // pred_fallthru
      _
    %5045 = vsyncpa [#allocation3], 1
    %5046 = vsyncpa [#allocation5], 1
    %5047 = vsyncpa [#allocation8], 1
    %5048 = vsyncpa [#allocation11], 1
    %5049 = vsyncpa [#allocation14], 1

</llo_original>
